<compile_context>
chip_gen: v7x
topology: tpu7x:2x2x1
jax: 0.10.0
libtpu: 0.0.40
codegen_flags: <defaults>
</compile_context>

<pallas_src>
import math
import jax
import jax.numpy as jnp
from jax.experimental import pallas as pl
from jax.experimental.pallas import tpu as pltpu

HIDDEN = 1000          # logical hidden size (nn.Linear(num_features, 1000))
HIDDEN_PAD = 1024      # lane-dense padded hidden size
EMBED_PAD = 128        # lane-dense padded embedding size
_MEGACORE_MIN_BATCH = 256   # force >=2 grid steps above this batch size


def _round_up(x, m):
    return ((x + m - 1) // m) * m


def _cdiv(a, b):
    return -(-a // b)


def _choose_tile(batch, tile_m):
    """Balanced batch tiling: minimal padding waste, >=2 tiles for big batches."""
    n_tiles = _cdiv(batch, tile_m)
    if batch >= _MEGACORE_MIN_BATCH:
        n_tiles = max(2, n_tiles)       # let megacore shard the batch axis
    tm = _round_up(_cdiv(batch, n_tiles), 8)
    padded_batch = _round_up(batch, tm)
    return tm, padded_batch


def _autoenc_kernel(x_ref,
                    ew1_ref, eb1_ref, ew2_ref, eb2_ref, ew3_ref, eb3_ref,
                    dw1_ref, db1_ref, dw2_ref, db2_ref, dw3_ref, db3_ref,
                    code_ref, out_ref):
    """Fused encoder + decoder for one batch tile.

    Weights are bf16, activations cast to bf16 right before each MXU matmul;
    accumulation, bias adds and the sigmoid are f32.
    """
    bf16 = jnp.bfloat16
    f32 = jnp.float32

    x = x_ref[...].astype(bf16)

    # --- encode (activation = identity, matching the module default) ---
    h = jnp.dot(x, ew1_ref[...], preferred_element_type=f32) + eb1_ref[...]
    h = jnp.dot(h.astype(bf16), ew2_ref[...], preferred_element_type=f32) + eb2_ref[...]
    code = jnp.dot(h.astype(bf16), ew3_ref[...], preferred_element_type=f32) + eb3_ref[...]
    code_bf = code.astype(bf16)
    code_ref[...] = code_bf           # lane-dense (tm, EMBED_PAD) bf16 slab

    # --- decode ---
    h = jnp.dot(code_bf, dw1_ref[...], preferred_element_type=f32) + db1_ref[...]
    h = jnp.dot(h.astype(bf16), dw2_ref[...], preferred_element_type=f32) + db2_ref[...]
    y = jnp.dot(h.astype(bf16), dw3_ref[...], preferred_element_type=f32) + db3_ref[...]
    out_ref[...] = jax.nn.sigmoid(y)  # lane-dense (tm, NF_OUT_PAD) f32 slab


def net_forward(x, prepared, *, embed_size=2, tile_m=1024):
    """x: (batch, num_features) f32. prepared: dict from prepare_params()."""
    batch, num_features = x.shape
    nf_out_pad = _round_up(num_features, 128)   # lane-dense output width

    tm, padded_batch = _choose_tile(batch, tile_m)
    if padded_batch != batch:
        x = jnp.pad(x, ((0, padded_batch - batch), (0, 0)))
    grid = (padded_batch // tm,)

    weights = (prepared["ew1"], prepared["eb1"],
               prepared["ew2"], prepared["eb2"],
               prepared["ew3"], prepared["eb3"],
               prepared["dw1"], prepared["db1"],
               prepared["dw2"], prepared["db2"],
               prepared["dw3"], prepared["db3"])

    def tiled_spec(cols):
        return pl.BlockSpec((tm, cols), lambda i: (i, 0))

    def resident_spec(arr):
        # Full block, constant index -> DMA'd once, VMEM-resident across grid
        # steps.  Single-buffered: re-DMA never happens, so a second buffer is
        # pure VMEM waste.
        return pl.BlockSpec(arr.shape, lambda i: (0, 0),
                            pipeline_mode=pl.Buffered(1))

    in_specs = [tiled_spec(num_features)] + [resident_spec(w) for w in weights]
    out_specs = (tiled_spec(EMBED_PAD), tiled_spec(nf_out_pad))

    # Advisory cost hint for the XLA scheduler.
    flops = 2 * padded_batch * (num_features * HIDDEN_PAD
                                + HIDDEN_PAD * HIDDEN_PAD
                                + HIDDEN_PAD * EMBED_PAD
                                + EMBED_PAD * HIDDEN_PAD
                                + HIDDEN_PAD * HIDDEN_PAD
                                + HIDDEN_PAD * nf_out_pad)
    bytes_accessed = (sum(int(w.size) * w.dtype.itemsize for w in weights)
                      + x.size * 4                       # input (f32)
                      + padded_batch * EMBED_PAD * 2     # code  (bf16)
                      + padded_batch * nf_out_pad * 4)   # output (f32)
    cost = pl.CostEstimate(flops=flops,
                           transcendentals=padded_batch * nf_out_pad,
                           bytes_accessed=bytes_accessed)

    code_pad, output = pl.pallas_call(
        _autoenc_kernel,
        grid=grid,
        in_specs=in_specs,
        out_specs=out_specs,
        out_shape=(jax.ShapeDtypeStruct((padded_batch, EMBED_PAD), jnp.bfloat16),
                   jax.ShapeDtypeStruct((padded_batch, nf_out_pad), jnp.float32)),
        compiler_params=pltpu.CompilerParams(
            dimension_semantics=("parallel",),
            vmem_limit_bytes=32 << 20),
        cost_estimate=cost,
    )(x, *weights)

    return {"code": code_pad[:batch, :embed_size].astype(jnp.float32),
            "output": output[:batch, :num_features]}


def _xavier_uniform(key, fan_in, fan_out, dtype=jnp.float32):
    # torch.nn.init.xavier_uniform_ with gain=1: U(-a, a), a = sqrt(6/(fan_in+fan_out))
    a = math.sqrt(6.0 / (fan_in + fan_out))
    return jax.random.uniform(key, (fan_in, fan_out), dtype, minval=-a, maxval=a)


def init_net_params(key, num_features, embed_size=2, hidden=HIDDEN):
    """f32 params at logical sizes, matching the PyTorch init
    (xavier_uniform_ weights, bias filled with 0.01). Stored as (in, out)."""
    keys = jax.random.split(key, 6)
    bias = lambda n: jnp.full((1, n), 0.01, dtype=jnp.float32)
    return {
        # encoder
        "ew1": _xavier_uniform(keys[0], num_features, hidden), "eb1": bias(hidden),
        "ew2": _xavier_uniform(keys[1], hidden, hidden),       "eb2": bias(hidden),
        "ew3": _xavier_uniform(keys[2], hidden, embed_size),   "eb3": bias(embed_size),
        # decoder
        "dw1": _xavier_uniform(keys[3], embed_size, hidden),   "db1": bias(hidden),
        "dw2": _xavier_uniform(keys[4], hidden, hidden),       "db2": bias(hidden),
        "dw3": _xavier_uniform(keys[5], hidden, num_features), "db3": bias(num_features),
    }


def prepare_params(params, num_features, embed_size=2):
    """Zero-pad hidden->1024, embed->128 and the decoder output dim -> multiple
    of 128; cast weights to bf16 (biases stay f32).

    The zero padding is exact under the identity activation: padded lanes stay
    identically zero through the whole network (padded output lanes become
    sigmoid(0)=0.5 and are sliced off in the wrapper).
    """
    nf_out_pad = _round_up(num_features, 128)

    def padw(w, rows, cols):
        r, c = w.shape
        return jnp.pad(w, ((0, rows - r), (0, cols - c))).astype(jnp.bfloat16)

    def padb(b, cols):
        return jnp.pad(b, ((0, 0), (0, cols - b.shape[1]))).astype(jnp.float32)

    return {
        "ew1": padw(params["ew1"], num_features, HIDDEN_PAD), "eb1": padb(params["eb1"], HIDDEN_PAD),
        "ew2": padw(params["ew2"], HIDDEN_PAD, HIDDEN_PAD),   "eb2": padb(params["eb2"], HIDDEN_PAD),
        "ew3": padw(params["ew3"], HIDDEN_PAD, EMBED_PAD),    "eb3": padb(params["eb3"], EMBED_PAD),
        "dw1": padw(params["dw1"], EMBED_PAD, HIDDEN_PAD),    "db1": padb(params["db1"], HIDDEN_PAD),
        "dw2": padw(params["dw2"], HIDDEN_PAD, HIDDEN_PAD),   "db2": padb(params["db2"], HIDDEN_PAD),
        "dw3": padw(params["dw3"], HIDDEN_PAD, nf_out_pad),   "db3": padb(params["db3"], nf_out_pad),
    }


if __name__ == "__main__":
    batch = 8
    num_features = 32
    embed_size = 2

    root = jax.random.PRNGKey(0)
    k_params, k_x = jax.random.split(root)

    params = init_net_params(k_params, num_features, embed_size)
    prepared = prepare_params(params, num_features, embed_size)
    x = jax.random.normal(k_x, (batch, num_features), dtype=jnp.float32)

    result = net_forward(x, prepared, embed_size=embed_size)
    jax.block_until_ready(result)

    # Plain-JAX reference using the same prepared (bf16, padded) params so the
    # comparison is apples-to-apples with the in-kernel bf16 MXU math
    # (bf16 weight storage is an accuracy trade-off vs the f32 PyTorch module).
    def ref(x, p):
        bf = lambda a: a.astype(jnp.bfloat16)

        def lin(h, w, b):
            return jnp.dot(bf(h), w, preferred_element_type=jnp.float32) + b

        code = lin(lin(lin(x, p["ew1"], p["eb1"]), p["ew2"], p["eb2"]),
                   p["ew3"], p["eb3"])
        code_bf = code.astype(jnp.bfloat16)           # kernel stores code in bf16
        h = lin(lin(code_bf, p["dw1"], p["db1"]), p["dw2"], p["db2"])
        out = jax.nn.sigmoid(lin(h, p["dw3"], p["db3"]))
        return (code_bf[:, :embed_size].astype(jnp.float32),
                out[:, :num_features])

    ref_code, ref_out = ref(x, prepared)
    assert result["code"].shape == (batch, embed_size)
    assert result["output"].shape == (batch, num_features)
    assert jnp.allclose(result["code"], ref_code, atol=1e-2, rtol=1e-2)
    assert jnp.allclose(result["output"], ref_out, atol=5e-3, rtol=5e-3)

    print("KERNEL_OK")
</pallas_src>

<mosaic_0001>
module attributes {stable_mosaic.version = 11 : i64} {
  func.func @_autoenc_kernel(%arg0: i32, %arg1: memref<8x32xf32, #tpu.memory_space<vmem>>, %arg2: memref<32x1024xbf16, #tpu.memory_space<vmem>>, %arg3: memref<1x1024xf32, #tpu.memory_space<vmem>>, %arg4: memref<1024x1024xbf16, #tpu.memory_space<vmem>>, %arg5: memref<1x1024xf32, #tpu.memory_space<vmem>>, %arg6: memref<1024x128xbf16, #tpu.memory_space<vmem>>, %arg7: memref<1x128xf32, #tpu.memory_space<vmem>>, %arg8: memref<128x1024xbf16, #tpu.memory_space<vmem>>, %arg9: memref<1x1024xf32, #tpu.memory_space<vmem>>, %arg10: memref<1024x1024xbf16, #tpu.memory_space<vmem>>, %arg11: memref<1x1024xf32, #tpu.memory_space<vmem>>, %arg12: memref<1024x128xbf16, #tpu.memory_space<vmem>>, %arg13: memref<1x128xf32, #tpu.memory_space<vmem>>, %arg14: memref<8x128xbf16, #tpu.memory_space<vmem>>, %arg15: memref<8x128xf32, #tpu.memory_space<vmem>>) attributes {dimension_semantics = [#tpu.dimension_semantics<parallel>], iteration_bounds = array<i64: 1>, scalar_prefetch = 0 : i64, scratch_operands = 0 : i64, tpu.core_type = #tpu.core_type<tc>, window_params = [{transform_indices = @transform_0, window_bounds = array<i64: 8, 32>}, {pipeline_mode = #tpu.pipeline_mode<synchronous>, transform_indices = @transform_1, window_bounds = array<i64: 32, 1024>}, {pipeline_mode = #tpu.pipeline_mode<synchronous>, transform_indices = @transform_2, window_bounds = array<i64: 1, 1024>}, {pipeline_mode = #tpu.pipeline_mode<synchronous>, transform_indices = @transform_3, window_bounds = array<i64: 1024, 1024>}, {pipeline_mode = #tpu.pipeline_mode<synchronous>, transform_indices = @transform_4, window_bounds = array<i64: 1, 1024>}, {pipeline_mode = #tpu.pipeline_mode<synchronous>, transform_indices = @transform_5, window_bounds = array<i64: 1024, 128>}, {pipeline_mode = #tpu.pipeline_mode<synchronous>, transform_indices = @transform_6, window_bounds = array<i64: 1, 128>}, {pipeline_mode = #tpu.pipeline_mode<synchronous>, transform_indices = @transform_7, window_bounds = array<i64: 128, 1024>}, {pipeline_mode = #tpu.pipeline_mode<synchronous>, transform_indices = @transform_8, window_bounds = array<i64: 1, 1024>}, {pipeline_mode = #tpu.pipeline_mode<synchronous>, transform_indices = @transform_9, window_bounds = array<i64: 1024, 1024>}, {pipeline_mode = #tpu.pipeline_mode<synchronous>, transform_indices = @transform_10, window_bounds = array<i64: 1, 1024>}, {pipeline_mode = #tpu.pipeline_mode<synchronous>, transform_indices = @transform_11, window_bounds = array<i64: 1024, 128>}, {pipeline_mode = #tpu.pipeline_mode<synchronous>, transform_indices = @transform_12, window_bounds = array<i64: 1, 128>}, {transform_indices = @transform_13, window_bounds = array<i64: 8, 128>}, {transform_indices = @transform_14, window_bounds = array<i64: 8, 128>}]} {
    %c0 = arith.constant 0 : index
    %c0_0 = arith.constant 0 : index
    %0 = vector.load %arg1[%c0, %c0_0] : memref<8x32xf32, #tpu.memory_space<vmem>>, vector<8x32xf32>
    %1 = arith.truncf %0 : vector<8x32xf32> to vector<8x32xbf16>
    %c0_1 = arith.constant 0 : index
    %c0_2 = arith.constant 0 : index
    %2 = vector.load %arg2[%c0_1, %c0_2] : memref<32x1024xbf16, #tpu.memory_space<vmem>>, vector<32x1024xbf16>
    %cst = arith.constant dense<0.000000e+00> : vector<8x1024xf32>
    %3 = tpu.matmul %1, %2, %cst {dimension_numbers = #tpu.dot_dimension_numbers<[1], [0], [0], [1], [0, 0, 1, 1], [], []>} : vector<8x32xbf16>, vector<32x1024xbf16>, vector<8x1024xf32> -> vector<8x1024xf32>
    %c0_3 = arith.constant 0 : index
    %c0_4 = arith.constant 0 : index
    %4 = vector.load %arg3[%c0_3, %c0_4] : memref<1x1024xf32, #tpu.memory_space<vmem>>, vector<1x1024xf32>
    %5 = vector.broadcast %4 : vector<1x1024xf32> to vector<8x1024xf32>
    %6 = arith.addf %3, %5 : vector<8x1024xf32>
    %7 = arith.truncf %6 : vector<8x1024xf32> to vector<8x1024xbf16>
    %c0_5 = arith.constant 0 : index
    %c0_6 = arith.constant 0 : index
    %8 = vector.load %arg4[%c0_5, %c0_6] : memref<1024x1024xbf16, #tpu.memory_space<vmem>>, vector<1024x1024xbf16>
    %cst_7 = arith.constant dense<0.000000e+00> : vector<8x1024xf32>
    %9 = tpu.matmul %7, %8, %cst_7 {dimension_numbers = #tpu.dot_dimension_numbers<[1], [0], [0], [1], [0, 0, 1, 1], [], []>} : vector<8x1024xbf16>, vector<1024x1024xbf16>, vector<8x1024xf32> -> vector<8x1024xf32>
    %c0_8 = arith.constant 0 : index
    %c0_9 = arith.constant 0 : index
    %10 = vector.load %arg5[%c0_8, %c0_9] : memref<1x1024xf32, #tpu.memory_space<vmem>>, vector<1x1024xf32>
    %11 = vector.broadcast %10 : vector<1x1024xf32> to vector<8x1024xf32>
    %12 = arith.addf %9, %11 : vector<8x1024xf32>
    %13 = arith.truncf %12 : vector<8x1024xf32> to vector<8x1024xbf16>
    %c0_10 = arith.constant 0 : index
    %c0_11 = arith.constant 0 : index
    %14 = vector.load %arg6[%c0_10, %c0_11] : memref<1024x128xbf16, #tpu.memory_space<vmem>>, vector<1024x128xbf16>
    %cst_12 = arith.constant dense<0.000000e+00> : vector<8x128xf32>
    %15 = tpu.matmul %13, %14, %cst_12 {dimension_numbers = #tpu.dot_dimension_numbers<[1], [0], [0], [1], [0, 0, 1, 1], [], []>} : vector<8x1024xbf16>, vector<1024x128xbf16>, vector<8x128xf32> -> vector<8x128xf32>
    %c0_13 = arith.constant 0 : index
    %c0_14 = arith.constant 0 : index
    %16 = vector.load %arg7[%c0_13, %c0_14] : memref<1x128xf32, #tpu.memory_space<vmem>>, vector<1x128xf32>
    %17 = vector.broadcast %16 : vector<1x128xf32> to vector<8x128xf32>
    %18 = arith.addf %15, %17 : vector<8x128xf32>
    %19 = arith.truncf %18 : vector<8x128xf32> to vector<8x128xbf16>
    %c0_15 = arith.constant 0 : index
    %c0_16 = arith.constant 0 : index
    %20 = vector.load %arg14[%c0_15, %c0_16] : memref<8x128xbf16, #tpu.memory_space<vmem>>, vector<8x128xbf16>
    tpu.vector_store %arg14[%c0_15, %c0_16], %19 {strides = array<i32>} : memref<8x128xbf16, #tpu.memory_space<vmem>>, vector<8x128xbf16>,
    %c0_17 = arith.constant 0 : index
    %c0_18 = arith.constant 0 : index
    %21 = vector.load %arg8[%c0_17, %c0_18] : memref<128x1024xbf16, #tpu.memory_space<vmem>>, vector<128x1024xbf16>
    %cst_19 = arith.constant dense<0.000000e+00> : vector<8x1024xf32>
    %22 = tpu.matmul %19, %21, %cst_19 {dimension_numbers = #tpu.dot_dimension_numbers<[1], [0], [0], [1], [0, 0, 1, 1], [], []>} : vector<8x128xbf16>, vector<128x1024xbf16>, vector<8x1024xf32> -> vector<8x1024xf32>
    %c0_20 = arith.constant 0 : index
    %c0_21 = arith.constant 0 : index
    %23 = vector.load %arg9[%c0_20, %c0_21] : memref<1x1024xf32, #tpu.memory_space<vmem>>, vector<1x1024xf32>
    %24 = vector.broadcast %23 : vector<1x1024xf32> to vector<8x1024xf32>
    %25 = arith.addf %22, %24 : vector<8x1024xf32>
    %26 = arith.truncf %25 : vector<8x1024xf32> to vector<8x1024xbf16>
    %c0_22 = arith.constant 0 : index
    %c0_23 = arith.constant 0 : index
    %27 = vector.load %arg10[%c0_22, %c0_23] : memref<1024x1024xbf16, #tpu.memory_space<vmem>>, vector<1024x1024xbf16>
    %cst_24 = arith.constant dense<0.000000e+00> : vector<8x1024xf32>
    %28 = tpu.matmul %26, %27, %cst_24 {dimension_numbers = #tpu.dot_dimension_numbers<[1], [0], [0], [1], [0, 0, 1, 1], [], []>} : vector<8x1024xbf16>, vector<1024x1024xbf16>, vector<8x1024xf32> -> vector<8x1024xf32>
    %c0_25 = arith.constant 0 : index
    %c0_26 = arith.constant 0 : index
    %29 = vector.load %arg11[%c0_25, %c0_26] : memref<1x1024xf32, #tpu.memory_space<vmem>>, vector<1x1024xf32>
    %30 = vector.broadcast %29 : vector<1x1024xf32> to vector<8x1024xf32>
    %31 = arith.addf %28, %30 : vector<8x1024xf32>
    %32 = arith.truncf %31 : vector<8x1024xf32> to vector<8x1024xbf16>
    %c0_27 = arith.constant 0 : index
    %c0_28 = arith.constant 0 : index
    %33 = vector.load %arg12[%c0_27, %c0_28] : memref<1024x128xbf16, #tpu.memory_space<vmem>>, vector<1024x128xbf16>
    %cst_29 = arith.constant dense<0.000000e+00> : vector<8x128xf32>
    %34 = tpu.matmul %32, %33, %cst_29 {dimension_numbers = #tpu.dot_dimension_numbers<[1], [0], [0], [1], [0, 0, 1, 1], [], []>} : vector<8x1024xbf16>, vector<1024x128xbf16>, vector<8x128xf32> -> vector<8x128xf32>
    %c0_30 = arith.constant 0 : index
    %c0_31 = arith.constant 0 : index
    %35 = vector.load %arg13[%c0_30, %c0_31] : memref<1x128xf32, #tpu.memory_space<vmem>>, vector<1x128xf32>
    %36 = vector.broadcast %35 : vector<1x128xf32> to vector<8x128xf32>
    %37 = arith.addf %34, %36 : vector<8x128xf32>
    %38 = arith.negf %37 : vector<8x128xf32>
    %39 = math.exp %38 : vector<8x128xf32>
    %cst_32 = arith.constant 1.000000e+00 : f32
    %40 = vector.broadcast %cst_32 : f32 to vector<8x128xf32>
    %41 = arith.addf %40, %39 : vector<8x128xf32>
    %42 = arith.divf %40, %41 : vector<8x128xf32>
    %c0_33 = arith.constant 0 : index
    %c0_34 = arith.constant 0 : index
    %43 = vector.load %arg15[%c0_33, %c0_34] : memref<8x128xf32, #tpu.memory_space<vmem>>, vector<8x128xf32>
    tpu.vector_store %arg15[%c0_33, %c0_34], %42 {strides = array<i32>} : memref<8x128xf32, #tpu.memory_space<vmem>>, vector<8x128xf32>,
    return
  }
  func.func @transform_0(%arg0: i32) -> (i32, i32) {
    %c0_i32 = arith.constant 0 : i32
    %c0_i32_0 = arith.constant 0 : i32
    return %arg0, %c0_i32 : i32, i32
  }
  func.func @transform_1(%arg0: i32) -> (i32, i32) {
    %c0_i32 = arith.constant 0 : i32
    %c0_i32_0 = arith.constant 0 : i32
    %c0_i32_1 = arith.constant 0 : i32
    return %c0_i32, %c0_i32_0 : i32, i32
  }
  func.func @transform_2(%arg0: i32) -> (i32, i32) {
    %c0_i32 = arith.constant 0 : i32
    %c0_i32_0 = arith.constant 0 : i32
    %c0_i32_1 = arith.constant 0 : i32
    return %c0_i32, %c0_i32_0 : i32, i32
  }
  func.func @transform_3(%arg0: i32) -> (i32, i32) {
    %c0_i32 = arith.constant 0 : i32
    %c0_i32_0 = arith.constant 0 : i32
    %c0_i32_1 = arith.constant 0 : i32
    return %c0_i32, %c0_i32_0 : i32, i32
  }
  func.func @transform_4(%arg0: i32) -> (i32, i32) {
    %c0_i32 = arith.constant 0 : i32
    %c0_i32_0 = arith.constant 0 : i32
    %c0_i32_1 = arith.constant 0 : i32
    return %c0_i32, %c0_i32_0 : i32, i32
  }
  func.func @transform_5(%arg0: i32) -> (i32, i32) {
    %c0_i32 = arith.constant 0 : i32
    %c0_i32_0 = arith.constant 0 : i32
    %c0_i32_1 = arith.constant 0 : i32
    return %c0_i32, %c0_i32_0 : i32, i32
  }
  func.func @transform_6(%arg0: i32) -> (i32, i32) {
    %c0_i32 = arith.constant 0 : i32
    %c0_i32_0 = arith.constant 0 : i32
    %c0_i32_1 = arith.constant 0 : i32
    return %c0_i32, %c0_i32_0 : i32, i32
  }
  func.func @transform_7(%arg0: i32) -> (i32, i32) {
    %c0_i32 = arith.constant 0 : i32
    %c0_i32_0 = arith.constant 0 : i32
    %c0_i32_1 = arith.constant 0 : i32
    return %c0_i32, %c0_i32_0 : i32, i32
  }
  func.func @transform_8(%arg0: i32) -> (i32, i32) {
    %c0_i32 = arith.constant 0 : i32
    %c0_i32_0 = arith.constant 0 : i32
    %c0_i32_1 = arith.constant 0 : i32
    return %c0_i32, %c0_i32_0 : i32, i32
  }
  func.func @transform_9(%arg0: i32) -> (i32, i32) {
    %c0_i32 = arith.constant 0 : i32
    %c0_i32_0 = arith.constant 0 : i32
    %c0_i32_1 = arith.constant 0 : i32
    return %c0_i32, %c0_i32_0 : i32, i32
  }
  func.func @transform_10(%arg0: i32) -> (i32, i32) {
    %c0_i32 = arith.constant 0 : i32
    %c0_i32_0 = arith.constant 0 : i32
    %c0_i32_1 = arith.constant 0 : i32
    return %c0_i32, %c0_i32_0 : i32, i32
  }
  func.func @transform_11(%arg0: i32) -> (i32, i32) {
    %c0_i32 = arith.constant 0 : i32
    %c0_i32_0 = arith.constant 0 : i32
    %c0_i32_1 = arith.constant 0 : i32
    return %c0_i32, %c0_i32_0 : i32, i32
  }
  func.func @transform_12(%arg0: i32) -> (i32, i32) {
    %c0_i32 = arith.constant 0 : i32
    %c0_i32_0 = arith.constant 0 : i32
    %c0_i32_1 = arith.constant 0 : i32
    return %c0_i32, %c0_i32_0 : i32, i32
  }
  func.func @transform_13(%arg0: i32) -> (i32, i32) {
    %c0_i32 = arith.constant 0 : i32
    %c0_i32_0 = arith.constant 0 : i32
    return %arg0, %c0_i32 : i32, i32
  }
  func.func @transform_14(%arg0: i32) -> (i32, i32) {
    %c0_i32 = arith.constant 0 : i32
    %c0_i32_0 = arith.constant 0 : i32
    return %arg0, %c0_i32 : i32, i32
  }
}

</mosaic_0001>

<llo_original>
// kernel: tpu_custom_call.1
$region0: #{tpu_custom_call.1}
  #allocation0 [shape = 'u32[]', space=smem, size = 0x4, offset = 0x4, fixed_abs, tag = 'smem constant byte address 0x4 - core index']
  #allocation1 [shape = 'u32[144,128]{1,0:T(1,128)}', space=vmem, size = 0x12000, scoped, tag = 'internal scratch']
  %s0 = inlined_call_operand.hbm [shape: f32[8,32], index: 0, kind: input, shape index: {}]
  %s1 = inlined_call_operand.hbm [shape: bf16[32,1024], index: 1, kind: input, shape index: {}]
  %s2 = inlined_call_operand.hbm [shape: f32[1,1024], index: 2, kind: input, shape index: {}]
  %s3 = inlined_call_operand.hbm [shape: bf16[1024,1024], index: 3, kind: input, shape index: {}]
  %s4 = inlined_call_operand.hbm [shape: f32[1,1024], index: 4, kind: input, shape index: {}]
  %s5 = inlined_call_operand.hbm [shape: bf16[1024,128], index: 5, kind: input, shape index: {}]
  %s6 = inlined_call_operand.hbm [shape: f32[1,128], index: 6, kind: input, shape index: {}]
  %s7 = inlined_call_operand.hbm [shape: bf16[128,1024], index: 7, kind: input, shape index: {}]
  %s8 = inlined_call_operand.hbm [shape: f32[1,1024], index: 8, kind: input, shape index: {}]
  %s9 = inlined_call_operand.hbm [shape: bf16[1024,1024], index: 9, kind: input, shape index: {}]
  %s10 = inlined_call_operand.hbm [shape: f32[1,1024], index: 10, kind: input, shape index: {}]
  %s11 = inlined_call_operand.hbm [shape: bf16[1024,128], index: 11, kind: input, shape index: {}]
  %s12 = inlined_call_operand.hbm [shape: f32[1,128], index: 12, kind: input, shape index: {}]
  %s13 = inlined_call_operand.hbm [shape: bf16[8,128], index: 13, kind: output, shape index: {0}]
  %s14 = inlined_call_operand.hbm [shape: f32[8,128], index: 14, kind: output, shape index: {1}]
  %15 = xla_tuple %s13, %s14
  %s16 = sld [smem:[#allocation0]]
  $region122: #{tpu_custom_call.1} parent=0
    _
  %s18 = ssub.s32 1, %s16
  %s19 = scalar_select 0, %s18, %s16
  $region1: #{tpu_custom_call.1} parent=0
    #allocation2 [shape = 'u8[4096]{0}', space=vmem, size = 0x1000, scoped, tag = 'input window, operand 0, single buffered']
    #allocation3 [shape = 's32[1]{0}', space=sflag, size = 0x4, scoped, tag = 'scoped memory for tpu_custom_call.1']
    #allocation4 [shape = 's32[1]{0}', space=sflag, size = 0x4, scoped, tag = 'scoped memory for tpu_custom_call.1']
    #allocation5 [shape = 'u8[65536]{0}', space=vmem, size = 0x10000, scoped, tag = 'input window, operand 1, single buffered']
    #allocation6 [shape = 's32[1]{0}', space=sflag, size = 0x4, scoped, tag = 'scoped memory for tpu_custom_call.1']
    #allocation7 [shape = 'u8[4096]{0}', space=vmem, size = 0x1000, scoped, tag = 'input window, operand 2, single buffered']
    #allocation8 [shape = 'u8[2097152]{0}', space=vmem, size = 0x200000, scoped, tag = 'input window, operand 3, single buffered']
    #allocation9 [shape = 's32[1]{0}', space=sflag, size = 0x4, scoped, tag = 'scoped memory for tpu_custom_call.1']
    #allocation10 [shape = 'u8[4096]{0}', space=vmem, size = 0x1000, scoped, tag = 'input window, operand 4, single buffered']
    #allocation11 [shape = 'u8[262144]{0}', space=vmem, size = 0x40000, scoped, tag = 'input window, operand 5, single buffered']
    #allocation12 [shape = 's32[1]{0}', space=sflag, size = 0x4, scoped, tag = 'scoped memory for tpu_custom_call.1']
    #allocation13 [shape = 'u8[512]{0}', space=vmem, size = 0x400, scoped, tag = 'input window, operand 6, single buffered']
    #allocation14 [shape = 'u8[262144]{0}', space=vmem, size = 0x40000, scoped, tag = 'input window, operand 7, single buffered']
    #allocation15 [shape = 's32[1]{0}', space=sflag, size = 0x4, scoped, tag = 'scoped memory for tpu_custom_call.1']
    #allocation16 [shape = 'u8[4096]{0}', space=vmem, size = 0x1000, scoped, tag = 'input window, operand 8, single buffered']
    #allocation17 [shape = 'u8[2097152]{0}', space=vmem, size = 0x200000, scoped, tag = 'input window, operand 9, single buffered']
    #allocation18 [shape = 's32[1]{0}', space=sflag, size = 0x4, scoped, tag = 'scoped memory for tpu_custom_call.1']
    #allocation19 [shape = 'u8[4096]{0}', space=vmem, size = 0x1000, scoped, tag = 'input window, operand 10, single buffered']
    #allocation20 [shape = 'u8[262144]{0}', space=vmem, size = 0x40000, scoped, tag = 'input window, operand 11, single buffered']
    #allocation21 [shape = 's32[1]{0}', space=sflag, size = 0x4, scoped, tag = 'scoped memory for tpu_custom_call.1']
    #allocation22 [shape = 'u8[512]{0}', space=vmem, size = 0x400, scoped, tag = 'input window, operand 12, single buffered']
    #allocation23 [shape = 'u8[2048]{0}', space=vmem, size = 0x800, scoped, tag = 'output window, operand 0, single buffered']
    #allocation24 [shape = 'u8[4096]{0}', space=vmem, size = 0x1000, scoped, tag = 'output window, operand 1, single buffered']
    #allocation25 [shape = 's32[1]{0}', space=sflag, size = 0x4, scoped, tag = 'scoped memory for tpu_custom_call.1']
    %20 = vsyncpa [#allocation3], 0
    %21 = vsyncpa [#allocation6], 0
    %22 = vsyncpa [#allocation9], 0
    %23 = vsyncpa [#allocation12], 0
    %24 = vsyncpa [#allocation15], 0
    %25 = vsyncpa [#allocation18], 0
    %26 = vsyncpa [#allocation21], 0
    %27 = vsyncpa [#allocation4], 0
    %28 = vsyncpa [#allocation25], 0
    // Predicated region
    $region2: #{tpu_custom_call.1} parent=1 // pred_check
      _
    $region3: #{tpu_custom_call.1} parent=1 // pred_check_branch
      %30 = sbr.rel (0) target = $region5
    $region4: #{tpu_custom_call.1} parent=1 // pred_region
      %s32 = ssub.s32 128, 128
      %33 = vsyncadd [#allocation3], %s32
      %s35 = sshll.u32 [#allocation2], 4
      %s36 = int_to_ptr.vmem [resolvable:$true] %s35
      %38 = dma.hbm_to_vmem [thread:$0]  %s0, 128, %s36, [#allocation3]
    $region5: #{tpu_custom_call.1} parent=1 // pred_fallthru
      _
    // Predicated region
    $region6: #{tpu_custom_call.1} parent=1 // pred_check
      _
    $region7: #{tpu_custom_call.1} parent=1 // pred_check_branch
      %40 = sbr.rel (0) target = $region9
    $region8: #{tpu_custom_call.1} parent=1 // pred_region
      %s42 = ssub.s32 2048, 2048
      %43 = vsyncadd [#allocation6], %s42
      %s44 = sshll.u32 [#allocation5], 4
      %s45 = int_to_ptr.vmem [resolvable:$true] %s44
      %50 = dma.hbm_to_vmem [thread:$0]  %s1, 2048, %s45, [#allocation6], 512, 512, 32
    $region9: #{tpu_custom_call.1} parent=1 // pred_fallthru
      _
    // Predicated region
    $region10: #{tpu_custom_call.1} parent=1 // pred_check
      _
    $region11: #{tpu_custom_call.1} parent=1 // pred_check_branch
      %52 = sbr.rel (0) target = $region13
    $region12: #{tpu_custom_call.1} parent=1 // pred_region
      %s54 = ssub.s32 128, 128
      %55 = vsyncadd [#allocation6], %s54
      %s57 = sshll.u32 [#allocation7], 4
      %s58 = int_to_ptr.vmem [resolvable:$true] %s57
      %60 = dma.hbm_to_vmem [thread:$0]  %s2, 128, %s58, [#allocation6]
    $region13: #{tpu_custom_call.1} parent=1 // pred_fallthru
      _
    // Predicated region
    $region14: #{tpu_custom_call.1} parent=1 // pred_check
      _
    $region15: #{tpu_custom_call.1} parent=1 // pred_check_branch
      %62 = sbr.rel (0) target = $region17
    $region16: #{tpu_custom_call.1} parent=1 // pred_region
      %s64 = ssub.s32 65536, 65536
      %65 = vsyncadd [#allocation9], %s64
      %s66 = sshll.u32 [#allocation8], 4
      %s67 = int_to_ptr.vmem [resolvable:$true] %s66
      %72 = dma.hbm_to_vmem [thread:$0]  %s3, 65536, %s67, [#allocation9], 512, 512, 32
    $region17: #{tpu_custom_call.1} parent=1 // pred_fallthru
      _
    // Predicated region
    $region18: #{tpu_custom_call.1} parent=1 // pred_check
      _
    $region19: #{tpu_custom_call.1} parent=1 // pred_check_branch
      %74 = sbr.rel (0) target = $region21
    $region20: #{tpu_custom_call.1} parent=1 // pred_region
      %s76 = ssub.s32 128, 128
      %77 = vsyncadd [#allocation9], %s76
      %s79 = sshll.u32 [#allocation10], 4
      %s80 = int_to_ptr.vmem [resolvable:$true] %s79
      %82 = dma.hbm_to_vmem [thread:$0]  %s4, 128, %s80, [#allocation9]
    $region21: #{tpu_custom_call.1} parent=1 // pred_fallthru
      _
    // Predicated region
    $region22: #{tpu_custom_call.1} parent=1 // pred_check
      _
    $region23: #{tpu_custom_call.1} parent=1 // pred_check_branch
      %84 = sbr.rel (0) target = $region25
    $region24: #{tpu_custom_call.1} parent=1 // pred_region
      %s86 = ssub.s32 8192, 8192
      %87 = vsyncadd [#allocation12], %s86
      %s88 = sshll.u32 [#allocation11], 4
      %s89 = int_to_ptr.vmem [resolvable:$true] %s88
      %94 = dma.hbm_to_vmem [thread:$0]  %s5, 8192, %s89, [#allocation12], 64, 64, 4
    $region25: #{tpu_custom_call.1} parent=1 // pred_fallthru
      _
    // Predicated region
    $region26: #{tpu_custom_call.1} parent=1 // pred_check
      _
    $region27: #{tpu_custom_call.1} parent=1 // pred_check_branch
      %96 = sbr.rel (0) target = $region29
    $region28: #{tpu_custom_call.1} parent=1 // pred_region
      %s98 = ssub.s32 16, 16
      %99 = vsyncadd [#allocation12], %s98
      %s101 = sshll.u32 [#allocation13], 4
      %s102 = int_to_ptr.vmem [resolvable:$true] %s101
      %104 = dma.hbm_to_vmem [thread:$0]  %s6, 16, %s102, [#allocation12]
    $region29: #{tpu_custom_call.1} parent=1 // pred_fallthru
      _
    // Predicated region
    $region30: #{tpu_custom_call.1} parent=1 // pred_check
      _
    $region31: #{tpu_custom_call.1} parent=1 // pred_check_branch
      %106 = sbr.rel (0) target = $region33
    $region32: #{tpu_custom_call.1} parent=1 // pred_region
      %s108 = ssub.s32 8192, 8192
      %109 = vsyncadd [#allocation15], %s108
      %s110 = sshll.u32 [#allocation14], 4
      %s111 = int_to_ptr.vmem [resolvable:$true] %s110
      %116 = dma.hbm_to_vmem [thread:$0]  %s7, 8192, %s111, [#allocation15], 512, 512, 32
    $region33: #{tpu_custom_call.1} parent=1 // pred_fallthru
      _
    // Predicated region
    $region34: #{tpu_custom_call.1} parent=1 // pred_check
      _
    $region35: #{tpu_custom_call.1} parent=1 // pred_check_branch
      %118 = sbr.rel (0) target = $region37
    $region36: #{tpu_custom_call.1} parent=1 // pred_region
      %s120 = ssub.s32 128, 128
      %121 = vsyncadd [#allocation15], %s120
      %s123 = sshll.u32 [#allocation16], 4
      %s124 = int_to_ptr.vmem [resolvable:$true] %s123
      %126 = dma.hbm_to_vmem [thread:$0]  %s8, 128, %s124, [#allocation15]
    $region37: #{tpu_custom_call.1} parent=1 // pred_fallthru
      _
    // Predicated region
    $region38: #{tpu_custom_call.1} parent=1 // pred_check
      _
    $region39: #{tpu_custom_call.1} parent=1 // pred_check_branch
      %128 = sbr.rel (0) target = $region41
    $region40: #{tpu_custom_call.1} parent=1 // pred_region
      %s130 = ssub.s32 65536, 65536
      %131 = vsyncadd [#allocation18], %s130
      %s132 = sshll.u32 [#allocation17], 4
      %s133 = int_to_ptr.vmem [resolvable:$true] %s132
      %138 = dma.hbm_to_vmem [thread:$0]  %s9, 65536, %s133, [#allocation18], 512, 512, 32
    $region41: #{tpu_custom_call.1} parent=1 // pred_fallthru
      _
    // Predicated region
    $region42: #{tpu_custom_call.1} parent=1 // pred_check
      _
    $region43: #{tpu_custom_call.1} parent=1 // pred_check_branch
      %140 = sbr.rel (0) target = $region45
    $region44: #{tpu_custom_call.1} parent=1 // pred_region
      %s142 = ssub.s32 128, 128
      %143 = vsyncadd [#allocation18], %s142
      %s145 = sshll.u32 [#allocation19], 4
      %s146 = int_to_ptr.vmem [resolvable:$true] %s145
      %148 = dma.hbm_to_vmem [thread:$0]  %s10, 128, %s146, [#allocation18]
    $region45: #{tpu_custom_call.1} parent=1 // pred_fallthru
      _
    // Predicated region
    $region46: #{tpu_custom_call.1} parent=1 // pred_check
      _
    $region47: #{tpu_custom_call.1} parent=1 // pred_check_branch
      %150 = sbr.rel (0) target = $region49
    $region48: #{tpu_custom_call.1} parent=1 // pred_region
      %s152 = ssub.s32 8192, 8192
      %153 = vsyncadd [#allocation21], %s152
      %s154 = sshll.u32 [#allocation20], 4
      %s155 = int_to_ptr.vmem [resolvable:$true] %s154
      %160 = dma.hbm_to_vmem [thread:$0]  %s11, 8192, %s155, [#allocation21], 64, 64, 4
    $region49: #{tpu_custom_call.1} parent=1 // pred_fallthru
      _
    // Predicated region
    $region50: #{tpu_custom_call.1} parent=1 // pred_check
      _
    $region51: #{tpu_custom_call.1} parent=1 // pred_check_branch
      %162 = sbr.rel (0) target = $region53
    $region52: #{tpu_custom_call.1} parent=1 // pred_region
      %s164 = ssub.s32 16, 16
      %165 = vsyncadd [#allocation21], %s164
      %s167 = sshll.u32 [#allocation22], 4
      %s168 = int_to_ptr.vmem [resolvable:$true] %s167
      %170 = dma.hbm_to_vmem [thread:$0]  %s12, 16, %s168, [#allocation21]
    $region53: #{tpu_custom_call.1} parent=1 // pred_fallthru
      _
    // Predicated region
    $region54: #{tpu_custom_call.1} parent=1 // pred_check
      _
    $region55: #{tpu_custom_call.1} parent=1 // pred_check_branch
      %172 = sbr.rel (0) target = $region57
    $region56: #{tpu_custom_call.1} parent=1 // pred_region
      %173 = dma.done [#allocation3], 128
    $region57: #{tpu_custom_call.1} parent=1 // pred_fallthru
      _
    // Predicated region
    $region58: #{tpu_custom_call.1} parent=1 // pred_check
      _
    $region59: #{tpu_custom_call.1} parent=1 // pred_check_branch
      %175 = sbr.rel (0) target = $region61
    $region60: #{tpu_custom_call.1} parent=1 // pred_region
      %176 = dma.done [#allocation6], 2048
    $region61: #{tpu_custom_call.1} parent=1 // pred_fallthru
      _
    // Predicated region
    $region62: #{tpu_custom_call.1} parent=1 // pred_check
      _
    $region63: #{tpu_custom_call.1} parent=1 // pred_check_branch
      %178 = sbr.rel (0) target = $region65
    $region64: #{tpu_custom_call.1} parent=1 // pred_region
      %179 = dma.done [#allocation6], 128
    $region65: #{tpu_custom_call.1} parent=1 // pred_fallthru
      _
    // Predicated region
    $region66: #{tpu_custom_call.1} parent=1 // pred_check
      _
    $region67: #{tpu_custom_call.1} parent=1 // pred_check_branch
      %181 = sbr.rel (0) target = $region69
    $region68: #{tpu_custom_call.1} parent=1 // pred_region
      %182 = dma.done [#allocation9], 65536
    $region69: #{tpu_custom_call.1} parent=1 // pred_fallthru
      _
    // Predicated region
    $region70: #{tpu_custom_call.1} parent=1 // pred_check
      _
    $region71: #{tpu_custom_call.1} parent=1 // pred_check_branch
      %184 = sbr.rel (0) target = $region73
    $region72: #{tpu_custom_call.1} parent=1 // pred_region
      %185 = dma.done [#allocation9], 128
    $region73: #{tpu_custom_call.1} parent=1 // pred_fallthru
      _
    // Predicated region
    $region74: #{tpu_custom_call.1} parent=1 // pred_check
      _
    $region75: #{tpu_custom_call.1} parent=1 // pred_check_branch
      %187 = sbr.rel (0) target = $region77
    $region76: #{tpu_custom_call.1} parent=1 // pred_region
      %188 = dma.done [#allocation12], 8192
    $region77: #{tpu_custom_call.1} parent=1 // pred_fallthru
      _
    // Predicated region
    $region78: #{tpu_custom_call.1} parent=1 // pred_check
      _
    $region79: #{tpu_custom_call.1} parent=1 // pred_check_branch
      %190 = sbr.rel (0) target = $region81
    $region80: #{tpu_custom_call.1} parent=1 // pred_region
      %191 = dma.done [#allocation12], 16
    $region81: #{tpu_custom_call.1} parent=1 // pred_fallthru
      _
    // Predicated region
    $region82: #{tpu_custom_call.1} parent=1 // pred_check
      _
    $region83: #{tpu_custom_call.1} parent=1 // pred_check_branch
      %193 = sbr.rel (0) target = $region85
    $region84: #{tpu_custom_call.1} parent=1 // pred_region
      %194 = dma.done [#allocation15], 8192
    $region85: #{tpu_custom_call.1} parent=1 // pred_fallthru
      _
    // Predicated region
    $region86: #{tpu_custom_call.1} parent=1 // pred_check
      _
    $region87: #{tpu_custom_call.1} parent=1 // pred_check_branch
      %196 = sbr.rel (0) target = $region89
    $region88: #{tpu_custom_call.1} parent=1 // pred_region
      %197 = dma.done [#allocation15], 128
    $region89: #{tpu_custom_call.1} parent=1 // pred_fallthru
      _
    // Predicated region
    $region90: #{tpu_custom_call.1} parent=1 // pred_check
      _
    $region91: #{tpu_custom_call.1} parent=1 // pred_check_branch
      %199 = sbr.rel (0) target = $region93
    $region92: #{tpu_custom_call.1} parent=1 // pred_region
      %200 = dma.done [#allocation18], 65536
    $region93: #{tpu_custom_call.1} parent=1 // pred_fallthru
      _
    // Predicated region
    $region94: #{tpu_custom_call.1} parent=1 // pred_check
      _
    $region95: #{tpu_custom_call.1} parent=1 // pred_check_branch
      %202 = sbr.rel (0) target = $region97
    $region96: #{tpu_custom_call.1} parent=1 // pred_region
      %203 = dma.done [#allocation18], 128
    $region97: #{tpu_custom_call.1} parent=1 // pred_fallthru
      _
    // Predicated region
    $region98: #{tpu_custom_call.1} parent=1 // pred_check
      _
    $region99: #{tpu_custom_call.1} parent=1 // pred_check_branch
      %205 = sbr.rel (0) target = $region101
    $region100: #{tpu_custom_call.1} parent=1 // pred_region
      %206 = dma.done [#allocation21], 8192
    $region101: #{tpu_custom_call.1} parent=1 // pred_fallthru
      _
    // Predicated region
    $region102: #{tpu_custom_call.1} parent=1 // pred_check
      _
    $region103: #{tpu_custom_call.1} parent=1 // pred_check_branch
      %208 = sbr.rel (0) target = $region105
    $region104: #{tpu_custom_call.1} parent=1 // pred_region
      %209 = dma.done [#allocation21], 16
    $region105: #{tpu_custom_call.1} parent=1 // pred_fallthru
      _
    %v211 = vld [vmem:[#allocation2] sm:$0xff]
    %v212 = vpack.c.bf16 %v211, %v211
    %v213 = vld [vmem:[#allocation5] sm:$0xff]
    %v214 = vld [vmem:[#allocation5 + $0x8] sm:$0xff]
    %v215 = vld [vmem:[#allocation5 + $0x10] sm:$0xff]
    %v216 = vld [vmem:[#allocation5 + $0x18] sm:$0xff]
    %v217 = vld [vmem:[#allocation5 + $0x20] sm:$0xff]
    %v218 = vld [vmem:[#allocation5 + $0x28] sm:$0xff]
    %v219 = vld [vmem:[#allocation5 + $0x30] sm:$0xff]
    %v220 = vld [vmem:[#allocation5 + $0x38] sm:$0xff]
    %v221 = vld [vmem:[#allocation5 + $0x40] sm:$0xff]
    %v222 = vld [vmem:[#allocation5 + $0x48] sm:$0xff]
    %v223 = vld [vmem:[#allocation5 + $0x50] sm:$0xff]
    %v224 = vld [vmem:[#allocation5 + $0x58] sm:$0xff]
    %v225 = vld [vmem:[#allocation5 + $0x60] sm:$0xff]
    %v226 = vld [vmem:[#allocation5 + $0x68] sm:$0xff]
    %v227 = vld [vmem:[#allocation5 + $0x70] sm:$0xff]
    %v228 = vld [vmem:[#allocation5 + $0x78] sm:$0xff]
    %v229 = vld [vmem:[#allocation7] sm:$0xff]
    %v231 = vlaneseq
    %v232 = vshrl.u32 %v231, 7
    %v233 = vsub.s32 0, %v232
    %v234 = vrot.slane %v229, %v233
    %v235 = vlaneseq
    %v236 = vshrl.u32 %v235, 7
    %v237 = vsub.s32 1, %v236
    %v238 = vrot.slane %v229, %v237
    %v239 = vlaneseq
    %v240 = vshrl.u32 %v239, 7
    %v241 = vsub.s32 2, %v240
    %v242 = vrot.slane %v229, %v241
    %v243 = vlaneseq
    %v244 = vshrl.u32 %v243, 7
    %v245 = vsub.s32 3, %v244
    %v246 = vrot.slane %v229, %v245
    %v247 = vlaneseq
    %v248 = vshrl.u32 %v247, 7
    %v249 = vsub.s32 4, %v248
    %v250 = vrot.slane %v229, %v249
    %v251 = vlaneseq
    %v252 = vshrl.u32 %v251, 7
    %v253 = vsub.s32 5, %v252
    %v254 = vrot.slane %v229, %v253
    %v255 = vlaneseq
    %v256 = vshrl.u32 %v255, 7
    %v257 = vsub.s32 6, %v256
    %v258 = vrot.slane %v229, %v257
    %v259 = vlaneseq
    %v260 = vshrl.u32 %v259, 7
    %v261 = vsub.s32 7, %v260
    %v262 = vrot.slane %v229, %v261
    %v287 = vunpack.c.l.b16 %v213
    %v288 = vunpack.c.h.b16 %v213
    %v289 = vunpack.c.l.b16 %v214
    %v290 = vunpack.c.h.b16 %v214
    %v291 = vunpack.c.l.b16 %v215
    %v292 = vunpack.c.h.b16 %v215
    %v293 = vunpack.c.l.b16 %v216
    %v294 = vunpack.c.h.b16 %v216
    %v295 = vunpack.c.l.b16 %v217
    %v296 = vunpack.c.h.b16 %v217
    %v297 = vunpack.c.l.b16 %v218
    %v298 = vunpack.c.h.b16 %v218
    %v299 = vunpack.c.l.b16 %v219
    %v300 = vunpack.c.h.b16 %v219
    %v301 = vunpack.c.l.b16 %v220
    %v302 = vunpack.c.h.b16 %v220
    %v303 = vunpack.c.l.b16 %v221
    %v304 = vunpack.c.h.b16 %v221
    %v305 = vunpack.c.l.b16 %v222
    %v306 = vunpack.c.h.b16 %v222
    %v307 = vunpack.c.l.b16 %v223
    %v308 = vunpack.c.h.b16 %v223
    %v309 = vunpack.c.l.b16 %v224
    %v310 = vunpack.c.h.b16 %v224
    %v311 = vunpack.c.l.b16 %v225
    %v312 = vunpack.c.h.b16 %v225
    %v313 = vunpack.c.l.b16 %v226
    %v314 = vunpack.c.h.b16 %v226
    %v315 = vunpack.c.l.b16 %v227
    %v316 = vunpack.c.h.b16 %v227
    %v317 = vunpack.c.l.b16 %v228
    %v318 = vunpack.c.h.b16 %v228
    %v319 = vpack.c.b16 %v295, %v287
    %v320 = vpack.c.b16 %v296, %v288
    %v321 = vpack.c.b16 %v297, %v289
    %v322 = vpack.c.b16 %v298, %v290
    %v323 = vpack.c.b16 %v299, %v291
    %v324 = vpack.c.b16 %v300, %v292
    %v325 = vpack.c.b16 %v301, %v293
    %v326 = vpack.c.b16 %v302, %v294
    %v327 = vpack.c.b16 %v311, %v303
    %v328 = vpack.c.b16 %v312, %v304
    %v329 = vpack.c.b16 %v313, %v305
    %v330 = vpack.c.b16 %v314, %v306
    %v331 = vpack.c.b16 %v315, %v307
    %v332 = vpack.c.b16 %v316, %v308
    %v333 = vpack.c.b16 %v317, %v309
    %v334 = vpack.c.b16 %v318, %v310
    %vm351 = vcmask 261120
    %v353 = vsel %vm351, %v212, 0
    %355 = vmatprep.subr.bf16.mxu0 %v320
    %356 = vmatpush1.bf16.msra.mxu0 %v319
    %357 = vmatprep.subr.bf16.mxu0 %v328
    %358 = vmatpush1.bf16.msra.mxu0 %v327
    %359 = vmatprep.subr.bf16.mxu0 0
    %360 = vmatpush1.bf16.msra.mxu0 0
    %361 = vmatprep.subr.bf16.mxu0 0
    %362 = vmatpush1.bf16.msra.mxu0 0
    %363 = vmatprep.subr.bf16.mxu0 0
    %364 = vmatpush1.bf16.msra.mxu0 0
    %365 = vmatprep.subr.bf16.mxu0 0
    %366 = vmatpush1.bf16.msra.mxu0 0
    %367 = vmatprep.subr.bf16.mxu0 0
    %368 = vmatpush1.bf16.msra.mxu0 0
    %369 = vmatprep.subr.bf16.mxu0 0
    %370 = vmatpush1.bf16.msra.mxu0 0
    %371 = vmatprep.subr.bf16.mxu0 0
    %372 = vmatpush1.bf16.msra.mxu0 0
    %373 = vmatprep.subr.bf16.mxu0 0
    %374 = vmatpush1.bf16.msra.mxu0 0
    %375 = vmatprep.subr.bf16.mxu0 0
    %376 = vmatpush1.bf16.msra.mxu0 0
    %377 = vmatprep.subr.bf16.mxu0 0
    %378 = vmatpush1.bf16.msra.mxu0 0
    %379 = vmatprep.subr.bf16.mxu0 0
    %380 = vmatpush1.bf16.msra.mxu0 0
    %381 = vmatprep.subr.bf16.mxu0 0
    %382 = vmatpush1.bf16.msra.mxu0 0
    %383 = vmatprep.subr.bf16.mxu0 0
    %384 = vmatpush1.bf16.msra.mxu0 0
    %385 = vmatprep.subr.bf16.mxu0 0
    %386 = vmatpush1.bf16.msra.mxu0 0
    %387 = vmatprep.mubr.bf16.mxu0 0
    %388 = vmatmul.mubr.bf16.gmra.mrb[0].mxu0 %v353
    %v389 = vpop.f32.mrb[0].mxu0
    %v390 = vadd.f32 %v234, %v389
    %v391 = vpop.f32.mrb[0].mxu0
    %v392 = vadd.f32 %v238, %v391
    %v393 = vpop.f32.mrb[0].mxu0
    %v394 = vpop.f32.mrb[0].mxu0
    %395 = vdwg.mxu0
    %396 = vmatprep.subr.bf16.mxu0 %v322
    %397 = vmatpush1.bf16.msra.mxu0 %v321
    %398 = vmatprep.subr.bf16.mxu0 %v330
    %399 = vmatpush1.bf16.msra.mxu0 %v329
    %400 = vmatprep.subr.bf16.mxu0 0
    %401 = vmatpush1.bf16.msra.mxu0 0
    %402 = vmatprep.subr.bf16.mxu0 0
    %403 = vmatpush1.bf16.msra.mxu0 0
    %404 = vmatprep.subr.bf16.mxu0 0
    %405 = vmatpush1.bf16.msra.mxu0 0
    %406 = vmatprep.subr.bf16.mxu0 0
    %407 = vmatpush1.bf16.msra.mxu0 0
    %408 = vmatprep.subr.bf16.mxu0 0
    %409 = vmatpush1.bf16.msra.mxu0 0
    %410 = vmatprep.subr.bf16.mxu0 0
    %411 = vmatpush1.bf16.msra.mxu0 0
    %412 = vmatprep.subr.bf16.mxu0 0
    %413 = vmatpush1.bf16.msra.mxu0 0
    %414 = vmatprep.subr.bf16.mxu0 0
    %415 = vmatpush1.bf16.msra.mxu0 0
    %416 = vmatprep.subr.bf16.mxu0 0
    %417 = vmatpush1.bf16.msra.mxu0 0
    %418 = vmatprep.subr.bf16.mxu0 0
    %419 = vmatpush1.bf16.msra.mxu0 0
    %420 = vmatprep.subr.bf16.mxu0 0
    %421 = vmatpush1.bf16.msra.mxu0 0
    %422 = vmatprep.subr.bf16.mxu0 0
    %423 = vmatpush1.bf16.msra.mxu0 0
    %424 = vmatprep.subr.bf16.mxu0 0
    %425 = vmatpush1.bf16.msra.mxu0 0
    %426 = vmatprep.subr.bf16.mxu0 0
    %427 = vmatpush1.bf16.msra.mxu0 0
    %428 = vmatprep.mubr.bf16.mxu0 0
    %429 = vmatmul.mubr.bf16.gmra.mrb[0].mxu0 %v353
    %v430 = vpop.f32.mrb[0].mxu0
    %v431 = vadd.f32 %v242, %v430
    %v432 = vpop.f32.mrb[0].mxu0
    %v433 = vadd.f32 %v246, %v432
    %v434 = vpop.f32.mrb[0].mxu0
    %v435 = vpop.f32.mrb[0].mxu0
    %436 = vdwg.mxu0
    %437 = vmatprep.subr.bf16.mxu0 %v324
    %438 = vmatpush1.bf16.msra.mxu0 %v323
    %439 = vmatprep.subr.bf16.mxu0 %v332
    %440 = vmatpush1.bf16.msra.mxu0 %v331
    %441 = vmatprep.subr.bf16.mxu0 0
    %442 = vmatpush1.bf16.msra.mxu0 0
    %443 = vmatprep.subr.bf16.mxu0 0
    %444 = vmatpush1.bf16.msra.mxu0 0
    %445 = vmatprep.subr.bf16.mxu0 0
    %446 = vmatpush1.bf16.msra.mxu0 0
    %447 = vmatprep.subr.bf16.mxu0 0
    %448 = vmatpush1.bf16.msra.mxu0 0
    %449 = vmatprep.subr.bf16.mxu0 0
    %450 = vmatpush1.bf16.msra.mxu0 0
    %451 = vmatprep.subr.bf16.mxu0 0
    %452 = vmatpush1.bf16.msra.mxu0 0
    %453 = vmatprep.subr.bf16.mxu0 0
    %454 = vmatpush1.bf16.msra.mxu0 0
    %455 = vmatprep.subr.bf16.mxu0 0
    %456 = vmatpush1.bf16.msra.mxu0 0
    %457 = vmatprep.subr.bf16.mxu0 0
    %458 = vmatpush1.bf16.msra.mxu0 0
    %459 = vmatprep.subr.bf16.mxu0 0
    %460 = vmatpush1.bf16.msra.mxu0 0
    %461 = vmatprep.subr.bf16.mxu0 0
    %462 = vmatpush1.bf16.msra.mxu0 0
    %463 = vmatprep.subr.bf16.mxu0 0
    %464 = vmatpush1.bf16.msra.mxu0 0
    %465 = vmatprep.subr.bf16.mxu0 0
    %466 = vmatpush1.bf16.msra.mxu0 0
    %467 = vmatprep.subr.bf16.mxu0 0
    %468 = vmatpush1.bf16.msra.mxu0 0
    %469 = vmatprep.mubr.bf16.mxu0 0
    %470 = vmatmul.mubr.bf16.gmra.mrb[0].mxu0 %v353
    %v471 = vpop.f32.mrb[0].mxu0
    %v472 = vadd.f32 %v250, %v471
    %v473 = vpop.f32.mrb[0].mxu0
    %v474 = vadd.f32 %v254, %v473
    %v475 = vpop.f32.mrb[0].mxu0
    %v476 = vpop.f32.mrb[0].mxu0
    %477 = vdwg.mxu0
    %478 = vmatprep.subr.bf16.mxu0 %v326
    %479 = vmatpush1.bf16.msra.mxu0 %v325
    %480 = vmatprep.subr.bf16.mxu0 %v334
    %481 = vmatpush1.bf16.msra.mxu0 %v333
    %482 = vmatprep.subr.bf16.mxu0 0
    %483 = vmatpush1.bf16.msra.mxu0 0
    %484 = vmatprep.subr.bf16.mxu0 0
    %485 = vmatpush1.bf16.msra.mxu0 0
    %486 = vmatprep.subr.bf16.mxu0 0
    %487 = vmatpush1.bf16.msra.mxu0 0
    %488 = vmatprep.subr.bf16.mxu0 0
    %489 = vmatpush1.bf16.msra.mxu0 0
    %490 = vmatprep.subr.bf16.mxu0 0
    %491 = vmatpush1.bf16.msra.mxu0 0
    %492 = vmatprep.subr.bf16.mxu0 0
    %493 = vmatpush1.bf16.msra.mxu0 0
    %494 = vmatprep.subr.bf16.mxu0 0
    %495 = vmatpush1.bf16.msra.mxu0 0
    %496 = vmatprep.subr.bf16.mxu0 0
    %497 = vmatpush1.bf16.msra.mxu0 0
    %498 = vmatprep.subr.bf16.mxu0 0
    %499 = vmatpush1.bf16.msra.mxu0 0
    %500 = vmatprep.subr.bf16.mxu0 0
    %501 = vmatpush1.bf16.msra.mxu0 0
    %502 = vmatprep.subr.bf16.mxu0 0
    %503 = vmatpush1.bf16.msra.mxu0 0
    %504 = vmatprep.subr.bf16.mxu0 0
    %505 = vmatpush1.bf16.msra.mxu0 0
    %506 = vmatprep.subr.bf16.mxu0 0
    %507 = vmatpush1.bf16.msra.mxu0 0
    %508 = vmatprep.subr.bf16.mxu0 0
    %509 = vmatpush1.bf16.msra.mxu0 0
    %510 = vmatprep.mubr.bf16.mxu0 0
    %511 = vmatmul.mubr.bf16.gmra.mrb[0].mxu0 %v353
    %v512 = vpop.f32.mrb[0].mxu0
    %v513 = vadd.f32 %v258, %v512
    %v514 = vpop.f32.mrb[0].mxu0
    %v515 = vadd.f32 %v262, %v514
    %v516 = vpop.f32.mrb[0].mxu0
    %v517 = vpop.f32.mrb[0].mxu0
    %518 = vdwg.mxu0
    %v519 = vpack.c.bf16 %v390, %v390
    %v520 = vpack.c.bf16 %v392, %v392
    %v521 = vpack.c.bf16 %v431, %v431
    %v522 = vpack.c.bf16 %v433, %v433
    %v523 = vpack.c.bf16 %v472, %v472
    %v524 = vpack.c.bf16 %v474, %v474
    %v525 = vpack.c.bf16 %v513, %v513
    %v526 = vpack.c.bf16 %v515, %v515
    %v527 = vld [vmem:[#allocation8] sm:$0xff]
    %v528 = vld [vmem:[#allocation8 + $0x8] sm:$0xff]
    %v529 = vld [vmem:[#allocation8 + $0x10] sm:$0xff]
    %v530 = vld [vmem:[#allocation8 + $0x18] sm:$0xff]
    %v531 = vld [vmem:[#allocation8 + $0x20] sm:$0xff]
    %v532 = vld [vmem:[#allocation8 + $0x28] sm:$0xff]
    %v533 = vld [vmem:[#allocation8 + $0x30] sm:$0xff]
    %v534 = vld [vmem:[#allocation8 + $0x38] sm:$0xff]
    %v535 = vld [vmem:[#allocation8 + $0x40] sm:$0xff]
    %v536 = vld [vmem:[#allocation8 + $0x48] sm:$0xff]
    %v537 = vld [vmem:[#allocation8 + $0x50] sm:$0xff]
    %v538 = vld [vmem:[#allocation8 + $0x58] sm:$0xff]
    %v539 = vld [vmem:[#allocation8 + $0x60] sm:$0xff]
    %v540 = vld [vmem:[#allocation8 + $0x68] sm:$0xff]
    %v541 = vld [vmem:[#allocation8 + $0x70] sm:$0xff]
    %v542 = vld [vmem:[#allocation8 + $0x78] sm:$0xff]
    %v543 = vld [vmem:[#allocation8 + $0x80] sm:$0xff]
    %v544 = vld [vmem:[#allocation8 + $0x88] sm:$0xff]
    %v545 = vld [vmem:[#allocation8 + $0x90] sm:$0xff]
    %v546 = vld [vmem:[#allocation8 + $0x98] sm:$0xff]
    %v547 = vld [vmem:[#allocation8 + $0xa0] sm:$0xff]
    %v548 = vld [vmem:[#allocation8 + $0xa8] sm:$0xff]
    %v549 = vld [vmem:[#allocation8 + $0xb0] sm:$0xff]
    %v550 = vld [vmem:[#allocation8 + $0xb8] sm:$0xff]
    %v551 = vld [vmem:[#allocation8 + $0xc0] sm:$0xff]
    %v552 = vld [vmem:[#allocation8 + $0xc8] sm:$0xff]
    %v553 = vld [vmem:[#allocation8 + $0xd0] sm:$0xff]
    %v554 = vld [vmem:[#allocation8 + $0xd8] sm:$0xff]
    %v555 = vld [vmem:[#allocation8 + $0xe0] sm:$0xff]
    %v556 = vld [vmem:[#allocation8 + $0xe8] sm:$0xff]
    %v557 = vld [vmem:[#allocation8 + $0xf0] sm:$0xff]
    %v558 = vld [vmem:[#allocation8 + $0xf8] sm:$0xff]
    %v559 = vld [vmem:[#allocation8 + $0x100] sm:$0xff]
    %v560 = vld [vmem:[#allocation8 + $0x108] sm:$0xff]
    %v561 = vld [vmem:[#allocation8 + $0x110] sm:$0xff]
    %v562 = vld [vmem:[#allocation8 + $0x118] sm:$0xff]
    %v563 = vld [vmem:[#allocation8 + $0x120] sm:$0xff]
    %v564 = vld [vmem:[#allocation8 + $0x128] sm:$0xff]
    %v565 = vld [vmem:[#allocation8 + $0x130] sm:$0xff]
    %v566 = vld [vmem:[#allocation8 + $0x138] sm:$0xff]
    %v567 = vld [vmem:[#allocation8 + $0x140] sm:$0xff]
    %v568 = vld [vmem:[#allocation8 + $0x148] sm:$0xff]
    %v569 = vld [vmem:[#allocation8 + $0x150] sm:$0xff]
    %v570 = vld [vmem:[#allocation8 + $0x158] sm:$0xff]
    %v571 = vld [vmem:[#allocation8 + $0x160] sm:$0xff]
    %v572 = vld [vmem:[#allocation8 + $0x168] sm:$0xff]
    %v573 = vld [vmem:[#allocation8 + $0x170] sm:$0xff]
    %v574 = vld [vmem:[#allocation8 + $0x178] sm:$0xff]
    %v575 = vld [vmem:[#allocation8 + $0x180] sm:$0xff]
    %v576 = vld [vmem:[#allocation8 + $0x188] sm:$0xff]
    %v577 = vld [vmem:[#allocation8 + $0x190] sm:$0xff]
    %v578 = vld [vmem:[#allocation8 + $0x198] sm:$0xff]
    %v579 = vld [vmem:[#allocation8 + $0x1a0] sm:$0xff]
    %v580 = vld [vmem:[#allocation8 + $0x1a8] sm:$0xff]
    %v581 = vld [vmem:[#allocation8 + $0x1b0] sm:$0xff]
    %v582 = vld [vmem:[#allocation8 + $0x1b8] sm:$0xff]
    %v583 = vld [vmem:[#allocation8 + $0x1c0] sm:$0xff]
    %v584 = vld [vmem:[#allocation8 + $0x1c8] sm:$0xff]
    %v585 = vld [vmem:[#allocation8 + $0x1d0] sm:$0xff]
    %v586 = vld [vmem:[#allocation8 + $0x1d8] sm:$0xff]
    %v587 = vld [vmem:[#allocation8 + $0x1e0] sm:$0xff]
    %v588 = vld [vmem:[#allocation8 + $0x1e8] sm:$0xff]
    %v589 = vld [vmem:[#allocation8 + $0x1f0] sm:$0xff]
    %v590 = vld [vmem:[#allocation8 + $0x1f8] sm:$0xff]
    %v591 = vld [vmem:[#allocation8 + $0x200] sm:$0xff]
    %v592 = vld [vmem:[#allocation8 + $0x208] sm:$0xff]
    %v593 = vld [vmem:[#allocation8 + $0x210] sm:$0xff]
    %v594 = vld [vmem:[#allocation8 + $0x218] sm:$0xff]
    %v595 = vld [vmem:[#allocation8 + $0x220] sm:$0xff]
    %v596 = vld [vmem:[#allocation8 + $0x228] sm:$0xff]
    %v597 = vld [vmem:[#allocation8 + $0x230] sm:$0xff]
    %v598 = vld [vmem:[#allocation8 + $0x238] sm:$0xff]
    %v599 = vld [vmem:[#allocation8 + $0x240] sm:$0xff]
    %v600 = vld [vmem:[#allocation8 + $0x248] sm:$0xff]
    %v601 = vld [vmem:[#allocation8 + $0x250] sm:$0xff]
    %v602 = vld [vmem:[#allocation8 + $0x258] sm:$0xff]
    %v603 = vld [vmem:[#allocation8 + $0x260] sm:$0xff]
    %v604 = vld [vmem:[#allocation8 + $0x268] sm:$0xff]
    %v605 = vld [vmem:[#allocation8 + $0x270] sm:$0xff]
    %v606 = vld [vmem:[#allocation8 + $0x278] sm:$0xff]
    %v607 = vld [vmem:[#allocation8 + $0x280] sm:$0xff]
    %v608 = vld [vmem:[#allocation8 + $0x288] sm:$0xff]
    %v609 = vld [vmem:[#allocation8 + $0x290] sm:$0xff]
    %v610 = vld [vmem:[#allocation8 + $0x298] sm:$0xff]
    %v611 = vld [vmem:[#allocation8 + $0x2a0] sm:$0xff]
    %v612 = vld [vmem:[#allocation8 + $0x2a8] sm:$0xff]
    %v613 = vld [vmem:[#allocation8 + $0x2b0] sm:$0xff]
    %v614 = vld [vmem:[#allocation8 + $0x2b8] sm:$0xff]
    %v615 = vld [vmem:[#allocation8 + $0x2c0] sm:$0xff]
    %v616 = vld [vmem:[#allocation8 + $0x2c8] sm:$0xff]
    %v617 = vld [vmem:[#allocation8 + $0x2d0] sm:$0xff]
    %v618 = vld [vmem:[#allocation8 + $0x2d8] sm:$0xff]
    %v619 = vld [vmem:[#allocation8 + $0x2e0] sm:$0xff]
    %v620 = vld [vmem:[#allocation8 + $0x2e8] sm:$0xff]
    %v621 = vld [vmem:[#allocation8 + $0x2f0] sm:$0xff]
    %v622 = vld [vmem:[#allocation8 + $0x2f8] sm:$0xff]
    %v623 = vld [vmem:[#allocation8 + $0x300] sm:$0xff]
    %v624 = vld [vmem:[#allocation8 + $0x308] sm:$0xff]
    %v625 = vld [vmem:[#allocation8 + $0x310] sm:$0xff]
    %v626 = vld [vmem:[#allocation8 + $0x318] sm:$0xff]
    %v627 = vld [vmem:[#allocation8 + $0x320] sm:$0xff]
    %v628 = vld [vmem:[#allocation8 + $0x328] sm:$0xff]
    %v629 = vld [vmem:[#allocation8 + $0x330] sm:$0xff]
    %v630 = vld [vmem:[#allocation8 + $0x338] sm:$0xff]
    %v631 = vld [vmem:[#allocation8 + $0x340] sm:$0xff]
    %v632 = vld [vmem:[#allocation8 + $0x348] sm:$0xff]
    %v633 = vld [vmem:[#allocation8 + $0x350] sm:$0xff]
    %v634 = vld [vmem:[#allocation8 + $0x358] sm:$0xff]
    %v635 = vld [vmem:[#allocation8 + $0x360] sm:$0xff]
    %v636 = vld [vmem:[#allocation8 + $0x368] sm:$0xff]
    %v637 = vld [vmem:[#allocation8 + $0x370] sm:$0xff]
    %v638 = vld [vmem:[#allocation8 + $0x378] sm:$0xff]
    %v639 = vld [vmem:[#allocation8 + $0x380] sm:$0xff]
    %v640 = vld [vmem:[#allocation8 + $0x388] sm:$0xff]
    %v641 = vld [vmem:[#allocation8 + $0x390] sm:$0xff]
    %v642 = vld [vmem:[#allocation8 + $0x398] sm:$0xff]
    %v643 = vld [vmem:[#allocation8 + $0x3a0] sm:$0xff]
    %v644 = vld [vmem:[#allocation8 + $0x3a8] sm:$0xff]
    %v645 = vld [vmem:[#allocation8 + $0x3b0] sm:$0xff]
    %v646 = vld [vmem:[#allocation8 + $0x3b8] sm:$0xff]
    %v647 = vld [vmem:[#allocation8 + $0x3c0] sm:$0xff]
    %v648 = vld [vmem:[#allocation8 + $0x3c8] sm:$0xff]
    %v649 = vld [vmem:[#allocation8 + $0x3d0] sm:$0xff]
    %v650 = vld [vmem:[#allocation8 + $0x3d8] sm:$0xff]
    %v651 = vld [vmem:[#allocation8 + $0x3e0] sm:$0xff]
    %v652 = vld [vmem:[#allocation8 + $0x3e8] sm:$0xff]
    %v653 = vld [vmem:[#allocation8 + $0x3f0] sm:$0xff]
    %v654 = vld [vmem:[#allocation8 + $0x3f8] sm:$0xff]
    %v655 = vld [vmem:[#allocation8 + $0x400] sm:$0xff]
    %v656 = vld [vmem:[#allocation8 + $0x408] sm:$0xff]
    %v657 = vld [vmem:[#allocation8 + $0x410] sm:$0xff]
    %v658 = vld [vmem:[#allocation8 + $0x418] sm:$0xff]
    %v659 = vld [vmem:[#allocation8 + $0x420] sm:$0xff]
    %v660 = vld [vmem:[#allocation8 + $0x428] sm:$0xff]
    %v661 = vld [vmem:[#allocation8 + $0x430] sm:$0xff]
    %v662 = vld [vmem:[#allocation8 + $0x438] sm:$0xff]
    %v663 = vld [vmem:[#allocation8 + $0x440] sm:$0xff]
    %v664 = vld [vmem:[#allocation8 + $0x448] sm:$0xff]
    %v665 = vld [vmem:[#allocation8 + $0x450] sm:$0xff]
    %v666 = vld [vmem:[#allocation8 + $0x458] sm:$0xff]
    %v667 = vld [vmem:[#allocation8 + $0x460] sm:$0xff]
    %v668 = vld [vmem:[#allocation8 + $0x468] sm:$0xff]
    %v669 = vld [vmem:[#allocation8 + $0x470] sm:$0xff]
    %v670 = vld [vmem:[#allocation8 + $0x478] sm:$0xff]
    %v671 = vld [vmem:[#allocation8 + $0x480] sm:$0xff]
    %v672 = vld [vmem:[#allocation8 + $0x488] sm:$0xff]
    %v673 = vld [vmem:[#allocation8 + $0x490] sm:$0xff]
    %v674 = vld [vmem:[#allocation8 + $0x498] sm:$0xff]
    %v675 = vld [vmem:[#allocation8 + $0x4a0] sm:$0xff]
    %v676 = vld [vmem:[#allocation8 + $0x4a8] sm:$0xff]
    %v677 = vld [vmem:[#allocation8 + $0x4b0] sm:$0xff]
    %v678 = vld [vmem:[#allocation8 + $0x4b8] sm:$0xff]
    %v679 = vld [vmem:[#allocation8 + $0x4c0] sm:$0xff]
    %v680 = vld [vmem:[#allocation8 + $0x4c8] sm:$0xff]
    %v681 = vld [vmem:[#allocation8 + $0x4d0] sm:$0xff]
    %v682 = vld [vmem:[#allocation8 + $0x4d8] sm:$0xff]
    %v683 = vld [vmem:[#allocation8 + $0x4e0] sm:$0xff]
    %v684 = vld [vmem:[#allocation8 + $0x4e8] sm:$0xff]
    %v685 = vld [vmem:[#allocation8 + $0x4f0] sm:$0xff]
    %v686 = vld [vmem:[#allocation8 + $0x4f8] sm:$0xff]
    %v687 = vld [vmem:[#allocation8 + $0x500] sm:$0xff]
    %v688 = vld [vmem:[#allocation8 + $0x508] sm:$0xff]
    %v689 = vld [vmem:[#allocation8 + $0x510] sm:$0xff]
    %v690 = vld [vmem:[#allocation8 + $0x518] sm:$0xff]
    %v691 = vld [vmem:[#allocation8 + $0x520] sm:$0xff]
    %v692 = vld [vmem:[#allocation8 + $0x528] sm:$0xff]
    %v693 = vld [vmem:[#allocation8 + $0x530] sm:$0xff]
    %v694 = vld [vmem:[#allocation8 + $0x538] sm:$0xff]
    %v695 = vld [vmem:[#allocation8 + $0x540] sm:$0xff]
    %v696 = vld [vmem:[#allocation8 + $0x548] sm:$0xff]
    %v697 = vld [vmem:[#allocation8 + $0x550] sm:$0xff]
    %v698 = vld [vmem:[#allocation8 + $0x558] sm:$0xff]
    %v699 = vld [vmem:[#allocation8 + $0x560] sm:$0xff]
    %v700 = vld [vmem:[#allocation8 + $0x568] sm:$0xff]
    %v701 = vld [vmem:[#allocation8 + $0x570] sm:$0xff]
    %v702 = vld [vmem:[#allocation8 + $0x578] sm:$0xff]
    %v703 = vld [vmem:[#allocation8 + $0x580] sm:$0xff]
    %v704 = vld [vmem:[#allocation8 + $0x588] sm:$0xff]
    %v705 = vld [vmem:[#allocation8 + $0x590] sm:$0xff]
    %v706 = vld [vmem:[#allocation8 + $0x598] sm:$0xff]
    %v707 = vld [vmem:[#allocation8 + $0x5a0] sm:$0xff]
    %v708 = vld [vmem:[#allocation8 + $0x5a8] sm:$0xff]
    %v709 = vld [vmem:[#allocation8 + $0x5b0] sm:$0xff]
    %v710 = vld [vmem:[#allocation8 + $0x5b8] sm:$0xff]
    %v711 = vld [vmem:[#allocation8 + $0x5c0] sm:$0xff]
    %v712 = vld [vmem:[#allocation8 + $0x5c8] sm:$0xff]
    %v713 = vld [vmem:[#allocation8 + $0x5d0] sm:$0xff]
    %v714 = vld [vmem:[#allocation8 + $0x5d8] sm:$0xff]
    %v715 = vld [vmem:[#allocation8 + $0x5e0] sm:$0xff]
    %v716 = vld [vmem:[#allocation8 + $0x5e8] sm:$0xff]
    %v717 = vld [vmem:[#allocation8 + $0x5f0] sm:$0xff]
    %v718 = vld [vmem:[#allocation8 + $0x5f8] sm:$0xff]
    %v719 = vld [vmem:[#allocation8 + $0x600] sm:$0xff]
    %v720 = vld [vmem:[#allocation8 + $0x608] sm:$0xff]
    %v721 = vld [vmem:[#allocation8 + $0x610] sm:$0xff]
    %v722 = vld [vmem:[#allocation8 + $0x618] sm:$0xff]
    %v723 = vld [vmem:[#allocation8 + $0x620] sm:$0xff]
    %v724 = vld [vmem:[#allocation8 + $0x628] sm:$0xff]
    %v725 = vld [vmem:[#allocation8 + $0x630] sm:$0xff]
    %v726 = vld [vmem:[#allocation8 + $0x638] sm:$0xff]
    %v727 = vld [vmem:[#allocation8 + $0x640] sm:$0xff]
    %v728 = vld [vmem:[#allocation8 + $0x648] sm:$0xff]
    %v729 = vld [vmem:[#allocation8 + $0x650] sm:$0xff]
    %v730 = vld [vmem:[#allocation8 + $0x658] sm:$0xff]
    %v731 = vld [vmem:[#allocation8 + $0x660] sm:$0xff]
    %v732 = vld [vmem:[#allocation8 + $0x668] sm:$0xff]
    %v733 = vld [vmem:[#allocation8 + $0x670] sm:$0xff]
    %v734 = vld [vmem:[#allocation8 + $0x678] sm:$0xff]
    %v735 = vld [vmem:[#allocation8 + $0x680] sm:$0xff]
    %v736 = vld [vmem:[#allocation8 + $0x688] sm:$0xff]
    %v737 = vld [vmem:[#allocation8 + $0x690] sm:$0xff]
    %v738 = vld [vmem:[#allocation8 + $0x698] sm:$0xff]
    %v739 = vld [vmem:[#allocation8 + $0x6a0] sm:$0xff]
    %v740 = vld [vmem:[#allocation8 + $0x6a8] sm:$0xff]
    %v741 = vld [vmem:[#allocation8 + $0x6b0] sm:$0xff]
    %v742 = vld [vmem:[#allocation8 + $0x6b8] sm:$0xff]
    %v743 = vld [vmem:[#allocation8 + $0x6c0] sm:$0xff]
    %v744 = vld [vmem:[#allocation8 + $0x6c8] sm:$0xff]
    %v745 = vld [vmem:[#allocation8 + $0x6d0] sm:$0xff]
    %v746 = vld [vmem:[#allocation8 + $0x6d8] sm:$0xff]
    %v747 = vld [vmem:[#allocation8 + $0x6e0] sm:$0xff]
    %v748 = vld [vmem:[#allocation8 + $0x6e8] sm:$0xff]
    %v749 = vld [vmem:[#allocation8 + $0x6f0] sm:$0xff]
    %v750 = vld [vmem:[#allocation8 + $0x6f8] sm:$0xff]
    %v751 = vld [vmem:[#allocation8 + $0x700] sm:$0xff]
    %v752 = vld [vmem:[#allocation8 + $0x708] sm:$0xff]
    %v753 = vld [vmem:[#allocation8 + $0x710] sm:$0xff]
    %v754 = vld [vmem:[#allocation8 + $0x718] sm:$0xff]
    %v755 = vld [vmem:[#allocation8 + $0x720] sm:$0xff]
    %v756 = vld [vmem:[#allocation8 + $0x728] sm:$0xff]
    %v757 = vld [vmem:[#allocation8 + $0x730] sm:$0xff]
    %v758 = vld [vmem:[#allocation8 + $0x738] sm:$0xff]
    %v759 = vld [vmem:[#allocation8 + $0x740] sm:$0xff]
    %v760 = vld [vmem:[#allocation8 + $0x748] sm:$0xff]
    %v761 = vld [vmem:[#allocation8 + $0x750] sm:$0xff]
    %v762 = vld [vmem:[#allocation8 + $0x758] sm:$0xff]
    %v763 = vld [vmem:[#allocation8 + $0x760] sm:$0xff]
    %v764 = vld [vmem:[#allocation8 + $0x768] sm:$0xff]
    %v765 = vld [vmem:[#allocation8 + $0x770] sm:$0xff]
    %v766 = vld [vmem:[#allocation8 + $0x778] sm:$0xff]
    %v767 = vld [vmem:[#allocation8 + $0x780] sm:$0xff]
    %v768 = vld [vmem:[#allocation8 + $0x788] sm:$0xff]
    %v769 = vld [vmem:[#allocation8 + $0x790] sm:$0xff]
    %v770 = vld [vmem:[#allocation8 + $0x798] sm:$0xff]
    %v771 = vld [vmem:[#allocation8 + $0x7a0] sm:$0xff]
    %v772 = vld [vmem:[#allocation8 + $0x7a8] sm:$0xff]
    %v773 = vld [vmem:[#allocation8 + $0x7b0] sm:$0xff]
    %v774 = vld [vmem:[#allocation8 + $0x7b8] sm:$0xff]
    %v775 = vld [vmem:[#allocation8 + $0x7c0] sm:$0xff]
    %v776 = vld [vmem:[#allocation8 + $0x7c8] sm:$0xff]
    %v777 = vld [vmem:[#allocation8 + $0x7d0] sm:$0xff]
    %v778 = vld [vmem:[#allocation8 + $0x7d8] sm:$0xff]
    %v779 = vld [vmem:[#allocation8 + $0x7e0] sm:$0xff]
    %v780 = vld [vmem:[#allocation8 + $0x7e8] sm:$0xff]
    %v781 = vld [vmem:[#allocation8 + $0x7f0] sm:$0xff]
    %v782 = vld [vmem:[#allocation8 + $0x7f8] sm:$0xff]
    %v783 = vld [vmem:[#allocation8 + $0x800] sm:$0xff]
    %v784 = vld [vmem:[#allocation8 + $0x808] sm:$0xff]
    %v785 = vld [vmem:[#allocation8 + $0x810] sm:$0xff]
    %v786 = vld [vmem:[#allocation8 + $0x818] sm:$0xff]
    %v787 = vld [vmem:[#allocation8 + $0x820] sm:$0xff]
    %v788 = vld [vmem:[#allocation8 + $0x828] sm:$0xff]
    %v789 = vld [vmem:[#allocation8 + $0x830] sm:$0xff]
    %v790 = vld [vmem:[#allocation8 + $0x838] sm:$0xff]
    %v791 = vld [vmem:[#allocation8 + $0x840] sm:$0xff]
    %v792 = vld [vmem:[#allocation8 + $0x848] sm:$0xff]
    %v793 = vld [vmem:[#allocation8 + $0x850] sm:$0xff]
    %v794 = vld [vmem:[#allocation8 + $0x858] sm:$0xff]
    %v795 = vld [vmem:[#allocation8 + $0x860] sm:$0xff]
    %v796 = vld [vmem:[#allocation8 + $0x868] sm:$0xff]
    %v797 = vld [vmem:[#allocation8 + $0x870] sm:$0xff]
    %v798 = vld [vmem:[#allocation8 + $0x878] sm:$0xff]
    %v799 = vld [vmem:[#allocation8 + $0x880] sm:$0xff]
    %v800 = vld [vmem:[#allocation8 + $0x888] sm:$0xff]
    %v801 = vld [vmem:[#allocation8 + $0x890] sm:$0xff]
    %v802 = vld [vmem:[#allocation8 + $0x898] sm:$0xff]
    %v803 = vld [vmem:[#allocation8 + $0x8a0] sm:$0xff]
    %v804 = vld [vmem:[#allocation8 + $0x8a8] sm:$0xff]
    %v805 = vld [vmem:[#allocation8 + $0x8b0] sm:$0xff]
    %v806 = vld [vmem:[#allocation8 + $0x8b8] sm:$0xff]
    %v807 = vld [vmem:[#allocation8 + $0x8c0] sm:$0xff]
    %v808 = vld [vmem:[#allocation8 + $0x8c8] sm:$0xff]
    %v809 = vld [vmem:[#allocation8 + $0x8d0] sm:$0xff]
    %v810 = vld [vmem:[#allocation8 + $0x8d8] sm:$0xff]
    %v811 = vld [vmem:[#allocation8 + $0x8e0] sm:$0xff]
    %v812 = vld [vmem:[#allocation8 + $0x8e8] sm:$0xff]
    %v813 = vld [vmem:[#allocation8 + $0x8f0] sm:$0xff]
    %v814 = vld [vmem:[#allocation8 + $0x8f8] sm:$0xff]
    %v815 = vld [vmem:[#allocation8 + $0x900] sm:$0xff]
    %v816 = vld [vmem:[#allocation8 + $0x908] sm:$0xff]
    %v817 = vld [vmem:[#allocation8 + $0x910] sm:$0xff]
    %v818 = vld [vmem:[#allocation8 + $0x918] sm:$0xff]
    %v819 = vld [vmem:[#allocation8 + $0x920] sm:$0xff]
    %v820 = vld [vmem:[#allocation8 + $0x928] sm:$0xff]
    %v821 = vld [vmem:[#allocation8 + $0x930] sm:$0xff]
    %v822 = vld [vmem:[#allocation8 + $0x938] sm:$0xff]
    %v823 = vld [vmem:[#allocation8 + $0x940] sm:$0xff]
    %v824 = vld [vmem:[#allocation8 + $0x948] sm:$0xff]
    %v825 = vld [vmem:[#allocation8 + $0x950] sm:$0xff]
    %v826 = vld [vmem:[#allocation8 + $0x958] sm:$0xff]
    %v827 = vld [vmem:[#allocation8 + $0x960] sm:$0xff]
    %v828 = vld [vmem:[#allocation8 + $0x968] sm:$0xff]
    %v829 = vld [vmem:[#allocation8 + $0x970] sm:$0xff]
    %v830 = vld [vmem:[#allocation8 + $0x978] sm:$0xff]
    %v831 = vld [vmem:[#allocation8 + $0x980] sm:$0xff]
    %v832 = vld [vmem:[#allocation8 + $0x988] sm:$0xff]
    %v833 = vld [vmem:[#allocation8 + $0x990] sm:$0xff]
    %v834 = vld [vmem:[#allocation8 + $0x998] sm:$0xff]
    %v835 = vld [vmem:[#allocation8 + $0x9a0] sm:$0xff]
    %v836 = vld [vmem:[#allocation8 + $0x9a8] sm:$0xff]
    %v837 = vld [vmem:[#allocation8 + $0x9b0] sm:$0xff]
    %v838 = vld [vmem:[#allocation8 + $0x9b8] sm:$0xff]
    %v839 = vld [vmem:[#allocation8 + $0x9c0] sm:$0xff]
    %v840 = vld [vmem:[#allocation8 + $0x9c8] sm:$0xff]
    %v841 = vld [vmem:[#allocation8 + $0x9d0] sm:$0xff]
    %v842 = vld [vmem:[#allocation8 + $0x9d8] sm:$0xff]
    %v843 = vld [vmem:[#allocation8 + $0x9e0] sm:$0xff]
    %v844 = vld [vmem:[#allocation8 + $0x9e8] sm:$0xff]
    %v845 = vld [vmem:[#allocation8 + $0x9f0] sm:$0xff]
    %v846 = vld [vmem:[#allocation8 + $0x9f8] sm:$0xff]
    %v847 = vld [vmem:[#allocation8 + $0xa00] sm:$0xff]
    %v848 = vld [vmem:[#allocation8 + $0xa08] sm:$0xff]
    %v849 = vld [vmem:[#allocation8 + $0xa10] sm:$0xff]
    %v850 = vld [vmem:[#allocation8 + $0xa18] sm:$0xff]
    %v851 = vld [vmem:[#allocation8 + $0xa20] sm:$0xff]
    %v852 = vld [vmem:[#allocation8 + $0xa28] sm:$0xff]
    %v853 = vld [vmem:[#allocation8 + $0xa30] sm:$0xff]
    %v854 = vld [vmem:[#allocation8 + $0xa38] sm:$0xff]
    %v855 = vld [vmem:[#allocation8 + $0xa40] sm:$0xff]
    %v856 = vld [vmem:[#allocation8 + $0xa48] sm:$0xff]
    %v857 = vld [vmem:[#allocation8 + $0xa50] sm:$0xff]
    %v858 = vld [vmem:[#allocation8 + $0xa58] sm:$0xff]
    %v859 = vld [vmem:[#allocation8 + $0xa60] sm:$0xff]
    %v860 = vld [vmem:[#allocation8 + $0xa68] sm:$0xff]
    %v861 = vld [vmem:[#allocation8 + $0xa70] sm:$0xff]
    %v862 = vld [vmem:[#allocation8 + $0xa78] sm:$0xff]
    %v863 = vld [vmem:[#allocation8 + $0xa80] sm:$0xff]
    %v864 = vld [vmem:[#allocation8 + $0xa88] sm:$0xff]
    %v865 = vld [vmem:[#allocation8 + $0xa90] sm:$0xff]
    %v866 = vld [vmem:[#allocation8 + $0xa98] sm:$0xff]
    %v867 = vld [vmem:[#allocation8 + $0xaa0] sm:$0xff]
    %v868 = vld [vmem:[#allocation8 + $0xaa8] sm:$0xff]
    %v869 = vld [vmem:[#allocation8 + $0xab0] sm:$0xff]
    %v870 = vld [vmem:[#allocation8 + $0xab8] sm:$0xff]
    %v871 = vld [vmem:[#allocation8 + $0xac0] sm:$0xff]
    %v872 = vld [vmem:[#allocation8 + $0xac8] sm:$0xff]
    %v873 = vld [vmem:[#allocation8 + $0xad0] sm:$0xff]
    %v874 = vld [vmem:[#allocation8 + $0xad8] sm:$0xff]
    %v875 = vld [vmem:[#allocation8 + $0xae0] sm:$0xff]
    %v876 = vld [vmem:[#allocation8 + $0xae8] sm:$0xff]
    %v877 = vld [vmem:[#allocation8 + $0xaf0] sm:$0xff]
    %v878 = vld [vmem:[#allocation8 + $0xaf8] sm:$0xff]
    %v879 = vld [vmem:[#allocation8 + $0xb00] sm:$0xff]
    %v880 = vld [vmem:[#allocation8 + $0xb08] sm:$0xff]
    %v881 = vld [vmem:[#allocation8 + $0xb10] sm:$0xff]
    %v882 = vld [vmem:[#allocation8 + $0xb18] sm:$0xff]
    %v883 = vld [vmem:[#allocation8 + $0xb20] sm:$0xff]
    %v884 = vld [vmem:[#allocation8 + $0xb28] sm:$0xff]
    %v885 = vld [vmem:[#allocation8 + $0xb30] sm:$0xff]
    %v886 = vld [vmem:[#allocation8 + $0xb38] sm:$0xff]
    %v887 = vld [vmem:[#allocation8 + $0xb40] sm:$0xff]
    %v888 = vld [vmem:[#allocation8 + $0xb48] sm:$0xff]
    %v889 = vld [vmem:[#allocation8 + $0xb50] sm:$0xff]
    %v890 = vld [vmem:[#allocation8 + $0xb58] sm:$0xff]
    %v891 = vld [vmem:[#allocation8 + $0xb60] sm:$0xff]
    %v892 = vld [vmem:[#allocation8 + $0xb68] sm:$0xff]
    %v893 = vld [vmem:[#allocation8 + $0xb70] sm:$0xff]
    %v894 = vld [vmem:[#allocation8 + $0xb78] sm:$0xff]
    %v895 = vld [vmem:[#allocation8 + $0xb80] sm:$0xff]
    %v896 = vld [vmem:[#allocation8 + $0xb88] sm:$0xff]
    %v897 = vld [vmem:[#allocation8 + $0xb90] sm:$0xff]
    %v898 = vld [vmem:[#allocation8 + $0xb98] sm:$0xff]
    %v899 = vld [vmem:[#allocation8 + $0xba0] sm:$0xff]
    %v900 = vld [vmem:[#allocation8 + $0xba8] sm:$0xff]
    %v901 = vld [vmem:[#allocation8 + $0xbb0] sm:$0xff]
    %v902 = vld [vmem:[#allocation8 + $0xbb8] sm:$0xff]
    %v903 = vld [vmem:[#allocation8 + $0xbc0] sm:$0xff]
    %v904 = vld [vmem:[#allocation8 + $0xbc8] sm:$0xff]
    %v905 = vld [vmem:[#allocation8 + $0xbd0] sm:$0xff]
    %v906 = vld [vmem:[#allocation8 + $0xbd8] sm:$0xff]
    %v907 = vld [vmem:[#allocation8 + $0xbe0] sm:$0xff]
    %v908 = vld [vmem:[#allocation8 + $0xbe8] sm:$0xff]
    %v909 = vld [vmem:[#allocation8 + $0xbf0] sm:$0xff]
    %v910 = vld [vmem:[#allocation8 + $0xbf8] sm:$0xff]
    %v911 = vld [vmem:[#allocation8 + $0xc00] sm:$0xff]
    %v912 = vld [vmem:[#allocation8 + $0xc08] sm:$0xff]
    %v913 = vld [vmem:[#allocation8 + $0xc10] sm:$0xff]
    %v914 = vld [vmem:[#allocation8 + $0xc18] sm:$0xff]
    %v915 = vld [vmem:[#allocation8 + $0xc20] sm:$0xff]
    %v916 = vld [vmem:[#allocation8 + $0xc28] sm:$0xff]
    %v917 = vld [vmem:[#allocation8 + $0xc30] sm:$0xff]
    %v918 = vld [vmem:[#allocation8 + $0xc38] sm:$0xff]
    %v919 = vld [vmem:[#allocation8 + $0xc40] sm:$0xff]
    %v920 = vld [vmem:[#allocation8 + $0xc48] sm:$0xff]
    %v921 = vld [vmem:[#allocation8 + $0xc50] sm:$0xff]
    %v922 = vld [vmem:[#allocation8 + $0xc58] sm:$0xff]
    %v923 = vld [vmem:[#allocation8 + $0xc60] sm:$0xff]
    %v924 = vld [vmem:[#allocation8 + $0xc68] sm:$0xff]
    %v925 = vld [vmem:[#allocation8 + $0xc70] sm:$0xff]
    %v926 = vld [vmem:[#allocation8 + $0xc78] sm:$0xff]
    %v927 = vld [vmem:[#allocation8 + $0xc80] sm:$0xff]
    %v928 = vld [vmem:[#allocation8 + $0xc88] sm:$0xff]
    %v929 = vld [vmem:[#allocation8 + $0xc90] sm:$0xff]
    %v930 = vld [vmem:[#allocation8 + $0xc98] sm:$0xff]
    %v931 = vld [vmem:[#allocation8 + $0xca0] sm:$0xff]
    %v932 = vld [vmem:[#allocation8 + $0xca8] sm:$0xff]
    %v933 = vld [vmem:[#allocation8 + $0xcb0] sm:$0xff]
    %v934 = vld [vmem:[#allocation8 + $0xcb8] sm:$0xff]
    %v935 = vld [vmem:[#allocation8 + $0xcc0] sm:$0xff]
    %v936 = vld [vmem:[#allocation8 + $0xcc8] sm:$0xff]
    %v937 = vld [vmem:[#allocation8 + $0xcd0] sm:$0xff]
    %v938 = vld [vmem:[#allocation8 + $0xcd8] sm:$0xff]
    %v939 = vld [vmem:[#allocation8 + $0xce0] sm:$0xff]
    %v940 = vld [vmem:[#allocation8 + $0xce8] sm:$0xff]
    %v941 = vld [vmem:[#allocation8 + $0xcf0] sm:$0xff]
    %v942 = vld [vmem:[#allocation8 + $0xcf8] sm:$0xff]
    %v943 = vld [vmem:[#allocation8 + $0xd00] sm:$0xff]
    %v944 = vld [vmem:[#allocation8 + $0xd08] sm:$0xff]
    %v945 = vld [vmem:[#allocation8 + $0xd10] sm:$0xff]
    %v946 = vld [vmem:[#allocation8 + $0xd18] sm:$0xff]
    %v947 = vld [vmem:[#allocation8 + $0xd20] sm:$0xff]
    %v948 = vld [vmem:[#allocation8 + $0xd28] sm:$0xff]
    %v949 = vld [vmem:[#allocation8 + $0xd30] sm:$0xff]
    %v950 = vld [vmem:[#allocation8 + $0xd38] sm:$0xff]
    %v951 = vld [vmem:[#allocation8 + $0xd40] sm:$0xff]
    %v952 = vld [vmem:[#allocation8 + $0xd48] sm:$0xff]
    %v953 = vld [vmem:[#allocation8 + $0xd50] sm:$0xff]
    %v954 = vld [vmem:[#allocation8 + $0xd58] sm:$0xff]
    %v955 = vld [vmem:[#allocation8 + $0xd60] sm:$0xff]
    %v956 = vld [vmem:[#allocation8 + $0xd68] sm:$0xff]
    %v957 = vld [vmem:[#allocation8 + $0xd70] sm:$0xff]
    %v958 = vld [vmem:[#allocation8 + $0xd78] sm:$0xff]
    %v959 = vld [vmem:[#allocation8 + $0xd80] sm:$0xff]
    %v960 = vld [vmem:[#allocation8 + $0xd88] sm:$0xff]
    %v961 = vld [vmem:[#allocation8 + $0xd90] sm:$0xff]
    %v962 = vld [vmem:[#allocation8 + $0xd98] sm:$0xff]
    %v963 = vld [vmem:[#allocation8 + $0xda0] sm:$0xff]
    %v964 = vld [vmem:[#allocation8 + $0xda8] sm:$0xff]
    %v965 = vld [vmem:[#allocation8 + $0xdb0] sm:$0xff]
    %v966 = vld [vmem:[#allocation8 + $0xdb8] sm:$0xff]
    %v967 = vld [vmem:[#allocation8 + $0xdc0] sm:$0xff]
    %v968 = vld [vmem:[#allocation8 + $0xdc8] sm:$0xff]
    %v969 = vld [vmem:[#allocation8 + $0xdd0] sm:$0xff]
    %v970 = vld [vmem:[#allocation8 + $0xdd8] sm:$0xff]
    %v971 = vld [vmem:[#allocation8 + $0xde0] sm:$0xff]
    %v972 = vld [vmem:[#allocation8 + $0xde8] sm:$0xff]
    %v973 = vld [vmem:[#allocation8 + $0xdf0] sm:$0xff]
    %v974 = vld [vmem:[#allocation8 + $0xdf8] sm:$0xff]
    %v975 = vld [vmem:[#allocation8 + $0xe00] sm:$0xff]
    %v976 = vld [vmem:[#allocation8 + $0xe08] sm:$0xff]
    %v977 = vld [vmem:[#allocation8 + $0xe10] sm:$0xff]
    %v978 = vld [vmem:[#allocation8 + $0xe18] sm:$0xff]
    %v979 = vld [vmem:[#allocation8 + $0xe20] sm:$0xff]
    %v980 = vld [vmem:[#allocation8 + $0xe28] sm:$0xff]
    %v981 = vld [vmem:[#allocation8 + $0xe30] sm:$0xff]
    %v982 = vld [vmem:[#allocation8 + $0xe38] sm:$0xff]
    %v983 = vld [vmem:[#allocation8 + $0xe40] sm:$0xff]
    %v984 = vld [vmem:[#allocation8 + $0xe48] sm:$0xff]
    %v985 = vld [vmem:[#allocation8 + $0xe50] sm:$0xff]
    %v986 = vld [vmem:[#allocation8 + $0xe58] sm:$0xff]
    %v987 = vld [vmem:[#allocation8 + $0xe60] sm:$0xff]
    %v988 = vld [vmem:[#allocation8 + $0xe68] sm:$0xff]
    %v989 = vld [vmem:[#allocation8 + $0xe70] sm:$0xff]
    %v990 = vld [vmem:[#allocation8 + $0xe78] sm:$0xff]
    %v991 = vld [vmem:[#allocation8 + $0xe80] sm:$0xff]
    %v992 = vld [vmem:[#allocation8 + $0xe88] sm:$0xff]
    %v993 = vld [vmem:[#allocation8 + $0xe90] sm:$0xff]
    %v994 = vld [vmem:[#allocation8 + $0xe98] sm:$0xff]
    %v995 = vld [vmem:[#allocation8 + $0xea0] sm:$0xff]
    %v996 = vld [vmem:[#allocation8 + $0xea8] sm:$0xff]
    %v997 = vld [vmem:[#allocation8 + $0xeb0] sm:$0xff]
    %v998 = vld [vmem:[#allocation8 + $0xeb8] sm:$0xff]
    %v999 = vld [vmem:[#allocation8 + $0xec0] sm:$0xff]
    %v1000 = vld [vmem:[#allocation8 + $0xec8] sm:$0xff]
    %v1001 = vld [vmem:[#allocation8 + $0xed0] sm:$0xff]
    %v1002 = vld [vmem:[#allocation8 + $0xed8] sm:$0xff]
    %v1003 = vld [vmem:[#allocation8 + $0xee0] sm:$0xff]
    %v1004 = vld [vmem:[#allocation8 + $0xee8] sm:$0xff]
    %v1005 = vld [vmem:[#allocation8 + $0xef0] sm:$0xff]
    %v1006 = vld [vmem:[#allocation8 + $0xef8] sm:$0xff]
    %v1007 = vld [vmem:[#allocation8 + $0xf00] sm:$0xff]
    %v1008 = vld [vmem:[#allocation8 + $0xf08] sm:$0xff]
    %v1009 = vld [vmem:[#allocation8 + $0xf10] sm:$0xff]
    %v1010 = vld [vmem:[#allocation8 + $0xf18] sm:$0xff]
    %v1011 = vld [vmem:[#allocation8 + $0xf20] sm:$0xff]
    %v1012 = vld [vmem:[#allocation8 + $0xf28] sm:$0xff]
    %v1013 = vld [vmem:[#allocation8 + $0xf30] sm:$0xff]
    %v1014 = vld [vmem:[#allocation8 + $0xf38] sm:$0xff]
    %v1015 = vld [vmem:[#allocation8 + $0xf40] sm:$0xff]
    %v1016 = vld [vmem:[#allocation8 + $0xf48] sm:$0xff]
    %v1017 = vld [vmem:[#allocation8 + $0xf50] sm:$0xff]
    %v1018 = vld [vmem:[#allocation8 + $0xf58] sm:$0xff]
    %v1019 = vld [vmem:[#allocation8 + $0xf60] sm:$0xff]
    %v1020 = vld [vmem:[#allocation8 + $0xf68] sm:$0xff]
    %v1021 = vld [vmem:[#allocation8 + $0xf70] sm:$0xff]
    %v1022 = vld [vmem:[#allocation8 + $0xf78] sm:$0xff]
    %v1023 = vld [vmem:[#allocation8 + $0xf80] sm:$0xff]
    %v1024 = vld [vmem:[#allocation8 + $0xf88] sm:$0xff]
    %v1025 = vld [vmem:[#allocation8 + $0xf90] sm:$0xff]
    %v1026 = vld [vmem:[#allocation8 + $0xf98] sm:$0xff]
    %v1027 = vld [vmem:[#allocation8 + $0xfa0] sm:$0xff]
    %v1028 = vld [vmem:[#allocation8 + $0xfa8] sm:$0xff]
    %v1029 = vld [vmem:[#allocation8 + $0xfb0] sm:$0xff]
    %v1030 = vld [vmem:[#allocation8 + $0xfb8] sm:$0xff]
    %v1031 = vld [vmem:[#allocation8 + $0xfc0] sm:$0xff]
    %v1032 = vld [vmem:[#allocation8 + $0xfc8] sm:$0xff]
    %v1033 = vld [vmem:[#allocation8 + $0xfd0] sm:$0xff]
    %v1034 = vld [vmem:[#allocation8 + $0xfd8] sm:$0xff]
    %v1035 = vld [vmem:[#allocation8 + $0xfe0] sm:$0xff]
    %v1036 = vld [vmem:[#allocation8 + $0xfe8] sm:$0xff]
    %v1037 = vld [vmem:[#allocation8 + $0xff0] sm:$0xff]
    %v1038 = vld [vmem:[#allocation8 + $0xff8] sm:$0xff]
    %v1039 = vld [vmem:[#allocation10] sm:$0xff]
    %v1041 = vlaneseq
    %v1042 = vshrl.u32 %v1041, 7
    %v1043 = vsub.s32 0, %v1042
    %v1044 = vrot.slane %v1039, %v1043
    %v1045 = vlaneseq
    %v1046 = vshrl.u32 %v1045, 7
    %v1047 = vsub.s32 1, %v1046
    %v1048 = vrot.slane %v1039, %v1047
    %v1049 = vlaneseq
    %v1050 = vshrl.u32 %v1049, 7
    %v1051 = vsub.s32 2, %v1050
    %v1052 = vrot.slane %v1039, %v1051
    %v1053 = vlaneseq
    %v1054 = vshrl.u32 %v1053, 7
    %v1055 = vsub.s32 3, %v1054
    %v1056 = vrot.slane %v1039, %v1055
    %v1057 = vlaneseq
    %v1058 = vshrl.u32 %v1057, 7
    %v1059 = vsub.s32 4, %v1058
    %v1060 = vrot.slane %v1039, %v1059
    %v1061 = vlaneseq
    %v1062 = vshrl.u32 %v1061, 7
    %v1063 = vsub.s32 5, %v1062
    %v1064 = vrot.slane %v1039, %v1063
    %v1065 = vlaneseq
    %v1066 = vshrl.u32 %v1065, 7
    %v1067 = vsub.s32 6, %v1066
    %v1068 = vrot.slane %v1039, %v1067
    %v1069 = vlaneseq
    %v1070 = vshrl.u32 %v1069, 7
    %v1071 = vsub.s32 7, %v1070
    %v1072 = vrot.slane %v1039, %v1071
    %v1593 = vunpack.c.l.b16 %v527
    %v1594 = vunpack.c.h.b16 %v527
    %v1595 = vunpack.c.l.b16 %v528
    %v1596 = vunpack.c.h.b16 %v528
    %v1597 = vunpack.c.l.b16 %v529
    %v1598 = vunpack.c.h.b16 %v529
    %v1599 = vunpack.c.l.b16 %v530
    %v1600 = vunpack.c.h.b16 %v530
    %v1601 = vunpack.c.l.b16 %v531
    %v1602 = vunpack.c.h.b16 %v531
    %v1603 = vunpack.c.l.b16 %v532
    %v1604 = vunpack.c.h.b16 %v532
    %v1605 = vunpack.c.l.b16 %v533
    %v1606 = vunpack.c.h.b16 %v533
    %v1607 = vunpack.c.l.b16 %v534
    %v1608 = vunpack.c.h.b16 %v534
    %v1609 = vunpack.c.l.b16 %v535
    %v1610 = vunpack.c.h.b16 %v535
    %v1611 = vunpack.c.l.b16 %v536
    %v1612 = vunpack.c.h.b16 %v536
    %v1613 = vunpack.c.l.b16 %v537
    %v1614 = vunpack.c.h.b16 %v537
    %v1615 = vunpack.c.l.b16 %v538
    %v1616 = vunpack.c.h.b16 %v538
    %v1617 = vunpack.c.l.b16 %v539
    %v1618 = vunpack.c.h.b16 %v539
    %v1619 = vunpack.c.l.b16 %v540
    %v1620 = vunpack.c.h.b16 %v540
    %v1621 = vunpack.c.l.b16 %v541
    %v1622 = vunpack.c.h.b16 %v541
    %v1623 = vunpack.c.l.b16 %v542
    %v1624 = vunpack.c.h.b16 %v542
    %v1625 = vunpack.c.l.b16 %v543
    %v1626 = vunpack.c.h.b16 %v543
    %v1627 = vunpack.c.l.b16 %v544
    %v1628 = vunpack.c.h.b16 %v544
    %v1629 = vunpack.c.l.b16 %v545
    %v1630 = vunpack.c.h.b16 %v545
    %v1631 = vunpack.c.l.b16 %v546
    %v1632 = vunpack.c.h.b16 %v546
    %v1633 = vunpack.c.l.b16 %v547
    %v1634 = vunpack.c.h.b16 %v547
    %v1635 = vunpack.c.l.b16 %v548
    %v1636 = vunpack.c.h.b16 %v548
    %v1637 = vunpack.c.l.b16 %v549
    %v1638 = vunpack.c.h.b16 %v549
    %v1639 = vunpack.c.l.b16 %v550
    %v1640 = vunpack.c.h.b16 %v550
    %v1641 = vunpack.c.l.b16 %v551
    %v1642 = vunpack.c.h.b16 %v551
    %v1643 = vunpack.c.l.b16 %v552
    %v1644 = vunpack.c.h.b16 %v552
    %v1645 = vunpack.c.l.b16 %v553
    %v1646 = vunpack.c.h.b16 %v553
    %v1647 = vunpack.c.l.b16 %v554
    %v1648 = vunpack.c.h.b16 %v554
    %v1649 = vunpack.c.l.b16 %v555
    %v1650 = vunpack.c.h.b16 %v555
    %v1651 = vunpack.c.l.b16 %v556
    %v1652 = vunpack.c.h.b16 %v556
    %v1653 = vunpack.c.l.b16 %v557
    %v1654 = vunpack.c.h.b16 %v557
    %v1655 = vunpack.c.l.b16 %v558
    %v1656 = vunpack.c.h.b16 %v558
    %v1657 = vunpack.c.l.b16 %v559
    %v1658 = vunpack.c.h.b16 %v559
    %v1659 = vunpack.c.l.b16 %v560
    %v1660 = vunpack.c.h.b16 %v560
    %v1661 = vunpack.c.l.b16 %v561
    %v1662 = vunpack.c.h.b16 %v561
    %v1663 = vunpack.c.l.b16 %v562
    %v1664 = vunpack.c.h.b16 %v562
    %v1665 = vunpack.c.l.b16 %v563
    %v1666 = vunpack.c.h.b16 %v563
    %v1667 = vunpack.c.l.b16 %v564
    %v1668 = vunpack.c.h.b16 %v564
    %v1669 = vunpack.c.l.b16 %v565
    %v1670 = vunpack.c.h.b16 %v565
    %v1671 = vunpack.c.l.b16 %v566
    %v1672 = vunpack.c.h.b16 %v566
    %v1673 = vunpack.c.l.b16 %v567
    %v1674 = vunpack.c.h.b16 %v567
    %v1675 = vunpack.c.l.b16 %v568
    %v1676 = vunpack.c.h.b16 %v568
    %v1677 = vunpack.c.l.b16 %v569
    %v1678 = vunpack.c.h.b16 %v569
    %v1679 = vunpack.c.l.b16 %v570
    %v1680 = vunpack.c.h.b16 %v570
    %v1681 = vunpack.c.l.b16 %v571
    %v1682 = vunpack.c.h.b16 %v571
    %v1683 = vunpack.c.l.b16 %v572
    %v1684 = vunpack.c.h.b16 %v572
    %v1685 = vunpack.c.l.b16 %v573
    %v1686 = vunpack.c.h.b16 %v573
    %v1687 = vunpack.c.l.b16 %v574
    %v1688 = vunpack.c.h.b16 %v574
    %v1689 = vunpack.c.l.b16 %v575
    %v1690 = vunpack.c.h.b16 %v575
    %v1691 = vunpack.c.l.b16 %v576
    %v1692 = vunpack.c.h.b16 %v576
    %v1693 = vunpack.c.l.b16 %v577
    %v1694 = vunpack.c.h.b16 %v577
    %v1695 = vunpack.c.l.b16 %v578
    %v1696 = vunpack.c.h.b16 %v578
    %v1697 = vunpack.c.l.b16 %v579
    %v1698 = vunpack.c.h.b16 %v579
    %v1699 = vunpack.c.l.b16 %v580
    %v1700 = vunpack.c.h.b16 %v580
    %v1701 = vunpack.c.l.b16 %v581
    %v1702 = vunpack.c.h.b16 %v581
    %v1703 = vunpack.c.l.b16 %v582
    %v1704 = vunpack.c.h.b16 %v582
    %v1705 = vunpack.c.l.b16 %v583
    %v1706 = vunpack.c.h.b16 %v583
    %v1707 = vunpack.c.l.b16 %v584
    %v1708 = vunpack.c.h.b16 %v584
    %v1709 = vunpack.c.l.b16 %v585
    %v1710 = vunpack.c.h.b16 %v585
    %v1711 = vunpack.c.l.b16 %v586
    %v1712 = vunpack.c.h.b16 %v586
    %v1713 = vunpack.c.l.b16 %v587
    %v1714 = vunpack.c.h.b16 %v587
    %v1715 = vunpack.c.l.b16 %v588
    %v1716 = vunpack.c.h.b16 %v588
    %v1717 = vunpack.c.l.b16 %v589
    %v1718 = vunpack.c.h.b16 %v589
    %v1719 = vunpack.c.l.b16 %v590
    %v1720 = vunpack.c.h.b16 %v590
    %v1721 = vunpack.c.l.b16 %v591
    %v1722 = vunpack.c.h.b16 %v591
    %v1723 = vunpack.c.l.b16 %v592
    %v1724 = vunpack.c.h.b16 %v592
    %v1725 = vunpack.c.l.b16 %v593
    %v1726 = vunpack.c.h.b16 %v593
    %v1727 = vunpack.c.l.b16 %v594
    %v1728 = vunpack.c.h.b16 %v594
    %v1729 = vunpack.c.l.b16 %v595
    %v1730 = vunpack.c.h.b16 %v595
    %v1731 = vunpack.c.l.b16 %v596
    %v1732 = vunpack.c.h.b16 %v596
    %v1733 = vunpack.c.l.b16 %v597
    %v1734 = vunpack.c.h.b16 %v597
    %v1735 = vunpack.c.l.b16 %v598
    %v1736 = vunpack.c.h.b16 %v598
    %v1737 = vunpack.c.l.b16 %v599
    %v1738 = vunpack.c.h.b16 %v599
    %v1739 = vunpack.c.l.b16 %v600
    %v1740 = vunpack.c.h.b16 %v600
    %v1741 = vunpack.c.l.b16 %v601
    %v1742 = vunpack.c.h.b16 %v601
    %v1743 = vunpack.c.l.b16 %v602
    %v1744 = vunpack.c.h.b16 %v602
    %v1745 = vunpack.c.l.b16 %v603
    %v1746 = vunpack.c.h.b16 %v603
    %v1747 = vunpack.c.l.b16 %v604
    %v1748 = vunpack.c.h.b16 %v604
    %v1749 = vunpack.c.l.b16 %v605
    %v1750 = vunpack.c.h.b16 %v605
    %v1751 = vunpack.c.l.b16 %v606
    %v1752 = vunpack.c.h.b16 %v606
    %v1753 = vunpack.c.l.b16 %v607
    %v1754 = vunpack.c.h.b16 %v607
    %v1755 = vunpack.c.l.b16 %v608
    %v1756 = vunpack.c.h.b16 %v608
    %v1757 = vunpack.c.l.b16 %v609
    %v1758 = vunpack.c.h.b16 %v609
    %v1759 = vunpack.c.l.b16 %v610
    %v1760 = vunpack.c.h.b16 %v610
    %v1761 = vunpack.c.l.b16 %v611
    %v1762 = vunpack.c.h.b16 %v611
    %v1763 = vunpack.c.l.b16 %v612
    %v1764 = vunpack.c.h.b16 %v612
    %v1765 = vunpack.c.l.b16 %v613
    %v1766 = vunpack.c.h.b16 %v613
    %v1767 = vunpack.c.l.b16 %v614
    %v1768 = vunpack.c.h.b16 %v614
    %v1769 = vunpack.c.l.b16 %v615
    %v1770 = vunpack.c.h.b16 %v615
    %v1771 = vunpack.c.l.b16 %v616
    %v1772 = vunpack.c.h.b16 %v616
    %v1773 = vunpack.c.l.b16 %v617
    %v1774 = vunpack.c.h.b16 %v617
    %v1775 = vunpack.c.l.b16 %v618
    %v1776 = vunpack.c.h.b16 %v618
    %v1777 = vunpack.c.l.b16 %v619
    %v1778 = vunpack.c.h.b16 %v619
    %v1779 = vunpack.c.l.b16 %v620
    %v1780 = vunpack.c.h.b16 %v620
    %v1781 = vunpack.c.l.b16 %v621
    %v1782 = vunpack.c.h.b16 %v621
    %v1783 = vunpack.c.l.b16 %v622
    %v1784 = vunpack.c.h.b16 %v622
    %v1785 = vunpack.c.l.b16 %v623
    %v1786 = vunpack.c.h.b16 %v623
    %v1787 = vunpack.c.l.b16 %v624
    %v1788 = vunpack.c.h.b16 %v624
    %v1789 = vunpack.c.l.b16 %v625
    %v1790 = vunpack.c.h.b16 %v625
    %v1791 = vunpack.c.l.b16 %v626
    %v1792 = vunpack.c.h.b16 %v626
    %v1793 = vunpack.c.l.b16 %v627
    %v1794 = vunpack.c.h.b16 %v627
    %v1795 = vunpack.c.l.b16 %v628
    %v1796 = vunpack.c.h.b16 %v628
    %v1797 = vunpack.c.l.b16 %v629
    %v1798 = vunpack.c.h.b16 %v629
    %v1799 = vunpack.c.l.b16 %v630
    %v1800 = vunpack.c.h.b16 %v630
    %v1801 = vunpack.c.l.b16 %v631
    %v1802 = vunpack.c.h.b16 %v631
    %v1803 = vunpack.c.l.b16 %v632
    %v1804 = vunpack.c.h.b16 %v632
    %v1805 = vunpack.c.l.b16 %v633
    %v1806 = vunpack.c.h.b16 %v633
    %v1807 = vunpack.c.l.b16 %v634
    %v1808 = vunpack.c.h.b16 %v634
    %v1809 = vunpack.c.l.b16 %v635
    %v1810 = vunpack.c.h.b16 %v635
    %v1811 = vunpack.c.l.b16 %v636
    %v1812 = vunpack.c.h.b16 %v636
    %v1813 = vunpack.c.l.b16 %v637
    %v1814 = vunpack.c.h.b16 %v637
    %v1815 = vunpack.c.l.b16 %v638
    %v1816 = vunpack.c.h.b16 %v638
    %v1817 = vunpack.c.l.b16 %v639
    %v1818 = vunpack.c.h.b16 %v639
    %v1819 = vunpack.c.l.b16 %v640
    %v1820 = vunpack.c.h.b16 %v640
    %v1821 = vunpack.c.l.b16 %v641
    %v1822 = vunpack.c.h.b16 %v641
    %v1823 = vunpack.c.l.b16 %v642
    %v1824 = vunpack.c.h.b16 %v642
    %v1825 = vunpack.c.l.b16 %v643
    %v1826 = vunpack.c.h.b16 %v643
    %v1827 = vunpack.c.l.b16 %v644
    %v1828 = vunpack.c.h.b16 %v644
    %v1829 = vunpack.c.l.b16 %v645
    %v1830 = vunpack.c.h.b16 %v645
    %v1831 = vunpack.c.l.b16 %v646
    %v1832 = vunpack.c.h.b16 %v646
    %v1833 = vunpack.c.l.b16 %v647
    %v1834 = vunpack.c.h.b16 %v647
    %v1835 = vunpack.c.l.b16 %v648
    %v1836 = vunpack.c.h.b16 %v648
    %v1837 = vunpack.c.l.b16 %v649
    %v1838 = vunpack.c.h.b16 %v649
    %v1839 = vunpack.c.l.b16 %v650
    %v1840 = vunpack.c.h.b16 %v650
    %v1841 = vunpack.c.l.b16 %v651
    %v1842 = vunpack.c.h.b16 %v651
    %v1843 = vunpack.c.l.b16 %v652
    %v1844 = vunpack.c.h.b16 %v652
    %v1845 = vunpack.c.l.b16 %v653
    %v1846 = vunpack.c.h.b16 %v653
    %v1847 = vunpack.c.l.b16 %v654
    %v1848 = vunpack.c.h.b16 %v654
    %v1849 = vunpack.c.l.b16 %v655
    %v1850 = vunpack.c.h.b16 %v655
    %v1851 = vunpack.c.l.b16 %v656
    %v1852 = vunpack.c.h.b16 %v656
    %v1853 = vunpack.c.l.b16 %v657
    %v1854 = vunpack.c.h.b16 %v657
    %v1855 = vunpack.c.l.b16 %v658
    %v1856 = vunpack.c.h.b16 %v658
    %v1857 = vunpack.c.l.b16 %v659
    %v1858 = vunpack.c.h.b16 %v659
    %v1859 = vunpack.c.l.b16 %v660
    %v1860 = vunpack.c.h.b16 %v660
    %v1861 = vunpack.c.l.b16 %v661
    %v1862 = vunpack.c.h.b16 %v661
    %v1863 = vunpack.c.l.b16 %v662
    %v1864 = vunpack.c.h.b16 %v662
    %v1865 = vunpack.c.l.b16 %v663
    %v1866 = vunpack.c.h.b16 %v663
    %v1867 = vunpack.c.l.b16 %v664
    %v1868 = vunpack.c.h.b16 %v664
    %v1869 = vunpack.c.l.b16 %v665
    %v1870 = vunpack.c.h.b16 %v665
    %v1871 = vunpack.c.l.b16 %v666
    %v1872 = vunpack.c.h.b16 %v666
    %v1873 = vunpack.c.l.b16 %v667
    %v1874 = vunpack.c.h.b16 %v667
    %v1875 = vunpack.c.l.b16 %v668
    %v1876 = vunpack.c.h.b16 %v668
    %v1877 = vunpack.c.l.b16 %v669
    %v1878 = vunpack.c.h.b16 %v669
    %v1879 = vunpack.c.l.b16 %v670
    %v1880 = vunpack.c.h.b16 %v670
    %v1881 = vunpack.c.l.b16 %v671
    %v1882 = vunpack.c.h.b16 %v671
    %v1883 = vunpack.c.l.b16 %v672
    %v1884 = vunpack.c.h.b16 %v672
    %v1885 = vunpack.c.l.b16 %v673
    %v1886 = vunpack.c.h.b16 %v673
    %v1887 = vunpack.c.l.b16 %v674
    %v1888 = vunpack.c.h.b16 %v674
    %v1889 = vunpack.c.l.b16 %v675
    %v1890 = vunpack.c.h.b16 %v675
    %v1891 = vunpack.c.l.b16 %v676
    %v1892 = vunpack.c.h.b16 %v676
    %v1893 = vunpack.c.l.b16 %v677
    %v1894 = vunpack.c.h.b16 %v677
    %v1895 = vunpack.c.l.b16 %v678
    %v1896 = vunpack.c.h.b16 %v678
    %v1897 = vunpack.c.l.b16 %v679
    %v1898 = vunpack.c.h.b16 %v679
    %v1899 = vunpack.c.l.b16 %v680
    %v1900 = vunpack.c.h.b16 %v680
    %v1901 = vunpack.c.l.b16 %v681
    %v1902 = vunpack.c.h.b16 %v681
    %v1903 = vunpack.c.l.b16 %v682
    %v1904 = vunpack.c.h.b16 %v682
    %v1905 = vunpack.c.l.b16 %v683
    %v1906 = vunpack.c.h.b16 %v683
    %v1907 = vunpack.c.l.b16 %v684
    %v1908 = vunpack.c.h.b16 %v684
    %v1909 = vunpack.c.l.b16 %v685
    %v1910 = vunpack.c.h.b16 %v685
    %v1911 = vunpack.c.l.b16 %v686
    %v1912 = vunpack.c.h.b16 %v686
    %v1913 = vunpack.c.l.b16 %v687
    %v1914 = vunpack.c.h.b16 %v687
    %v1915 = vunpack.c.l.b16 %v688
    %v1916 = vunpack.c.h.b16 %v688
    %v1917 = vunpack.c.l.b16 %v689
    %v1918 = vunpack.c.h.b16 %v689
    %v1919 = vunpack.c.l.b16 %v690
    %v1920 = vunpack.c.h.b16 %v690
    %v1921 = vunpack.c.l.b16 %v691
    %v1922 = vunpack.c.h.b16 %v691
    %v1923 = vunpack.c.l.b16 %v692
    %v1924 = vunpack.c.h.b16 %v692
    %v1925 = vunpack.c.l.b16 %v693
    %v1926 = vunpack.c.h.b16 %v693
    %v1927 = vunpack.c.l.b16 %v694
    %v1928 = vunpack.c.h.b16 %v694
    %v1929 = vunpack.c.l.b16 %v695
    %v1930 = vunpack.c.h.b16 %v695
    %v1931 = vunpack.c.l.b16 %v696
    %v1932 = vunpack.c.h.b16 %v696
    %v1933 = vunpack.c.l.b16 %v697
    %v1934 = vunpack.c.h.b16 %v697
    %v1935 = vunpack.c.l.b16 %v698
    %v1936 = vunpack.c.h.b16 %v698
    %v1937 = vunpack.c.l.b16 %v699
    %v1938 = vunpack.c.h.b16 %v699
    %v1939 = vunpack.c.l.b16 %v700
    %v1940 = vunpack.c.h.b16 %v700
    %v1941 = vunpack.c.l.b16 %v701
    %v1942 = vunpack.c.h.b16 %v701
    %v1943 = vunpack.c.l.b16 %v702
    %v1944 = vunpack.c.h.b16 %v702
    %v1945 = vunpack.c.l.b16 %v703
    %v1946 = vunpack.c.h.b16 %v703
    %v1947 = vunpack.c.l.b16 %v704
    %v1948 = vunpack.c.h.b16 %v704
    %v1949 = vunpack.c.l.b16 %v705
    %v1950 = vunpack.c.h.b16 %v705
    %v1951 = vunpack.c.l.b16 %v706
    %v1952 = vunpack.c.h.b16 %v706
    %v1953 = vunpack.c.l.b16 %v707
    %v1954 = vunpack.c.h.b16 %v707
    %v1955 = vunpack.c.l.b16 %v708
    %v1956 = vunpack.c.h.b16 %v708
    %v1957 = vunpack.c.l.b16 %v709
    %v1958 = vunpack.c.h.b16 %v709
    %v1959 = vunpack.c.l.b16 %v710
    %v1960 = vunpack.c.h.b16 %v710
    %v1961 = vunpack.c.l.b16 %v711
    %v1962 = vunpack.c.h.b16 %v711
    %v1963 = vunpack.c.l.b16 %v712
    %v1964 = vunpack.c.h.b16 %v712
    %v1965 = vunpack.c.l.b16 %v713
    %v1966 = vunpack.c.h.b16 %v713
    %v1967 = vunpack.c.l.b16 %v714
    %v1968 = vunpack.c.h.b16 %v714
    %v1969 = vunpack.c.l.b16 %v715
    %v1970 = vunpack.c.h.b16 %v715
    %v1971 = vunpack.c.l.b16 %v716
    %v1972 = vunpack.c.h.b16 %v716
    %v1973 = vunpack.c.l.b16 %v717
    %v1974 = vunpack.c.h.b16 %v717
    %v1975 = vunpack.c.l.b16 %v718
    %v1976 = vunpack.c.h.b16 %v718
    %v1977 = vunpack.c.l.b16 %v719
    %v1978 = vunpack.c.h.b16 %v719
    %v1979 = vunpack.c.l.b16 %v720
    %v1980 = vunpack.c.h.b16 %v720
    %v1981 = vunpack.c.l.b16 %v721
    %v1982 = vunpack.c.h.b16 %v721
    %v1983 = vunpack.c.l.b16 %v722
    %v1984 = vunpack.c.h.b16 %v722
    %v1985 = vunpack.c.l.b16 %v723
    %v1986 = vunpack.c.h.b16 %v723
    %v1987 = vunpack.c.l.b16 %v724
    %v1988 = vunpack.c.h.b16 %v724
    %v1989 = vunpack.c.l.b16 %v725
    %v1990 = vunpack.c.h.b16 %v725
    %v1991 = vunpack.c.l.b16 %v726
    %v1992 = vunpack.c.h.b16 %v726
    %v1993 = vunpack.c.l.b16 %v727
    %v1994 = vunpack.c.h.b16 %v727
    %v1995 = vunpack.c.l.b16 %v728
    %v1996 = vunpack.c.h.b16 %v728
    %v1997 = vunpack.c.l.b16 %v729
    %v1998 = vunpack.c.h.b16 %v729
    %v1999 = vunpack.c.l.b16 %v730
    %v2000 = vunpack.c.h.b16 %v730
    %v2001 = vunpack.c.l.b16 %v731
    %v2002 = vunpack.c.h.b16 %v731
    %v2003 = vunpack.c.l.b16 %v732
    %v2004 = vunpack.c.h.b16 %v732
    %v2005 = vunpack.c.l.b16 %v733
    %v2006 = vunpack.c.h.b16 %v733
    %v2007 = vunpack.c.l.b16 %v734
    %v2008 = vunpack.c.h.b16 %v734
    %v2009 = vunpack.c.l.b16 %v735
    %v2010 = vunpack.c.h.b16 %v735
    %v2011 = vunpack.c.l.b16 %v736
    %v2012 = vunpack.c.h.b16 %v736
    %v2013 = vunpack.c.l.b16 %v737
    %v2014 = vunpack.c.h.b16 %v737
    %v2015 = vunpack.c.l.b16 %v738
    %v2016 = vunpack.c.h.b16 %v738
    %v2017 = vunpack.c.l.b16 %v739
    %v2018 = vunpack.c.h.b16 %v739
    %v2019 = vunpack.c.l.b16 %v740
    %v2020 = vunpack.c.h.b16 %v740
    %v2021 = vunpack.c.l.b16 %v741
    %v2022 = vunpack.c.h.b16 %v741
    %v2023 = vunpack.c.l.b16 %v742
    %v2024 = vunpack.c.h.b16 %v742
    %v2025 = vunpack.c.l.b16 %v743
    %v2026 = vunpack.c.h.b16 %v743
    %v2027 = vunpack.c.l.b16 %v744
    %v2028 = vunpack.c.h.b16 %v744
    %v2029 = vunpack.c.l.b16 %v745
    %v2030 = vunpack.c.h.b16 %v745
    %v2031 = vunpack.c.l.b16 %v746
    %v2032 = vunpack.c.h.b16 %v746
    %v2033 = vunpack.c.l.b16 %v747
    %v2034 = vunpack.c.h.b16 %v747
    %v2035 = vunpack.c.l.b16 %v748
    %v2036 = vunpack.c.h.b16 %v748
    %v2037 = vunpack.c.l.b16 %v749
    %v2038 = vunpack.c.h.b16 %v749
    %v2039 = vunpack.c.l.b16 %v750
    %v2040 = vunpack.c.h.b16 %v750
    %v2041 = vunpack.c.l.b16 %v751
    %v2042 = vunpack.c.h.b16 %v751
    %v2043 = vunpack.c.l.b16 %v752
    %v2044 = vunpack.c.h.b16 %v752
    %v2045 = vunpack.c.l.b16 %v753
    %v2046 = vunpack.c.h.b16 %v753
    %v2047 = vunpack.c.l.b16 %v754
    %v2048 = vunpack.c.h.b16 %v754
    %v2049 = vunpack.c.l.b16 %v755
    %v2050 = vunpack.c.h.b16 %v755
    %v2051 = vunpack.c.l.b16 %v756
    %v2052 = vunpack.c.h.b16 %v756
    %v2053 = vunpack.c.l.b16 %v757
    %v2054 = vunpack.c.h.b16 %v757
    %v2055 = vunpack.c.l.b16 %v758
    %v2056 = vunpack.c.h.b16 %v758
    %v2057 = vunpack.c.l.b16 %v759
    %v2058 = vunpack.c.h.b16 %v759
    %v2059 = vunpack.c.l.b16 %v760
    %v2060 = vunpack.c.h.b16 %v760
    %v2061 = vunpack.c.l.b16 %v761
    %v2062 = vunpack.c.h.b16 %v761
    %v2063 = vunpack.c.l.b16 %v762
    %v2064 = vunpack.c.h.b16 %v762
    %v2065 = vunpack.c.l.b16 %v763
    %v2066 = vunpack.c.h.b16 %v763
    %v2067 = vunpack.c.l.b16 %v764
    %v2068 = vunpack.c.h.b16 %v764
    %v2069 = vunpack.c.l.b16 %v765
    %v2070 = vunpack.c.h.b16 %v765
    %v2071 = vunpack.c.l.b16 %v766
    %v2072 = vunpack.c.h.b16 %v766
    %v2073 = vunpack.c.l.b16 %v767
    %v2074 = vunpack.c.h.b16 %v767
    %v2075 = vunpack.c.l.b16 %v768
    %v2076 = vunpack.c.h.b16 %v768
    %v2077 = vunpack.c.l.b16 %v769
    %v2078 = vunpack.c.h.b16 %v769
    %v2079 = vunpack.c.l.b16 %v770
    %v2080 = vunpack.c.h.b16 %v770
    %v2081 = vunpack.c.l.b16 %v771
    %v2082 = vunpack.c.h.b16 %v771
    %v2083 = vunpack.c.l.b16 %v772
    %v2084 = vunpack.c.h.b16 %v772
    %v2085 = vunpack.c.l.b16 %v773
    %v2086 = vunpack.c.h.b16 %v773
    %v2087 = vunpack.c.l.b16 %v774
    %v2088 = vunpack.c.h.b16 %v774
    %v2089 = vunpack.c.l.b16 %v775
    %v2090 = vunpack.c.h.b16 %v775
    %v2091 = vunpack.c.l.b16 %v776
    %v2092 = vunpack.c.h.b16 %v776
    %v2093 = vunpack.c.l.b16 %v777
    %v2094 = vunpack.c.h.b16 %v777
    %v2095 = vunpack.c.l.b16 %v778
    %v2096 = vunpack.c.h.b16 %v778
    %v2097 = vunpack.c.l.b16 %v779
    %v2098 = vunpack.c.h.b16 %v779
    %v2099 = vunpack.c.l.b16 %v780
    %v2100 = vunpack.c.h.b16 %v780
    %v2101 = vunpack.c.l.b16 %v781
    %v2102 = vunpack.c.h.b16 %v781
    %v2103 = vunpack.c.l.b16 %v782
    %v2104 = vunpack.c.h.b16 %v782
    %v2105 = vunpack.c.l.b16 %v783
    %v2106 = vunpack.c.h.b16 %v783
    %v2107 = vunpack.c.l.b16 %v784
    %v2108 = vunpack.c.h.b16 %v784
    %v2109 = vunpack.c.l.b16 %v785
    %v2110 = vunpack.c.h.b16 %v785
    %v2111 = vunpack.c.l.b16 %v786
    %v2112 = vunpack.c.h.b16 %v786
    %v2113 = vunpack.c.l.b16 %v787
    %v2114 = vunpack.c.h.b16 %v787
    %v2115 = vunpack.c.l.b16 %v788
    %v2116 = vunpack.c.h.b16 %v788
    %v2117 = vunpack.c.l.b16 %v789
    %v2118 = vunpack.c.h.b16 %v789
    %v2119 = vunpack.c.l.b16 %v790
    %v2120 = vunpack.c.h.b16 %v790
    %v2121 = vunpack.c.l.b16 %v791
    %v2122 = vunpack.c.h.b16 %v791
    %v2123 = vunpack.c.l.b16 %v792
    %v2124 = vunpack.c.h.b16 %v792
    %v2125 = vunpack.c.l.b16 %v793
    %v2126 = vunpack.c.h.b16 %v793
    %v2127 = vunpack.c.l.b16 %v794
    %v2128 = vunpack.c.h.b16 %v794
    %v2129 = vunpack.c.l.b16 %v795
    %v2130 = vunpack.c.h.b16 %v795
    %v2131 = vunpack.c.l.b16 %v796
    %v2132 = vunpack.c.h.b16 %v796
    %v2133 = vunpack.c.l.b16 %v797
    %v2134 = vunpack.c.h.b16 %v797
    %v2135 = vunpack.c.l.b16 %v798
    %v2136 = vunpack.c.h.b16 %v798
    %v2137 = vunpack.c.l.b16 %v799
    %v2138 = vunpack.c.h.b16 %v799
    %v2139 = vunpack.c.l.b16 %v800
    %v2140 = vunpack.c.h.b16 %v800
    %v2141 = vunpack.c.l.b16 %v801
    %v2142 = vunpack.c.h.b16 %v801
    %v2143 = vunpack.c.l.b16 %v802
    %v2144 = vunpack.c.h.b16 %v802
    %v2145 = vunpack.c.l.b16 %v803
    %v2146 = vunpack.c.h.b16 %v803
    %v2147 = vunpack.c.l.b16 %v804
    %v2148 = vunpack.c.h.b16 %v804
    %v2149 = vunpack.c.l.b16 %v805
    %v2150 = vunpack.c.h.b16 %v805
    %v2151 = vunpack.c.l.b16 %v806
    %v2152 = vunpack.c.h.b16 %v806
    %v2153 = vunpack.c.l.b16 %v807
    %v2154 = vunpack.c.h.b16 %v807
    %v2155 = vunpack.c.l.b16 %v808
    %v2156 = vunpack.c.h.b16 %v808
    %v2157 = vunpack.c.l.b16 %v809
    %v2158 = vunpack.c.h.b16 %v809
    %v2159 = vunpack.c.l.b16 %v810
    %v2160 = vunpack.c.h.b16 %v810
    %v2161 = vunpack.c.l.b16 %v811
    %v2162 = vunpack.c.h.b16 %v811
    %v2163 = vunpack.c.l.b16 %v812
    %v2164 = vunpack.c.h.b16 %v812
    %v2165 = vunpack.c.l.b16 %v813
    %v2166 = vunpack.c.h.b16 %v813
    %v2167 = vunpack.c.l.b16 %v814
    %v2168 = vunpack.c.h.b16 %v814
    %v2169 = vunpack.c.l.b16 %v815
    %v2170 = vunpack.c.h.b16 %v815
    %v2171 = vunpack.c.l.b16 %v816
    %v2172 = vunpack.c.h.b16 %v816
    %v2173 = vunpack.c.l.b16 %v817
    %v2174 = vunpack.c.h.b16 %v817
    %v2175 = vunpack.c.l.b16 %v818
    %v2176 = vunpack.c.h.b16 %v818
    %v2177 = vunpack.c.l.b16 %v819
    %v2178 = vunpack.c.h.b16 %v819
    %v2179 = vunpack.c.l.b16 %v820
    %v2180 = vunpack.c.h.b16 %v820
    %v2181 = vunpack.c.l.b16 %v821
    %v2182 = vunpack.c.h.b16 %v821
    %v2183 = vunpack.c.l.b16 %v822
    %v2184 = vunpack.c.h.b16 %v822
    %v2185 = vunpack.c.l.b16 %v823
    %v2186 = vunpack.c.h.b16 %v823
    %v2187 = vunpack.c.l.b16 %v824
    %v2188 = vunpack.c.h.b16 %v824
    %v2189 = vunpack.c.l.b16 %v825
    %v2190 = vunpack.c.h.b16 %v825
    %v2191 = vunpack.c.l.b16 %v826
    %v2192 = vunpack.c.h.b16 %v826
    %v2193 = vunpack.c.l.b16 %v827
    %v2194 = vunpack.c.h.b16 %v827
    %v2195 = vunpack.c.l.b16 %v828
    %v2196 = vunpack.c.h.b16 %v828
    %v2197 = vunpack.c.l.b16 %v829
    %v2198 = vunpack.c.h.b16 %v829
    %v2199 = vunpack.c.l.b16 %v830
    %v2200 = vunpack.c.h.b16 %v830
    %v2201 = vunpack.c.l.b16 %v831
    %v2202 = vunpack.c.h.b16 %v831
    %v2203 = vunpack.c.l.b16 %v832
    %v2204 = vunpack.c.h.b16 %v832
    %v2205 = vunpack.c.l.b16 %v833
    %v2206 = vunpack.c.h.b16 %v833
    %v2207 = vunpack.c.l.b16 %v834
    %v2208 = vunpack.c.h.b16 %v834
    %v2209 = vunpack.c.l.b16 %v835
    %v2210 = vunpack.c.h.b16 %v835
    %v2211 = vunpack.c.l.b16 %v836
    %v2212 = vunpack.c.h.b16 %v836
    %v2213 = vunpack.c.l.b16 %v837
    %v2214 = vunpack.c.h.b16 %v837
    %v2215 = vunpack.c.l.b16 %v838
    %v2216 = vunpack.c.h.b16 %v838
    %v2217 = vunpack.c.l.b16 %v839
    %v2218 = vunpack.c.h.b16 %v839
    %v2219 = vunpack.c.l.b16 %v840
    %v2220 = vunpack.c.h.b16 %v840
    %v2221 = vunpack.c.l.b16 %v841
    %v2222 = vunpack.c.h.b16 %v841
    %v2223 = vunpack.c.l.b16 %v842
    %v2224 = vunpack.c.h.b16 %v842
    %v2225 = vunpack.c.l.b16 %v843
    %v2226 = vunpack.c.h.b16 %v843
    %v2227 = vunpack.c.l.b16 %v844
    %v2228 = vunpack.c.h.b16 %v844
    %v2229 = vunpack.c.l.b16 %v845
    %v2230 = vunpack.c.h.b16 %v845
    %v2231 = vunpack.c.l.b16 %v846
    %v2232 = vunpack.c.h.b16 %v846
    %v2233 = vunpack.c.l.b16 %v847
    %v2234 = vunpack.c.h.b16 %v847
    %v2235 = vunpack.c.l.b16 %v848
    %v2236 = vunpack.c.h.b16 %v848
    %v2237 = vunpack.c.l.b16 %v849
    %v2238 = vunpack.c.h.b16 %v849
    %v2239 = vunpack.c.l.b16 %v850
    %v2240 = vunpack.c.h.b16 %v850
    %v2241 = vunpack.c.l.b16 %v851
    %v2242 = vunpack.c.h.b16 %v851
    %v2243 = vunpack.c.l.b16 %v852
    %v2244 = vunpack.c.h.b16 %v852
    %v2245 = vunpack.c.l.b16 %v853
    %v2246 = vunpack.c.h.b16 %v853
    %v2247 = vunpack.c.l.b16 %v854
    %v2248 = vunpack.c.h.b16 %v854
    %v2249 = vunpack.c.l.b16 %v855
    %v2250 = vunpack.c.h.b16 %v855
    %v2251 = vunpack.c.l.b16 %v856
    %v2252 = vunpack.c.h.b16 %v856
    %v2253 = vunpack.c.l.b16 %v857
    %v2254 = vunpack.c.h.b16 %v857
    %v2255 = vunpack.c.l.b16 %v858
    %v2256 = vunpack.c.h.b16 %v858
    %v2257 = vunpack.c.l.b16 %v859
    %v2258 = vunpack.c.h.b16 %v859
    %v2259 = vunpack.c.l.b16 %v860
    %v2260 = vunpack.c.h.b16 %v860
    %v2261 = vunpack.c.l.b16 %v861
    %v2262 = vunpack.c.h.b16 %v861
    %v2263 = vunpack.c.l.b16 %v862
    %v2264 = vunpack.c.h.b16 %v862
    %v2265 = vunpack.c.l.b16 %v863
    %v2266 = vunpack.c.h.b16 %v863
    %v2267 = vunpack.c.l.b16 %v864
    %v2268 = vunpack.c.h.b16 %v864
    %v2269 = vunpack.c.l.b16 %v865
    %v2270 = vunpack.c.h.b16 %v865
    %v2271 = vunpack.c.l.b16 %v866
    %v2272 = vunpack.c.h.b16 %v866
    %v2273 = vunpack.c.l.b16 %v867
    %v2274 = vunpack.c.h.b16 %v867
    %v2275 = vunpack.c.l.b16 %v868
    %v2276 = vunpack.c.h.b16 %v868
    %v2277 = vunpack.c.l.b16 %v869
    %v2278 = vunpack.c.h.b16 %v869
    %v2279 = vunpack.c.l.b16 %v870
    %v2280 = vunpack.c.h.b16 %v870
    %v2281 = vunpack.c.l.b16 %v871
    %v2282 = vunpack.c.h.b16 %v871
    %v2283 = vunpack.c.l.b16 %v872
    %v2284 = vunpack.c.h.b16 %v872
    %v2285 = vunpack.c.l.b16 %v873
    %v2286 = vunpack.c.h.b16 %v873
    %v2287 = vunpack.c.l.b16 %v874
    %v2288 = vunpack.c.h.b16 %v874
    %v2289 = vunpack.c.l.b16 %v875
    %v2290 = vunpack.c.h.b16 %v875
    %v2291 = vunpack.c.l.b16 %v876
    %v2292 = vunpack.c.h.b16 %v876
    %v2293 = vunpack.c.l.b16 %v877
    %v2294 = vunpack.c.h.b16 %v877
    %v2295 = vunpack.c.l.b16 %v878
    %v2296 = vunpack.c.h.b16 %v878
    %v2297 = vunpack.c.l.b16 %v879
    %v2298 = vunpack.c.h.b16 %v879
    %v2299 = vunpack.c.l.b16 %v880
    %v2300 = vunpack.c.h.b16 %v880
    %v2301 = vunpack.c.l.b16 %v881
    %v2302 = vunpack.c.h.b16 %v881
    %v2303 = vunpack.c.l.b16 %v882
    %v2304 = vunpack.c.h.b16 %v882
    %v2305 = vunpack.c.l.b16 %v883
    %v2306 = vunpack.c.h.b16 %v883
    %v2307 = vunpack.c.l.b16 %v884
    %v2308 = vunpack.c.h.b16 %v884
    %v2309 = vunpack.c.l.b16 %v885
    %v2310 = vunpack.c.h.b16 %v885
    %v2311 = vunpack.c.l.b16 %v886
    %v2312 = vunpack.c.h.b16 %v886
    %v2313 = vunpack.c.l.b16 %v887
    %v2314 = vunpack.c.h.b16 %v887
    %v2315 = vunpack.c.l.b16 %v888
    %v2316 = vunpack.c.h.b16 %v888
    %v2317 = vunpack.c.l.b16 %v889
    %v2318 = vunpack.c.h.b16 %v889
    %v2319 = vunpack.c.l.b16 %v890
    %v2320 = vunpack.c.h.b16 %v890
    %v2321 = vunpack.c.l.b16 %v891
    %v2322 = vunpack.c.h.b16 %v891
    %v2323 = vunpack.c.l.b16 %v892
    %v2324 = vunpack.c.h.b16 %v892
    %v2325 = vunpack.c.l.b16 %v893
    %v2326 = vunpack.c.h.b16 %v893
    %v2327 = vunpack.c.l.b16 %v894
    %v2328 = vunpack.c.h.b16 %v894
    %v2329 = vunpack.c.l.b16 %v895
    %v2330 = vunpack.c.h.b16 %v895
    %v2331 = vunpack.c.l.b16 %v896
    %v2332 = vunpack.c.h.b16 %v896
    %v2333 = vunpack.c.l.b16 %v897
    %v2334 = vunpack.c.h.b16 %v897
    %v2335 = vunpack.c.l.b16 %v898
    %v2336 = vunpack.c.h.b16 %v898
    %v2337 = vunpack.c.l.b16 %v899
    %v2338 = vunpack.c.h.b16 %v899
    %v2339 = vunpack.c.l.b16 %v900
    %v2340 = vunpack.c.h.b16 %v900
    %v2341 = vunpack.c.l.b16 %v901
    %v2342 = vunpack.c.h.b16 %v901
    %v2343 = vunpack.c.l.b16 %v902
    %v2344 = vunpack.c.h.b16 %v902
    %v2345 = vunpack.c.l.b16 %v903
    %v2346 = vunpack.c.h.b16 %v903
    %v2347 = vunpack.c.l.b16 %v904
    %v2348 = vunpack.c.h.b16 %v904
    %v2349 = vunpack.c.l.b16 %v905
    %v2350 = vunpack.c.h.b16 %v905
    %v2351 = vunpack.c.l.b16 %v906
    %v2352 = vunpack.c.h.b16 %v906
    %v2353 = vunpack.c.l.b16 %v907
    %v2354 = vunpack.c.h.b16 %v907
    %v2355 = vunpack.c.l.b16 %v908
    %v2356 = vunpack.c.h.b16 %v908
    %v2357 = vunpack.c.l.b16 %v909
    %v2358 = vunpack.c.h.b16 %v909
    %v2359 = vunpack.c.l.b16 %v910
    %v2360 = vunpack.c.h.b16 %v910
    %v2361 = vunpack.c.l.b16 %v911
    %v2362 = vunpack.c.h.b16 %v911
    %v2363 = vunpack.c.l.b16 %v912
    %v2364 = vunpack.c.h.b16 %v912
    %v2365 = vunpack.c.l.b16 %v913
    %v2366 = vunpack.c.h.b16 %v913
    %v2367 = vunpack.c.l.b16 %v914
    %v2368 = vunpack.c.h.b16 %v914
    %v2369 = vunpack.c.l.b16 %v915
    %v2370 = vunpack.c.h.b16 %v915
    %v2371 = vunpack.c.l.b16 %v916
    %v2372 = vunpack.c.h.b16 %v916
    %v2373 = vunpack.c.l.b16 %v917
    %v2374 = vunpack.c.h.b16 %v917
    %v2375 = vunpack.c.l.b16 %v918
    %v2376 = vunpack.c.h.b16 %v918
    %v2377 = vunpack.c.l.b16 %v919
    %v2378 = vunpack.c.h.b16 %v919
    %v2379 = vunpack.c.l.b16 %v920
    %v2380 = vunpack.c.h.b16 %v920
    %v2381 = vunpack.c.l.b16 %v921
    %v2382 = vunpack.c.h.b16 %v921
    %v2383 = vunpack.c.l.b16 %v922
    %v2384 = vunpack.c.h.b16 %v922
    %v2385 = vunpack.c.l.b16 %v923
    %v2386 = vunpack.c.h.b16 %v923
    %v2387 = vunpack.c.l.b16 %v924
    %v2388 = vunpack.c.h.b16 %v924
    %v2389 = vunpack.c.l.b16 %v925
    %v2390 = vunpack.c.h.b16 %v925
    %v2391 = vunpack.c.l.b16 %v926
    %v2392 = vunpack.c.h.b16 %v926
    %v2393 = vunpack.c.l.b16 %v927
    %v2394 = vunpack.c.h.b16 %v927
    %v2395 = vunpack.c.l.b16 %v928
    %v2396 = vunpack.c.h.b16 %v928
    %v2397 = vunpack.c.l.b16 %v929
    %v2398 = vunpack.c.h.b16 %v929
    %v2399 = vunpack.c.l.b16 %v930
    %v2400 = vunpack.c.h.b16 %v930
    %v2401 = vunpack.c.l.b16 %v931
    %v2402 = vunpack.c.h.b16 %v931
    %v2403 = vunpack.c.l.b16 %v932
    %v2404 = vunpack.c.h.b16 %v932
    %v2405 = vunpack.c.l.b16 %v933
    %v2406 = vunpack.c.h.b16 %v933
    %v2407 = vunpack.c.l.b16 %v934
    %v2408 = vunpack.c.h.b16 %v934
    %v2409 = vunpack.c.l.b16 %v935
    %v2410 = vunpack.c.h.b16 %v935
    %v2411 = vunpack.c.l.b16 %v936
    %v2412 = vunpack.c.h.b16 %v936
    %v2413 = vunpack.c.l.b16 %v937
    %v2414 = vunpack.c.h.b16 %v937
    %v2415 = vunpack.c.l.b16 %v938
    %v2416 = vunpack.c.h.b16 %v938
    %v2417 = vunpack.c.l.b16 %v939
    %v2418 = vunpack.c.h.b16 %v939
    %v2419 = vunpack.c.l.b16 %v940
    %v2420 = vunpack.c.h.b16 %v940
    %v2421 = vunpack.c.l.b16 %v941
    %v2422 = vunpack.c.h.b16 %v941
    %v2423 = vunpack.c.l.b16 %v942
    %v2424 = vunpack.c.h.b16 %v942
    %v2425 = vunpack.c.l.b16 %v943
    %v2426 = vunpack.c.h.b16 %v943
    %v2427 = vunpack.c.l.b16 %v944
    %v2428 = vunpack.c.h.b16 %v944
    %v2429 = vunpack.c.l.b16 %v945
    %v2430 = vunpack.c.h.b16 %v945
    %v2431 = vunpack.c.l.b16 %v946
    %v2432 = vunpack.c.h.b16 %v946
    %v2433 = vunpack.c.l.b16 %v947
    %v2434 = vunpack.c.h.b16 %v947
    %v2435 = vunpack.c.l.b16 %v948
    %v2436 = vunpack.c.h.b16 %v948
    %v2437 = vunpack.c.l.b16 %v949
    %v2438 = vunpack.c.h.b16 %v949
    %v2439 = vunpack.c.l.b16 %v950
    %v2440 = vunpack.c.h.b16 %v950
    %v2441 = vunpack.c.l.b16 %v951
    %v2442 = vunpack.c.h.b16 %v951
    %v2443 = vunpack.c.l.b16 %v952
    %v2444 = vunpack.c.h.b16 %v952
    %v2445 = vunpack.c.l.b16 %v953
    %v2446 = vunpack.c.h.b16 %v953
    %v2447 = vunpack.c.l.b16 %v954
    %v2448 = vunpack.c.h.b16 %v954
    %v2449 = vunpack.c.l.b16 %v955
    %v2450 = vunpack.c.h.b16 %v955
    %v2451 = vunpack.c.l.b16 %v956
    %v2452 = vunpack.c.h.b16 %v956
    %v2453 = vunpack.c.l.b16 %v957
    %v2454 = vunpack.c.h.b16 %v957
    %v2455 = vunpack.c.l.b16 %v958
    %v2456 = vunpack.c.h.b16 %v958
    %v2457 = vunpack.c.l.b16 %v959
    %v2458 = vunpack.c.h.b16 %v959
    %v2459 = vunpack.c.l.b16 %v960
    %v2460 = vunpack.c.h.b16 %v960
    %v2461 = vunpack.c.l.b16 %v961
    %v2462 = vunpack.c.h.b16 %v961
    %v2463 = vunpack.c.l.b16 %v962
    %v2464 = vunpack.c.h.b16 %v962
    %v2465 = vunpack.c.l.b16 %v963
    %v2466 = vunpack.c.h.b16 %v963
    %v2467 = vunpack.c.l.b16 %v964
    %v2468 = vunpack.c.h.b16 %v964
    %v2469 = vunpack.c.l.b16 %v965
    %v2470 = vunpack.c.h.b16 %v965
    %v2471 = vunpack.c.l.b16 %v966
    %v2472 = vunpack.c.h.b16 %v966
    %v2473 = vunpack.c.l.b16 %v967
    %v2474 = vunpack.c.h.b16 %v967
    %v2475 = vunpack.c.l.b16 %v968
    %v2476 = vunpack.c.h.b16 %v968
    %v2477 = vunpack.c.l.b16 %v969
    %v2478 = vunpack.c.h.b16 %v969
    %v2479 = vunpack.c.l.b16 %v970
    %v2480 = vunpack.c.h.b16 %v970
    %v2481 = vunpack.c.l.b16 %v971
    %v2482 = vunpack.c.h.b16 %v971
    %v2483 = vunpack.c.l.b16 %v972
    %v2484 = vunpack.c.h.b16 %v972
    %v2485 = vunpack.c.l.b16 %v973
    %v2486 = vunpack.c.h.b16 %v973
    %v2487 = vunpack.c.l.b16 %v974
    %v2488 = vunpack.c.h.b16 %v974
    %v2489 = vunpack.c.l.b16 %v975
    %v2490 = vunpack.c.h.b16 %v975
    %v2491 = vunpack.c.l.b16 %v976
    %v2492 = vunpack.c.h.b16 %v976
    %v2493 = vunpack.c.l.b16 %v977
    %v2494 = vunpack.c.h.b16 %v977
    %v2495 = vunpack.c.l.b16 %v978
    %v2496 = vunpack.c.h.b16 %v978
    %v2497 = vunpack.c.l.b16 %v979
    %v2498 = vunpack.c.h.b16 %v979
    %v2499 = vunpack.c.l.b16 %v980
    %v2500 = vunpack.c.h.b16 %v980
    %v2501 = vunpack.c.l.b16 %v981
    %v2502 = vunpack.c.h.b16 %v981
    %v2503 = vunpack.c.l.b16 %v982
    %v2504 = vunpack.c.h.b16 %v982
    %v2505 = vunpack.c.l.b16 %v983
    %v2506 = vunpack.c.h.b16 %v983
    %v2507 = vunpack.c.l.b16 %v984
    %v2508 = vunpack.c.h.b16 %v984
    %v2509 = vunpack.c.l.b16 %v985
    %v2510 = vunpack.c.h.b16 %v985
    %v2511 = vunpack.c.l.b16 %v986
    %v2512 = vunpack.c.h.b16 %v986
    %v2513 = vunpack.c.l.b16 %v987
    %v2514 = vunpack.c.h.b16 %v987
    %v2515 = vunpack.c.l.b16 %v988
    %v2516 = vunpack.c.h.b16 %v988
    %v2517 = vunpack.c.l.b16 %v989
    %v2518 = vunpack.c.h.b16 %v989
    %v2519 = vunpack.c.l.b16 %v990
    %v2520 = vunpack.c.h.b16 %v990
    %v2521 = vunpack.c.l.b16 %v991
    %v2522 = vunpack.c.h.b16 %v991
    %v2523 = vunpack.c.l.b16 %v992
    %v2524 = vunpack.c.h.b16 %v992
    %v2525 = vunpack.c.l.b16 %v993
    %v2526 = vunpack.c.h.b16 %v993
    %v2527 = vunpack.c.l.b16 %v994
    %v2528 = vunpack.c.h.b16 %v994
    %v2529 = vunpack.c.l.b16 %v995
    %v2530 = vunpack.c.h.b16 %v995
    %v2531 = vunpack.c.l.b16 %v996
    %v2532 = vunpack.c.h.b16 %v996
    %v2533 = vunpack.c.l.b16 %v997
    %v2534 = vunpack.c.h.b16 %v997
    %v2535 = vunpack.c.l.b16 %v998
    %v2536 = vunpack.c.h.b16 %v998
    %v2537 = vunpack.c.l.b16 %v999
    %v2538 = vunpack.c.h.b16 %v999
    %v2539 = vunpack.c.l.b16 %v1000
    %v2540 = vunpack.c.h.b16 %v1000
    %v2541 = vunpack.c.l.b16 %v1001
    %v2542 = vunpack.c.h.b16 %v1001
    %v2543 = vunpack.c.l.b16 %v1002
    %v2544 = vunpack.c.h.b16 %v1002
    %v2545 = vunpack.c.l.b16 %v1003
    %v2546 = vunpack.c.h.b16 %v1003
    %v2547 = vunpack.c.l.b16 %v1004
    %v2548 = vunpack.c.h.b16 %v1004
    %v2549 = vunpack.c.l.b16 %v1005
    %v2550 = vunpack.c.h.b16 %v1005
    %v2551 = vunpack.c.l.b16 %v1006
    %v2552 = vunpack.c.h.b16 %v1006
    %v2553 = vunpack.c.l.b16 %v1007
    %v2554 = vunpack.c.h.b16 %v1007
    %v2555 = vunpack.c.l.b16 %v1008
    %v2556 = vunpack.c.h.b16 %v1008
    %v2557 = vunpack.c.l.b16 %v1009
    %v2558 = vunpack.c.h.b16 %v1009
    %v2559 = vunpack.c.l.b16 %v1010
    %v2560 = vunpack.c.h.b16 %v1010
    %v2561 = vunpack.c.l.b16 %v1011
    %v2562 = vunpack.c.h.b16 %v1011
    %v2563 = vunpack.c.l.b16 %v1012
    %v2564 = vunpack.c.h.b16 %v1012
    %v2565 = vunpack.c.l.b16 %v1013
    %v2566 = vunpack.c.h.b16 %v1013
    %v2567 = vunpack.c.l.b16 %v1014
    %v2568 = vunpack.c.h.b16 %v1014
    %v2569 = vunpack.c.l.b16 %v1015
    %v2570 = vunpack.c.h.b16 %v1015
    %v2571 = vunpack.c.l.b16 %v1016
    %v2572 = vunpack.c.h.b16 %v1016
    %v2573 = vunpack.c.l.b16 %v1017
    %v2574 = vunpack.c.h.b16 %v1017
    %v2575 = vunpack.c.l.b16 %v1018
    %v2576 = vunpack.c.h.b16 %v1018
    %v2577 = vunpack.c.l.b16 %v1019
    %v2578 = vunpack.c.h.b16 %v1019
    %v2579 = vunpack.c.l.b16 %v1020
    %v2580 = vunpack.c.h.b16 %v1020
    %v2581 = vunpack.c.l.b16 %v1021
    %v2582 = vunpack.c.h.b16 %v1021
    %v2583 = vunpack.c.l.b16 %v1022
    %v2584 = vunpack.c.h.b16 %v1022
    %v2585 = vunpack.c.l.b16 %v1023
    %v2586 = vunpack.c.h.b16 %v1023
    %v2587 = vunpack.c.l.b16 %v1024
    %v2588 = vunpack.c.h.b16 %v1024
    %v2589 = vunpack.c.l.b16 %v1025
    %v2590 = vunpack.c.h.b16 %v1025
    %v2591 = vunpack.c.l.b16 %v1026
    %v2592 = vunpack.c.h.b16 %v1026
    %v2593 = vunpack.c.l.b16 %v1027
    %v2594 = vunpack.c.h.b16 %v1027
    %v2595 = vunpack.c.l.b16 %v1028
    %v2596 = vunpack.c.h.b16 %v1028
    %v2597 = vunpack.c.l.b16 %v1029
    %v2598 = vunpack.c.h.b16 %v1029
    %v2599 = vunpack.c.l.b16 %v1030
    %v2600 = vunpack.c.h.b16 %v1030
    %v2601 = vunpack.c.l.b16 %v1031
    %v2602 = vunpack.c.h.b16 %v1031
    %v2603 = vunpack.c.l.b16 %v1032
    %v2604 = vunpack.c.h.b16 %v1032
    %v2605 = vunpack.c.l.b16 %v1033
    %v2606 = vunpack.c.h.b16 %v1033
    %v2607 = vunpack.c.l.b16 %v1034
    %v2608 = vunpack.c.h.b16 %v1034
    %v2609 = vunpack.c.l.b16 %v1035
    %v2610 = vunpack.c.h.b16 %v1035
    %v2611 = vunpack.c.l.b16 %v1036
    %v2612 = vunpack.c.h.b16 %v1036
    %v2613 = vunpack.c.l.b16 %v1037
    %v2614 = vunpack.c.h.b16 %v1037
    %v2615 = vunpack.c.l.b16 %v1038
    %v2616 = vunpack.c.h.b16 %v1038
    %v2617 = vpack.c.b16 %v1601, %v1593
    %v2618 = vpack.c.b16 %v1602, %v1594
    %v2619 = vpack.c.b16 %v1603, %v1595
    %v2620 = vpack.c.b16 %v1604, %v1596
    %v2621 = vpack.c.b16 %v1605, %v1597
    %v2622 = vpack.c.b16 %v1606, %v1598
    %v2623 = vpack.c.b16 %v1607, %v1599
    %v2624 = vpack.c.b16 %v1608, %v1600
    %v2625 = vpack.c.b16 %v1617, %v1609
    %v2626 = vpack.c.b16 %v1618, %v1610
    %v2627 = vpack.c.b16 %v1619, %v1611
    %v2628 = vpack.c.b16 %v1620, %v1612
    %v2629 = vpack.c.b16 %v1621, %v1613
    %v2630 = vpack.c.b16 %v1622, %v1614
    %v2631 = vpack.c.b16 %v1623, %v1615
    %v2632 = vpack.c.b16 %v1624, %v1616
    %v2633 = vpack.c.b16 %v1633, %v1625
    %v2634 = vpack.c.b16 %v1634, %v1626
    %v2635 = vpack.c.b16 %v1635, %v1627
    %v2636 = vpack.c.b16 %v1636, %v1628
    %v2637 = vpack.c.b16 %v1637, %v1629
    %v2638 = vpack.c.b16 %v1638, %v1630
    %v2639 = vpack.c.b16 %v1639, %v1631
    %v2640 = vpack.c.b16 %v1640, %v1632
    %v2641 = vpack.c.b16 %v1649, %v1641
    %v2642 = vpack.c.b16 %v1650, %v1642
    %v2643 = vpack.c.b16 %v1651, %v1643
    %v2644 = vpack.c.b16 %v1652, %v1644
    %v2645 = vpack.c.b16 %v1653, %v1645
    %v2646 = vpack.c.b16 %v1654, %v1646
    %v2647 = vpack.c.b16 %v1655, %v1647
    %v2648 = vpack.c.b16 %v1656, %v1648
    %v2649 = vpack.c.b16 %v1665, %v1657
    %v2650 = vpack.c.b16 %v1666, %v1658
    %v2651 = vpack.c.b16 %v1667, %v1659
    %v2652 = vpack.c.b16 %v1668, %v1660
    %v2653 = vpack.c.b16 %v1669, %v1661
    %v2654 = vpack.c.b16 %v1670, %v1662
    %v2655 = vpack.c.b16 %v1671, %v1663
    %v2656 = vpack.c.b16 %v1672, %v1664
    %v2657 = vpack.c.b16 %v1681, %v1673
    %v2658 = vpack.c.b16 %v1682, %v1674
    %v2659 = vpack.c.b16 %v1683, %v1675
    %v2660 = vpack.c.b16 %v1684, %v1676
    %v2661 = vpack.c.b16 %v1685, %v1677
    %v2662 = vpack.c.b16 %v1686, %v1678
    %v2663 = vpack.c.b16 %v1687, %v1679
    %v2664 = vpack.c.b16 %v1688, %v1680
    %v2665 = vpack.c.b16 %v1697, %v1689
    %v2666 = vpack.c.b16 %v1698, %v1690
    %v2667 = vpack.c.b16 %v1699, %v1691
    %v2668 = vpack.c.b16 %v1700, %v1692
    %v2669 = vpack.c.b16 %v1701, %v1693
    %v2670 = vpack.c.b16 %v1702, %v1694
    %v2671 = vpack.c.b16 %v1703, %v1695
    %v2672 = vpack.c.b16 %v1704, %v1696
    %v2673 = vpack.c.b16 %v1713, %v1705
    %v2674 = vpack.c.b16 %v1714, %v1706
    %v2675 = vpack.c.b16 %v1715, %v1707
    %v2676 = vpack.c.b16 %v1716, %v1708
    %v2677 = vpack.c.b16 %v1717, %v1709
    %v2678 = vpack.c.b16 %v1718, %v1710
    %v2679 = vpack.c.b16 %v1719, %v1711
    %v2680 = vpack.c.b16 %v1720, %v1712
    %v2681 = vpack.c.b16 %v1729, %v1721
    %v2682 = vpack.c.b16 %v1730, %v1722
    %v2683 = vpack.c.b16 %v1731, %v1723
    %v2684 = vpack.c.b16 %v1732, %v1724
    %v2685 = vpack.c.b16 %v1733, %v1725
    %v2686 = vpack.c.b16 %v1734, %v1726
    %v2687 = vpack.c.b16 %v1735, %v1727
    %v2688 = vpack.c.b16 %v1736, %v1728
    %v2689 = vpack.c.b16 %v1745, %v1737
    %v2690 = vpack.c.b16 %v1746, %v1738
    %v2691 = vpack.c.b16 %v1747, %v1739
    %v2692 = vpack.c.b16 %v1748, %v1740
    %v2693 = vpack.c.b16 %v1749, %v1741
    %v2694 = vpack.c.b16 %v1750, %v1742
    %v2695 = vpack.c.b16 %v1751, %v1743
    %v2696 = vpack.c.b16 %v1752, %v1744
    %v2697 = vpack.c.b16 %v1761, %v1753
    %v2698 = vpack.c.b16 %v1762, %v1754
    %v2699 = vpack.c.b16 %v1763, %v1755
    %v2700 = vpack.c.b16 %v1764, %v1756
    %v2701 = vpack.c.b16 %v1765, %v1757
    %v2702 = vpack.c.b16 %v1766, %v1758
    %v2703 = vpack.c.b16 %v1767, %v1759
    %v2704 = vpack.c.b16 %v1768, %v1760
    %v2705 = vpack.c.b16 %v1777, %v1769
    %v2706 = vpack.c.b16 %v1778, %v1770
    %v2707 = vpack.c.b16 %v1779, %v1771
    %v2708 = vpack.c.b16 %v1780, %v1772
    %v2709 = vpack.c.b16 %v1781, %v1773
    %v2710 = vpack.c.b16 %v1782, %v1774
    %v2711 = vpack.c.b16 %v1783, %v1775
    %v2712 = vpack.c.b16 %v1784, %v1776
    %v2713 = vpack.c.b16 %v1793, %v1785
    %v2714 = vpack.c.b16 %v1794, %v1786
    %v2715 = vpack.c.b16 %v1795, %v1787
    %v2716 = vpack.c.b16 %v1796, %v1788
    %v2717 = vpack.c.b16 %v1797, %v1789
    %v2718 = vpack.c.b16 %v1798, %v1790
    %v2719 = vpack.c.b16 %v1799, %v1791
    %v2720 = vpack.c.b16 %v1800, %v1792
    %v2721 = vpack.c.b16 %v1809, %v1801
    %v2722 = vpack.c.b16 %v1810, %v1802
    %v2723 = vpack.c.b16 %v1811, %v1803
    %v2724 = vpack.c.b16 %v1812, %v1804
    %v2725 = vpack.c.b16 %v1813, %v1805
    %v2726 = vpack.c.b16 %v1814, %v1806
    %v2727 = vpack.c.b16 %v1815, %v1807
    %v2728 = vpack.c.b16 %v1816, %v1808
    %v2729 = vpack.c.b16 %v1825, %v1817
    %v2730 = vpack.c.b16 %v1826, %v1818
    %v2731 = vpack.c.b16 %v1827, %v1819
    %v2732 = vpack.c.b16 %v1828, %v1820
    %v2733 = vpack.c.b16 %v1829, %v1821
    %v2734 = vpack.c.b16 %v1830, %v1822
    %v2735 = vpack.c.b16 %v1831, %v1823
    %v2736 = vpack.c.b16 %v1832, %v1824
    %v2737 = vpack.c.b16 %v1841, %v1833
    %v2738 = vpack.c.b16 %v1842, %v1834
    %v2739 = vpack.c.b16 %v1843, %v1835
    %v2740 = vpack.c.b16 %v1844, %v1836
    %v2741 = vpack.c.b16 %v1845, %v1837
    %v2742 = vpack.c.b16 %v1846, %v1838
    %v2743 = vpack.c.b16 %v1847, %v1839
    %v2744 = vpack.c.b16 %v1848, %v1840
    %v2745 = vpack.c.b16 %v1857, %v1849
    %v2746 = vpack.c.b16 %v1858, %v1850
    %v2747 = vpack.c.b16 %v1859, %v1851
    %v2748 = vpack.c.b16 %v1860, %v1852
    %v2749 = vpack.c.b16 %v1861, %v1853
    %v2750 = vpack.c.b16 %v1862, %v1854
    %v2751 = vpack.c.b16 %v1863, %v1855
    %v2752 = vpack.c.b16 %v1864, %v1856
    %v2753 = vpack.c.b16 %v1873, %v1865
    %v2754 = vpack.c.b16 %v1874, %v1866
    %v2755 = vpack.c.b16 %v1875, %v1867
    %v2756 = vpack.c.b16 %v1876, %v1868
    %v2757 = vpack.c.b16 %v1877, %v1869
    %v2758 = vpack.c.b16 %v1878, %v1870
    %v2759 = vpack.c.b16 %v1879, %v1871
    %v2760 = vpack.c.b16 %v1880, %v1872
    %v2761 = vpack.c.b16 %v1889, %v1881
    %v2762 = vpack.c.b16 %v1890, %v1882
    %v2763 = vpack.c.b16 %v1891, %v1883
    %v2764 = vpack.c.b16 %v1892, %v1884
    %v2765 = vpack.c.b16 %v1893, %v1885
    %v2766 = vpack.c.b16 %v1894, %v1886
    %v2767 = vpack.c.b16 %v1895, %v1887
    %v2768 = vpack.c.b16 %v1896, %v1888
    %v2769 = vpack.c.b16 %v1905, %v1897
    %v2770 = vpack.c.b16 %v1906, %v1898
    %v2771 = vpack.c.b16 %v1907, %v1899
    %v2772 = vpack.c.b16 %v1908, %v1900
    %v2773 = vpack.c.b16 %v1909, %v1901
    %v2774 = vpack.c.b16 %v1910, %v1902
    %v2775 = vpack.c.b16 %v1911, %v1903
    %v2776 = vpack.c.b16 %v1912, %v1904
    %v2777 = vpack.c.b16 %v1921, %v1913
    %v2778 = vpack.c.b16 %v1922, %v1914
    %v2779 = vpack.c.b16 %v1923, %v1915
    %v2780 = vpack.c.b16 %v1924, %v1916
    %v2781 = vpack.c.b16 %v1925, %v1917
    %v2782 = vpack.c.b16 %v1926, %v1918
    %v2783 = vpack.c.b16 %v1927, %v1919
    %v2784 = vpack.c.b16 %v1928, %v1920
    %v2785 = vpack.c.b16 %v1937, %v1929
    %v2786 = vpack.c.b16 %v1938, %v1930
    %v2787 = vpack.c.b16 %v1939, %v1931
    %v2788 = vpack.c.b16 %v1940, %v1932
    %v2789 = vpack.c.b16 %v1941, %v1933
    %v2790 = vpack.c.b16 %v1942, %v1934
    %v2791 = vpack.c.b16 %v1943, %v1935
    %v2792 = vpack.c.b16 %v1944, %v1936
    %v2793 = vpack.c.b16 %v1953, %v1945
    %v2794 = vpack.c.b16 %v1954, %v1946
    %v2795 = vpack.c.b16 %v1955, %v1947
    %v2796 = vpack.c.b16 %v1956, %v1948
    %v2797 = vpack.c.b16 %v1957, %v1949
    %v2798 = vpack.c.b16 %v1958, %v1950
    %v2799 = vpack.c.b16 %v1959, %v1951
    %v2800 = vpack.c.b16 %v1960, %v1952
    %v2801 = vpack.c.b16 %v1969, %v1961
    %v2802 = vpack.c.b16 %v1970, %v1962
    %v2803 = vpack.c.b16 %v1971, %v1963
    %v2804 = vpack.c.b16 %v1972, %v1964
    %v2805 = vpack.c.b16 %v1973, %v1965
    %v2806 = vpack.c.b16 %v1974, %v1966
    %v2807 = vpack.c.b16 %v1975, %v1967
    %v2808 = vpack.c.b16 %v1976, %v1968
    %v2809 = vpack.c.b16 %v1985, %v1977
    %v2810 = vpack.c.b16 %v1986, %v1978
    %v2811 = vpack.c.b16 %v1987, %v1979
    %v2812 = vpack.c.b16 %v1988, %v1980
    %v2813 = vpack.c.b16 %v1989, %v1981
    %v2814 = vpack.c.b16 %v1990, %v1982
    %v2815 = vpack.c.b16 %v1991, %v1983
    %v2816 = vpack.c.b16 %v1992, %v1984
    %v2817 = vpack.c.b16 %v2001, %v1993
    %v2818 = vpack.c.b16 %v2002, %v1994
    %v2819 = vpack.c.b16 %v2003, %v1995
    %v2820 = vpack.c.b16 %v2004, %v1996
    %v2821 = vpack.c.b16 %v2005, %v1997
    %v2822 = vpack.c.b16 %v2006, %v1998
    %v2823 = vpack.c.b16 %v2007, %v1999
    %v2824 = vpack.c.b16 %v2008, %v2000
    %v2825 = vpack.c.b16 %v2017, %v2009
    %v2826 = vpack.c.b16 %v2018, %v2010
    %v2827 = vpack.c.b16 %v2019, %v2011
    %v2828 = vpack.c.b16 %v2020, %v2012
    %v2829 = vpack.c.b16 %v2021, %v2013
    %v2830 = vpack.c.b16 %v2022, %v2014
    %v2831 = vpack.c.b16 %v2023, %v2015
    %v2832 = vpack.c.b16 %v2024, %v2016
    %v2833 = vpack.c.b16 %v2033, %v2025
    %v2834 = vpack.c.b16 %v2034, %v2026
    %v2835 = vpack.c.b16 %v2035, %v2027
    %v2836 = vpack.c.b16 %v2036, %v2028
    %v2837 = vpack.c.b16 %v2037, %v2029
    %v2838 = vpack.c.b16 %v2038, %v2030
    %v2839 = vpack.c.b16 %v2039, %v2031
    %v2840 = vpack.c.b16 %v2040, %v2032
    %v2841 = vpack.c.b16 %v2049, %v2041
    %v2842 = vpack.c.b16 %v2050, %v2042
    %v2843 = vpack.c.b16 %v2051, %v2043
    %v2844 = vpack.c.b16 %v2052, %v2044
    %v2845 = vpack.c.b16 %v2053, %v2045
    %v2846 = vpack.c.b16 %v2054, %v2046
    %v2847 = vpack.c.b16 %v2055, %v2047
    %v2848 = vpack.c.b16 %v2056, %v2048
    %v2849 = vpack.c.b16 %v2065, %v2057
    %v2850 = vpack.c.b16 %v2066, %v2058
    %v2851 = vpack.c.b16 %v2067, %v2059
    %v2852 = vpack.c.b16 %v2068, %v2060
    %v2853 = vpack.c.b16 %v2069, %v2061
    %v2854 = vpack.c.b16 %v2070, %v2062
    %v2855 = vpack.c.b16 %v2071, %v2063
    %v2856 = vpack.c.b16 %v2072, %v2064
    %v2857 = vpack.c.b16 %v2081, %v2073
    %v2858 = vpack.c.b16 %v2082, %v2074
    %v2859 = vpack.c.b16 %v2083, %v2075
    %v2860 = vpack.c.b16 %v2084, %v2076
    %v2861 = vpack.c.b16 %v2085, %v2077
    %v2862 = vpack.c.b16 %v2086, %v2078
    %v2863 = vpack.c.b16 %v2087, %v2079
    %v2864 = vpack.c.b16 %v2088, %v2080
    %v2865 = vpack.c.b16 %v2097, %v2089
    %v2866 = vpack.c.b16 %v2098, %v2090
    %v2867 = vpack.c.b16 %v2099, %v2091
    %v2868 = vpack.c.b16 %v2100, %v2092
    %v2869 = vpack.c.b16 %v2101, %v2093
    %v2870 = vpack.c.b16 %v2102, %v2094
    %v2871 = vpack.c.b16 %v2103, %v2095
    %v2872 = vpack.c.b16 %v2104, %v2096
    %v2873 = vpack.c.b16 %v2113, %v2105
    %v2874 = vpack.c.b16 %v2114, %v2106
    %v2875 = vpack.c.b16 %v2115, %v2107
    %v2876 = vpack.c.b16 %v2116, %v2108
    %v2877 = vpack.c.b16 %v2117, %v2109
    %v2878 = vpack.c.b16 %v2118, %v2110
    %v2879 = vpack.c.b16 %v2119, %v2111
    %v2880 = vpack.c.b16 %v2120, %v2112
    %v2881 = vpack.c.b16 %v2129, %v2121
    %v2882 = vpack.c.b16 %v2130, %v2122
    %v2883 = vpack.c.b16 %v2131, %v2123
    %v2884 = vpack.c.b16 %v2132, %v2124
    %v2885 = vpack.c.b16 %v2133, %v2125
    %v2886 = vpack.c.b16 %v2134, %v2126
    %v2887 = vpack.c.b16 %v2135, %v2127
    %v2888 = vpack.c.b16 %v2136, %v2128
    %v2889 = vpack.c.b16 %v2145, %v2137
    %v2890 = vpack.c.b16 %v2146, %v2138
    %v2891 = vpack.c.b16 %v2147, %v2139
    %v2892 = vpack.c.b16 %v2148, %v2140
    %v2893 = vpack.c.b16 %v2149, %v2141
    %v2894 = vpack.c.b16 %v2150, %v2142
    %v2895 = vpack.c.b16 %v2151, %v2143
    %v2896 = vpack.c.b16 %v2152, %v2144
    %v2897 = vpack.c.b16 %v2161, %v2153
    %v2898 = vpack.c.b16 %v2162, %v2154
    %v2899 = vpack.c.b16 %v2163, %v2155
    %v2900 = vpack.c.b16 %v2164, %v2156
    %v2901 = vpack.c.b16 %v2165, %v2157
    %v2902 = vpack.c.b16 %v2166, %v2158
    %v2903 = vpack.c.b16 %v2167, %v2159
    %v2904 = vpack.c.b16 %v2168, %v2160
    %v2905 = vpack.c.b16 %v2177, %v2169
    %v2906 = vpack.c.b16 %v2178, %v2170
    %v2907 = vpack.c.b16 %v2179, %v2171
    %v2908 = vpack.c.b16 %v2180, %v2172
    %v2909 = vpack.c.b16 %v2181, %v2173
    %v2910 = vpack.c.b16 %v2182, %v2174
    %v2911 = vpack.c.b16 %v2183, %v2175
    %v2912 = vpack.c.b16 %v2184, %v2176
    %v2913 = vpack.c.b16 %v2193, %v2185
    %v2914 = vpack.c.b16 %v2194, %v2186
    %v2915 = vpack.c.b16 %v2195, %v2187
    %v2916 = vpack.c.b16 %v2196, %v2188
    %v2917 = vpack.c.b16 %v2197, %v2189
    %v2918 = vpack.c.b16 %v2198, %v2190
    %v2919 = vpack.c.b16 %v2199, %v2191
    %v2920 = vpack.c.b16 %v2200, %v2192
    %v2921 = vpack.c.b16 %v2209, %v2201
    %v2922 = vpack.c.b16 %v2210, %v2202
    %v2923 = vpack.c.b16 %v2211, %v2203
    %v2924 = vpack.c.b16 %v2212, %v2204
    %v2925 = vpack.c.b16 %v2213, %v2205
    %v2926 = vpack.c.b16 %v2214, %v2206
    %v2927 = vpack.c.b16 %v2215, %v2207
    %v2928 = vpack.c.b16 %v2216, %v2208
    %v2929 = vpack.c.b16 %v2225, %v2217
    %v2930 = vpack.c.b16 %v2226, %v2218
    %v2931 = vpack.c.b16 %v2227, %v2219
    %v2932 = vpack.c.b16 %v2228, %v2220
    %v2933 = vpack.c.b16 %v2229, %v2221
    %v2934 = vpack.c.b16 %v2230, %v2222
    %v2935 = vpack.c.b16 %v2231, %v2223
    %v2936 = vpack.c.b16 %v2232, %v2224
    %v2937 = vpack.c.b16 %v2241, %v2233
    %v2938 = vpack.c.b16 %v2242, %v2234
    %v2939 = vpack.c.b16 %v2243, %v2235
    %v2940 = vpack.c.b16 %v2244, %v2236
    %v2941 = vpack.c.b16 %v2245, %v2237
    %v2942 = vpack.c.b16 %v2246, %v2238
    %v2943 = vpack.c.b16 %v2247, %v2239
    %v2944 = vpack.c.b16 %v2248, %v2240
    %v2945 = vpack.c.b16 %v2257, %v2249
    %v2946 = vpack.c.b16 %v2258, %v2250
    %v2947 = vpack.c.b16 %v2259, %v2251
    %v2948 = vpack.c.b16 %v2260, %v2252
    %v2949 = vpack.c.b16 %v2261, %v2253
    %v2950 = vpack.c.b16 %v2262, %v2254
    %v2951 = vpack.c.b16 %v2263, %v2255
    %v2952 = vpack.c.b16 %v2264, %v2256
    %v2953 = vpack.c.b16 %v2273, %v2265
    %v2954 = vpack.c.b16 %v2274, %v2266
    %v2955 = vpack.c.b16 %v2275, %v2267
    %v2956 = vpack.c.b16 %v2276, %v2268
    %v2957 = vpack.c.b16 %v2277, %v2269
    %v2958 = vpack.c.b16 %v2278, %v2270
    %v2959 = vpack.c.b16 %v2279, %v2271
    %v2960 = vpack.c.b16 %v2280, %v2272
    %v2961 = vpack.c.b16 %v2289, %v2281
    %v2962 = vpack.c.b16 %v2290, %v2282
    %v2963 = vpack.c.b16 %v2291, %v2283
    %v2964 = vpack.c.b16 %v2292, %v2284
    %v2965 = vpack.c.b16 %v2293, %v2285
    %v2966 = vpack.c.b16 %v2294, %v2286
    %v2967 = vpack.c.b16 %v2295, %v2287
    %v2968 = vpack.c.b16 %v2296, %v2288
    %v2969 = vpack.c.b16 %v2305, %v2297
    %v2970 = vpack.c.b16 %v2306, %v2298
    %v2971 = vpack.c.b16 %v2307, %v2299
    %v2972 = vpack.c.b16 %v2308, %v2300
    %v2973 = vpack.c.b16 %v2309, %v2301
    %v2974 = vpack.c.b16 %v2310, %v2302
    %v2975 = vpack.c.b16 %v2311, %v2303
    %v2976 = vpack.c.b16 %v2312, %v2304
    %v2977 = vpack.c.b16 %v2321, %v2313
    %v2978 = vpack.c.b16 %v2322, %v2314
    %v2979 = vpack.c.b16 %v2323, %v2315
    %v2980 = vpack.c.b16 %v2324, %v2316
    %v2981 = vpack.c.b16 %v2325, %v2317
    %v2982 = vpack.c.b16 %v2326, %v2318
    %v2983 = vpack.c.b16 %v2327, %v2319
    %v2984 = vpack.c.b16 %v2328, %v2320
    %v2985 = vpack.c.b16 %v2337, %v2329
    %v2986 = vpack.c.b16 %v2338, %v2330
    %v2987 = vpack.c.b16 %v2339, %v2331
    %v2988 = vpack.c.b16 %v2340, %v2332
    %v2989 = vpack.c.b16 %v2341, %v2333
    %v2990 = vpack.c.b16 %v2342, %v2334
    %v2991 = vpack.c.b16 %v2343, %v2335
    %v2992 = vpack.c.b16 %v2344, %v2336
    %v2993 = vpack.c.b16 %v2353, %v2345
    %v2994 = vpack.c.b16 %v2354, %v2346
    %v2995 = vpack.c.b16 %v2355, %v2347
    %v2996 = vpack.c.b16 %v2356, %v2348
    %v2997 = vpack.c.b16 %v2357, %v2349
    %v2998 = vpack.c.b16 %v2358, %v2350
    %v2999 = vpack.c.b16 %v2359, %v2351
    %v3000 = vpack.c.b16 %v2360, %v2352
    %v3001 = vpack.c.b16 %v2369, %v2361
    %v3002 = vpack.c.b16 %v2370, %v2362
    %v3003 = vpack.c.b16 %v2371, %v2363
    %v3004 = vpack.c.b16 %v2372, %v2364
    %v3005 = vpack.c.b16 %v2373, %v2365
    %v3006 = vpack.c.b16 %v2374, %v2366
    %v3007 = vpack.c.b16 %v2375, %v2367
    %v3008 = vpack.c.b16 %v2376, %v2368
    %v3009 = vpack.c.b16 %v2385, %v2377
    %v3010 = vpack.c.b16 %v2386, %v2378
    %v3011 = vpack.c.b16 %v2387, %v2379
    %v3012 = vpack.c.b16 %v2388, %v2380
    %v3013 = vpack.c.b16 %v2389, %v2381
    %v3014 = vpack.c.b16 %v2390, %v2382
    %v3015 = vpack.c.b16 %v2391, %v2383
    %v3016 = vpack.c.b16 %v2392, %v2384
    %v3017 = vpack.c.b16 %v2401, %v2393
    %v3018 = vpack.c.b16 %v2402, %v2394
    %v3019 = vpack.c.b16 %v2403, %v2395
    %v3020 = vpack.c.b16 %v2404, %v2396
    %v3021 = vpack.c.b16 %v2405, %v2397
    %v3022 = vpack.c.b16 %v2406, %v2398
    %v3023 = vpack.c.b16 %v2407, %v2399
    %v3024 = vpack.c.b16 %v2408, %v2400
    %v3025 = vpack.c.b16 %v2417, %v2409
    %v3026 = vpack.c.b16 %v2418, %v2410
    %v3027 = vpack.c.b16 %v2419, %v2411
    %v3028 = vpack.c.b16 %v2420, %v2412
    %v3029 = vpack.c.b16 %v2421, %v2413
    %v3030 = vpack.c.b16 %v2422, %v2414
    %v3031 = vpack.c.b16 %v2423, %v2415
    %v3032 = vpack.c.b16 %v2424, %v2416
    %v3033 = vpack.c.b16 %v2433, %v2425
    %v3034 = vpack.c.b16 %v2434, %v2426
    %v3035 = vpack.c.b16 %v2435, %v2427
    %v3036 = vpack.c.b16 %v2436, %v2428
    %v3037 = vpack.c.b16 %v2437, %v2429
    %v3038 = vpack.c.b16 %v2438, %v2430
    %v3039 = vpack.c.b16 %v2439, %v2431
    %v3040 = vpack.c.b16 %v2440, %v2432
    %v3041 = vpack.c.b16 %v2449, %v2441
    %v3042 = vpack.c.b16 %v2450, %v2442
    %v3043 = vpack.c.b16 %v2451, %v2443
    %v3044 = vpack.c.b16 %v2452, %v2444
    %v3045 = vpack.c.b16 %v2453, %v2445
    %v3046 = vpack.c.b16 %v2454, %v2446
    %v3047 = vpack.c.b16 %v2455, %v2447
    %v3048 = vpack.c.b16 %v2456, %v2448
    %v3049 = vpack.c.b16 %v2465, %v2457
    %v3050 = vpack.c.b16 %v2466, %v2458
    %v3051 = vpack.c.b16 %v2467, %v2459
    %v3052 = vpack.c.b16 %v2468, %v2460
    %v3053 = vpack.c.b16 %v2469, %v2461
    %v3054 = vpack.c.b16 %v2470, %v2462
    %v3055 = vpack.c.b16 %v2471, %v2463
    %v3056 = vpack.c.b16 %v2472, %v2464
    %v3057 = vpack.c.b16 %v2481, %v2473
    %v3058 = vpack.c.b16 %v2482, %v2474
    %v3059 = vpack.c.b16 %v2483, %v2475
    %v3060 = vpack.c.b16 %v2484, %v2476
    %v3061 = vpack.c.b16 %v2485, %v2477
    %v3062 = vpack.c.b16 %v2486, %v2478
    %v3063 = vpack.c.b16 %v2487, %v2479
    %v3064 = vpack.c.b16 %v2488, %v2480
    %v3065 = vpack.c.b16 %v2497, %v2489
    %v3066 = vpack.c.b16 %v2498, %v2490
    %v3067 = vpack.c.b16 %v2499, %v2491
    %v3068 = vpack.c.b16 %v2500, %v2492
    %v3069 = vpack.c.b16 %v2501, %v2493
    %v3070 = vpack.c.b16 %v2502, %v2494
    %v3071 = vpack.c.b16 %v2503, %v2495
    %v3072 = vpack.c.b16 %v2504, %v2496
    %v3073 = vpack.c.b16 %v2513, %v2505
    %v3074 = vpack.c.b16 %v2514, %v2506
    %v3075 = vpack.c.b16 %v2515, %v2507
    %v3076 = vpack.c.b16 %v2516, %v2508
    %v3077 = vpack.c.b16 %v2517, %v2509
    %v3078 = vpack.c.b16 %v2518, %v2510
    %v3079 = vpack.c.b16 %v2519, %v2511
    %v3080 = vpack.c.b16 %v2520, %v2512
    %v3081 = vpack.c.b16 %v2529, %v2521
    %v3082 = vpack.c.b16 %v2530, %v2522
    %v3083 = vpack.c.b16 %v2531, %v2523
    %v3084 = vpack.c.b16 %v2532, %v2524
    %v3085 = vpack.c.b16 %v2533, %v2525
    %v3086 = vpack.c.b16 %v2534, %v2526
    %v3087 = vpack.c.b16 %v2535, %v2527
    %v3088 = vpack.c.b16 %v2536, %v2528
    %v3089 = vpack.c.b16 %v2545, %v2537
    %v3090 = vpack.c.b16 %v2546, %v2538
    %v3091 = vpack.c.b16 %v2547, %v2539
    %v3092 = vpack.c.b16 %v2548, %v2540
    %v3093 = vpack.c.b16 %v2549, %v2541
    %v3094 = vpack.c.b16 %v2550, %v2542
    %v3095 = vpack.c.b16 %v2551, %v2543
    %v3096 = vpack.c.b16 %v2552, %v2544
    %v3097 = vpack.c.b16 %v2561, %v2553
    %v3098 = vpack.c.b16 %v2562, %v2554
    %v3099 = vpack.c.b16 %v2563, %v2555
    %v3100 = vpack.c.b16 %v2564, %v2556
    %v3101 = vpack.c.b16 %v2565, %v2557
    %v3102 = vpack.c.b16 %v2566, %v2558
    %v3103 = vpack.c.b16 %v2567, %v2559
    %v3104 = vpack.c.b16 %v2568, %v2560
    %v3105 = vpack.c.b16 %v2577, %v2569
    %v3106 = vpack.c.b16 %v2578, %v2570
    %v3107 = vpack.c.b16 %v2579, %v2571
    %v3108 = vpack.c.b16 %v2580, %v2572
    %v3109 = vpack.c.b16 %v2581, %v2573
    %v3110 = vpack.c.b16 %v2582, %v2574
    %v3111 = vpack.c.b16 %v2583, %v2575
    %v3112 = vpack.c.b16 %v2584, %v2576
    %v3113 = vpack.c.b16 %v2593, %v2585
    %v3114 = vpack.c.b16 %v2594, %v2586
    %v3115 = vpack.c.b16 %v2595, %v2587
    %v3116 = vpack.c.b16 %v2596, %v2588
    %v3117 = vpack.c.b16 %v2597, %v2589
    %v3118 = vpack.c.b16 %v2598, %v2590
    %v3119 = vpack.c.b16 %v2599, %v2591
    %v3120 = vpack.c.b16 %v2600, %v2592
    %v3121 = vpack.c.b16 %v2609, %v2601
    %v3122 = vpack.c.b16 %v2610, %v2602
    %v3123 = vpack.c.b16 %v2611, %v2603
    %v3124 = vpack.c.b16 %v2612, %v2604
    %v3125 = vpack.c.b16 %v2613, %v2605
    %v3126 = vpack.c.b16 %v2614, %v2606
    %v3127 = vpack.c.b16 %v2615, %v2607
    %v3128 = vpack.c.b16 %v2616, %v2608
    %3641 = vmatprep.subr.bf16.mxu0 %v2618
    %3642 = vmatpush1.bf16.msra.mxu0 %v2617
    %3643 = vmatprep.subr.bf16.mxu0 %v2626
    %3644 = vmatpush1.bf16.msra.mxu0 %v2625
    %3645 = vmatprep.subr.bf16.mxu0 %v2634
    %3646 = vmatpush1.bf16.msra.mxu0 %v2633
    %3647 = vmatprep.subr.bf16.mxu0 %v2642
    %3648 = vmatpush1.bf16.msra.mxu0 %v2641
    %3649 = vmatprep.subr.bf16.mxu0 %v2650
    %3650 = vmatpush1.bf16.msra.mxu0 %v2649
    %3651 = vmatprep.subr.bf16.mxu0 %v2658
    %3652 = vmatpush1.bf16.msra.mxu0 %v2657
    %3653 = vmatprep.subr.bf16.mxu0 %v2666
    %3654 = vmatpush1.bf16.msra.mxu0 %v2665
    %3655 = vmatprep.subr.bf16.mxu0 %v2674
    %3656 = vmatpush1.bf16.msra.mxu0 %v2673
    %3657 = vmatprep.subr.bf16.mxu0 %v2682
    %3658 = vmatpush1.bf16.msra.mxu0 %v2681
    %3659 = vmatprep.subr.bf16.mxu0 %v2690
    %3660 = vmatpush1.bf16.msra.mxu0 %v2689
    %3661 = vmatprep.subr.bf16.mxu0 %v2698
    %3662 = vmatpush1.bf16.msra.mxu0 %v2697
    %3663 = vmatprep.subr.bf16.mxu0 %v2706
    %3664 = vmatpush1.bf16.msra.mxu0 %v2705
    %3665 = vmatprep.subr.bf16.mxu0 %v2714
    %3666 = vmatpush1.bf16.msra.mxu0 %v2713
    %3667 = vmatprep.subr.bf16.mxu0 %v2722
    %3668 = vmatpush1.bf16.msra.mxu0 %v2721
    %3669 = vmatprep.subr.bf16.mxu0 %v2730
    %3670 = vmatpush1.bf16.msra.mxu0 %v2729
    %3671 = vmatprep.subr.bf16.mxu0 %v2738
    %3672 = vmatpush1.bf16.msra.mxu0 %v2737
    %3673 = vmatprep.mubr.bf16.mxu0 %v520
    %3674 = vmatmul.mubr.bf16.gmra.mrb[0].mxu0 %v519
    %v3675 = vpop.f32.mrb[0].mxu0
    %v3676 = vadd.f32 %v1044, %v3675
    %v3677 = vpop.f32.mrb[0].mxu0
    %v3678 = vadd.f32 %v1048, %v3677
    %v3679 = vpop.f32.mrb[0].mxu0
    %v3680 = vpop.f32.mrb[0].mxu0
    %3681 = vdwg.mxu0
    %3682 = vmatprep.subr.bf16.mxu0 %v2746
    %3683 = vmatpush1.bf16.msra.mxu0 %v2745
    %3684 = vmatprep.subr.bf16.mxu0 %v2754
    %3685 = vmatpush1.bf16.msra.mxu0 %v2753
    %3686 = vmatprep.subr.bf16.mxu0 %v2762
    %3687 = vmatpush1.bf16.msra.mxu0 %v2761
    %3688 = vmatprep.subr.bf16.mxu0 %v2770
    %3689 = vmatpush1.bf16.msra.mxu0 %v2769
    %3690 = vmatprep.subr.bf16.mxu0 %v2778
    %3691 = vmatpush1.bf16.msra.mxu0 %v2777
    %3692 = vmatprep.subr.bf16.mxu0 %v2786
    %3693 = vmatpush1.bf16.msra.mxu0 %v2785
    %3694 = vmatprep.subr.bf16.mxu0 %v2794
    %3695 = vmatpush1.bf16.msra.mxu0 %v2793
    %3696 = vmatprep.subr.bf16.mxu0 %v2802
    %3697 = vmatpush1.bf16.msra.mxu0 %v2801
    %3698 = vmatprep.subr.bf16.mxu0 %v2810
    %3699 = vmatpush1.bf16.msra.mxu0 %v2809
    %3700 = vmatprep.subr.bf16.mxu0 %v2818
    %3701 = vmatpush1.bf16.msra.mxu0 %v2817
    %3702 = vmatprep.subr.bf16.mxu0 %v2826
    %3703 = vmatpush1.bf16.msra.mxu0 %v2825
    %3704 = vmatprep.subr.bf16.mxu0 %v2834
    %3705 = vmatpush1.bf16.msra.mxu0 %v2833
    %3706 = vmatprep.subr.bf16.mxu0 %v2842
    %3707 = vmatpush1.bf16.msra.mxu0 %v2841
    %3708 = vmatprep.subr.bf16.mxu0 %v2850
    %3709 = vmatpush1.bf16.msra.mxu0 %v2849
    %3710 = vmatprep.subr.bf16.mxu0 %v2858
    %3711 = vmatpush1.bf16.msra.mxu0 %v2857
    %3712 = vmatprep.subr.bf16.mxu0 %v2866
    %3713 = vmatpush1.bf16.msra.mxu0 %v2865
    %3714 = vmatprep.mubr.bf16.mxu0 %v522
    %3715 = vmatmul.mubr.bf16.gmra.mrb[0].mxu0 %v521
    %v3716 = vpop.f32.mrb[0].mxu0
    %v3717 = vadd.f32 %v3676, %v3716
    %v3718 = vpop.f32.mrb[0].mxu0
    %v3719 = vadd.f32 %v3678, %v3718
    %v3720 = vpop.f32.mrb[0].mxu0
    %v3721 = vpop.f32.mrb[0].mxu0
    %3722 = vdwg.mxu0
    %3723 = vmatprep.subr.bf16.mxu0 %v2874
    %3724 = vmatpush1.bf16.msra.mxu0 %v2873
    %3725 = vmatprep.subr.bf16.mxu0 %v2882
    %3726 = vmatpush1.bf16.msra.mxu0 %v2881
    %3727 = vmatprep.subr.bf16.mxu0 %v2890
    %3728 = vmatpush1.bf16.msra.mxu0 %v2889
    %3729 = vmatprep.subr.bf16.mxu0 %v2898
    %3730 = vmatpush1.bf16.msra.mxu0 %v2897
    %3731 = vmatprep.subr.bf16.mxu0 %v2906
    %3732 = vmatpush1.bf16.msra.mxu0 %v2905
    %3733 = vmatprep.subr.bf16.mxu0 %v2914
    %3734 = vmatpush1.bf16.msra.mxu0 %v2913
    %3735 = vmatprep.subr.bf16.mxu0 %v2922
    %3736 = vmatpush1.bf16.msra.mxu0 %v2921
    %3737 = vmatprep.subr.bf16.mxu0 %v2930
    %3738 = vmatpush1.bf16.msra.mxu0 %v2929
    %3739 = vmatprep.subr.bf16.mxu0 %v2938
    %3740 = vmatpush1.bf16.msra.mxu0 %v2937
    %3741 = vmatprep.subr.bf16.mxu0 %v2946
    %3742 = vmatpush1.bf16.msra.mxu0 %v2945
    %3743 = vmatprep.subr.bf16.mxu0 %v2954
    %3744 = vmatpush1.bf16.msra.mxu0 %v2953
    %3745 = vmatprep.subr.bf16.mxu0 %v2962
    %3746 = vmatpush1.bf16.msra.mxu0 %v2961
    %3747 = vmatprep.subr.bf16.mxu0 %v2970
    %3748 = vmatpush1.bf16.msra.mxu0 %v2969
    %3749 = vmatprep.subr.bf16.mxu0 %v2978
    %3750 = vmatpush1.bf16.msra.mxu0 %v2977
    %3751 = vmatprep.subr.bf16.mxu0 %v2986
    %3752 = vmatpush1.bf16.msra.mxu0 %v2985
    %3753 = vmatprep.subr.bf16.mxu0 %v2994
    %3754 = vmatpush1.bf16.msra.mxu0 %v2993
    %3755 = vmatprep.mubr.bf16.mxu0 %v524
    %3756 = vmatmul.mubr.bf16.gmra.mrb[0].mxu0 %v523
    %v3757 = vpop.f32.mrb[0].mxu0
    %v3758 = vadd.f32 %v3717, %v3757
    %v3759 = vpop.f32.mrb[0].mxu0
    %v3760 = vadd.f32 %v3719, %v3759
    %v3761 = vpop.f32.mrb[0].mxu0
    %v3762 = vpop.f32.mrb[0].mxu0
    %3763 = vdwg.mxu0
    %3764 = vmatprep.subr.bf16.mxu0 %v3002
    %3765 = vmatpush1.bf16.msra.mxu0 %v3001
    %3766 = vmatprep.subr.bf16.mxu0 %v3010
    %3767 = vmatpush1.bf16.msra.mxu0 %v3009
    %3768 = vmatprep.subr.bf16.mxu0 %v3018
    %3769 = vmatpush1.bf16.msra.mxu0 %v3017
    %3770 = vmatprep.subr.bf16.mxu0 %v3026
    %3771 = vmatpush1.bf16.msra.mxu0 %v3025
    %3772 = vmatprep.subr.bf16.mxu0 %v3034
    %3773 = vmatpush1.bf16.msra.mxu0 %v3033
    %3774 = vmatprep.subr.bf16.mxu0 %v3042
    %3775 = vmatpush1.bf16.msra.mxu0 %v3041
    %3776 = vmatprep.subr.bf16.mxu0 %v3050
    %3777 = vmatpush1.bf16.msra.mxu0 %v3049
    %3778 = vmatprep.subr.bf16.mxu0 %v3058
    %3779 = vmatpush1.bf16.msra.mxu0 %v3057
    %3780 = vmatprep.subr.bf16.mxu0 %v3066
    %3781 = vmatpush1.bf16.msra.mxu0 %v3065
    %3782 = vmatprep.subr.bf16.mxu0 %v3074
    %3783 = vmatpush1.bf16.msra.mxu0 %v3073
    %3784 = vmatprep.subr.bf16.mxu0 %v3082
    %3785 = vmatpush1.bf16.msra.mxu0 %v3081
    %3786 = vmatprep.subr.bf16.mxu0 %v3090
    %3787 = vmatpush1.bf16.msra.mxu0 %v3089
    %3788 = vmatprep.subr.bf16.mxu0 %v3098
    %3789 = vmatpush1.bf16.msra.mxu0 %v3097
    %3790 = vmatprep.subr.bf16.mxu0 %v3106
    %3791 = vmatpush1.bf16.msra.mxu0 %v3105
    %3792 = vmatprep.subr.bf16.mxu0 %v3114
    %3793 = vmatpush1.bf16.msra.mxu0 %v3113
    %3794 = vmatprep.subr.bf16.mxu0 %v3122
    %3795 = vmatpush1.bf16.msra.mxu0 %v3121
    %3796 = vmatprep.mubr.bf16.mxu0 %v526
    %3797 = vmatmul.mubr.bf16.gmra.mrb[0].mxu0 %v525
    %v3798 = vpop.f32.mrb[0].mxu0
    %v3799 = vadd.f32 %v3758, %v3798
    %v3800 = vpop.f32.mrb[0].mxu0
    %v3801 = vadd.f32 %v3760, %v3800
    %v3802 = vpop.f32.mrb[0].mxu0
    %v3803 = vpop.f32.mrb[0].mxu0
    %3804 = vdwg.mxu0
    %3805 = vmatprep.subr.bf16.mxu0 %v2620
    %3806 = vmatpush1.bf16.msra.mxu0 %v2619
    %3807 = vmatprep.subr.bf16.mxu0 %v2628
    %3808 = vmatpush1.bf16.msra.mxu0 %v2627
    %3809 = vmatprep.subr.bf16.mxu0 %v2636
    %3810 = vmatpush1.bf16.msra.mxu0 %v2635
    %3811 = vmatprep.subr.bf16.mxu0 %v2644
    %3812 = vmatpush1.bf16.msra.mxu0 %v2643
    %3813 = vmatprep.subr.bf16.mxu0 %v2652
    %3814 = vmatpush1.bf16.msra.mxu0 %v2651
    %3815 = vmatprep.subr.bf16.mxu0 %v2660
    %3816 = vmatpush1.bf16.msra.mxu0 %v2659
    %3817 = vmatprep.subr.bf16.mxu0 %v2668
    %3818 = vmatpush1.bf16.msra.mxu0 %v2667
    %3819 = vmatprep.subr.bf16.mxu0 %v2676
    %3820 = vmatpush1.bf16.msra.mxu0 %v2675
    %3821 = vmatprep.subr.bf16.mxu0 %v2684
    %3822 = vmatpush1.bf16.msra.mxu0 %v2683
    %3823 = vmatprep.subr.bf16.mxu0 %v2692
    %3824 = vmatpush1.bf16.msra.mxu0 %v2691
    %3825 = vmatprep.subr.bf16.mxu0 %v2700
    %3826 = vmatpush1.bf16.msra.mxu0 %v2699
    %3827 = vmatprep.subr.bf16.mxu0 %v2708
    %3828 = vmatpush1.bf16.msra.mxu0 %v2707
    %3829 = vmatprep.subr.bf16.mxu0 %v2716
    %3830 = vmatpush1.bf16.msra.mxu0 %v2715
    %3831 = vmatprep.subr.bf16.mxu0 %v2724
    %3832 = vmatpush1.bf16.msra.mxu0 %v2723
    %3833 = vmatprep.subr.bf16.mxu0 %v2732
    %3834 = vmatpush1.bf16.msra.mxu0 %v2731
    %3835 = vmatprep.subr.bf16.mxu0 %v2740
    %3836 = vmatpush1.bf16.msra.mxu0 %v2739
    %3837 = vmatprep.mubr.bf16.mxu0 %v520
    %3838 = vmatmul.mubr.bf16.gmra.mrb[0].mxu0 %v519
    %v3839 = vpop.f32.mrb[0].mxu0
    %v3840 = vadd.f32 %v1052, %v3839
    %v3841 = vpop.f32.mrb[0].mxu0
    %v3842 = vadd.f32 %v1056, %v3841
    %v3843 = vpop.f32.mrb[0].mxu0
    %v3844 = vpop.f32.mrb[0].mxu0
    %3845 = vdwg.mxu0
    %3846 = vmatprep.subr.bf16.mxu0 %v2748
    %3847 = vmatpush1.bf16.msra.mxu0 %v2747
    %3848 = vmatprep.subr.bf16.mxu0 %v2756
    %3849 = vmatpush1.bf16.msra.mxu0 %v2755
    %3850 = vmatprep.subr.bf16.mxu0 %v2764
    %3851 = vmatpush1.bf16.msra.mxu0 %v2763
    %3852 = vmatprep.subr.bf16.mxu0 %v2772
    %3853 = vmatpush1.bf16.msra.mxu0 %v2771
    %3854 = vmatprep.subr.bf16.mxu0 %v2780
    %3855 = vmatpush1.bf16.msra.mxu0 %v2779
    %3856 = vmatprep.subr.bf16.mxu0 %v2788
    %3857 = vmatpush1.bf16.msra.mxu0 %v2787
    %3858 = vmatprep.subr.bf16.mxu0 %v2796
    %3859 = vmatpush1.bf16.msra.mxu0 %v2795
    %3860 = vmatprep.subr.bf16.mxu0 %v2804
    %3861 = vmatpush1.bf16.msra.mxu0 %v2803
    %3862 = vmatprep.subr.bf16.mxu0 %v2812
    %3863 = vmatpush1.bf16.msra.mxu0 %v2811
    %3864 = vmatprep.subr.bf16.mxu0 %v2820
    %3865 = vmatpush1.bf16.msra.mxu0 %v2819
    %3866 = vmatprep.subr.bf16.mxu0 %v2828
    %3867 = vmatpush1.bf16.msra.mxu0 %v2827
    %3868 = vmatprep.subr.bf16.mxu0 %v2836
    %3869 = vmatpush1.bf16.msra.mxu0 %v2835
    %3870 = vmatprep.subr.bf16.mxu0 %v2844
    %3871 = vmatpush1.bf16.msra.mxu0 %v2843
    %3872 = vmatprep.subr.bf16.mxu0 %v2852
    %3873 = vmatpush1.bf16.msra.mxu0 %v2851
    %3874 = vmatprep.subr.bf16.mxu0 %v2860
    %3875 = vmatpush1.bf16.msra.mxu0 %v2859
    %3876 = vmatprep.subr.bf16.mxu0 %v2868
    %3877 = vmatpush1.bf16.msra.mxu0 %v2867
    %3878 = vmatprep.mubr.bf16.mxu0 %v522
    %3879 = vmatmul.mubr.bf16.gmra.mrb[0].mxu0 %v521
    %v3880 = vpop.f32.mrb[0].mxu0
    %v3881 = vadd.f32 %v3840, %v3880
    %v3882 = vpop.f32.mrb[0].mxu0
    %v3883 = vadd.f32 %v3842, %v3882
    %v3884 = vpop.f32.mrb[0].mxu0
    %v3885 = vpop.f32.mrb[0].mxu0
    %3886 = vdwg.mxu0
    %3887 = vmatprep.subr.bf16.mxu0 %v2876
    %3888 = vmatpush1.bf16.msra.mxu0 %v2875
    %3889 = vmatprep.subr.bf16.mxu0 %v2884
    %3890 = vmatpush1.bf16.msra.mxu0 %v2883
    %3891 = vmatprep.subr.bf16.mxu0 %v2892
    %3892 = vmatpush1.bf16.msra.mxu0 %v2891
    %3893 = vmatprep.subr.bf16.mxu0 %v2900
    %3894 = vmatpush1.bf16.msra.mxu0 %v2899
    %3895 = vmatprep.subr.bf16.mxu0 %v2908
    %3896 = vmatpush1.bf16.msra.mxu0 %v2907
    %3897 = vmatprep.subr.bf16.mxu0 %v2916
    %3898 = vmatpush1.bf16.msra.mxu0 %v2915
    %3899 = vmatprep.subr.bf16.mxu0 %v2924
    %3900 = vmatpush1.bf16.msra.mxu0 %v2923
    %3901 = vmatprep.subr.bf16.mxu0 %v2932
    %3902 = vmatpush1.bf16.msra.mxu0 %v2931
    %3903 = vmatprep.subr.bf16.mxu0 %v2940
    %3904 = vmatpush1.bf16.msra.mxu0 %v2939
    %3905 = vmatprep.subr.bf16.mxu0 %v2948
    %3906 = vmatpush1.bf16.msra.mxu0 %v2947
    %3907 = vmatprep.subr.bf16.mxu0 %v2956
    %3908 = vmatpush1.bf16.msra.mxu0 %v2955
    %3909 = vmatprep.subr.bf16.mxu0 %v2964
    %3910 = vmatpush1.bf16.msra.mxu0 %v2963
    %3911 = vmatprep.subr.bf16.mxu0 %v2972
    %3912 = vmatpush1.bf16.msra.mxu0 %v2971
    %3913 = vmatprep.subr.bf16.mxu0 %v2980
    %3914 = vmatpush1.bf16.msra.mxu0 %v2979
    %3915 = vmatprep.subr.bf16.mxu0 %v2988
    %3916 = vmatpush1.bf16.msra.mxu0 %v2987
    %3917 = vmatprep.subr.bf16.mxu0 %v2996
    %3918 = vmatpush1.bf16.msra.mxu0 %v2995
    %3919 = vmatprep.mubr.bf16.mxu0 %v524
    %3920 = vmatmul.mubr.bf16.gmra.mrb[0].mxu0 %v523
    %v3921 = vpop.f32.mrb[0].mxu0
    %v3922 = vadd.f32 %v3881, %v3921
    %v3923 = vpop.f32.mrb[0].mxu0
    %v3924 = vadd.f32 %v3883, %v3923
    %v3925 = vpop.f32.mrb[0].mxu0
    %v3926 = vpop.f32.mrb[0].mxu0
    %3927 = vdwg.mxu0
    %3928 = vmatprep.subr.bf16.mxu0 %v3004
    %3929 = vmatpush1.bf16.msra.mxu0 %v3003
    %3930 = vmatprep.subr.bf16.mxu0 %v3012
    %3931 = vmatpush1.bf16.msra.mxu0 %v3011
    %3932 = vmatprep.subr.bf16.mxu0 %v3020
    %3933 = vmatpush1.bf16.msra.mxu0 %v3019
    %3934 = vmatprep.subr.bf16.mxu0 %v3028
    %3935 = vmatpush1.bf16.msra.mxu0 %v3027
    %3936 = vmatprep.subr.bf16.mxu0 %v3036
    %3937 = vmatpush1.bf16.msra.mxu0 %v3035
    %3938 = vmatprep.subr.bf16.mxu0 %v3044
    %3939 = vmatpush1.bf16.msra.mxu0 %v3043
    %3940 = vmatprep.subr.bf16.mxu0 %v3052
    %3941 = vmatpush1.bf16.msra.mxu0 %v3051
    %3942 = vmatprep.subr.bf16.mxu0 %v3060
    %3943 = vmatpush1.bf16.msra.mxu0 %v3059
    %3944 = vmatprep.subr.bf16.mxu0 %v3068
    %3945 = vmatpush1.bf16.msra.mxu0 %v3067
    %3946 = vmatprep.subr.bf16.mxu0 %v3076
    %3947 = vmatpush1.bf16.msra.mxu0 %v3075
    %3948 = vmatprep.subr.bf16.mxu0 %v3084
    %3949 = vmatpush1.bf16.msra.mxu0 %v3083
    %3950 = vmatprep.subr.bf16.mxu0 %v3092
    %3951 = vmatpush1.bf16.msra.mxu0 %v3091
    %3952 = vmatprep.subr.bf16.mxu0 %v3100
    %3953 = vmatpush1.bf16.msra.mxu0 %v3099
    %3954 = vmatprep.subr.bf16.mxu0 %v3108
    %3955 = vmatpush1.bf16.msra.mxu0 %v3107
    %3956 = vmatprep.subr.bf16.mxu0 %v3116
    %3957 = vmatpush1.bf16.msra.mxu0 %v3115
    %3958 = vmatprep.subr.bf16.mxu0 %v3124
    %3959 = vmatpush1.bf16.msra.mxu0 %v3123
    %3960 = vmatprep.mubr.bf16.mxu0 %v526
    %3961 = vmatmul.mubr.bf16.gmra.mrb[0].mxu0 %v525
    %v3962 = vpop.f32.mrb[0].mxu0
    %v3963 = vadd.f32 %v3922, %v3962
    %v3964 = vpop.f32.mrb[0].mxu0
    %v3965 = vadd.f32 %v3924, %v3964
    %v3966 = vpop.f32.mrb[0].mxu0
    %v3967 = vpop.f32.mrb[0].mxu0
    %3968 = vdwg.mxu0
    %3969 = vmatprep.subr.bf16.mxu0 %v2622
    %3970 = vmatpush1.bf16.msra.mxu0 %v2621
    %3971 = vmatprep.subr.bf16.mxu0 %v2630
    %3972 = vmatpush1.bf16.msra.mxu0 %v2629
    %3973 = vmatprep.subr.bf16.mxu0 %v2638
    %3974 = vmatpush1.bf16.msra.mxu0 %v2637
    %3975 = vmatprep.subr.bf16.mxu0 %v2646
    %3976 = vmatpush1.bf16.msra.mxu0 %v2645
    %3977 = vmatprep.subr.bf16.mxu0 %v2654
    %3978 = vmatpush1.bf16.msra.mxu0 %v2653
    %3979 = vmatprep.subr.bf16.mxu0 %v2662
    %3980 = vmatpush1.bf16.msra.mxu0 %v2661
    %3981 = vmatprep.subr.bf16.mxu0 %v2670
    %3982 = vmatpush1.bf16.msra.mxu0 %v2669
    %3983 = vmatprep.subr.bf16.mxu0 %v2678
    %3984 = vmatpush1.bf16.msra.mxu0 %v2677
    %3985 = vmatprep.subr.bf16.mxu0 %v2686
    %3986 = vmatpush1.bf16.msra.mxu0 %v2685
    %3987 = vmatprep.subr.bf16.mxu0 %v2694
    %3988 = vmatpush1.bf16.msra.mxu0 %v2693
    %3989 = vmatprep.subr.bf16.mxu0 %v2702
    %3990 = vmatpush1.bf16.msra.mxu0 %v2701
    %3991 = vmatprep.subr.bf16.mxu0 %v2710
    %3992 = vmatpush1.bf16.msra.mxu0 %v2709
    %3993 = vmatprep.subr.bf16.mxu0 %v2718
    %3994 = vmatpush1.bf16.msra.mxu0 %v2717
    %3995 = vmatprep.subr.bf16.mxu0 %v2726
    %3996 = vmatpush1.bf16.msra.mxu0 %v2725
    %3997 = vmatprep.subr.bf16.mxu0 %v2734
    %3998 = vmatpush1.bf16.msra.mxu0 %v2733
    %3999 = vmatprep.subr.bf16.mxu0 %v2742
    %4000 = vmatpush1.bf16.msra.mxu0 %v2741
    %4001 = vmatprep.mubr.bf16.mxu0 %v520
    %4002 = vmatmul.mubr.bf16.gmra.mrb[0].mxu0 %v519
    %v4003 = vpop.f32.mrb[0].mxu0
    %v4004 = vadd.f32 %v1060, %v4003
    %v4005 = vpop.f32.mrb[0].mxu0
    %v4006 = vadd.f32 %v1064, %v4005
    %v4007 = vpop.f32.mrb[0].mxu0
    %v4008 = vpop.f32.mrb[0].mxu0
    %4009 = vdwg.mxu0
    %4010 = vmatprep.subr.bf16.mxu0 %v2750
    %4011 = vmatpush1.bf16.msra.mxu0 %v2749
    %4012 = vmatprep.subr.bf16.mxu0 %v2758
    %4013 = vmatpush1.bf16.msra.mxu0 %v2757
    %4014 = vmatprep.subr.bf16.mxu0 %v2766
    %4015 = vmatpush1.bf16.msra.mxu0 %v2765
    %4016 = vmatprep.subr.bf16.mxu0 %v2774
    %4017 = vmatpush1.bf16.msra.mxu0 %v2773
    %4018 = vmatprep.subr.bf16.mxu0 %v2782
    %4019 = vmatpush1.bf16.msra.mxu0 %v2781
    %4020 = vmatprep.subr.bf16.mxu0 %v2790
    %4021 = vmatpush1.bf16.msra.mxu0 %v2789
    %4022 = vmatprep.subr.bf16.mxu0 %v2798
    %4023 = vmatpush1.bf16.msra.mxu0 %v2797
    %4024 = vmatprep.subr.bf16.mxu0 %v2806
    %4025 = vmatpush1.bf16.msra.mxu0 %v2805
    %4026 = vmatprep.subr.bf16.mxu0 %v2814
    %4027 = vmatpush1.bf16.msra.mxu0 %v2813
    %4028 = vmatprep.subr.bf16.mxu0 %v2822
    %4029 = vmatpush1.bf16.msra.mxu0 %v2821
    %4030 = vmatprep.subr.bf16.mxu0 %v2830
    %4031 = vmatpush1.bf16.msra.mxu0 %v2829
    %4032 = vmatprep.subr.bf16.mxu0 %v2838
    %4033 = vmatpush1.bf16.msra.mxu0 %v2837
    %4034 = vmatprep.subr.bf16.mxu0 %v2846
    %4035 = vmatpush1.bf16.msra.mxu0 %v2845
    %4036 = vmatprep.subr.bf16.mxu0 %v2854
    %4037 = vmatpush1.bf16.msra.mxu0 %v2853
    %4038 = vmatprep.subr.bf16.mxu0 %v2862
    %4039 = vmatpush1.bf16.msra.mxu0 %v2861
    %4040 = vmatprep.subr.bf16.mxu0 %v2870
    %4041 = vmatpush1.bf16.msra.mxu0 %v2869
    %4042 = vmatprep.mubr.bf16.mxu0 %v522
    %4043 = vmatmul.mubr.bf16.gmra.mrb[0].mxu0 %v521
    %v4044 = vpop.f32.mrb[0].mxu0
    %v4045 = vadd.f32 %v4004, %v4044
    %v4046 = vpop.f32.mrb[0].mxu0
    %v4047 = vadd.f32 %v4006, %v4046
    %v4048 = vpop.f32.mrb[0].mxu0
    %v4049 = vpop.f32.mrb[0].mxu0
    %4050 = vdwg.mxu0
    %4051 = vmatprep.subr.bf16.mxu0 %v2878
    %4052 = vmatpush1.bf16.msra.mxu0 %v2877
    %4053 = vmatprep.subr.bf16.mxu0 %v2886
    %4054 = vmatpush1.bf16.msra.mxu0 %v2885
    %4055 = vmatprep.subr.bf16.mxu0 %v2894
    %4056 = vmatpush1.bf16.msra.mxu0 %v2893
    %4057 = vmatprep.subr.bf16.mxu0 %v2902
    %4058 = vmatpush1.bf16.msra.mxu0 %v2901
    %4059 = vmatprep.subr.bf16.mxu0 %v2910
    %4060 = vmatpush1.bf16.msra.mxu0 %v2909
    %4061 = vmatprep.subr.bf16.mxu0 %v2918
    %4062 = vmatpush1.bf16.msra.mxu0 %v2917
    %4063 = vmatprep.subr.bf16.mxu0 %v2926
    %4064 = vmatpush1.bf16.msra.mxu0 %v2925
    %4065 = vmatprep.subr.bf16.mxu0 %v2934
    %4066 = vmatpush1.bf16.msra.mxu0 %v2933
    %4067 = vmatprep.subr.bf16.mxu0 %v2942
    %4068 = vmatpush1.bf16.msra.mxu0 %v2941
    %4069 = vmatprep.subr.bf16.mxu0 %v2950
    %4070 = vmatpush1.bf16.msra.mxu0 %v2949
    %4071 = vmatprep.subr.bf16.mxu0 %v2958
    %4072 = vmatpush1.bf16.msra.mxu0 %v2957
    %4073 = vmatprep.subr.bf16.mxu0 %v2966
    %4074 = vmatpush1.bf16.msra.mxu0 %v2965
    %4075 = vmatprep.subr.bf16.mxu0 %v2974
    %4076 = vmatpush1.bf16.msra.mxu0 %v2973
    %4077 = vmatprep.subr.bf16.mxu0 %v2982
    %4078 = vmatpush1.bf16.msra.mxu0 %v2981
    %4079 = vmatprep.subr.bf16.mxu0 %v2990
    %4080 = vmatpush1.bf16.msra.mxu0 %v2989
    %4081 = vmatprep.subr.bf16.mxu0 %v2998
    %4082 = vmatpush1.bf16.msra.mxu0 %v2997
    %4083 = vmatprep.mubr.bf16.mxu0 %v524
    %4084 = vmatmul.mubr.bf16.gmra.mrb[0].mxu0 %v523
    %v4085 = vpop.f32.mrb[0].mxu0
    %v4086 = vadd.f32 %v4045, %v4085
    %v4087 = vpop.f32.mrb[0].mxu0
    %v4088 = vadd.f32 %v4047, %v4087
    %v4089 = vpop.f32.mrb[0].mxu0
    %v4090 = vpop.f32.mrb[0].mxu0
    %4091 = vdwg.mxu0
    %4092 = vmatprep.subr.bf16.mxu0 %v3006
    %4093 = vmatpush1.bf16.msra.mxu0 %v3005
    %4094 = vmatprep.subr.bf16.mxu0 %v3014
    %4095 = vmatpush1.bf16.msra.mxu0 %v3013
    %4096 = vmatprep.subr.bf16.mxu0 %v3022
    %4097 = vmatpush1.bf16.msra.mxu0 %v3021
    %4098 = vmatprep.subr.bf16.mxu0 %v3030
    %4099 = vmatpush1.bf16.msra.mxu0 %v3029
    %4100 = vmatprep.subr.bf16.mxu0 %v3038
    %4101 = vmatpush1.bf16.msra.mxu0 %v3037
    %4102 = vmatprep.subr.bf16.mxu0 %v3046
    %4103 = vmatpush1.bf16.msra.mxu0 %v3045
    %4104 = vmatprep.subr.bf16.mxu0 %v3054
    %4105 = vmatpush1.bf16.msra.mxu0 %v3053
    %4106 = vmatprep.subr.bf16.mxu0 %v3062
    %4107 = vmatpush1.bf16.msra.mxu0 %v3061
    %4108 = vmatprep.subr.bf16.mxu0 %v3070
    %4109 = vmatpush1.bf16.msra.mxu0 %v3069
    %4110 = vmatprep.subr.bf16.mxu0 %v3078
    %4111 = vmatpush1.bf16.msra.mxu0 %v3077
    %4112 = vmatprep.subr.bf16.mxu0 %v3086
    %4113 = vmatpush1.bf16.msra.mxu0 %v3085
    %4114 = vmatprep.subr.bf16.mxu0 %v3094
    %4115 = vmatpush1.bf16.msra.mxu0 %v3093
    %4116 = vmatprep.subr.bf16.mxu0 %v3102
    %4117 = vmatpush1.bf16.msra.mxu0 %v3101
    %4118 = vmatprep.subr.bf16.mxu0 %v3110
    %4119 = vmatpush1.bf16.msra.mxu0 %v3109
    %4120 = vmatprep.subr.bf16.mxu0 %v3118
    %4121 = vmatpush1.bf16.msra.mxu0 %v3117
    %4122 = vmatprep.subr.bf16.mxu0 %v3126
    %4123 = vmatpush1.bf16.msra.mxu0 %v3125
    %4124 = vmatprep.mubr.bf16.mxu0 %v526
    %4125 = vmatmul.mubr.bf16.gmra.mrb[0].mxu0 %v525
    %v4126 = vpop.f32.mrb[0].mxu0
    %v4127 = vadd.f32 %v4086, %v4126
    %v4128 = vpop.f32.mrb[0].mxu0
    %v4129 = vadd.f32 %v4088, %v4128
    %v4130 = vpop.f32.mrb[0].mxu0
    %v4131 = vpop.f32.mrb[0].mxu0
    %4132 = vdwg.mxu0
    %4133 = vmatprep.subr.bf16.mxu0 %v2624
    %4134 = vmatpush1.bf16.msra.mxu0 %v2623
    %4135 = vmatprep.subr.bf16.mxu0 %v2632
    %4136 = vmatpush1.bf16.msra.mxu0 %v2631
    %4137 = vmatprep.subr.bf16.mxu0 %v2640
    %4138 = vmatpush1.bf16.msra.mxu0 %v2639
    %4139 = vmatprep.subr.bf16.mxu0 %v2648
    %4140 = vmatpush1.bf16.msra.mxu0 %v2647
    %4141 = vmatprep.subr.bf16.mxu0 %v2656
    %4142 = vmatpush1.bf16.msra.mxu0 %v2655
    %4143 = vmatprep.subr.bf16.mxu0 %v2664
    %4144 = vmatpush1.bf16.msra.mxu0 %v2663
    %4145 = vmatprep.subr.bf16.mxu0 %v2672
    %4146 = vmatpush1.bf16.msra.mxu0 %v2671
    %4147 = vmatprep.subr.bf16.mxu0 %v2680
    %4148 = vmatpush1.bf16.msra.mxu0 %v2679
    %4149 = vmatprep.subr.bf16.mxu0 %v2688
    %4150 = vmatpush1.bf16.msra.mxu0 %v2687
    %4151 = vmatprep.subr.bf16.mxu0 %v2696
    %4152 = vmatpush1.bf16.msra.mxu0 %v2695
    %4153 = vmatprep.subr.bf16.mxu0 %v2704
    %4154 = vmatpush1.bf16.msra.mxu0 %v2703
    %4155 = vmatprep.subr.bf16.mxu0 %v2712
    %4156 = vmatpush1.bf16.msra.mxu0 %v2711
    %4157 = vmatprep.subr.bf16.mxu0 %v2720
    %4158 = vmatpush1.bf16.msra.mxu0 %v2719
    %4159 = vmatprep.subr.bf16.mxu0 %v2728
    %4160 = vmatpush1.bf16.msra.mxu0 %v2727
    %4161 = vmatprep.subr.bf16.mxu0 %v2736
    %4162 = vmatpush1.bf16.msra.mxu0 %v2735
    %4163 = vmatprep.subr.bf16.mxu0 %v2744
    %4164 = vmatpush1.bf16.msra.mxu0 %v2743
    %4165 = vmatprep.mubr.bf16.mxu0 %v520
    %4166 = vmatmul.mubr.bf16.gmra.mrb[0].mxu0 %v519
    %v4167 = vpop.f32.mrb[0].mxu0
    %v4168 = vadd.f32 %v1068, %v4167
    %v4169 = vpop.f32.mrb[0].mxu0
    %v4170 = vadd.f32 %v1072, %v4169
    %v4171 = vpop.f32.mrb[0].mxu0
    %v4172 = vpop.f32.mrb[0].mxu0
    %4173 = vdwg.mxu0
    %4174 = vmatprep.subr.bf16.mxu0 %v2752
    %4175 = vmatpush1.bf16.msra.mxu0 %v2751
    %4176 = vmatprep.subr.bf16.mxu0 %v2760
    %4177 = vmatpush1.bf16.msra.mxu0 %v2759
    %4178 = vmatprep.subr.bf16.mxu0 %v2768
    %4179 = vmatpush1.bf16.msra.mxu0 %v2767
    %4180 = vmatprep.subr.bf16.mxu0 %v2776
    %4181 = vmatpush1.bf16.msra.mxu0 %v2775
    %4182 = vmatprep.subr.bf16.mxu0 %v2784
    %4183 = vmatpush1.bf16.msra.mxu0 %v2783
    %4184 = vmatprep.subr.bf16.mxu0 %v2792
    %4185 = vmatpush1.bf16.msra.mxu0 %v2791
    %4186 = vmatprep.subr.bf16.mxu0 %v2800
    %4187 = vmatpush1.bf16.msra.mxu0 %v2799
    %4188 = vmatprep.subr.bf16.mxu0 %v2808
    %4189 = vmatpush1.bf16.msra.mxu0 %v2807
    %4190 = vmatprep.subr.bf16.mxu0 %v2816
    %4191 = vmatpush1.bf16.msra.mxu0 %v2815
    %4192 = vmatprep.subr.bf16.mxu0 %v2824
    %4193 = vmatpush1.bf16.msra.mxu0 %v2823
    %4194 = vmatprep.subr.bf16.mxu0 %v2832
    %4195 = vmatpush1.bf16.msra.mxu0 %v2831
    %4196 = vmatprep.subr.bf16.mxu0 %v2840
    %4197 = vmatpush1.bf16.msra.mxu0 %v2839
    %4198 = vmatprep.subr.bf16.mxu0 %v2848
    %4199 = vmatpush1.bf16.msra.mxu0 %v2847
    %4200 = vmatprep.subr.bf16.mxu0 %v2856
    %4201 = vmatpush1.bf16.msra.mxu0 %v2855
    %4202 = vmatprep.subr.bf16.mxu0 %v2864
    %4203 = vmatpush1.bf16.msra.mxu0 %v2863
    %4204 = vmatprep.subr.bf16.mxu0 %v2872
    %4205 = vmatpush1.bf16.msra.mxu0 %v2871
    %4206 = vmatprep.mubr.bf16.mxu0 %v522
    %4207 = vmatmul.mubr.bf16.gmra.mrb[0].mxu0 %v521
    %v4208 = vpop.f32.mrb[0].mxu0
    %v4209 = vadd.f32 %v4168, %v4208
    %v4210 = vpop.f32.mrb[0].mxu0
    %v4211 = vadd.f32 %v4170, %v4210
    %v4212 = vpop.f32.mrb[0].mxu0
    %v4213 = vpop.f32.mrb[0].mxu0
    %4214 = vdwg.mxu0
    %4215 = vmatprep.subr.bf16.mxu0 %v2880
    %4216 = vmatpush1.bf16.msra.mxu0 %v2879
    %4217 = vmatprep.subr.bf16.mxu0 %v2888
    %4218 = vmatpush1.bf16.msra.mxu0 %v2887
    %4219 = vmatprep.subr.bf16.mxu0 %v2896
    %4220 = vmatpush1.bf16.msra.mxu0 %v2895
    %4221 = vmatprep.subr.bf16.mxu0 %v2904
    %4222 = vmatpush1.bf16.msra.mxu0 %v2903
    %4223 = vmatprep.subr.bf16.mxu0 %v2912
    %4224 = vmatpush1.bf16.msra.mxu0 %v2911
    %4225 = vmatprep.subr.bf16.mxu0 %v2920
    %4226 = vmatpush1.bf16.msra.mxu0 %v2919
    %4227 = vmatprep.subr.bf16.mxu0 %v2928
    %4228 = vmatpush1.bf16.msra.mxu0 %v2927
    %4229 = vmatprep.subr.bf16.mxu0 %v2936
    %4230 = vmatpush1.bf16.msra.mxu0 %v2935
    %4231 = vmatprep.subr.bf16.mxu0 %v2944
    %4232 = vmatpush1.bf16.msra.mxu0 %v2943
    %4233 = vmatprep.subr.bf16.mxu0 %v2952
    %4234 = vmatpush1.bf16.msra.mxu0 %v2951
    %4235 = vmatprep.subr.bf16.mxu0 %v2960
    %4236 = vmatpush1.bf16.msra.mxu0 %v2959
    %4237 = vmatprep.subr.bf16.mxu0 %v2968
    %4238 = vmatpush1.bf16.msra.mxu0 %v2967
    %4239 = vmatprep.subr.bf16.mxu0 %v2976
    %4240 = vmatpush1.bf16.msra.mxu0 %v2975
    %4241 = vmatprep.subr.bf16.mxu0 %v2984
    %4242 = vmatpush1.bf16.msra.mxu0 %v2983
    %4243 = vmatprep.subr.bf16.mxu0 %v2992
    %4244 = vmatpush1.bf16.msra.mxu0 %v2991
    %4245 = vmatprep.subr.bf16.mxu0 %v3000
    %4246 = vmatpush1.bf16.msra.mxu0 %v2999
    %4247 = vmatprep.mubr.bf16.mxu0 %v524
    %4248 = vmatmul.mubr.bf16.gmra.mrb[0].mxu0 %v523
    %v4249 = vpop.f32.mrb[0].mxu0
    %v4250 = vadd.f32 %v4209, %v4249
    %v4251 = vpop.f32.mrb[0].mxu0
    %v4252 = vadd.f32 %v4211, %v4251
    %v4253 = vpop.f32.mrb[0].mxu0
    %v4254 = vpop.f32.mrb[0].mxu0
    %4255 = vdwg.mxu0
    %4256 = vmatprep.subr.bf16.mxu0 %v3008
    %4257 = vmatpush1.bf16.msra.mxu0 %v3007
    %4258 = vmatprep.subr.bf16.mxu0 %v3016
    %4259 = vmatpush1.bf16.msra.mxu0 %v3015
    %4260 = vmatprep.subr.bf16.mxu0 %v3024
    %4261 = vmatpush1.bf16.msra.mxu0 %v3023
    %4262 = vmatprep.subr.bf16.mxu0 %v3032
    %4263 = vmatpush1.bf16.msra.mxu0 %v3031
    %4264 = vmatprep.subr.bf16.mxu0 %v3040
    %4265 = vmatpush1.bf16.msra.mxu0 %v3039
    %4266 = vmatprep.subr.bf16.mxu0 %v3048
    %4267 = vmatpush1.bf16.msra.mxu0 %v3047
    %4268 = vmatprep.subr.bf16.mxu0 %v3056
    %4269 = vmatpush1.bf16.msra.mxu0 %v3055
    %4270 = vmatprep.subr.bf16.mxu0 %v3064
    %4271 = vmatpush1.bf16.msra.mxu0 %v3063
    %4272 = vmatprep.subr.bf16.mxu0 %v3072
    %4273 = vmatpush1.bf16.msra.mxu0 %v3071
    %4274 = vmatprep.subr.bf16.mxu0 %v3080
    %4275 = vmatpush1.bf16.msra.mxu0 %v3079
    %4276 = vmatprep.subr.bf16.mxu0 %v3088
    %4277 = vmatpush1.bf16.msra.mxu0 %v3087
    %4278 = vmatprep.subr.bf16.mxu0 %v3096
    %4279 = vmatpush1.bf16.msra.mxu0 %v3095
    %4280 = vmatprep.subr.bf16.mxu0 %v3104
    %4281 = vmatpush1.bf16.msra.mxu0 %v3103
    %4282 = vmatprep.subr.bf16.mxu0 %v3112
    %4283 = vmatpush1.bf16.msra.mxu0 %v3111
    %4284 = vmatprep.subr.bf16.mxu0 %v3120
    %4285 = vmatpush1.bf16.msra.mxu0 %v3119
    %4286 = vmatprep.subr.bf16.mxu0 %v3128
    %4287 = vmatpush1.bf16.msra.mxu0 %v3127
    %4288 = vmatprep.mubr.bf16.mxu0 %v526
    %4289 = vmatmul.mubr.bf16.gmra.mrb[0].mxu0 %v525
    %v4290 = vpop.f32.mrb[0].mxu0
    %v4291 = vadd.f32 %v4250, %v4290
    %v4292 = vpop.f32.mrb[0].mxu0
    %v4293 = vadd.f32 %v4252, %v4292
    %v4294 = vpop.f32.mrb[0].mxu0
    %v4295 = vpop.f32.mrb[0].mxu0
    %4296 = vdwg.mxu0
    %v4297 = vpack.c.bf16 %v3799, %v3799
    %v4298 = vpack.c.bf16 %v3801, %v3801
    %v4299 = vpack.c.bf16 %v3963, %v3963
    %v4300 = vpack.c.bf16 %v3965, %v3965
    %v4301 = vpack.c.bf16 %v4127, %v4127
    %v4302 = vpack.c.bf16 %v4129, %v4129
    %v4303 = vpack.c.bf16 %v4291, %v4291
    %v4304 = vpack.c.bf16 %v4293, %v4293
    %v4305 = vld [vmem:[#allocation11] sm:$0xf]
    %v4306 = vld [vmem:[#allocation11 + $0x4] sm:$0xf]
    %v4307 = vld [vmem:[#allocation11 + $0x8] sm:$0xf]
    %v4308 = vld [vmem:[#allocation11 + $0xc] sm:$0xf]
    %v4309 = vld [vmem:[#allocation11 + $0x10] sm:$0xf]
    %v4310 = vld [vmem:[#allocation11 + $0x14] sm:$0xf]
    %v4311 = vld [vmem:[#allocation11 + $0x18] sm:$0xf]
    %v4312 = vld [vmem:[#allocation11 + $0x1c] sm:$0xf]
    %v4313 = vld [vmem:[#allocation11 + $0x20] sm:$0xf]
    %v4314 = vld [vmem:[#allocation11 + $0x24] sm:$0xf]
    %v4315 = vld [vmem:[#allocation11 + $0x28] sm:$0xf]
    %v4316 = vld [vmem:[#allocation11 + $0x2c] sm:$0xf]
    %v4317 = vld [vmem:[#allocation11 + $0x30] sm:$0xf]
    %v4318 = vld [vmem:[#allocation11 + $0x34] sm:$0xf]
    %v4319 = vld [vmem:[#allocation11 + $0x38] sm:$0xf]
    %v4320 = vld [vmem:[#allocation11 + $0x3c] sm:$0xf]
    %v4321 = vld [vmem:[#allocation11 + $0x40] sm:$0xf]
    %v4322 = vld [vmem:[#allocation11 + $0x44] sm:$0xf]
    %v4323 = vld [vmem:[#allocation11 + $0x48] sm:$0xf]
    %v4324 = vld [vmem:[#allocation11 + $0x4c] sm:$0xf]
    %v4325 = vld [vmem:[#allocation11 + $0x50] sm:$0xf]
    %v4326 = vld [vmem:[#allocation11 + $0x54] sm:$0xf]
    %v4327 = vld [vmem:[#allocation11 + $0x58] sm:$0xf]
    %v4328 = vld [vmem:[#allocation11 + $0x5c] sm:$0xf]
    %v4329 = vld [vmem:[#allocation11 + $0x60] sm:$0xf]
    %v4330 = vld [vmem:[#allocation11 + $0x64] sm:$0xf]
    %v4331 = vld [vmem:[#allocation11 + $0x68] sm:$0xf]
    %v4332 = vld [vmem:[#allocation11 + $0x6c] sm:$0xf]
    %v4333 = vld [vmem:[#allocation11 + $0x70] sm:$0xf]
    %v4334 = vld [vmem:[#allocation11 + $0x74] sm:$0xf]
    %v4335 = vld [vmem:[#allocation11 + $0x78] sm:$0xf]
    %v4336 = vld [vmem:[#allocation11 + $0x7c] sm:$0xf]
    %v4337 = vld [vmem:[#allocation11 + $0x80] sm:$0xf]
    %v4338 = vld [vmem:[#allocation11 + $0x84] sm:$0xf]
    %v4339 = vld [vmem:[#allocation11 + $0x88] sm:$0xf]
    %v4340 = vld [vmem:[#allocation11 + $0x8c] sm:$0xf]
    %v4341 = vld [vmem:[#allocation11 + $0x90] sm:$0xf]
    %v4342 = vld [vmem:[#allocation11 + $0x94] sm:$0xf]
    %v4343 = vld [vmem:[#allocation11 + $0x98] sm:$0xf]
    %v4344 = vld [vmem:[#allocation11 + $0x9c] sm:$0xf]
    %v4345 = vld [vmem:[#allocation11 + $0xa0] sm:$0xf]
    %v4346 = vld [vmem:[#allocation11 + $0xa4] sm:$0xf]
    %v4347 = vld [vmem:[#allocation11 + $0xa8] sm:$0xf]
    %v4348 = vld [vmem:[#allocation11 + $0xac] sm:$0xf]
    %v4349 = vld [vmem:[#allocation11 + $0xb0] sm:$0xf]
    %v4350 = vld [vmem:[#allocation11 + $0xb4] sm:$0xf]
    %v4351 = vld [vmem:[#allocation11 + $0xb8] sm:$0xf]
    %v4352 = vld [vmem:[#allocation11 + $0xbc] sm:$0xf]
    %v4353 = vld [vmem:[#allocation11 + $0xc0] sm:$0xf]
    %v4354 = vld [vmem:[#allocation11 + $0xc4] sm:$0xf]
    %v4355 = vld [vmem:[#allocation11 + $0xc8] sm:$0xf]
    %v4356 = vld [vmem:[#allocation11 + $0xcc] sm:$0xf]
    %v4357 = vld [vmem:[#allocation11 + $0xd0] sm:$0xf]
    %v4358 = vld [vmem:[#allocation11 + $0xd4] sm:$0xf]
    %v4359 = vld [vmem:[#allocation11 + $0xd8] sm:$0xf]
    %v4360 = vld [vmem:[#allocation11 + $0xdc] sm:$0xf]
    %v4361 = vld [vmem:[#allocation11 + $0xe0] sm:$0xf]
    %v4362 = vld [vmem:[#allocation11 + $0xe4] sm:$0xf]
    %v4363 = vld [vmem:[#allocation11 + $0xe8] sm:$0xf]
    %v4364 = vld [vmem:[#allocation11 + $0xec] sm:$0xf]
    %v4365 = vld [vmem:[#allocation11 + $0xf0] sm:$0xf]
    %v4366 = vld [vmem:[#allocation11 + $0xf4] sm:$0xf]
    %v4367 = vld [vmem:[#allocation11 + $0xf8] sm:$0xf]
    %v4368 = vld [vmem:[#allocation11 + $0xfc] sm:$0xf]
    %v4369 = vld [vmem:[#allocation11 + $0x100] sm:$0xf]
    %v4370 = vld [vmem:[#allocation11 + $0x104] sm:$0xf]
    %v4371 = vld [vmem:[#allocation11 + $0x108] sm:$0xf]
    %v4372 = vld [vmem:[#allocation11 + $0x10c] sm:$0xf]
    %v4373 = vld [vmem:[#allocation11 + $0x110] sm:$0xf]
    %v4374 = vld [vmem:[#allocation11 + $0x114] sm:$0xf]
    %v4375 = vld [vmem:[#allocation11 + $0x118] sm:$0xf]
    %v4376 = vld [vmem:[#allocation11 + $0x11c] sm:$0xf]
    %v4377 = vld [vmem:[#allocation11 + $0x120] sm:$0xf]
    %v4378 = vld [vmem:[#allocation11 + $0x124] sm:$0xf]
    %v4379 = vld [vmem:[#allocation11 + $0x128] sm:$0xf]
    %v4380 = vld [vmem:[#allocation11 + $0x12c] sm:$0xf]
    %v4381 = vld [vmem:[#allocation11 + $0x130] sm:$0xf]
    %v4382 = vld [vmem:[#allocation11 + $0x134] sm:$0xf]
    %v4383 = vld [vmem:[#allocation11 + $0x138] sm:$0xf]
    %v4384 = vld [vmem:[#allocation11 + $0x13c] sm:$0xf]
    %v4385 = vld [vmem:[#allocation11 + $0x140] sm:$0xf]
    %v4386 = vld [vmem:[#allocation11 + $0x144] sm:$0xf]
    %v4387 = vld [vmem:[#allocation11 + $0x148] sm:$0xf]
    %v4388 = vld [vmem:[#allocation11 + $0x14c] sm:$0xf]
    %v4389 = vld [vmem:[#allocation11 + $0x150] sm:$0xf]
    %v4390 = vld [vmem:[#allocation11 + $0x154] sm:$0xf]
    %v4391 = vld [vmem:[#allocation11 + $0x158] sm:$0xf]
    %v4392 = vld [vmem:[#allocation11 + $0x15c] sm:$0xf]
    %v4393 = vld [vmem:[#allocation11 + $0x160] sm:$0xf]
    %v4394 = vld [vmem:[#allocation11 + $0x164] sm:$0xf]
    %v4395 = vld [vmem:[#allocation11 + $0x168] sm:$0xf]
    %v4396 = vld [vmem:[#allocation11 + $0x16c] sm:$0xf]
    %v4397 = vld [vmem:[#allocation11 + $0x170] sm:$0xf]
    %v4398 = vld [vmem:[#allocation11 + $0x174] sm:$0xf]
    %v4399 = vld [vmem:[#allocation11 + $0x178] sm:$0xf]
    %v4400 = vld [vmem:[#allocation11 + $0x17c] sm:$0xf]
    %v4401 = vld [vmem:[#allocation11 + $0x180] sm:$0xf]
    %v4402 = vld [vmem:[#allocation11 + $0x184] sm:$0xf]
    %v4403 = vld [vmem:[#allocation11 + $0x188] sm:$0xf]
    %v4404 = vld [vmem:[#allocation11 + $0x18c] sm:$0xf]
    %v4405 = vld [vmem:[#allocation11 + $0x190] sm:$0xf]
    %v4406 = vld [vmem:[#allocation11 + $0x194] sm:$0xf]
    %v4407 = vld [vmem:[#allocation11 + $0x198] sm:$0xf]
    %v4408 = vld [vmem:[#allocation11 + $0x19c] sm:$0xf]
    %v4409 = vld [vmem:[#allocation11 + $0x1a0] sm:$0xf]
    %v4410 = vld [vmem:[#allocation11 + $0x1a4] sm:$0xf]
    %v4411 = vld [vmem:[#allocation11 + $0x1a8] sm:$0xf]
    %v4412 = vld [vmem:[#allocation11 + $0x1ac] sm:$0xf]
    %v4413 = vld [vmem:[#allocation11 + $0x1b0] sm:$0xf]
    %v4414 = vld [vmem:[#allocation11 + $0x1b4] sm:$0xf]
    %v4415 = vld [vmem:[#allocation11 + $0x1b8] sm:$0xf]
    %v4416 = vld [vmem:[#allocation11 + $0x1bc] sm:$0xf]
    %v4417 = vld [vmem:[#allocation11 + $0x1c0] sm:$0xf]
    %v4418 = vld [vmem:[#allocation11 + $0x1c4] sm:$0xf]
    %v4419 = vld [vmem:[#allocation11 + $0x1c8] sm:$0xf]
    %v4420 = vld [vmem:[#allocation11 + $0x1cc] sm:$0xf]
    %v4421 = vld [vmem:[#allocation11 + $0x1d0] sm:$0xf]
    %v4422 = vld [vmem:[#allocation11 + $0x1d4] sm:$0xf]
    %v4423 = vld [vmem:[#allocation11 + $0x1d8] sm:$0xf]
    %v4424 = vld [vmem:[#allocation11 + $0x1dc] sm:$0xf]
    %v4425 = vld [vmem:[#allocation11 + $0x1e0] sm:$0xf]
    %v4426 = vld [vmem:[#allocation11 + $0x1e4] sm:$0xf]
    %v4427 = vld [vmem:[#allocation11 + $0x1e8] sm:$0xf]
    %v4428 = vld [vmem:[#allocation11 + $0x1ec] sm:$0xf]
    %v4429 = vld [vmem:[#allocation11 + $0x1f0] sm:$0xf]
    %v4430 = vld [vmem:[#allocation11 + $0x1f4] sm:$0xf]
    %v4431 = vld [vmem:[#allocation11 + $0x1f8] sm:$0xf]
    %v4432 = vld [vmem:[#allocation11 + $0x1fc] sm:$0xf]
    %v4433 = vld [vmem:[#allocation13] sm:$0x1]
    %v4435 = vlaneseq
    %v4436 = vshrl.u32 %v4435, 7
    %v4437 = vsub.s32 0, %v4436
    %v4438 = vrot.slane %v4433, %v4437
    %v4568 = vunpack.c.l.b16 %v4305
    %v4569 = vunpack.c.l.b16 %v4306
    %v4570 = vunpack.c.l.b16 %v4307
    %v4571 = vunpack.c.l.b16 %v4308
    %v4572 = vunpack.c.l.b16 %v4309
    %v4573 = vunpack.c.l.b16 %v4310
    %v4574 = vunpack.c.l.b16 %v4311
    %v4575 = vunpack.c.l.b16 %v4312
    %v4576 = vunpack.c.l.b16 %v4313
    %v4577 = vunpack.c.l.b16 %v4314
    %v4578 = vunpack.c.l.b16 %v4315
    %v4579 = vunpack.c.l.b16 %v4316
    %v4580 = vunpack.c.l.b16 %v4317
    %v4581 = vunpack.c.l.b16 %v4318
    %v4582 = vunpack.c.l.b16 %v4319
    %v4583 = vunpack.c.l.b16 %v4320
    %v4584 = vunpack.c.l.b16 %v4321
    %v4585 = vunpack.c.l.b16 %v4322
    %v4586 = vunpack.c.l.b16 %v4323
    %v4587 = vunpack.c.l.b16 %v4324
    %v4588 = vunpack.c.l.b16 %v4325
    %v4589 = vunpack.c.l.b16 %v4326
    %v4590 = vunpack.c.l.b16 %v4327
    %v4591 = vunpack.c.l.b16 %v4328
    %v4592 = vunpack.c.l.b16 %v4329
    %v4593 = vunpack.c.l.b16 %v4330
    %v4594 = vunpack.c.l.b16 %v4331
    %v4595 = vunpack.c.l.b16 %v4332
    %v4596 = vunpack.c.l.b16 %v4333
    %v4597 = vunpack.c.l.b16 %v4334
    %v4598 = vunpack.c.l.b16 %v4335
    %v4599 = vunpack.c.l.b16 %v4336
    %v4600 = vunpack.c.l.b16 %v4337
    %v4601 = vunpack.c.l.b16 %v4338
    %v4602 = vunpack.c.l.b16 %v4339
    %v4603 = vunpack.c.l.b16 %v4340
    %v4604 = vunpack.c.l.b16 %v4341
    %v4605 = vunpack.c.l.b16 %v4342
    %v4606 = vunpack.c.l.b16 %v4343
    %v4607 = vunpack.c.l.b16 %v4344
    %v4608 = vunpack.c.l.b16 %v4345
    %v4609 = vunpack.c.l.b16 %v4346
    %v4610 = vunpack.c.l.b16 %v4347
    %v4611 = vunpack.c.l.b16 %v4348
    %v4612 = vunpack.c.l.b16 %v4349
    %v4613 = vunpack.c.l.b16 %v4350
    %v4614 = vunpack.c.l.b16 %v4351
    %v4615 = vunpack.c.l.b16 %v4352
    %v4616 = vunpack.c.l.b16 %v4353
    %v4617 = vunpack.c.l.b16 %v4354
    %v4618 = vunpack.c.l.b16 %v4355
    %v4619 = vunpack.c.l.b16 %v4356
    %v4620 = vunpack.c.l.b16 %v4357
    %v4621 = vunpack.c.l.b16 %v4358
    %v4622 = vunpack.c.l.b16 %v4359
    %v4623 = vunpack.c.l.b16 %v4360
    %v4624 = vunpack.c.l.b16 %v4361
    %v4625 = vunpack.c.l.b16 %v4362
    %v4626 = vunpack.c.l.b16 %v4363
    %v4627 = vunpack.c.l.b16 %v4364
    %v4628 = vunpack.c.l.b16 %v4365
    %v4629 = vunpack.c.l.b16 %v4366
    %v4630 = vunpack.c.l.b16 %v4367
    %v4631 = vunpack.c.l.b16 %v4368
    %v4632 = vunpack.c.l.b16 %v4369
    %v4633 = vunpack.c.l.b16 %v4370
    %v4634 = vunpack.c.l.b16 %v4371
    %v4635 = vunpack.c.l.b16 %v4372
    %v4636 = vunpack.c.l.b16 %v4373
    %v4637 = vunpack.c.l.b16 %v4374
    %v4638 = vunpack.c.l.b16 %v4375
    %v4639 = vunpack.c.l.b16 %v4376
    %v4640 = vunpack.c.l.b16 %v4377
    %v4641 = vunpack.c.l.b16 %v4378
    %v4642 = vunpack.c.l.b16 %v4379
    %v4643 = vunpack.c.l.b16 %v4380
    %v4644 = vunpack.c.l.b16 %v4381
    %v4645 = vunpack.c.l.b16 %v4382
    %v4646 = vunpack.c.l.b16 %v4383
    %v4647 = vunpack.c.l.b16 %v4384
    %v4648 = vunpack.c.l.b16 %v4385
    %v4649 = vunpack.c.l.b16 %v4386
    %v4650 = vunpack.c.l.b16 %v4387
    %v4651 = vunpack.c.l.b16 %v4388
    %v4652 = vunpack.c.l.b16 %v4389
    %v4653 = vunpack.c.l.b16 %v4390
    %v4654 = vunpack.c.l.b16 %v4391
    %v4655 = vunpack.c.l.b16 %v4392
    %v4656 = vunpack.c.l.b16 %v4393
    %v4657 = vunpack.c.l.b16 %v4394
    %v4658 = vunpack.c.l.b16 %v4395
    %v4659 = vunpack.c.l.b16 %v4396
    %v4660 = vunpack.c.l.b16 %v4397
    %v4661 = vunpack.c.l.b16 %v4398
    %v4662 = vunpack.c.l.b16 %v4399
    %v4663 = vunpack.c.l.b16 %v4400
    %v4664 = vunpack.c.l.b16 %v4401
    %v4665 = vunpack.c.l.b16 %v4402
    %v4666 = vunpack.c.l.b16 %v4403
    %v4667 = vunpack.c.l.b16 %v4404
    %v4668 = vunpack.c.l.b16 %v4405
    %v4669 = vunpack.c.l.b16 %v4406
    %v4670 = vunpack.c.l.b16 %v4407
    %v4671 = vunpack.c.l.b16 %v4408
    %v4672 = vunpack.c.l.b16 %v4409
    %v4673 = vunpack.c.l.b16 %v4410
    %v4674 = vunpack.c.l.b16 %v4411
    %v4675 = vunpack.c.l.b16 %v4412
    %v4676 = vunpack.c.l.b16 %v4413
    %v4677 = vunpack.c.l.b16 %v4414
    %v4678 = vunpack.c.l.b16 %v4415
    %v4679 = vunpack.c.l.b16 %v4416
    %v4680 = vunpack.c.l.b16 %v4417
    %v4681 = vunpack.c.l.b16 %v4418
    %v4682 = vunpack.c.l.b16 %v4419
    %v4683 = vunpack.c.l.b16 %v4420
    %v4684 = vunpack.c.l.b16 %v4421
    %v4685 = vunpack.c.l.b16 %v4422
    %v4686 = vunpack.c.l.b16 %v4423
    %v4687 = vunpack.c.l.b16 %v4424
    %v4688 = vunpack.c.l.b16 %v4425
    %v4689 = vunpack.c.l.b16 %v4426
    %v4690 = vunpack.c.l.b16 %v4427
    %v4691 = vunpack.c.l.b16 %v4428
    %v4692 = vunpack.c.l.b16 %v4429
    %v4693 = vunpack.c.l.b16 %v4430
    %v4694 = vunpack.c.l.b16 %v4431
    %v4695 = vunpack.c.l.b16 %v4432
    %v4696 = vpack.c.b16 %v4569, %v4568
    %v4697 = vpack.c.b16 %v4571, %v4570
    %v4698 = vpack.c.b16 %v4573, %v4572
    %v4699 = vpack.c.b16 %v4575, %v4574
    %v4700 = vpack.c.b16 %v4577, %v4576
    %v4701 = vpack.c.b16 %v4579, %v4578
    %v4702 = vpack.c.b16 %v4581, %v4580
    %v4703 = vpack.c.b16 %v4583, %v4582
    %v4704 = vpack.c.b16 %v4585, %v4584
    %v4705 = vpack.c.b16 %v4587, %v4586
    %v4706 = vpack.c.b16 %v4589, %v4588
    %v4707 = vpack.c.b16 %v4591, %v4590
    %v4708 = vpack.c.b16 %v4593, %v4592
    %v4709 = vpack.c.b16 %v4595, %v4594
    %v4710 = vpack.c.b16 %v4597, %v4596
    %v4711 = vpack.c.b16 %v4599, %v4598
    %v4712 = vpack.c.b16 %v4601, %v4600
    %v4713 = vpack.c.b16 %v4603, %v4602
    %v4714 = vpack.c.b16 %v4605, %v4604
    %v4715 = vpack.c.b16 %v4607, %v4606
    %v4716 = vpack.c.b16 %v4609, %v4608
    %v4717 = vpack.c.b16 %v4611, %v4610
    %v4718 = vpack.c.b16 %v4613, %v4612
    %v4719 = vpack.c.b16 %v4615, %v4614
    %v4720 = vpack.c.b16 %v4617, %v4616
    %v4721 = vpack.c.b16 %v4619, %v4618
    %v4722 = vpack.c.b16 %v4621, %v4620
    %v4723 = vpack.c.b16 %v4623, %v4622
    %v4724 = vpack.c.b16 %v4625, %v4624
    %v4725 = vpack.c.b16 %v4627, %v4626
    %v4726 = vpack.c.b16 %v4629, %v4628
    %v4727 = vpack.c.b16 %v4631, %v4630
    %v4728 = vpack.c.b16 %v4633, %v4632
    %v4729 = vpack.c.b16 %v4635, %v4634
    %v4730 = vpack.c.b16 %v4637, %v4636
    %v4731 = vpack.c.b16 %v4639, %v4638
    %v4732 = vpack.c.b16 %v4641, %v4640
    %v4733 = vpack.c.b16 %v4643, %v4642
    %v4734 = vpack.c.b16 %v4645, %v4644
    %v4735 = vpack.c.b16 %v4647, %v4646
    %v4736 = vpack.c.b16 %v4649, %v4648
    %v4737 = vpack.c.b16 %v4651, %v4650
    %v4738 = vpack.c.b16 %v4653, %v4652
    %v4739 = vpack.c.b16 %v4655, %v4654
    %v4740 = vpack.c.b16 %v4657, %v4656
    %v4741 = vpack.c.b16 %v4659, %v4658
    %v4742 = vpack.c.b16 %v4661, %v4660
    %v4743 = vpack.c.b16 %v4663, %v4662
    %v4744 = vpack.c.b16 %v4665, %v4664
    %v4745 = vpack.c.b16 %v4667, %v4666
    %v4746 = vpack.c.b16 %v4669, %v4668
    %v4747 = vpack.c.b16 %v4671, %v4670
    %v4748 = vpack.c.b16 %v4673, %v4672
    %v4749 = vpack.c.b16 %v4675, %v4674
    %v4750 = vpack.c.b16 %v4677, %v4676
    %v4751 = vpack.c.b16 %v4679, %v4678
    %v4752 = vpack.c.b16 %v4681, %v4680
    %v4753 = vpack.c.b16 %v4683, %v4682
    %v4754 = vpack.c.b16 %v4685, %v4684
    %v4755 = vpack.c.b16 %v4687, %v4686
    %v4756 = vpack.c.b16 %v4689, %v4688
    %v4757 = vpack.c.b16 %v4691, %v4690
    %v4758 = vpack.c.b16 %v4693, %v4692
    %v4759 = vpack.c.b16 %v4695, %v4694
    %4824 = vmatprep.subr.bf16.mxu0 0
    %4825 = vmatpush1.bf16.msra.mxu0 %v4696
    %4826 = vmatprep.subr.bf16.mxu0 0
    %4827 = vmatpush1.bf16.msra.mxu0 %v4697
    %4828 = vmatprep.subr.bf16.mxu0 0
    %4829 = vmatpush1.bf16.msra.mxu0 %v4698
    %4830 = vmatprep.subr.bf16.mxu0 0
    %4831 = vmatpush1.bf16.msra.mxu0 %v4699
    %4832 = vmatprep.subr.bf16.mxu0 0
    %4833 = vmatpush1.bf16.msra.mxu0 %v4700
    %4834 = vmatprep.subr.bf16.mxu0 0
    %4835 = vmatpush1.bf16.msra.mxu0 %v4701
    %4836 = vmatprep.subr.bf16.mxu0 0
    %4837 = vmatpush1.bf16.msra.mxu0 %v4702
    %4838 = vmatprep.subr.bf16.mxu0 0
    %4839 = vmatpush1.bf16.msra.mxu0 %v4703
    %4840 = vmatprep.subr.bf16.mxu0 0
    %4841 = vmatpush1.bf16.msra.mxu0 %v4704
    %4842 = vmatprep.subr.bf16.mxu0 0
    %4843 = vmatpush1.bf16.msra.mxu0 %v4705
    %4844 = vmatprep.subr.bf16.mxu0 0
    %4845 = vmatpush1.bf16.msra.mxu0 %v4706
    %4846 = vmatprep.subr.bf16.mxu0 0
    %4847 = vmatpush1.bf16.msra.mxu0 %v4707
    %4848 = vmatprep.subr.bf16.mxu0 0
    %4849 = vmatpush1.bf16.msra.mxu0 %v4708
    %4850 = vmatprep.subr.bf16.mxu0 0
    %4851 = vmatpush1.bf16.msra.mxu0 %v4709
    %4852 = vmatprep.subr.bf16.mxu0 0
    %4853 = vmatpush1.bf16.msra.mxu0 %v4710
    %4854 = vmatprep.subr.bf16.mxu0 0
    %4855 = vmatpush1.bf16.msra.mxu0 %v4711
    %4856 = vmatprep.mubr.bf16.mxu0 %v4298
    %4857 = vmatmul.mubr.bf16.gmra.mrb[0].mxu0 %v4297
    %v4858 = vpop.f32.mrb[0].mxu0
    %v4859 = vadd.f32 %v4438, %v4858
    %v4860 = vpop.f32.mrb[0].mxu0
    %v4861 = vpop.f32.mrb[0].mxu0
    %v4862 = vpop.f32.mrb[0].mxu0
    %4863 = vdwg.mxu0
    %4864 = vmatprep.subr.bf16.mxu0 0
    %4865 = vmatpush1.bf16.msra.mxu0 %v4712
    %4866 = vmatprep.subr.bf16.mxu0 0
    %4867 = vmatpush1.bf16.msra.mxu0 %v4713
    %4868 = vmatprep.subr.bf16.mxu0 0
    %4869 = vmatpush1.bf16.msra.mxu0 %v4714
    %4870 = vmatprep.subr.bf16.mxu0 0
    %4871 = vmatpush1.bf16.msra.mxu0 %v4715
    %4872 = vmatprep.subr.bf16.mxu0 0
    %4873 = vmatpush1.bf16.msra.mxu0 %v4716
    %4874 = vmatprep.subr.bf16.mxu0 0
    %4875 = vmatpush1.bf16.msra.mxu0 %v4717
    %4876 = vmatprep.subr.bf16.mxu0 0
    %4877 = vmatpush1.bf16.msra.mxu0 %v4718
    %4878 = vmatprep.subr.bf16.mxu0 0
    %4879 = vmatpush1.bf16.msra.mxu0 %v4719
    %4880 = vmatprep.subr.bf16.mxu0 0
    %4881 = vmatpush1.bf16.msra.mxu0 %v4720
    %4882 = vmatprep.subr.bf16.mxu0 0
    %4883 = vmatpush1.bf16.msra.mxu0 %v4721
    %4884 = vmatprep.subr.bf16.mxu0 0
    %4885 = vmatpush1.bf16.msra.mxu0 %v4722
    %4886 = vmatprep.subr.bf16.mxu0 0
    %4887 = vmatpush1.bf16.msra.mxu0 %v4723
    %4888 = vmatprep.subr.bf16.mxu0 0
    %4889 = vmatpush1.bf16.msra.mxu0 %v4724
    %4890 = vmatprep.subr.bf16.mxu0 0
    %4891 = vmatpush1.bf16.msra.mxu0 %v4725
    %4892 = vmatprep.subr.bf16.mxu0 0
    %4893 = vmatpush1.bf16.msra.mxu0 %v4726
    %4894 = vmatprep.subr.bf16.mxu0 0
    %4895 = vmatpush1.bf16.msra.mxu0 %v4727
    %4896 = vmatprep.mubr.bf16.mxu0 %v4300
    %4897 = vmatmul.mubr.bf16.gmra.mrb[0].mxu0 %v4299
    %v4898 = vpop.f32.mrb[0].mxu0
    %v4899 = vadd.f32 %v4859, %v4898
    %v4900 = vpop.f32.mrb[0].mxu0
    %v4901 = vpop.f32.mrb[0].mxu0
    %v4902 = vpop.f32.mrb[0].mxu0
    %4903 = vdwg.mxu0
    %4904 = vmatprep.subr.bf16.mxu0 0
    %4905 = vmatpush1.bf16.msra.mxu0 %v4728
    %4906 = vmatprep.subr.bf16.mxu0 0
    %4907 = vmatpush1.bf16.msra.mxu0 %v4729
    %4908 = vmatprep.subr.bf16.mxu0 0
    %4909 = vmatpush1.bf16.msra.mxu0 %v4730
    %4910 = vmatprep.subr.bf16.mxu0 0
    %4911 = vmatpush1.bf16.msra.mxu0 %v4731
    %4912 = vmatprep.subr.bf16.mxu0 0
    %4913 = vmatpush1.bf16.msra.mxu0 %v4732
    %4914 = vmatprep.subr.bf16.mxu0 0
    %4915 = vmatpush1.bf16.msra.mxu0 %v4733
    %4916 = vmatprep.subr.bf16.mxu0 0
    %4917 = vmatpush1.bf16.msra.mxu0 %v4734
    %4918 = vmatprep.subr.bf16.mxu0 0
    %4919 = vmatpush1.bf16.msra.mxu0 %v4735
    %4920 = vmatprep.subr.bf16.mxu0 0
    %4921 = vmatpush1.bf16.msra.mxu0 %v4736
    %4922 = vmatprep.subr.bf16.mxu0 0
    %4923 = vmatpush1.bf16.msra.mxu0 %v4737
    %4924 = vmatprep.subr.bf16.mxu0 0
    %4925 = vmatpush1.bf16.msra.mxu0 %v4738
    %4926 = vmatprep.subr.bf16.mxu0 0
    %4927 = vmatpush1.bf16.msra.mxu0 %v4739
    %4928 = vmatprep.subr.bf16.mxu0 0
    %4929 = vmatpush1.bf16.msra.mxu0 %v4740
    %4930 = vmatprep.subr.bf16.mxu0 0
    %4931 = vmatpush1.bf16.msra.mxu0 %v4741
    %4932 = vmatprep.subr.bf16.mxu0 0
    %4933 = vmatpush1.bf16.msra.mxu0 %v4742
    %4934 = vmatprep.subr.bf16.mxu0 0
    %4935 = vmatpush1.bf16.msra.mxu0 %v4743
    %4936 = vmatprep.mubr.bf16.mxu0 %v4302
    %4937 = vmatmul.mubr.bf16.gmra.mrb[0].mxu0 %v4301
    %v4938 = vpop.f32.mrb[0].mxu0
    %v4939 = vadd.f32 %v4899, %v4938
    %v4940 = vpop.f32.mrb[0].mxu0
    %v4941 = vpop.f32.mrb[0].mxu0
    %v4942 = vpop.f32.mrb[0].mxu0
    %4943 = vdwg.mxu0
    %4944 = vmatprep.subr.bf16.mxu0 0
    %4945 = vmatpush1.bf16.msra.mxu0 %v4744
    %4946 = vmatprep.subr.bf16.mxu0 0
    %4947 = vmatpush1.bf16.msra.mxu0 %v4745
    %4948 = vmatprep.subr.bf16.mxu0 0
    %4949 = vmatpush1.bf16.msra.mxu0 %v4746
    %4950 = vmatprep.subr.bf16.mxu0 0
    %4951 = vmatpush1.bf16.msra.mxu0 %v4747
    %4952 = vmatprep.subr.bf16.mxu0 0
    %4953 = vmatpush1.bf16.msra.mxu0 %v4748
    %4954 = vmatprep.subr.bf16.mxu0 0
    %4955 = vmatpush1.bf16.msra.mxu0 %v4749
    %4956 = vmatprep.subr.bf16.mxu0 0
    %4957 = vmatpush1.bf16.msra.mxu0 %v4750
    %4958 = vmatprep.subr.bf16.mxu0 0
    %4959 = vmatpush1.bf16.msra.mxu0 %v4751
    %4960 = vmatprep.subr.bf16.mxu0 0
    %4961 = vmatpush1.bf16.msra.mxu0 %v4752
    %4962 = vmatprep.subr.bf16.mxu0 0
    %4963 = vmatpush1.bf16.msra.mxu0 %v4753
    %4964 = vmatprep.subr.bf16.mxu0 0
    %4965 = vmatpush1.bf16.msra.mxu0 %v4754
    %4966 = vmatprep.subr.bf16.mxu0 0
    %4967 = vmatpush1.bf16.msra.mxu0 %v4755
    %4968 = vmatprep.subr.bf16.mxu0 0
    %4969 = vmatpush1.bf16.msra.mxu0 %v4756
    %4970 = vmatprep.subr.bf16.mxu0 0
    %4971 = vmatpush1.bf16.msra.mxu0 %v4757
    %4972 = vmatprep.subr.bf16.mxu0 0
    %4973 = vmatpush1.bf16.msra.mxu0 %v4758
    %4974 = vmatprep.subr.bf16.mxu0 0
    %4975 = vmatpush1.bf16.msra.mxu0 %v4759
    %4976 = vmatprep.mubr.bf16.mxu0 %v4304
    %4977 = vmatmul.mubr.bf16.gmra.mrb[0].mxu0 %v4303
    %v4978 = vpop.f32.mrb[0].mxu0
    %v4979 = vadd.f32 %v4939, %v4978
    %v4980 = vpop.f32.mrb[0].mxu0
    %v4981 = vpop.f32.mrb[0].mxu0
    %v4982 = vpop.f32.mrb[0].mxu0
    %4983 = vdwg.mxu0
    %v4984 = vpack.c.bf16 %v4979, %v4979
    %4985 = vst [vmem:[#allocation23] sm:$0xf] %v4984
    %v4986 = vld [vmem:[#allocation14] sm:$0xff]
    %v4987 = vld [vmem:[#allocation14 + $0x8] sm:$0xff]
    %v4988 = vld [vmem:[#allocation14 + $0x10] sm:$0xff]
    %v4989 = vld [vmem:[#allocation14 + $0x18] sm:$0xff]
    %v4990 = vld [vmem:[#allocation14 + $0x20] sm:$0xff]
    %v4991 = vld [vmem:[#allocation14 + $0x28] sm:$0xff]
    %v4992 = vld [vmem:[#allocation14 + $0x30] sm:$0xff]
    %v4993 = vld [vmem:[#allocation14 + $0x38] sm:$0xff]
    %v4994 = vld [vmem:[#allocation14 + $0x40] sm:$0xff]
    %v4995 = vld [vmem:[#allocation14 + $0x48] sm:$0xff]
    %v4996 = vld [vmem:[#allocation14 + $0x50] sm:$0xff]
    %v4997 = vld [vmem:[#allocation14 + $0x58] sm:$0xff]
    %v4998 = vld [vmem:[#allocation14 + $0x60] sm:$0xff]
    %v4999 = vld [vmem:[#allocation14 + $0x68] sm:$0xff]
    %v5000 = vld [vmem:[#allocation14 + $0x70] sm:$0xff]
    %v5001 = vld [vmem:[#allocation14 + $0x78] sm:$0xff]
    %v5002 = vld [vmem:[#allocation14 + $0x80] sm:$0xff]
    %v5003 = vld [vmem:[#allocation14 + $0x88] sm:$0xff]
    %v5004 = vld [vmem:[#allocation14 + $0x90] sm:$0xff]
    %v5005 = vld [vmem:[#allocation14 + $0x98] sm:$0xff]
    %v5006 = vld [vmem:[#allocation14 + $0xa0] sm:$0xff]
    %v5007 = vld [vmem:[#allocation14 + $0xa8] sm:$0xff]
    %v5008 = vld [vmem:[#allocation14 + $0xb0] sm:$0xff]
    %v5009 = vld [vmem:[#allocation14 + $0xb8] sm:$0xff]
    %v5010 = vld [vmem:[#allocation14 + $0xc0] sm:$0xff]
    %v5011 = vld [vmem:[#allocation14 + $0xc8] sm:$0xff]
    %v5012 = vld [vmem:[#allocation14 + $0xd0] sm:$0xff]
    %v5013 = vld [vmem:[#allocation14 + $0xd8] sm:$0xff]
    %v5014 = vld [vmem:[#allocation14 + $0xe0] sm:$0xff]
    %v5015 = vld [vmem:[#allocation14 + $0xe8] sm:$0xff]
    %v5016 = vld [vmem:[#allocation14 + $0xf0] sm:$0xff]
    %v5017 = vld [vmem:[#allocation14 + $0xf8] sm:$0xff]
    %v5018 = vld [vmem:[#allocation14 + $0x100] sm:$0xff]
    %v5019 = vld [vmem:[#allocation14 + $0x108] sm:$0xff]
    %v5020 = vld [vmem:[#allocation14 + $0x110] sm:$0xff]
    %v5021 = vld [vmem:[#allocation14 + $0x118] sm:$0xff]
    %v5022 = vld [vmem:[#allocation14 + $0x120] sm:$0xff]
    %v5023 = vld [vmem:[#allocation14 + $0x128] sm:$0xff]
    %v5024 = vld [vmem:[#allocation14 + $0x130] sm:$0xff]
    %v5025 = vld [vmem:[#allocation14 + $0x138] sm:$0xff]
    %v5026 = vld [vmem:[#allocation14 + $0x140] sm:$0xff]
    %v5027 = vld [vmem:[#allocation14 + $0x148] sm:$0xff]
    %v5028 = vld [vmem:[#allocation14 + $0x150] sm:$0xff]
    %v5029 = vld [vmem:[#allocation14 + $0x158] sm:$0xff]
    %v5030 = vld [vmem:[#allocation14 + $0x160] sm:$0xff]
    %v5031 = vld [vmem:[#allocation14 + $0x168] sm:$0xff]
    %v5032 = vld [vmem:[#allocation14 + $0x170] sm:$0xff]
    %v5033 = vld [vmem:[#allocation14 + $0x178] sm:$0xff]
    %v5034 = vld [vmem:[#allocation14 + $0x180] sm:$0xff]
    %v5035 = vld [vmem:[#allocation14 + $0x188] sm:$0xff]
    %v5036 = vld [vmem:[#allocation14 + $0x190] sm:$0xff]
    %v5037 = vld [vmem:[#allocation14 + $0x198] sm:$0xff]
    %v5038 = vld [vmem:[#allocation14 + $0x1a0] sm:$0xff]
    %v5039 = vld [vmem:[#allocation14 + $0x1a8] sm:$0xff]
    %v5040 = vld [vmem:[#allocation14 + $0x1b0] sm:$0xff]
    %v5041 = vld [vmem:[#allocation14 + $0x1b8] sm:$0xff]
    %v5042 = vld [vmem:[#allocation14 + $0x1c0] sm:$0xff]
    %v5043 = vld [vmem:[#allocation14 + $0x1c8] sm:$0xff]
    %v5044 = vld [vmem:[#allocation14 + $0x1d0] sm:$0xff]
    %v5045 = vld [vmem:[#allocation14 + $0x1d8] sm:$0xff]
    %v5046 = vld [vmem:[#allocation14 + $0x1e0] sm:$0xff]
    %v5047 = vld [vmem:[#allocation14 + $0x1e8] sm:$0xff]
    %v5048 = vld [vmem:[#allocation14 + $0x1f0] sm:$0xff]
    %v5049 = vld [vmem:[#allocation14 + $0x1f8] sm:$0xff]
    %v5050 = vld [vmem:[#allocation16] sm:$0xff]
    %v5052 = vlaneseq
    %v5053 = vshrl.u32 %v5052, 7
    %v5054 = vsub.s32 0, %v5053
    %v5055 = vrot.slane %v5050, %v5054
    %v5056 = vlaneseq
    %v5057 = vshrl.u32 %v5056, 7
    %v5058 = vsub.s32 1, %v5057
    %v5059 = vrot.slane %v5050, %v5058
    %v5060 = vlaneseq
    %v5061 = vshrl.u32 %v5060, 7
    %v5062 = vsub.s32 2, %v5061
    %v5063 = vrot.slane %v5050, %v5062
    %v5064 = vlaneseq
    %v5065 = vshrl.u32 %v5064, 7
    %v5066 = vsub.s32 3, %v5065
    %v5067 = vrot.slane %v5050, %v5066
    %v5068 = vlaneseq
    %v5069 = vshrl.u32 %v5068, 7
    %v5070 = vsub.s32 4, %v5069
    %v5071 = vrot.slane %v5050, %v5070
    %v5072 = vlaneseq
    %v5073 = vshrl.u32 %v5072, 7
    %v5074 = vsub.s32 5, %v5073
    %v5075 = vrot.slane %v5050, %v5074
    %v5076 = vlaneseq
    %v5077 = vshrl.u32 %v5076, 7
    %v5078 = vsub.s32 6, %v5077
    %v5079 = vrot.slane %v5050, %v5078
    %v5080 = vlaneseq
    %v5081 = vshrl.u32 %v5080, 7
    %v5082 = vsub.s32 7, %v5081
    %v5083 = vrot.slane %v5050, %v5082
    %v5156 = vunpack.c.l.b16 %v4986
    %v5157 = vunpack.c.h.b16 %v4986
    %v5158 = vunpack.c.l.b16 %v4987
    %v5159 = vunpack.c.h.b16 %v4987
    %v5160 = vunpack.c.l.b16 %v4988
    %v5161 = vunpack.c.h.b16 %v4988
    %v5162 = vunpack.c.l.b16 %v4989
    %v5163 = vunpack.c.h.b16 %v4989
    %v5164 = vunpack.c.l.b16 %v4990
    %v5165 = vunpack.c.h.b16 %v4990
    %v5166 = vunpack.c.l.b16 %v4991
    %v5167 = vunpack.c.h.b16 %v4991
    %v5168 = vunpack.c.l.b16 %v4992
    %v5169 = vunpack.c.h.b16 %v4992
    %v5170 = vunpack.c.l.b16 %v4993
    %v5171 = vunpack.c.h.b16 %v4993
    %v5172 = vunpack.c.l.b16 %v4994
    %v5173 = vunpack.c.h.b16 %v4994
    %v5174 = vunpack.c.l.b16 %v4995
    %v5175 = vunpack.c.h.b16 %v4995
    %v5176 = vunpack.c.l.b16 %v4996
    %v5177 = vunpack.c.h.b16 %v4996
    %v5178 = vunpack.c.l.b16 %v4997
    %v5179 = vunpack.c.h.b16 %v4997
    %v5180 = vunpack.c.l.b16 %v4998
    %v5181 = vunpack.c.h.b16 %v4998
    %v5182 = vunpack.c.l.b16 %v4999
    %v5183 = vunpack.c.h.b16 %v4999
    %v5184 = vunpack.c.l.b16 %v5000
    %v5185 = vunpack.c.h.b16 %v5000
    %v5186 = vunpack.c.l.b16 %v5001
    %v5187 = vunpack.c.h.b16 %v5001
    %v5188 = vunpack.c.l.b16 %v5002
    %v5189 = vunpack.c.h.b16 %v5002
    %v5190 = vunpack.c.l.b16 %v5003
    %v5191 = vunpack.c.h.b16 %v5003
    %v5192 = vunpack.c.l.b16 %v5004
    %v5193 = vunpack.c.h.b16 %v5004
    %v5194 = vunpack.c.l.b16 %v5005
    %v5195 = vunpack.c.h.b16 %v5005
    %v5196 = vunpack.c.l.b16 %v5006
    %v5197 = vunpack.c.h.b16 %v5006
    %v5198 = vunpack.c.l.b16 %v5007
    %v5199 = vunpack.c.h.b16 %v5007
    %v5200 = vunpack.c.l.b16 %v5008
    %v5201 = vunpack.c.h.b16 %v5008
    %v5202 = vunpack.c.l.b16 %v5009
    %v5203 = vunpack.c.h.b16 %v5009
    %v5204 = vunpack.c.l.b16 %v5010
    %v5205 = vunpack.c.h.b16 %v5010
    %v5206 = vunpack.c.l.b16 %v5011
    %v5207 = vunpack.c.h.b16 %v5011
    %v5208 = vunpack.c.l.b16 %v5012
    %v5209 = vunpack.c.h.b16 %v5012
    %v5210 = vunpack.c.l.b16 %v5013
    %v5211 = vunpack.c.h.b16 %v5013
    %v5212 = vunpack.c.l.b16 %v5014
    %v5213 = vunpack.c.h.b16 %v5014
    %v5214 = vunpack.c.l.b16 %v5015
    %v5215 = vunpack.c.h.b16 %v5015
    %v5216 = vunpack.c.l.b16 %v5016
    %v5217 = vunpack.c.h.b16 %v5016
    %v5218 = vunpack.c.l.b16 %v5017
    %v5219 = vunpack.c.h.b16 %v5017
    %v5220 = vunpack.c.l.b16 %v5018
    %v5221 = vunpack.c.h.b16 %v5018
    %v5222 = vunpack.c.l.b16 %v5019
    %v5223 = vunpack.c.h.b16 %v5019
    %v5224 = vunpack.c.l.b16 %v5020
    %v5225 = vunpack.c.h.b16 %v5020
    %v5226 = vunpack.c.l.b16 %v5021
    %v5227 = vunpack.c.h.b16 %v5021
    %v5228 = vunpack.c.l.b16 %v5022
    %v5229 = vunpack.c.h.b16 %v5022
    %v5230 = vunpack.c.l.b16 %v5023
    %v5231 = vunpack.c.h.b16 %v5023
    %v5232 = vunpack.c.l.b16 %v5024
    %v5233 = vunpack.c.h.b16 %v5024
    %v5234 = vunpack.c.l.b16 %v5025
    %v5235 = vunpack.c.h.b16 %v5025
    %v5236 = vunpack.c.l.b16 %v5026
    %v5237 = vunpack.c.h.b16 %v5026
    %v5238 = vunpack.c.l.b16 %v5027
    %v5239 = vunpack.c.h.b16 %v5027
    %v5240 = vunpack.c.l.b16 %v5028
    %v5241 = vunpack.c.h.b16 %v5028
    %v5242 = vunpack.c.l.b16 %v5029
    %v5243 = vunpack.c.h.b16 %v5029
    %v5244 = vunpack.c.l.b16 %v5030
    %v5245 = vunpack.c.h.b16 %v5030
    %v5246 = vunpack.c.l.b16 %v5031
    %v5247 = vunpack.c.h.b16 %v5031
    %v5248 = vunpack.c.l.b16 %v5032
    %v5249 = vunpack.c.h.b16 %v5032
    %v5250 = vunpack.c.l.b16 %v5033
    %v5251 = vunpack.c.h.b16 %v5033
    %v5252 = vunpack.c.l.b16 %v5034
    %v5253 = vunpack.c.h.b16 %v5034
    %v5254 = vunpack.c.l.b16 %v5035
    %v5255 = vunpack.c.h.b16 %v5035
    %v5256 = vunpack.c.l.b16 %v5036
    %v5257 = vunpack.c.h.b16 %v5036
    %v5258 = vunpack.c.l.b16 %v5037
    %v5259 = vunpack.c.h.b16 %v5037
    %v5260 = vunpack.c.l.b16 %v5038
    %v5261 = vunpack.c.h.b16 %v5038
    %v5262 = vunpack.c.l.b16 %v5039
    %v5263 = vunpack.c.h.b16 %v5039
    %v5264 = vunpack.c.l.b16 %v5040
    %v5265 = vunpack.c.h.b16 %v5040
    %v5266 = vunpack.c.l.b16 %v5041
    %v5267 = vunpack.c.h.b16 %v5041
    %v5268 = vunpack.c.l.b16 %v5042
    %v5269 = vunpack.c.h.b16 %v5042
    %v5270 = vunpack.c.l.b16 %v5043
    %v5271 = vunpack.c.h.b16 %v5043
    %v5272 = vunpack.c.l.b16 %v5044
    %v5273 = vunpack.c.h.b16 %v5044
    %v5274 = vunpack.c.l.b16 %v5045
    %v5275 = vunpack.c.h.b16 %v5045
    %v5276 = vunpack.c.l.b16 %v5046
    %v5277 = vunpack.c.h.b16 %v5046
    %v5278 = vunpack.c.l.b16 %v5047
    %v5279 = vunpack.c.h.b16 %v5047
    %v5280 = vunpack.c.l.b16 %v5048
    %v5281 = vunpack.c.h.b16 %v5048
    %v5282 = vunpack.c.l.b16 %v5049
    %v5283 = vunpack.c.h.b16 %v5049
    %v5284 = vpack.c.b16 %v5164, %v5156
    %v5285 = vpack.c.b16 %v5165, %v5157
    %v5286 = vpack.c.b16 %v5166, %v5158
    %v5287 = vpack.c.b16 %v5167, %v5159
    %v5288 = vpack.c.b16 %v5168, %v5160
    %v5289 = vpack.c.b16 %v5169, %v5161
    %v5290 = vpack.c.b16 %v5170, %v5162
    %v5291 = vpack.c.b16 %v5171, %v5163
    %v5292 = vpack.c.b16 %v5180, %v5172
    %v5293 = vpack.c.b16 %v5181, %v5173
    %v5294 = vpack.c.b16 %v5182, %v5174
    %v5295 = vpack.c.b16 %v5183, %v5175
    %v5296 = vpack.c.b16 %v5184, %v5176
    %v5297 = vpack.c.b16 %v5185, %v5177
    %v5298 = vpack.c.b16 %v5186, %v5178
    %v5299 = vpack.c.b16 %v5187, %v5179
    %v5300 = vpack.c.b16 %v5196, %v5188
    %v5301 = vpack.c.b16 %v5197, %v5189
    %v5302 = vpack.c.b16 %v5198, %v5190
    %v5303 = vpack.c.b16 %v5199, %v5191
    %v5304 = vpack.c.b16 %v5200, %v5192
    %v5305 = vpack.c.b16 %v5201, %v5193
    %v5306 = vpack.c.b16 %v5202, %v5194
    %v5307 = vpack.c.b16 %v5203, %v5195
    %v5308 = vpack.c.b16 %v5212, %v5204
    %v5309 = vpack.c.b16 %v5213, %v5205
    %v5310 = vpack.c.b16 %v5214, %v5206
    %v5311 = vpack.c.b16 %v5215, %v5207
    %v5312 = vpack.c.b16 %v5216, %v5208
    %v5313 = vpack.c.b16 %v5217, %v5209
    %v5314 = vpack.c.b16 %v5218, %v5210
    %v5315 = vpack.c.b16 %v5219, %v5211
    %v5316 = vpack.c.b16 %v5228, %v5220
    %v5317 = vpack.c.b16 %v5229, %v5221
    %v5318 = vpack.c.b16 %v5230, %v5222
    %v5319 = vpack.c.b16 %v5231, %v5223
    %v5320 = vpack.c.b16 %v5232, %v5224
    %v5321 = vpack.c.b16 %v5233, %v5225
    %v5322 = vpack.c.b16 %v5234, %v5226
    %v5323 = vpack.c.b16 %v5235, %v5227
    %v5324 = vpack.c.b16 %v5244, %v5236
    %v5325 = vpack.c.b16 %v5245, %v5237
    %v5326 = vpack.c.b16 %v5246, %v5238
    %v5327 = vpack.c.b16 %v5247, %v5239
    %v5328 = vpack.c.b16 %v5248, %v5240
    %v5329 = vpack.c.b16 %v5249, %v5241
    %v5330 = vpack.c.b16 %v5250, %v5242
    %v5331 = vpack.c.b16 %v5251, %v5243
    %v5332 = vpack.c.b16 %v5260, %v5252
    %v5333 = vpack.c.b16 %v5261, %v5253
    %v5334 = vpack.c.b16 %v5262, %v5254
    %v5335 = vpack.c.b16 %v5263, %v5255
    %v5336 = vpack.c.b16 %v5264, %v5256
    %v5337 = vpack.c.b16 %v5265, %v5257
    %v5338 = vpack.c.b16 %v5266, %v5258
    %v5339 = vpack.c.b16 %v5267, %v5259
    %v5340 = vpack.c.b16 %v5276, %v5268
    %v5341 = vpack.c.b16 %v5277, %v5269
    %v5342 = vpack.c.b16 %v5278, %v5270
    %v5343 = vpack.c.b16 %v5279, %v5271
    %v5344 = vpack.c.b16 %v5280, %v5272
    %v5345 = vpack.c.b16 %v5281, %v5273
    %v5346 = vpack.c.b16 %v5282, %v5274
    %v5347 = vpack.c.b16 %v5283, %v5275
    %5412 = vmatprep.subr.bf16.mxu0 %v5285
    %5413 = vmatpush1.bf16.msra.mxu0 %v5284
    %5414 = vmatprep.subr.bf16.mxu0 %v5293
    %5415 = vmatpush1.bf16.msra.mxu0 %v5292
    %5416 = vmatprep.subr.bf16.mxu0 %v5301
    %5417 = vmatpush1.bf16.msra.mxu0 %v5300
    %5418 = vmatprep.subr.bf16.mxu0 %v5309
    %5419 = vmatpush1.bf16.msra.mxu0 %v5308
    %5420 = vmatprep.subr.bf16.mxu0 %v5317
    %5421 = vmatpush1.bf16.msra.mxu0 %v5316
    %5422 = vmatprep.subr.bf16.mxu0 %v5325
    %5423 = vmatpush1.bf16.msra.mxu0 %v5324
    %5424 = vmatprep.subr.bf16.mxu0 %v5333
    %5425 = vmatpush1.bf16.msra.mxu0 %v5332
    %5426 = vmatprep.subr.bf16.mxu0 %v5341
    %5427 = vmatpush1.bf16.msra.mxu0 %v5340
    %5428 = vmatprep.subr.bf16.mxu0 0
    %5429 = vmatpush1.bf16.msra.mxu0 0
    %5430 = vmatprep.subr.bf16.mxu0 0
    %5431 = vmatpush1.bf16.msra.mxu0 0
    %5432 = vmatprep.subr.bf16.mxu0 0
    %5433 = vmatpush1.bf16.msra.mxu0 0
    %5434 = vmatprep.subr.bf16.mxu0 0
    %5435 = vmatpush1.bf16.msra.mxu0 0
    %5436 = vmatprep.subr.bf16.mxu0 0
    %5437 = vmatpush1.bf16.msra.mxu0 0
    %5438 = vmatprep.subr.bf16.mxu0 0
    %5439 = vmatpush1.bf16.msra.mxu0 0
    %5440 = vmatprep.subr.bf16.mxu0 0
    %5441 = vmatpush1.bf16.msra.mxu0 0
    %5442 = vmatprep.subr.bf16.mxu0 0
    %5443 = vmatpush1.bf16.msra.mxu0 0
    %5444 = vmatprep.mubr.bf16.mxu0 0
    %5445 = vmatmul.mubr.bf16.gmra.mrb[0].mxu0 %v4984
    %v5446 = vpop.f32.mrb[0].mxu0
    %v5447 = vadd.f32 %v5055, %v5446
    %v5448 = vpop.f32.mrb[0].mxu0
    %v5449 = vadd.f32 %v5059, %v5448
    %v5450 = vpop.f32.mrb[0].mxu0
    %v5451 = vpop.f32.mrb[0].mxu0
    %5452 = vdwg.mxu0
    %5453 = vmatprep.subr.bf16.mxu0 %v5287
    %5454 = vmatpush1.bf16.msra.mxu0 %v5286
    %5455 = vmatprep.subr.bf16.mxu0 %v5295
    %5456 = vmatpush1.bf16.msra.mxu0 %v5294
    %5457 = vmatprep.subr.bf16.mxu0 %v5303
    %5458 = vmatpush1.bf16.msra.mxu0 %v5302
    %5459 = vmatprep.subr.bf16.mxu0 %v5311
    %5460 = vmatpush1.bf16.msra.mxu0 %v5310
    %5461 = vmatprep.subr.bf16.mxu0 %v5319
    %5462 = vmatpush1.bf16.msra.mxu0 %v5318
    %5463 = vmatprep.subr.bf16.mxu0 %v5327
    %5464 = vmatpush1.bf16.msra.mxu0 %v5326
    %5465 = vmatprep.subr.bf16.mxu0 %v5335
    %5466 = vmatpush1.bf16.msra.mxu0 %v5334
    %5467 = vmatprep.subr.bf16.mxu0 %v5343
    %5468 = vmatpush1.bf16.msra.mxu0 %v5342
    %5469 = vmatprep.subr.bf16.mxu0 0
    %5470 = vmatpush1.bf16.msra.mxu0 0
    %5471 = vmatprep.subr.bf16.mxu0 0
    %5472 = vmatpush1.bf16.msra.mxu0 0
    %5473 = vmatprep.subr.bf16.mxu0 0
    %5474 = vmatpush1.bf16.msra.mxu0 0
    %5475 = vmatprep.subr.bf16.mxu0 0
    %5476 = vmatpush1.bf16.msra.mxu0 0
    %5477 = vmatprep.subr.bf16.mxu0 0
    %5478 = vmatpush1.bf16.msra.mxu0 0
    %5479 = vmatprep.subr.bf16.mxu0 0
    %5480 = vmatpush1.bf16.msra.mxu0 0
    %5481 = vmatprep.subr.bf16.mxu0 0
    %5482 = vmatpush1.bf16.msra.mxu0 0
    %5483 = vmatprep.subr.bf16.mxu0 0
    %5484 = vmatpush1.bf16.msra.mxu0 0
    %5485 = vmatprep.mubr.bf16.mxu0 0
    %5486 = vmatmul.mubr.bf16.gmra.mrb[0].mxu0 %v4984
    %v5487 = vpop.f32.mrb[0].mxu0
    %v5488 = vadd.f32 %v5063, %v5487
    %v5489 = vpop.f32.mrb[0].mxu0
    %v5490 = vadd.f32 %v5067, %v5489
    %v5491 = vpop.f32.mrb[0].mxu0
    %v5492 = vpop.f32.mrb[0].mxu0
    %5493 = vdwg.mxu0
    %5494 = vmatprep.subr.bf16.mxu0 %v5289
    %5495 = vmatpush1.bf16.msra.mxu0 %v5288
    %5496 = vmatprep.subr.bf16.mxu0 %v5297
    %5497 = vmatpush1.bf16.msra.mxu0 %v5296
    %5498 = vmatprep.subr.bf16.mxu0 %v5305
    %5499 = vmatpush1.bf16.msra.mxu0 %v5304
    %5500 = vmatprep.subr.bf16.mxu0 %v5313
    %5501 = vmatpush1.bf16.msra.mxu0 %v5312
    %5502 = vmatprep.subr.bf16.mxu0 %v5321
    %5503 = vmatpush1.bf16.msra.mxu0 %v5320
    %5504 = vmatprep.subr.bf16.mxu0 %v5329
    %5505 = vmatpush1.bf16.msra.mxu0 %v5328
    %5506 = vmatprep.subr.bf16.mxu0 %v5337
    %5507 = vmatpush1.bf16.msra.mxu0 %v5336
    %5508 = vmatprep.subr.bf16.mxu0 %v5345
    %5509 = vmatpush1.bf16.msra.mxu0 %v5344
    %5510 = vmatprep.subr.bf16.mxu0 0
    %5511 = vmatpush1.bf16.msra.mxu0 0
    %5512 = vmatprep.subr.bf16.mxu0 0
    %5513 = vmatpush1.bf16.msra.mxu0 0
    %5514 = vmatprep.subr.bf16.mxu0 0
    %5515 = vmatpush1.bf16.msra.mxu0 0
    %5516 = vmatprep.subr.bf16.mxu0 0
    %5517 = vmatpush1.bf16.msra.mxu0 0
    %5518 = vmatprep.subr.bf16.mxu0 0
    %5519 = vmatpush1.bf16.msra.mxu0 0
    %5520 = vmatprep.subr.bf16.mxu0 0
    %5521 = vmatpush1.bf16.msra.mxu0 0
    %5522 = vmatprep.subr.bf16.mxu0 0
    %5523 = vmatpush1.bf16.msra.mxu0 0
    %5524 = vmatprep.subr.bf16.mxu0 0
    %5525 = vmatpush1.bf16.msra.mxu0 0
    %5526 = vmatprep.mubr.bf16.mxu0 0
    %5527 = vmatmul.mubr.bf16.gmra.mrb[0].mxu0 %v4984
    %v5528 = vpop.f32.mrb[0].mxu0
    %v5529 = vadd.f32 %v5071, %v5528
    %v5530 = vpop.f32.mrb[0].mxu0
    %v5531 = vadd.f32 %v5075, %v5530
    %v5532 = vpop.f32.mrb[0].mxu0
    %v5533 = vpop.f32.mrb[0].mxu0
    %5534 = vdwg.mxu0
    %5535 = vmatprep.subr.bf16.mxu0 %v5291
    %5536 = vmatpush1.bf16.msra.mxu0 %v5290
    %5537 = vmatprep.subr.bf16.mxu0 %v5299
    %5538 = vmatpush1.bf16.msra.mxu0 %v5298
    %5539 = vmatprep.subr.bf16.mxu0 %v5307
    %5540 = vmatpush1.bf16.msra.mxu0 %v5306
    %5541 = vmatprep.subr.bf16.mxu0 %v5315
    %5542 = vmatpush1.bf16.msra.mxu0 %v5314
    %5543 = vmatprep.subr.bf16.mxu0 %v5323
    %5544 = vmatpush1.bf16.msra.mxu0 %v5322
    %5545 = vmatprep.subr.bf16.mxu0 %v5331
    %5546 = vmatpush1.bf16.msra.mxu0 %v5330
    %5547 = vmatprep.subr.bf16.mxu0 %v5339
    %5548 = vmatpush1.bf16.msra.mxu0 %v5338
    %5549 = vmatprep.subr.bf16.mxu0 %v5347
    %5550 = vmatpush1.bf16.msra.mxu0 %v5346
    %5551 = vmatprep.subr.bf16.mxu0 0
    %5552 = vmatpush1.bf16.msra.mxu0 0
    %5553 = vmatprep.subr.bf16.mxu0 0
    %5554 = vmatpush1.bf16.msra.mxu0 0
    %5555 = vmatprep.subr.bf16.mxu0 0
    %5556 = vmatpush1.bf16.msra.mxu0 0
    %5557 = vmatprep.subr.bf16.mxu0 0
    %5558 = vmatpush1.bf16.msra.mxu0 0
    %5559 = vmatprep.subr.bf16.mxu0 0
    %5560 = vmatpush1.bf16.msra.mxu0 0
    %5561 = vmatprep.subr.bf16.mxu0 0
    %5562 = vmatpush1.bf16.msra.mxu0 0
    %5563 = vmatprep.subr.bf16.mxu0 0
    %5564 = vmatpush1.bf16.msra.mxu0 0
    %5565 = vmatprep.subr.bf16.mxu0 0
    %5566 = vmatpush1.bf16.msra.mxu0 0
    %5567 = vmatprep.mubr.bf16.mxu0 0
    %5568 = vmatmul.mubr.bf16.gmra.mrb[0].mxu0 %v4984
    %v5569 = vpop.f32.mrb[0].mxu0
    %v5570 = vadd.f32 %v5079, %v5569
    %v5571 = vpop.f32.mrb[0].mxu0
    %v5572 = vadd.f32 %v5083, %v5571
    %v5573 = vpop.f32.mrb[0].mxu0
    %v5574 = vpop.f32.mrb[0].mxu0
    %5575 = vdwg.mxu0
    %v5576 = vpack.c.bf16 %v5447, %v5447
    %v5577 = vpack.c.bf16 %v5449, %v5449
    %v5578 = vpack.c.bf16 %v5488, %v5488
    %v5579 = vpack.c.bf16 %v5490, %v5490
    %v5580 = vpack.c.bf16 %v5529, %v5529
    %v5581 = vpack.c.bf16 %v5531, %v5531
    %v5582 = vpack.c.bf16 %v5570, %v5570
    %v5583 = vpack.c.bf16 %v5572, %v5572
    %v5584 = vld [vmem:[#allocation17] sm:$0xff]
    %v5585 = vld [vmem:[#allocation17 + $0x8] sm:$0xff]
    %v5586 = vld [vmem:[#allocation17 + $0x10] sm:$0xff]
    %v5587 = vld [vmem:[#allocation17 + $0x18] sm:$0xff]
    %v5588 = vld [vmem:[#allocation17 + $0x20] sm:$0xff]
    %v5589 = vld [vmem:[#allocation17 + $0x28] sm:$0xff]
    %v5590 = vld [vmem:[#allocation17 + $0x30] sm:$0xff]
    %v5591 = vld [vmem:[#allocation17 + $0x38] sm:$0xff]
    %v5592 = vld [vmem:[#allocation17 + $0x40] sm:$0xff]
    %v5593 = vld [vmem:[#allocation17 + $0x48] sm:$0xff]
    %v5594 = vld [vmem:[#allocation17 + $0x50] sm:$0xff]
    %v5595 = vld [vmem:[#allocation17 + $0x58] sm:$0xff]
    %v5596 = vld [vmem:[#allocation17 + $0x60] sm:$0xff]
    %v5597 = vld [vmem:[#allocation17 + $0x68] sm:$0xff]
    %v5598 = vld [vmem:[#allocation17 + $0x70] sm:$0xff]
    %v5599 = vld [vmem:[#allocation17 + $0x78] sm:$0xff]
    %v5600 = vld [vmem:[#allocation17 + $0x80] sm:$0xff]
    %v5601 = vld [vmem:[#allocation17 + $0x88] sm:$0xff]
    %v5602 = vld [vmem:[#allocation17 + $0x90] sm:$0xff]
    %v5603 = vld [vmem:[#allocation17 + $0x98] sm:$0xff]
    %v5604 = vld [vmem:[#allocation17 + $0xa0] sm:$0xff]
    %v5605 = vld [vmem:[#allocation17 + $0xa8] sm:$0xff]
    %v5606 = vld [vmem:[#allocation17 + $0xb0] sm:$0xff]
    %v5607 = vld [vmem:[#allocation17 + $0xb8] sm:$0xff]
    %v5608 = vld [vmem:[#allocation17 + $0xc0] sm:$0xff]
    %v5609 = vld [vmem:[#allocation17 + $0xc8] sm:$0xff]
    %v5610 = vld [vmem:[#allocation17 + $0xd0] sm:$0xff]
    %v5611 = vld [vmem:[#allocation17 + $0xd8] sm:$0xff]
    %v5612 = vld [vmem:[#allocation17 + $0xe0] sm:$0xff]
    %v5613 = vld [vmem:[#allocation17 + $0xe8] sm:$0xff]
    %v5614 = vld [vmem:[#allocation17 + $0xf0] sm:$0xff]
    %v5615 = vld [vmem:[#allocation17 + $0xf8] sm:$0xff]
    %v5616 = vld [vmem:[#allocation17 + $0x100] sm:$0xff]
    %v5617 = vld [vmem:[#allocation17 + $0x108] sm:$0xff]
    %v5618 = vld [vmem:[#allocation17 + $0x110] sm:$0xff]
    %v5619 = vld [vmem:[#allocation17 + $0x118] sm:$0xff]
    %v5620 = vld [vmem:[#allocation17 + $0x120] sm:$0xff]
    %v5621 = vld [vmem:[#allocation17 + $0x128] sm:$0xff]
    %v5622 = vld [vmem:[#allocation17 + $0x130] sm:$0xff]
    %v5623 = vld [vmem:[#allocation17 + $0x138] sm:$0xff]
    %v5624 = vld [vmem:[#allocation17 + $0x140] sm:$0xff]
    %v5625 = vld [vmem:[#allocation17 + $0x148] sm:$0xff]
    %v5626 = vld [vmem:[#allocation17 + $0x150] sm:$0xff]
    %v5627 = vld [vmem:[#allocation17 + $0x158] sm:$0xff]
    %v5628 = vld [vmem:[#allocation17 + $0x160] sm:$0xff]
    %v5629 = vld [vmem:[#allocation17 + $0x168] sm:$0xff]
    %v5630 = vld [vmem:[#allocation17 + $0x170] sm:$0xff]
    %v5631 = vld [vmem:[#allocation17 + $0x178] sm:$0xff]
    %v5632 = vld [vmem:[#allocation17 + $0x180] sm:$0xff]
    %v5633 = vld [vmem:[#allocation17 + $0x188] sm:$0xff]
    %v5634 = vld [vmem:[#allocation17 + $0x190] sm:$0xff]
    %v5635 = vld [vmem:[#allocation17 + $0x198] sm:$0xff]
    %v5636 = vld [vmem:[#allocation17 + $0x1a0] sm:$0xff]
    %v5637 = vld [vmem:[#allocation17 + $0x1a8] sm:$0xff]
    %v5638 = vld [vmem:[#allocation17 + $0x1b0] sm:$0xff]
    %v5639 = vld [vmem:[#allocation17 + $0x1b8] sm:$0xff]
    %v5640 = vld [vmem:[#allocation17 + $0x1c0] sm:$0xff]
    %v5641 = vld [vmem:[#allocation17 + $0x1c8] sm:$0xff]
    %v5642 = vld [vmem:[#allocation17 + $0x1d0] sm:$0xff]
    %v5643 = vld [vmem:[#allocation17 + $0x1d8] sm:$0xff]
    %v5644 = vld [vmem:[#allocation17 + $0x1e0] sm:$0xff]
    %v5645 = vld [vmem:[#allocation17 + $0x1e8] sm:$0xff]
    %v5646 = vld [vmem:[#allocation17 + $0x1f0] sm:$0xff]
    %v5647 = vld [vmem:[#allocation17 + $0x1f8] sm:$0xff]
    %v5648 = vld [vmem:[#allocation17 + $0x200] sm:$0xff]
    %v5649 = vld [vmem:[#allocation17 + $0x208] sm:$0xff]
    %v5650 = vld [vmem:[#allocation17 + $0x210] sm:$0xff]
    %v5651 = vld [vmem:[#allocation17 + $0x218] sm:$0xff]
    %v5652 = vld [vmem:[#allocation17 + $0x220] sm:$0xff]
    %v5653 = vld [vmem:[#allocation17 + $0x228] sm:$0xff]
    %v5654 = vld [vmem:[#allocation17 + $0x230] sm:$0xff]
    %v5655 = vld [vmem:[#allocation17 + $0x238] sm:$0xff]
    %v5656 = vld [vmem:[#allocation17 + $0x240] sm:$0xff]
    %v5657 = vld [vmem:[#allocation17 + $0x248] sm:$0xff]
    %v5658 = vld [vmem:[#allocation17 + $0x250] sm:$0xff]
    %v5659 = vld [vmem:[#allocation17 + $0x258] sm:$0xff]
    %v5660 = vld [vmem:[#allocation17 + $0x260] sm:$0xff]
    %v5661 = vld [vmem:[#allocation17 + $0x268] sm:$0xff]
    %v5662 = vld [vmem:[#allocation17 + $0x270] sm:$0xff]
    %v5663 = vld [vmem:[#allocation17 + $0x278] sm:$0xff]
    %v5664 = vld [vmem:[#allocation17 + $0x280] sm:$0xff]
    %v5665 = vld [vmem:[#allocation17 + $0x288] sm:$0xff]
    %v5666 = vld [vmem:[#allocation17 + $0x290] sm:$0xff]
    %v5667 = vld [vmem:[#allocation17 + $0x298] sm:$0xff]
    %v5668 = vld [vmem:[#allocation17 + $0x2a0] sm:$0xff]
    %v5669 = vld [vmem:[#allocation17 + $0x2a8] sm:$0xff]
    %v5670 = vld [vmem:[#allocation17 + $0x2b0] sm:$0xff]
    %v5671 = vld [vmem:[#allocation17 + $0x2b8] sm:$0xff]
    %v5672 = vld [vmem:[#allocation17 + $0x2c0] sm:$0xff]
    %v5673 = vld [vmem:[#allocation17 + $0x2c8] sm:$0xff]
    %v5674 = vld [vmem:[#allocation17 + $0x2d0] sm:$0xff]
    %v5675 = vld [vmem:[#allocation17 + $0x2d8] sm:$0xff]
    %v5676 = vld [vmem:[#allocation17 + $0x2e0] sm:$0xff]
    %v5677 = vld [vmem:[#allocation17 + $0x2e8] sm:$0xff]
    %v5678 = vld [vmem:[#allocation17 + $0x2f0] sm:$0xff]
    %v5679 = vld [vmem:[#allocation17 + $0x2f8] sm:$0xff]
    %v5680 = vld [vmem:[#allocation17 + $0x300] sm:$0xff]
    %v5681 = vld [vmem:[#allocation17 + $0x308] sm:$0xff]
    %v5682 = vld [vmem:[#allocation17 + $0x310] sm:$0xff]
    %v5683 = vld [vmem:[#allocation17 + $0x318] sm:$0xff]
    %v5684 = vld [vmem:[#allocation17 + $0x320] sm:$0xff]
    %v5685 = vld [vmem:[#allocation17 + $0x328] sm:$0xff]
    %v5686 = vld [vmem:[#allocation17 + $0x330] sm:$0xff]
    %v5687 = vld [vmem:[#allocation17 + $0x338] sm:$0xff]
    %v5688 = vld [vmem:[#allocation17 + $0x340] sm:$0xff]
    %v5689 = vld [vmem:[#allocation17 + $0x348] sm:$0xff]
    %v5690 = vld [vmem:[#allocation17 + $0x350] sm:$0xff]
    %v5691 = vld [vmem:[#allocation17 + $0x358] sm:$0xff]
    %v5692 = vld [vmem:[#allocation17 + $0x360] sm:$0xff]
    %v5693 = vld [vmem:[#allocation17 + $0x368] sm:$0xff]
    %v5694 = vld [vmem:[#allocation17 + $0x370] sm:$0xff]
    %v5695 = vld [vmem:[#allocation17 + $0x378] sm:$0xff]
    %v5696 = vld [vmem:[#allocation17 + $0x380] sm:$0xff]
    %v5697 = vld [vmem:[#allocation17 + $0x388] sm:$0xff]
    %v5698 = vld [vmem:[#allocation17 + $0x390] sm:$0xff]
    %v5699 = vld [vmem:[#allocation17 + $0x398] sm:$0xff]
    %v5700 = vld [vmem:[#allocation17 + $0x3a0] sm:$0xff]
    %v5701 = vld [vmem:[#allocation17 + $0x3a8] sm:$0xff]
    %v5702 = vld [vmem:[#allocation17 + $0x3b0] sm:$0xff]
    %v5703 = vld [vmem:[#allocation17 + $0x3b8] sm:$0xff]
    %v5704 = vld [vmem:[#allocation17 + $0x3c0] sm:$0xff]
    %v5705 = vld [vmem:[#allocation17 + $0x3c8] sm:$0xff]
    %v5706 = vld [vmem:[#allocation17 + $0x3d0] sm:$0xff]
    %v5707 = vld [vmem:[#allocation17 + $0x3d8] sm:$0xff]
    %v5708 = vld [vmem:[#allocation17 + $0x3e0] sm:$0xff]
    %v5709 = vld [vmem:[#allocation17 + $0x3e8] sm:$0xff]
    %v5710 = vld [vmem:[#allocation17 + $0x3f0] sm:$0xff]
    %v5711 = vld [vmem:[#allocation17 + $0x3f8] sm:$0xff]
    %v5712 = vld [vmem:[#allocation17 + $0x400] sm:$0xff]
    %v5713 = vld [vmem:[#allocation17 + $0x408] sm:$0xff]
    %v5714 = vld [vmem:[#allocation17 + $0x410] sm:$0xff]
    %v5715 = vld [vmem:[#allocation17 + $0x418] sm:$0xff]
    %v5716 = vld [vmem:[#allocation17 + $0x420] sm:$0xff]
    %v5717 = vld [vmem:[#allocation17 + $0x428] sm:$0xff]
    %v5718 = vld [vmem:[#allocation17 + $0x430] sm:$0xff]
    %v5719 = vld [vmem:[#allocation17 + $0x438] sm:$0xff]
    %v5720 = vld [vmem:[#allocation17 + $0x440] sm:$0xff]
    %v5721 = vld [vmem:[#allocation17 + $0x448] sm:$0xff]
    %v5722 = vld [vmem:[#allocation17 + $0x450] sm:$0xff]
    %v5723 = vld [vmem:[#allocation17 + $0x458] sm:$0xff]
    %v5724 = vld [vmem:[#allocation17 + $0x460] sm:$0xff]
    %v5725 = vld [vmem:[#allocation17 + $0x468] sm:$0xff]
    %v5726 = vld [vmem:[#allocation17 + $0x470] sm:$0xff]
    %v5727 = vld [vmem:[#allocation17 + $0x478] sm:$0xff]
    %v5728 = vld [vmem:[#allocation17 + $0x480] sm:$0xff]
    %v5729 = vld [vmem:[#allocation17 + $0x488] sm:$0xff]
    %v5730 = vld [vmem:[#allocation17 + $0x490] sm:$0xff]
    %v5731 = vld [vmem:[#allocation17 + $0x498] sm:$0xff]
    %v5732 = vld [vmem:[#allocation17 + $0x4a0] sm:$0xff]
    %v5733 = vld [vmem:[#allocation17 + $0x4a8] sm:$0xff]
    %v5734 = vld [vmem:[#allocation17 + $0x4b0] sm:$0xff]
    %v5735 = vld [vmem:[#allocation17 + $0x4b8] sm:$0xff]
    %v5736 = vld [vmem:[#allocation17 + $0x4c0] sm:$0xff]
    %v5737 = vld [vmem:[#allocation17 + $0x4c8] sm:$0xff]
    %v5738 = vld [vmem:[#allocation17 + $0x4d0] sm:$0xff]
    %v5739 = vld [vmem:[#allocation17 + $0x4d8] sm:$0xff]
    %v5740 = vld [vmem:[#allocation17 + $0x4e0] sm:$0xff]
    %v5741 = vld [vmem:[#allocation17 + $0x4e8] sm:$0xff]
    %v5742 = vld [vmem:[#allocation17 + $0x4f0] sm:$0xff]
    %v5743 = vld [vmem:[#allocation17 + $0x4f8] sm:$0xff]
    %v5744 = vld [vmem:[#allocation17 + $0x500] sm:$0xff]
    %v5745 = vld [vmem:[#allocation17 + $0x508] sm:$0xff]
    %v5746 = vld [vmem:[#allocation17 + $0x510] sm:$0xff]
    %v5747 = vld [vmem:[#allocation17 + $0x518] sm:$0xff]
    %v5748 = vld [vmem:[#allocation17 + $0x520] sm:$0xff]
    %v5749 = vld [vmem:[#allocation17 + $0x528] sm:$0xff]
    %v5750 = vld [vmem:[#allocation17 + $0x530] sm:$0xff]
    %v5751 = vld [vmem:[#allocation17 + $0x538] sm:$0xff]
    %v5752 = vld [vmem:[#allocation17 + $0x540] sm:$0xff]
    %v5753 = vld [vmem:[#allocation17 + $0x548] sm:$0xff]
    %v5754 = vld [vmem:[#allocation17 + $0x550] sm:$0xff]
    %v5755 = vld [vmem:[#allocation17 + $0x558] sm:$0xff]
    %v5756 = vld [vmem:[#allocation17 + $0x560] sm:$0xff]
    %v5757 = vld [vmem:[#allocation17 + $0x568] sm:$0xff]
    %v5758 = vld [vmem:[#allocation17 + $0x570] sm:$0xff]
    %v5759 = vld [vmem:[#allocation17 + $0x578] sm:$0xff]
    %v5760 = vld [vmem:[#allocation17 + $0x580] sm:$0xff]
    %v5761 = vld [vmem:[#allocation17 + $0x588] sm:$0xff]
    %v5762 = vld [vmem:[#allocation17 + $0x590] sm:$0xff]
    %v5763 = vld [vmem:[#allocation17 + $0x598] sm:$0xff]
    %v5764 = vld [vmem:[#allocation17 + $0x5a0] sm:$0xff]
    %v5765 = vld [vmem:[#allocation17 + $0x5a8] sm:$0xff]
    %v5766 = vld [vmem:[#allocation17 + $0x5b0] sm:$0xff]
    %v5767 = vld [vmem:[#allocation17 + $0x5b8] sm:$0xff]
    %v5768 = vld [vmem:[#allocation17 + $0x5c0] sm:$0xff]
    %v5769 = vld [vmem:[#allocation17 + $0x5c8] sm:$0xff]
    %v5770 = vld [vmem:[#allocation17 + $0x5d0] sm:$0xff]
    %v5771 = vld [vmem:[#allocation17 + $0x5d8] sm:$0xff]
    %v5772 = vld [vmem:[#allocation17 + $0x5e0] sm:$0xff]
    %v5773 = vld [vmem:[#allocation17 + $0x5e8] sm:$0xff]
    %v5774 = vld [vmem:[#allocation17 + $0x5f0] sm:$0xff]
    %v5775 = vld [vmem:[#allocation17 + $0x5f8] sm:$0xff]
    %v5776 = vld [vmem:[#allocation17 + $0x600] sm:$0xff]
    %v5777 = vld [vmem:[#allocation17 + $0x608] sm:$0xff]
    %v5778 = vld [vmem:[#allocation17 + $0x610] sm:$0xff]
    %v5779 = vld [vmem:[#allocation17 + $0x618] sm:$0xff]
    %v5780 = vld [vmem:[#allocation17 + $0x620] sm:$0xff]
    %v5781 = vld [vmem:[#allocation17 + $0x628] sm:$0xff]
    %v5782 = vld [vmem:[#allocation17 + $0x630] sm:$0xff]
    %v5783 = vld [vmem:[#allocation17 + $0x638] sm:$0xff]
    %v5784 = vld [vmem:[#allocation17 + $0x640] sm:$0xff]
    %v5785 = vld [vmem:[#allocation17 + $0x648] sm:$0xff]
    %v5786 = vld [vmem:[#allocation17 + $0x650] sm:$0xff]
    %v5787 = vld [vmem:[#allocation17 + $0x658] sm:$0xff]
    %v5788 = vld [vmem:[#allocation17 + $0x660] sm:$0xff]
    %v5789 = vld [vmem:[#allocation17 + $0x668] sm:$0xff]
    %v5790 = vld [vmem:[#allocation17 + $0x670] sm:$0xff]
    %v5791 = vld [vmem:[#allocation17 + $0x678] sm:$0xff]
    %v5792 = vld [vmem:[#allocation17 + $0x680] sm:$0xff]
    %v5793 = vld [vmem:[#allocation17 + $0x688] sm:$0xff]
    %v5794 = vld [vmem:[#allocation17 + $0x690] sm:$0xff]
    %v5795 = vld [vmem:[#allocation17 + $0x698] sm:$0xff]
    %v5796 = vld [vmem:[#allocation17 + $0x6a0] sm:$0xff]
    %v5797 = vld [vmem:[#allocation17 + $0x6a8] sm:$0xff]
    %v5798 = vld [vmem:[#allocation17 + $0x6b0] sm:$0xff]
    %v5799 = vld [vmem:[#allocation17 + $0x6b8] sm:$0xff]
    %v5800 = vld [vmem:[#allocation17 + $0x6c0] sm:$0xff]
    %v5801 = vld [vmem:[#allocation17 + $0x6c8] sm:$0xff]
    %v5802 = vld [vmem:[#allocation17 + $0x6d0] sm:$0xff]
    %v5803 = vld [vmem:[#allocation17 + $0x6d8] sm:$0xff]
    %v5804 = vld [vmem:[#allocation17 + $0x6e0] sm:$0xff]
    %v5805 = vld [vmem:[#allocation17 + $0x6e8] sm:$0xff]
    %v5806 = vld [vmem:[#allocation17 + $0x6f0] sm:$0xff]
    %v5807 = vld [vmem:[#allocation17 + $0x6f8] sm:$0xff]
    %v5808 = vld [vmem:[#allocation17 + $0x700] sm:$0xff]
    %v5809 = vld [vmem:[#allocation17 + $0x708] sm:$0xff]
    %v5810 = vld [vmem:[#allocation17 + $0x710] sm:$0xff]
    %v5811 = vld [vmem:[#allocation17 + $0x718] sm:$0xff]
    %v5812 = vld [vmem:[#allocation17 + $0x720] sm:$0xff]
    %v5813 = vld [vmem:[#allocation17 + $0x728] sm:$0xff]
    %v5814 = vld [vmem:[#allocation17 + $0x730] sm:$0xff]
    %v5815 = vld [vmem:[#allocation17 + $0x738] sm:$0xff]
    %v5816 = vld [vmem:[#allocation17 + $0x740] sm:$0xff]
    %v5817 = vld [vmem:[#allocation17 + $0x748] sm:$0xff]
    %v5818 = vld [vmem:[#allocation17 + $0x750] sm:$0xff]
    %v5819 = vld [vmem:[#allocation17 + $0x758] sm:$0xff]
    %v5820 = vld [vmem:[#allocation17 + $0x760] sm:$0xff]
    %v5821 = vld [vmem:[#allocation17 + $0x768] sm:$0xff]
    %v5822 = vld [vmem:[#allocation17 + $0x770] sm:$0xff]
    %v5823 = vld [vmem:[#allocation17 + $0x778] sm:$0xff]
    %v5824 = vld [vmem:[#allocation17 + $0x780] sm:$0xff]
    %v5825 = vld [vmem:[#allocation17 + $0x788] sm:$0xff]
    %v5826 = vld [vmem:[#allocation17 + $0x790] sm:$0xff]
    %v5827 = vld [vmem:[#allocation17 + $0x798] sm:$0xff]
    %v5828 = vld [vmem:[#allocation17 + $0x7a0] sm:$0xff]
    %v5829 = vld [vmem:[#allocation17 + $0x7a8] sm:$0xff]
    %v5830 = vld [vmem:[#allocation17 + $0x7b0] sm:$0xff]
    %v5831 = vld [vmem:[#allocation17 + $0x7b8] sm:$0xff]
    %v5832 = vld [vmem:[#allocation17 + $0x7c0] sm:$0xff]
    %v5833 = vld [vmem:[#allocation17 + $0x7c8] sm:$0xff]
    %v5834 = vld [vmem:[#allocation17 + $0x7d0] sm:$0xff]
    %v5835 = vld [vmem:[#allocation17 + $0x7d8] sm:$0xff]
    %v5836 = vld [vmem:[#allocation17 + $0x7e0] sm:$0xff]
    %v5837 = vld [vmem:[#allocation17 + $0x7e8] sm:$0xff]
    %v5838 = vld [vmem:[#allocation17 + $0x7f0] sm:$0xff]
    %v5839 = vld [vmem:[#allocation17 + $0x7f8] sm:$0xff]
    %v5840 = vld [vmem:[#allocation17 + $0x800] sm:$0xff]
    %v5841 = vld [vmem:[#allocation17 + $0x808] sm:$0xff]
    %v5842 = vld [vmem:[#allocation17 + $0x810] sm:$0xff]
    %v5843 = vld [vmem:[#allocation17 + $0x818] sm:$0xff]
    %v5844 = vld [vmem:[#allocation17 + $0x820] sm:$0xff]
    %v5845 = vld [vmem:[#allocation17 + $0x828] sm:$0xff]
    %v5846 = vld [vmem:[#allocation17 + $0x830] sm:$0xff]
    %v5847 = vld [vmem:[#allocation17 + $0x838] sm:$0xff]
    %v5848 = vld [vmem:[#allocation17 + $0x840] sm:$0xff]
    %v5849 = vld [vmem:[#allocation17 + $0x848] sm:$0xff]
    %v5850 = vld [vmem:[#allocation17 + $0x850] sm:$0xff]
    %v5851 = vld [vmem:[#allocation17 + $0x858] sm:$0xff]
    %v5852 = vld [vmem:[#allocation17 + $0x860] sm:$0xff]
    %v5853 = vld [vmem:[#allocation17 + $0x868] sm:$0xff]
    %v5854 = vld [vmem:[#allocation17 + $0x870] sm:$0xff]
    %v5855 = vld [vmem:[#allocation17 + $0x878] sm:$0xff]
    %v5856 = vld [vmem:[#allocation17 + $0x880] sm:$0xff]
    %v5857 = vld [vmem:[#allocation17 + $0x888] sm:$0xff]
    %v5858 = vld [vmem:[#allocation17 + $0x890] sm:$0xff]
    %v5859 = vld [vmem:[#allocation17 + $0x898] sm:$0xff]
    %v5860 = vld [vmem:[#allocation17 + $0x8a0] sm:$0xff]
    %v5861 = vld [vmem:[#allocation17 + $0x8a8] sm:$0xff]
    %v5862 = vld [vmem:[#allocation17 + $0x8b0] sm:$0xff]
    %v5863 = vld [vmem:[#allocation17 + $0x8b8] sm:$0xff]
    %v5864 = vld [vmem:[#allocation17 + $0x8c0] sm:$0xff]
    %v5865 = vld [vmem:[#allocation17 + $0x8c8] sm:$0xff]
    %v5866 = vld [vmem:[#allocation17 + $0x8d0] sm:$0xff]
    %v5867 = vld [vmem:[#allocation17 + $0x8d8] sm:$0xff]
    %v5868 = vld [vmem:[#allocation17 + $0x8e0] sm:$0xff]
    %v5869 = vld [vmem:[#allocation17 + $0x8e8] sm:$0xff]
    %v5870 = vld [vmem:[#allocation17 + $0x8f0] sm:$0xff]
    %v5871 = vld [vmem:[#allocation17 + $0x8f8] sm:$0xff]
    %v5872 = vld [vmem:[#allocation17 + $0x900] sm:$0xff]
    %v5873 = vld [vmem:[#allocation17 + $0x908] sm:$0xff]
    %v5874 = vld [vmem:[#allocation17 + $0x910] sm:$0xff]
    %v5875 = vld [vmem:[#allocation17 + $0x918] sm:$0xff]
    %v5876 = vld [vmem:[#allocation17 + $0x920] sm:$0xff]
    %v5877 = vld [vmem:[#allocation17 + $0x928] sm:$0xff]
    %v5878 = vld [vmem:[#allocation17 + $0x930] sm:$0xff]
    %v5879 = vld [vmem:[#allocation17 + $0x938] sm:$0xff]
    %v5880 = vld [vmem:[#allocation17 + $0x940] sm:$0xff]
    %v5881 = vld [vmem:[#allocation17 + $0x948] sm:$0xff]
    %v5882 = vld [vmem:[#allocation17 + $0x950] sm:$0xff]
    %v5883 = vld [vmem:[#allocation17 + $0x958] sm:$0xff]
    %v5884 = vld [vmem:[#allocation17 + $0x960] sm:$0xff]
    %v5885 = vld [vmem:[#allocation17 + $0x968] sm:$0xff]
    %v5886 = vld [vmem:[#allocation17 + $0x970] sm:$0xff]
    %v5887 = vld [vmem:[#allocation17 + $0x978] sm:$0xff]
    %v5888 = vld [vmem:[#allocation17 + $0x980] sm:$0xff]
    %v5889 = vld [vmem:[#allocation17 + $0x988] sm:$0xff]
    %v5890 = vld [vmem:[#allocation17 + $0x990] sm:$0xff]
    %v5891 = vld [vmem:[#allocation17 + $0x998] sm:$0xff]
    %v5892 = vld [vmem:[#allocation17 + $0x9a0] sm:$0xff]
    %v5893 = vld [vmem:[#allocation17 + $0x9a8] sm:$0xff]
    %v5894 = vld [vmem:[#allocation17 + $0x9b0] sm:$0xff]
    %v5895 = vld [vmem:[#allocation17 + $0x9b8] sm:$0xff]
    %v5896 = vld [vmem:[#allocation17 + $0x9c0] sm:$0xff]
    %v5897 = vld [vmem:[#allocation17 + $0x9c8] sm:$0xff]
    %v5898 = vld [vmem:[#allocation17 + $0x9d0] sm:$0xff]
    %v5899 = vld [vmem:[#allocation17 + $0x9d8] sm:$0xff]
    %v5900 = vld [vmem:[#allocation17 + $0x9e0] sm:$0xff]
    %v5901 = vld [vmem:[#allocation17 + $0x9e8] sm:$0xff]
    %v5902 = vld [vmem:[#allocation17 + $0x9f0] sm:$0xff]
    %v5903 = vld [vmem:[#allocation17 + $0x9f8] sm:$0xff]
    %v5904 = vld [vmem:[#allocation17 + $0xa00] sm:$0xff]
    %v5905 = vld [vmem:[#allocation17 + $0xa08] sm:$0xff]
    %v5906 = vld [vmem:[#allocation17 + $0xa10] sm:$0xff]
    %v5907 = vld [vmem:[#allocation17 + $0xa18] sm:$0xff]
    %v5908 = vld [vmem:[#allocation17 + $0xa20] sm:$0xff]
    %v5909 = vld [vmem:[#allocation17 + $0xa28] sm:$0xff]
    %v5910 = vld [vmem:[#allocation17 + $0xa30] sm:$0xff]
    %v5911 = vld [vmem:[#allocation17 + $0xa38] sm:$0xff]
    %v5912 = vld [vmem:[#allocation17 + $0xa40] sm:$0xff]
    %v5913 = vld [vmem:[#allocation17 + $0xa48] sm:$0xff]
    %v5914 = vld [vmem:[#allocation17 + $0xa50] sm:$0xff]
    %v5915 = vld [vmem:[#allocation17 + $0xa58] sm:$0xff]
    %v5916 = vld [vmem:[#allocation17 + $0xa60] sm:$0xff]
    %v5917 = vld [vmem:[#allocation17 + $0xa68] sm:$0xff]
    %v5918 = vld [vmem:[#allocation17 + $0xa70] sm:$0xff]
    %v5919 = vld [vmem:[#allocation17 + $0xa78] sm:$0xff]
    %v5920 = vld [vmem:[#allocation17 + $0xa80] sm:$0xff]
    %v5921 = vld [vmem:[#allocation17 + $0xa88] sm:$0xff]
    %v5922 = vld [vmem:[#allocation17 + $0xa90] sm:$0xff]
    %v5923 = vld [vmem:[#allocation17 + $0xa98] sm:$0xff]
    %v5924 = vld [vmem:[#allocation17 + $0xaa0] sm:$0xff]
    %v5925 = vld [vmem:[#allocation17 + $0xaa8] sm:$0xff]
    %v5926 = vld [vmem:[#allocation17 + $0xab0] sm:$0xff]
    %v5927 = vld [vmem:[#allocation17 + $0xab8] sm:$0xff]
    %v5928 = vld [vmem:[#allocation17 + $0xac0] sm:$0xff]
    %v5929 = vld [vmem:[#allocation17 + $0xac8] sm:$0xff]
    %v5930 = vld [vmem:[#allocation17 + $0xad0] sm:$0xff]
    %v5931 = vld [vmem:[#allocation17 + $0xad8] sm:$0xff]
    %v5932 = vld [vmem:[#allocation17 + $0xae0] sm:$0xff]
    %v5933 = vld [vmem:[#allocation17 + $0xae8] sm:$0xff]
    %v5934 = vld [vmem:[#allocation17 + $0xaf0] sm:$0xff]
    %v5935 = vld [vmem:[#allocation17 + $0xaf8] sm:$0xff]
    %v5936 = vld [vmem:[#allocation17 + $0xb00] sm:$0xff]
    %v5937 = vld [vmem:[#allocation17 + $0xb08] sm:$0xff]
    %v5938 = vld [vmem:[#allocation17 + $0xb10] sm:$0xff]
    %v5939 = vld [vmem:[#allocation17 + $0xb18] sm:$0xff]
    %v5940 = vld [vmem:[#allocation17 + $0xb20] sm:$0xff]
    %v5941 = vld [vmem:[#allocation17 + $0xb28] sm:$0xff]
    %v5942 = vld [vmem:[#allocation17 + $0xb30] sm:$0xff]
    %v5943 = vld [vmem:[#allocation17 + $0xb38] sm:$0xff]
    %v5944 = vld [vmem:[#allocation17 + $0xb40] sm:$0xff]
    %v5945 = vld [vmem:[#allocation17 + $0xb48] sm:$0xff]
    %v5946 = vld [vmem:[#allocation17 + $0xb50] sm:$0xff]
    %v5947 = vld [vmem:[#allocation17 + $0xb58] sm:$0xff]
    %v5948 = vld [vmem:[#allocation17 + $0xb60] sm:$0xff]
    %v5949 = vld [vmem:[#allocation17 + $0xb68] sm:$0xff]
    %v5950 = vld [vmem:[#allocation17 + $0xb70] sm:$0xff]
    %v5951 = vld [vmem:[#allocation17 + $0xb78] sm:$0xff]
    %v5952 = vld [vmem:[#allocation17 + $0xb80] sm:$0xff]
    %v5953 = vld [vmem:[#allocation17 + $0xb88] sm:$0xff]
    %v5954 = vld [vmem:[#allocation17 + $0xb90] sm:$0xff]
    %v5955 = vld [vmem:[#allocation17 + $0xb98] sm:$0xff]
    %v5956 = vld [vmem:[#allocation17 + $0xba0] sm:$0xff]
    %v5957 = vld [vmem:[#allocation17 + $0xba8] sm:$0xff]
    %v5958 = vld [vmem:[#allocation17 + $0xbb0] sm:$0xff]
    %v5959 = vld [vmem:[#allocation17 + $0xbb8] sm:$0xff]
    %v5960 = vld [vmem:[#allocation17 + $0xbc0] sm:$0xff]
    %v5961 = vld [vmem:[#allocation17 + $0xbc8] sm:$0xff]
    %v5962 = vld [vmem:[#allocation17 + $0xbd0] sm:$0xff]
    %v5963 = vld [vmem:[#allocation17 + $0xbd8] sm:$0xff]
    %v5964 = vld [vmem:[#allocation17 + $0xbe0] sm:$0xff]
    %v5965 = vld [vmem:[#allocation17 + $0xbe8] sm:$0xff]
    %v5966 = vld [vmem:[#allocation17 + $0xbf0] sm:$0xff]
    %v5967 = vld [vmem:[#allocation17 + $0xbf8] sm:$0xff]
    %v5968 = vld [vmem:[#allocation17 + $0xc00] sm:$0xff]
    %v5969 = vld [vmem:[#allocation17 + $0xc08] sm:$0xff]
    %v5970 = vld [vmem:[#allocation17 + $0xc10] sm:$0xff]
    %v5971 = vld [vmem:[#allocation17 + $0xc18] sm:$0xff]
    %v5972 = vld [vmem:[#allocation17 + $0xc20] sm:$0xff]
    %v5973 = vld [vmem:[#allocation17 + $0xc28] sm:$0xff]
    %v5974 = vld [vmem:[#allocation17 + $0xc30] sm:$0xff]
    %v5975 = vld [vmem:[#allocation17 + $0xc38] sm:$0xff]
    %v5976 = vld [vmem:[#allocation17 + $0xc40] sm:$0xff]
    %v5977 = vld [vmem:[#allocation17 + $0xc48] sm:$0xff]
    %v5978 = vld [vmem:[#allocation17 + $0xc50] sm:$0xff]
    %v5979 = vld [vmem:[#allocation17 + $0xc58] sm:$0xff]
    %v5980 = vld [vmem:[#allocation17 + $0xc60] sm:$0xff]
    %v5981 = vld [vmem:[#allocation17 + $0xc68] sm:$0xff]
    %v5982 = vld [vmem:[#allocation17 + $0xc70] sm:$0xff]
    %v5983 = vld [vmem:[#allocation17 + $0xc78] sm:$0xff]
    %v5984 = vld [vmem:[#allocation17 + $0xc80] sm:$0xff]
    %v5985 = vld [vmem:[#allocation17 + $0xc88] sm:$0xff]
    %v5986 = vld [vmem:[#allocation17 + $0xc90] sm:$0xff]
    %v5987 = vld [vmem:[#allocation17 + $0xc98] sm:$0xff]
    %v5988 = vld [vmem:[#allocation17 + $0xca0] sm:$0xff]
    %v5989 = vld [vmem:[#allocation17 + $0xca8] sm:$0xff]
    %v5990 = vld [vmem:[#allocation17 + $0xcb0] sm:$0xff]
    %v5991 = vld [vmem:[#allocation17 + $0xcb8] sm:$0xff]
    %v5992 = vld [vmem:[#allocation17 + $0xcc0] sm:$0xff]
    %v5993 = vld [vmem:[#allocation17 + $0xcc8] sm:$0xff]
    %v5994 = vld [vmem:[#allocation17 + $0xcd0] sm:$0xff]
    %v5995 = vld [vmem:[#allocation17 + $0xcd8] sm:$0xff]
    %v5996 = vld [vmem:[#allocation17 + $0xce0] sm:$0xff]
    %v5997 = vld [vmem:[#allocation17 + $0xce8] sm:$0xff]
    %v5998 = vld [vmem:[#allocation17 + $0xcf0] sm:$0xff]
    %v5999 = vld [vmem:[#allocation17 + $0xcf8] sm:$0xff]
    %v6000 = vld [vmem:[#allocation17 + $0xd00] sm:$0xff]
    %v6001 = vld [vmem:[#allocation17 + $0xd08] sm:$0xff]
    %v6002 = vld [vmem:[#allocation17 + $0xd10] sm:$0xff]
    %v6003 = vld [vmem:[#allocation17 + $0xd18] sm:$0xff]
    %v6004 = vld [vmem:[#allocation17 + $0xd20] sm:$0xff]
    %v6005 = vld [vmem:[#allocation17 + $0xd28] sm:$0xff]
    %v6006 = vld [vmem:[#allocation17 + $0xd30] sm:$0xff]
    %v6007 = vld [vmem:[#allocation17 + $0xd38] sm:$0xff]
    %v6008 = vld [vmem:[#allocation17 + $0xd40] sm:$0xff]
    %v6009 = vld [vmem:[#allocation17 + $0xd48] sm:$0xff]
    %v6010 = vld [vmem:[#allocation17 + $0xd50] sm:$0xff]
    %v6011 = vld [vmem:[#allocation17 + $0xd58] sm:$0xff]
    %v6012 = vld [vmem:[#allocation17 + $0xd60] sm:$0xff]
    %v6013 = vld [vmem:[#allocation17 + $0xd68] sm:$0xff]
    %v6014 = vld [vmem:[#allocation17 + $0xd70] sm:$0xff]
    %v6015 = vld [vmem:[#allocation17 + $0xd78] sm:$0xff]
    %v6016 = vld [vmem:[#allocation17 + $0xd80] sm:$0xff]
    %v6017 = vld [vmem:[#allocation17 + $0xd88] sm:$0xff]
    %v6018 = vld [vmem:[#allocation17 + $0xd90] sm:$0xff]
    %v6019 = vld [vmem:[#allocation17 + $0xd98] sm:$0xff]
    %v6020 = vld [vmem:[#allocation17 + $0xda0] sm:$0xff]
    %v6021 = vld [vmem:[#allocation17 + $0xda8] sm:$0xff]
    %v6022 = vld [vmem:[#allocation17 + $0xdb0] sm:$0xff]
    %v6023 = vld [vmem:[#allocation17 + $0xdb8] sm:$0xff]
    %v6024 = vld [vmem:[#allocation17 + $0xdc0] sm:$0xff]
    %v6025 = vld [vmem:[#allocation17 + $0xdc8] sm:$0xff]
    %v6026 = vld [vmem:[#allocation17 + $0xdd0] sm:$0xff]
    %v6027 = vld [vmem:[#allocation17 + $0xdd8] sm:$0xff]
    %v6028 = vld [vmem:[#allocation17 + $0xde0] sm:$0xff]
    %v6029 = vld [vmem:[#allocation17 + $0xde8] sm:$0xff]
    %v6030 = vld [vmem:[#allocation17 + $0xdf0] sm:$0xff]
    %v6031 = vld [vmem:[#allocation17 + $0xdf8] sm:$0xff]
    %v6032 = vld [vmem:[#allocation17 + $0xe00] sm:$0xff]
    %v6033 = vld [vmem:[#allocation17 + $0xe08] sm:$0xff]
    %v6034 = vld [vmem:[#allocation17 + $0xe10] sm:$0xff]
    %v6035 = vld [vmem:[#allocation17 + $0xe18] sm:$0xff]
    %v6036 = vld [vmem:[#allocation17 + $0xe20] sm:$0xff]
    %v6037 = vld [vmem:[#allocation17 + $0xe28] sm:$0xff]
    %v6038 = vld [vmem:[#allocation17 + $0xe30] sm:$0xff]
    %v6039 = vld [vmem:[#allocation17 + $0xe38] sm:$0xff]
    %v6040 = vld [vmem:[#allocation17 + $0xe40] sm:$0xff]
    %v6041 = vld [vmem:[#allocation17 + $0xe48] sm:$0xff]
    %v6042 = vld [vmem:[#allocation17 + $0xe50] sm:$0xff]
    %v6043 = vld [vmem:[#allocation17 + $0xe58] sm:$0xff]
    %v6044 = vld [vmem:[#allocation17 + $0xe60] sm:$0xff]
    %v6045 = vld [vmem:[#allocation17 + $0xe68] sm:$0xff]
    %v6046 = vld [vmem:[#allocation17 + $0xe70] sm:$0xff]
    %v6047 = vld [vmem:[#allocation17 + $0xe78] sm:$0xff]
    %v6048 = vld [vmem:[#allocation17 + $0xe80] sm:$0xff]
    %v6049 = vld [vmem:[#allocation17 + $0xe88] sm:$0xff]
    %v6050 = vld [vmem:[#allocation17 + $0xe90] sm:$0xff]
    %v6051 = vld [vmem:[#allocation17 + $0xe98] sm:$0xff]
    %v6052 = vld [vmem:[#allocation17 + $0xea0] sm:$0xff]
    %v6053 = vld [vmem:[#allocation17 + $0xea8] sm:$0xff]
    %v6054 = vld [vmem:[#allocation17 + $0xeb0] sm:$0xff]
    %v6055 = vld [vmem:[#allocation17 + $0xeb8] sm:$0xff]
    %v6056 = vld [vmem:[#allocation17 + $0xec0] sm:$0xff]
    %v6057 = vld [vmem:[#allocation17 + $0xec8] sm:$0xff]
    %v6058 = vld [vmem:[#allocation17 + $0xed0] sm:$0xff]
    %v6059 = vld [vmem:[#allocation17 + $0xed8] sm:$0xff]
    %v6060 = vld [vmem:[#allocation17 + $0xee0] sm:$0xff]
    %v6061 = vld [vmem:[#allocation17 + $0xee8] sm:$0xff]
    %v6062 = vld [vmem:[#allocation17 + $0xef0] sm:$0xff]
    %v6063 = vld [vmem:[#allocation17 + $0xef8] sm:$0xff]
    %v6064 = vld [vmem:[#allocation17 + $0xf00] sm:$0xff]
    %v6065 = vld [vmem:[#allocation17 + $0xf08] sm:$0xff]
    %v6066 = vld [vmem:[#allocation17 + $0xf10] sm:$0xff]
    %v6067 = vld [vmem:[#allocation17 + $0xf18] sm:$0xff]
    %v6068 = vld [vmem:[#allocation17 + $0xf20] sm:$0xff]
    %v6069 = vld [vmem:[#allocation17 + $0xf28] sm:$0xff]
    %v6070 = vld [vmem:[#allocation17 + $0xf30] sm:$0xff]
    %v6071 = vld [vmem:[#allocation17 + $0xf38] sm:$0xff]
    %v6072 = vld [vmem:[#allocation17 + $0xf40] sm:$0xff]
    %v6073 = vld [vmem:[#allocation17 + $0xf48] sm:$0xff]
    %v6074 = vld [vmem:[#allocation17 + $0xf50] sm:$0xff]
    %v6075 = vld [vmem:[#allocation17 + $0xf58] sm:$0xff]
    %v6076 = vld [vmem:[#allocation17 + $0xf60] sm:$0xff]
    %v6077 = vld [vmem:[#allocation17 + $0xf68] sm:$0xff]
    %v6078 = vld [vmem:[#allocation17 + $0xf70] sm:$0xff]
    %v6079 = vld [vmem:[#allocation17 + $0xf78] sm:$0xff]
    %v6080 = vld [vmem:[#allocation17 + $0xf80] sm:$0xff]
    %v6081 = vld [vmem:[#allocation17 + $0xf88] sm:$0xff]
    %v6082 = vld [vmem:[#allocation17 + $0xf90] sm:$0xff]
    %v6083 = vld [vmem:[#allocation17 + $0xf98] sm:$0xff]
    %v6084 = vld [vmem:[#allocation17 + $0xfa0] sm:$0xff]
    %v6085 = vld [vmem:[#allocation17 + $0xfa8] sm:$0xff]
    %v6086 = vld [vmem:[#allocation17 + $0xfb0] sm:$0xff]
    %v6087 = vld [vmem:[#allocation17 + $0xfb8] sm:$0xff]
    %v6088 = vld [vmem:[#allocation17 + $0xfc0] sm:$0xff]
    %v6089 = vld [vmem:[#allocation17 + $0xfc8] sm:$0xff]
    %v6090 = vld [vmem:[#allocation17 + $0xfd0] sm:$0xff]
    %v6091 = vld [vmem:[#allocation17 + $0xfd8] sm:$0xff]
    %v6092 = vld [vmem:[#allocation17 + $0xfe0] sm:$0xff]
    %v6093 = vld [vmem:[#allocation17 + $0xfe8] sm:$0xff]
    %v6094 = vld [vmem:[#allocation17 + $0xff0] sm:$0xff]
    %v6095 = vld [vmem:[#allocation17 + $0xff8] sm:$0xff]
    %v6096 = vld [vmem:[#allocation19] sm:$0xff]
    %v6098 = vlaneseq
    %v6099 = vshrl.u32 %v6098, 7
    %v6100 = vsub.s32 0, %v6099
    %v6101 = vrot.slane %v6096, %v6100
    %v6102 = vlaneseq
    %v6103 = vshrl.u32 %v6102, 7
    %v6104 = vsub.s32 1, %v6103
    %v6105 = vrot.slane %v6096, %v6104
    %v6106 = vlaneseq
    %v6107 = vshrl.u32 %v6106, 7
    %v6108 = vsub.s32 2, %v6107
    %v6109 = vrot.slane %v6096, %v6108
    %v6110 = vlaneseq
    %v6111 = vshrl.u32 %v6110, 7
    %v6112 = vsub.s32 3, %v6111
    %v6113 = vrot.slane %v6096, %v6112
    %v6114 = vlaneseq
    %v6115 = vshrl.u32 %v6114, 7
    %v6116 = vsub.s32 4, %v6115
    %v6117 = vrot.slane %v6096, %v6116
    %v6118 = vlaneseq
    %v6119 = vshrl.u32 %v6118, 7
    %v6120 = vsub.s32 5, %v6119
    %v6121 = vrot.slane %v6096, %v6120
    %v6122 = vlaneseq
    %v6123 = vshrl.u32 %v6122, 7
    %v6124 = vsub.s32 6, %v6123
    %v6125 = vrot.slane %v6096, %v6124
    %v6126 = vlaneseq
    %v6127 = vshrl.u32 %v6126, 7
    %v6128 = vsub.s32 7, %v6127
    %v6129 = vrot.slane %v6096, %v6128
    %v6650 = vunpack.c.l.b16 %v5584
    %v6651 = vunpack.c.h.b16 %v5584
    %v6652 = vunpack.c.l.b16 %v5585
    %v6653 = vunpack.c.h.b16 %v5585
    %v6654 = vunpack.c.l.b16 %v5586
    %v6655 = vunpack.c.h.b16 %v5586
    %v6656 = vunpack.c.l.b16 %v5587
    %v6657 = vunpack.c.h.b16 %v5587
    %v6658 = vunpack.c.l.b16 %v5588
    %v6659 = vunpack.c.h.b16 %v5588
    %v6660 = vunpack.c.l.b16 %v5589
    %v6661 = vunpack.c.h.b16 %v5589
    %v6662 = vunpack.c.l.b16 %v5590
    %v6663 = vunpack.c.h.b16 %v5590
    %v6664 = vunpack.c.l.b16 %v5591
    %v6665 = vunpack.c.h.b16 %v5591
    %v6666 = vunpack.c.l.b16 %v5592
    %v6667 = vunpack.c.h.b16 %v5592
    %v6668 = vunpack.c.l.b16 %v5593
    %v6669 = vunpack.c.h.b16 %v5593
    %v6670 = vunpack.c.l.b16 %v5594
    %v6671 = vunpack.c.h.b16 %v5594
    %v6672 = vunpack.c.l.b16 %v5595
    %v6673 = vunpack.c.h.b16 %v5595
    %v6674 = vunpack.c.l.b16 %v5596
    %v6675 = vunpack.c.h.b16 %v5596
    %v6676 = vunpack.c.l.b16 %v5597
    %v6677 = vunpack.c.h.b16 %v5597
    %v6678 = vunpack.c.l.b16 %v5598
    %v6679 = vunpack.c.h.b16 %v5598
    %v6680 = vunpack.c.l.b16 %v5599
    %v6681 = vunpack.c.h.b16 %v5599
    %v6682 = vunpack.c.l.b16 %v5600
    %v6683 = vunpack.c.h.b16 %v5600
    %v6684 = vunpack.c.l.b16 %v5601
    %v6685 = vunpack.c.h.b16 %v5601
    %v6686 = vunpack.c.l.b16 %v5602
    %v6687 = vunpack.c.h.b16 %v5602
    %v6688 = vunpack.c.l.b16 %v5603
    %v6689 = vunpack.c.h.b16 %v5603
    %v6690 = vunpack.c.l.b16 %v5604
    %v6691 = vunpack.c.h.b16 %v5604
    %v6692 = vunpack.c.l.b16 %v5605
    %v6693 = vunpack.c.h.b16 %v5605
    %v6694 = vunpack.c.l.b16 %v5606
    %v6695 = vunpack.c.h.b16 %v5606
    %v6696 = vunpack.c.l.b16 %v5607
    %v6697 = vunpack.c.h.b16 %v5607
    %v6698 = vunpack.c.l.b16 %v5608
    %v6699 = vunpack.c.h.b16 %v5608
    %v6700 = vunpack.c.l.b16 %v5609
    %v6701 = vunpack.c.h.b16 %v5609
    %v6702 = vunpack.c.l.b16 %v5610
    %v6703 = vunpack.c.h.b16 %v5610
    %v6704 = vunpack.c.l.b16 %v5611
    %v6705 = vunpack.c.h.b16 %v5611
    %v6706 = vunpack.c.l.b16 %v5612
    %v6707 = vunpack.c.h.b16 %v5612
    %v6708 = vunpack.c.l.b16 %v5613
    %v6709 = vunpack.c.h.b16 %v5613
    %v6710 = vunpack.c.l.b16 %v5614
    %v6711 = vunpack.c.h.b16 %v5614
    %v6712 = vunpack.c.l.b16 %v5615
    %v6713 = vunpack.c.h.b16 %v5615
    %v6714 = vunpack.c.l.b16 %v5616
    %v6715 = vunpack.c.h.b16 %v5616
    %v6716 = vunpack.c.l.b16 %v5617
    %v6717 = vunpack.c.h.b16 %v5617
    %v6718 = vunpack.c.l.b16 %v5618
    %v6719 = vunpack.c.h.b16 %v5618
    %v6720 = vunpack.c.l.b16 %v5619
    %v6721 = vunpack.c.h.b16 %v5619
    %v6722 = vunpack.c.l.b16 %v5620
    %v6723 = vunpack.c.h.b16 %v5620
    %v6724 = vunpack.c.l.b16 %v5621
    %v6725 = vunpack.c.h.b16 %v5621
    %v6726 = vunpack.c.l.b16 %v5622
    %v6727 = vunpack.c.h.b16 %v5622
    %v6728 = vunpack.c.l.b16 %v5623
    %v6729 = vunpack.c.h.b16 %v5623
    %v6730 = vunpack.c.l.b16 %v5624
    %v6731 = vunpack.c.h.b16 %v5624
    %v6732 = vunpack.c.l.b16 %v5625
    %v6733 = vunpack.c.h.b16 %v5625
    %v6734 = vunpack.c.l.b16 %v5626
    %v6735 = vunpack.c.h.b16 %v5626
    %v6736 = vunpack.c.l.b16 %v5627
    %v6737 = vunpack.c.h.b16 %v5627
    %v6738 = vunpack.c.l.b16 %v5628
    %v6739 = vunpack.c.h.b16 %v5628
    %v6740 = vunpack.c.l.b16 %v5629
    %v6741 = vunpack.c.h.b16 %v5629
    %v6742 = vunpack.c.l.b16 %v5630
    %v6743 = vunpack.c.h.b16 %v5630
    %v6744 = vunpack.c.l.b16 %v5631
    %v6745 = vunpack.c.h.b16 %v5631
    %v6746 = vunpack.c.l.b16 %v5632
    %v6747 = vunpack.c.h.b16 %v5632
    %v6748 = vunpack.c.l.b16 %v5633
    %v6749 = vunpack.c.h.b16 %v5633
    %v6750 = vunpack.c.l.b16 %v5634
    %v6751 = vunpack.c.h.b16 %v5634
    %v6752 = vunpack.c.l.b16 %v5635
    %v6753 = vunpack.c.h.b16 %v5635
    %v6754 = vunpack.c.l.b16 %v5636
    %v6755 = vunpack.c.h.b16 %v5636
    %v6756 = vunpack.c.l.b16 %v5637
    %v6757 = vunpack.c.h.b16 %v5637
    %v6758 = vunpack.c.l.b16 %v5638
    %v6759 = vunpack.c.h.b16 %v5638
    %v6760 = vunpack.c.l.b16 %v5639
    %v6761 = vunpack.c.h.b16 %v5639
    %v6762 = vunpack.c.l.b16 %v5640
    %v6763 = vunpack.c.h.b16 %v5640
    %v6764 = vunpack.c.l.b16 %v5641
    %v6765 = vunpack.c.h.b16 %v5641
    %v6766 = vunpack.c.l.b16 %v5642
    %v6767 = vunpack.c.h.b16 %v5642
    %v6768 = vunpack.c.l.b16 %v5643
    %v6769 = vunpack.c.h.b16 %v5643
    %v6770 = vunpack.c.l.b16 %v5644
    %v6771 = vunpack.c.h.b16 %v5644
    %v6772 = vunpack.c.l.b16 %v5645
    %v6773 = vunpack.c.h.b16 %v5645
    %v6774 = vunpack.c.l.b16 %v5646
    %v6775 = vunpack.c.h.b16 %v5646
    %v6776 = vunpack.c.l.b16 %v5647
    %v6777 = vunpack.c.h.b16 %v5647
    %v6778 = vunpack.c.l.b16 %v5648
    %v6779 = vunpack.c.h.b16 %v5648
    %v6780 = vunpack.c.l.b16 %v5649
    %v6781 = vunpack.c.h.b16 %v5649
    %v6782 = vunpack.c.l.b16 %v5650
    %v6783 = vunpack.c.h.b16 %v5650
    %v6784 = vunpack.c.l.b16 %v5651
    %v6785 = vunpack.c.h.b16 %v5651
    %v6786 = vunpack.c.l.b16 %v5652
    %v6787 = vunpack.c.h.b16 %v5652
    %v6788 = vunpack.c.l.b16 %v5653
    %v6789 = vunpack.c.h.b16 %v5653
    %v6790 = vunpack.c.l.b16 %v5654
    %v6791 = vunpack.c.h.b16 %v5654
    %v6792 = vunpack.c.l.b16 %v5655
    %v6793 = vunpack.c.h.b16 %v5655
    %v6794 = vunpack.c.l.b16 %v5656
    %v6795 = vunpack.c.h.b16 %v5656
    %v6796 = vunpack.c.l.b16 %v5657
    %v6797 = vunpack.c.h.b16 %v5657
    %v6798 = vunpack.c.l.b16 %v5658
    %v6799 = vunpack.c.h.b16 %v5658
    %v6800 = vunpack.c.l.b16 %v5659
    %v6801 = vunpack.c.h.b16 %v5659
    %v6802 = vunpack.c.l.b16 %v5660
    %v6803 = vunpack.c.h.b16 %v5660
    %v6804 = vunpack.c.l.b16 %v5661
    %v6805 = vunpack.c.h.b16 %v5661
    %v6806 = vunpack.c.l.b16 %v5662
    %v6807 = vunpack.c.h.b16 %v5662
    %v6808 = vunpack.c.l.b16 %v5663
    %v6809 = vunpack.c.h.b16 %v5663
    %v6810 = vunpack.c.l.b16 %v5664
    %v6811 = vunpack.c.h.b16 %v5664
    %v6812 = vunpack.c.l.b16 %v5665
    %v6813 = vunpack.c.h.b16 %v5665
    %v6814 = vunpack.c.l.b16 %v5666
    %v6815 = vunpack.c.h.b16 %v5666
    %v6816 = vunpack.c.l.b16 %v5667
    %v6817 = vunpack.c.h.b16 %v5667
    %v6818 = vunpack.c.l.b16 %v5668
    %v6819 = vunpack.c.h.b16 %v5668
    %v6820 = vunpack.c.l.b16 %v5669
    %v6821 = vunpack.c.h.b16 %v5669
    %v6822 = vunpack.c.l.b16 %v5670
    %v6823 = vunpack.c.h.b16 %v5670
    %v6824 = vunpack.c.l.b16 %v5671
    %v6825 = vunpack.c.h.b16 %v5671
    %v6826 = vunpack.c.l.b16 %v5672
    %v6827 = vunpack.c.h.b16 %v5672
    %v6828 = vunpack.c.l.b16 %v5673
    %v6829 = vunpack.c.h.b16 %v5673
    %v6830 = vunpack.c.l.b16 %v5674
    %v6831 = vunpack.c.h.b16 %v5674
    %v6832 = vunpack.c.l.b16 %v5675
    %v6833 = vunpack.c.h.b16 %v5675
    %v6834 = vunpack.c.l.b16 %v5676
    %v6835 = vunpack.c.h.b16 %v5676
    %v6836 = vunpack.c.l.b16 %v5677
    %v6837 = vunpack.c.h.b16 %v5677
    %v6838 = vunpack.c.l.b16 %v5678
    %v6839 = vunpack.c.h.b16 %v5678
    %v6840 = vunpack.c.l.b16 %v5679
    %v6841 = vunpack.c.h.b16 %v5679
    %v6842 = vunpack.c.l.b16 %v5680
    %v6843 = vunpack.c.h.b16 %v5680
    %v6844 = vunpack.c.l.b16 %v5681
    %v6845 = vunpack.c.h.b16 %v5681
    %v6846 = vunpack.c.l.b16 %v5682
    %v6847 = vunpack.c.h.b16 %v5682
    %v6848 = vunpack.c.l.b16 %v5683
    %v6849 = vunpack.c.h.b16 %v5683
    %v6850 = vunpack.c.l.b16 %v5684
    %v6851 = vunpack.c.h.b16 %v5684
    %v6852 = vunpack.c.l.b16 %v5685
    %v6853 = vunpack.c.h.b16 %v5685
    %v6854 = vunpack.c.l.b16 %v5686
    %v6855 = vunpack.c.h.b16 %v5686
    %v6856 = vunpack.c.l.b16 %v5687
    %v6857 = vunpack.c.h.b16 %v5687
    %v6858 = vunpack.c.l.b16 %v5688
    %v6859 = vunpack.c.h.b16 %v5688
    %v6860 = vunpack.c.l.b16 %v5689
    %v6861 = vunpack.c.h.b16 %v5689
    %v6862 = vunpack.c.l.b16 %v5690
    %v6863 = vunpack.c.h.b16 %v5690
    %v6864 = vunpack.c.l.b16 %v5691
    %v6865 = vunpack.c.h.b16 %v5691
    %v6866 = vunpack.c.l.b16 %v5692
    %v6867 = vunpack.c.h.b16 %v5692
    %v6868 = vunpack.c.l.b16 %v5693
    %v6869 = vunpack.c.h.b16 %v5693
    %v6870 = vunpack.c.l.b16 %v5694
    %v6871 = vunpack.c.h.b16 %v5694
    %v6872 = vunpack.c.l.b16 %v5695
    %v6873 = vunpack.c.h.b16 %v5695
    %v6874 = vunpack.c.l.b16 %v5696
    %v6875 = vunpack.c.h.b16 %v5696
    %v6876 = vunpack.c.l.b16 %v5697
    %v6877 = vunpack.c.h.b16 %v5697
    %v6878 = vunpack.c.l.b16 %v5698
    %v6879 = vunpack.c.h.b16 %v5698
    %v6880 = vunpack.c.l.b16 %v5699
    %v6881 = vunpack.c.h.b16 %v5699
    %v6882 = vunpack.c.l.b16 %v5700
    %v6883 = vunpack.c.h.b16 %v5700
    %v6884 = vunpack.c.l.b16 %v5701
    %v6885 = vunpack.c.h.b16 %v5701
    %v6886 = vunpack.c.l.b16 %v5702
    %v6887 = vunpack.c.h.b16 %v5702
    %v6888 = vunpack.c.l.b16 %v5703
    %v6889 = vunpack.c.h.b16 %v5703
    %v6890 = vunpack.c.l.b16 %v5704
    %v6891 = vunpack.c.h.b16 %v5704
    %v6892 = vunpack.c.l.b16 %v5705
    %v6893 = vunpack.c.h.b16 %v5705
    %v6894 = vunpack.c.l.b16 %v5706
    %v6895 = vunpack.c.h.b16 %v5706
    %v6896 = vunpack.c.l.b16 %v5707
    %v6897 = vunpack.c.h.b16 %v5707
    %v6898 = vunpack.c.l.b16 %v5708
    %v6899 = vunpack.c.h.b16 %v5708
    %v6900 = vunpack.c.l.b16 %v5709
    %v6901 = vunpack.c.h.b16 %v5709
    %v6902 = vunpack.c.l.b16 %v5710
    %v6903 = vunpack.c.h.b16 %v5710
    %v6904 = vunpack.c.l.b16 %v5711
    %v6905 = vunpack.c.h.b16 %v5711
    %v6906 = vunpack.c.l.b16 %v5712
    %v6907 = vunpack.c.h.b16 %v5712
    %v6908 = vunpack.c.l.b16 %v5713
    %v6909 = vunpack.c.h.b16 %v5713
    %v6910 = vunpack.c.l.b16 %v5714
    %v6911 = vunpack.c.h.b16 %v5714
    %v6912 = vunpack.c.l.b16 %v5715
    %v6913 = vunpack.c.h.b16 %v5715
    %v6914 = vunpack.c.l.b16 %v5716
    %v6915 = vunpack.c.h.b16 %v5716
    %v6916 = vunpack.c.l.b16 %v5717
    %v6917 = vunpack.c.h.b16 %v5717
    %v6918 = vunpack.c.l.b16 %v5718
    %v6919 = vunpack.c.h.b16 %v5718
    %v6920 = vunpack.c.l.b16 %v5719
    %v6921 = vunpack.c.h.b16 %v5719
    %v6922 = vunpack.c.l.b16 %v5720
    %v6923 = vunpack.c.h.b16 %v5720
    %v6924 = vunpack.c.l.b16 %v5721
    %v6925 = vunpack.c.h.b16 %v5721
    %v6926 = vunpack.c.l.b16 %v5722
    %v6927 = vunpack.c.h.b16 %v5722
    %v6928 = vunpack.c.l.b16 %v5723
    %v6929 = vunpack.c.h.b16 %v5723
    %v6930 = vunpack.c.l.b16 %v5724
    %v6931 = vunpack.c.h.b16 %v5724
    %v6932 = vunpack.c.l.b16 %v5725
    %v6933 = vunpack.c.h.b16 %v5725
    %v6934 = vunpack.c.l.b16 %v5726
    %v6935 = vunpack.c.h.b16 %v5726
    %v6936 = vunpack.c.l.b16 %v5727
    %v6937 = vunpack.c.h.b16 %v5727
    %v6938 = vunpack.c.l.b16 %v5728
    %v6939 = vunpack.c.h.b16 %v5728
    %v6940 = vunpack.c.l.b16 %v5729
    %v6941 = vunpack.c.h.b16 %v5729
    %v6942 = vunpack.c.l.b16 %v5730
    %v6943 = vunpack.c.h.b16 %v5730
    %v6944 = vunpack.c.l.b16 %v5731
    %v6945 = vunpack.c.h.b16 %v5731
    %v6946 = vunpack.c.l.b16 %v5732
    %v6947 = vunpack.c.h.b16 %v5732
    %v6948 = vunpack.c.l.b16 %v5733
    %v6949 = vunpack.c.h.b16 %v5733
    %v6950 = vunpack.c.l.b16 %v5734
    %v6951 = vunpack.c.h.b16 %v5734
    %v6952 = vunpack.c.l.b16 %v5735
    %v6953 = vunpack.c.h.b16 %v5735
    %v6954 = vunpack.c.l.b16 %v5736
    %v6955 = vunpack.c.h.b16 %v5736
    %v6956 = vunpack.c.l.b16 %v5737
    %v6957 = vunpack.c.h.b16 %v5737
    %v6958 = vunpack.c.l.b16 %v5738
    %v6959 = vunpack.c.h.b16 %v5738
    %v6960 = vunpack.c.l.b16 %v5739
    %v6961 = vunpack.c.h.b16 %v5739
    %v6962 = vunpack.c.l.b16 %v5740
    %v6963 = vunpack.c.h.b16 %v5740
    %v6964 = vunpack.c.l.b16 %v5741
    %v6965 = vunpack.c.h.b16 %v5741
    %v6966 = vunpack.c.l.b16 %v5742
    %v6967 = vunpack.c.h.b16 %v5742
    %v6968 = vunpack.c.l.b16 %v5743
    %v6969 = vunpack.c.h.b16 %v5743
    %v6970 = vunpack.c.l.b16 %v5744
    %v6971 = vunpack.c.h.b16 %v5744
    %v6972 = vunpack.c.l.b16 %v5745
    %v6973 = vunpack.c.h.b16 %v5745
    %v6974 = vunpack.c.l.b16 %v5746
    %v6975 = vunpack.c.h.b16 %v5746
    %v6976 = vunpack.c.l.b16 %v5747
    %v6977 = vunpack.c.h.b16 %v5747
    %v6978 = vunpack.c.l.b16 %v5748
    %v6979 = vunpack.c.h.b16 %v5748
    %v6980 = vunpack.c.l.b16 %v5749
    %v6981 = vunpack.c.h.b16 %v5749
    %v6982 = vunpack.c.l.b16 %v5750
    %v6983 = vunpack.c.h.b16 %v5750
    %v6984 = vunpack.c.l.b16 %v5751
    %v6985 = vunpack.c.h.b16 %v5751
    %v6986 = vunpack.c.l.b16 %v5752
    %v6987 = vunpack.c.h.b16 %v5752
    %v6988 = vunpack.c.l.b16 %v5753
    %v6989 = vunpack.c.h.b16 %v5753
    %v6990 = vunpack.c.l.b16 %v5754
    %v6991 = vunpack.c.h.b16 %v5754
    %v6992 = vunpack.c.l.b16 %v5755
    %v6993 = vunpack.c.h.b16 %v5755
    %v6994 = vunpack.c.l.b16 %v5756
    %v6995 = vunpack.c.h.b16 %v5756
    %v6996 = vunpack.c.l.b16 %v5757
    %v6997 = vunpack.c.h.b16 %v5757
    %v6998 = vunpack.c.l.b16 %v5758
    %v6999 = vunpack.c.h.b16 %v5758
    %v7000 = vunpack.c.l.b16 %v5759
    %v7001 = vunpack.c.h.b16 %v5759
    %v7002 = vunpack.c.l.b16 %v5760
    %v7003 = vunpack.c.h.b16 %v5760
    %v7004 = vunpack.c.l.b16 %v5761
    %v7005 = vunpack.c.h.b16 %v5761
    %v7006 = vunpack.c.l.b16 %v5762
    %v7007 = vunpack.c.h.b16 %v5762
    %v7008 = vunpack.c.l.b16 %v5763
    %v7009 = vunpack.c.h.b16 %v5763
    %v7010 = vunpack.c.l.b16 %v5764
    %v7011 = vunpack.c.h.b16 %v5764
    %v7012 = vunpack.c.l.b16 %v5765
    %v7013 = vunpack.c.h.b16 %v5765
    %v7014 = vunpack.c.l.b16 %v5766
    %v7015 = vunpack.c.h.b16 %v5766
    %v7016 = vunpack.c.l.b16 %v5767
    %v7017 = vunpack.c.h.b16 %v5767
    %v7018 = vunpack.c.l.b16 %v5768
    %v7019 = vunpack.c.h.b16 %v5768
    %v7020 = vunpack.c.l.b16 %v5769
    %v7021 = vunpack.c.h.b16 %v5769
    %v7022 = vunpack.c.l.b16 %v5770
    %v7023 = vunpack.c.h.b16 %v5770
    %v7024 = vunpack.c.l.b16 %v5771
    %v7025 = vunpack.c.h.b16 %v5771
    %v7026 = vunpack.c.l.b16 %v5772
    %v7027 = vunpack.c.h.b16 %v5772
    %v7028 = vunpack.c.l.b16 %v5773
    %v7029 = vunpack.c.h.b16 %v5773
    %v7030 = vunpack.c.l.b16 %v5774
    %v7031 = vunpack.c.h.b16 %v5774
    %v7032 = vunpack.c.l.b16 %v5775
    %v7033 = vunpack.c.h.b16 %v5775
    %v7034 = vunpack.c.l.b16 %v5776
    %v7035 = vunpack.c.h.b16 %v5776
    %v7036 = vunpack.c.l.b16 %v5777
    %v7037 = vunpack.c.h.b16 %v5777
    %v7038 = vunpack.c.l.b16 %v5778
    %v7039 = vunpack.c.h.b16 %v5778
    %v7040 = vunpack.c.l.b16 %v5779
    %v7041 = vunpack.c.h.b16 %v5779
    %v7042 = vunpack.c.l.b16 %v5780
    %v7043 = vunpack.c.h.b16 %v5780
    %v7044 = vunpack.c.l.b16 %v5781
    %v7045 = vunpack.c.h.b16 %v5781
    %v7046 = vunpack.c.l.b16 %v5782
    %v7047 = vunpack.c.h.b16 %v5782
    %v7048 = vunpack.c.l.b16 %v5783
    %v7049 = vunpack.c.h.b16 %v5783
    %v7050 = vunpack.c.l.b16 %v5784
    %v7051 = vunpack.c.h.b16 %v5784
    %v7052 = vunpack.c.l.b16 %v5785
    %v7053 = vunpack.c.h.b16 %v5785
    %v7054 = vunpack.c.l.b16 %v5786
    %v7055 = vunpack.c.h.b16 %v5786
    %v7056 = vunpack.c.l.b16 %v5787
    %v7057 = vunpack.c.h.b16 %v5787
    %v7058 = vunpack.c.l.b16 %v5788
    %v7059 = vunpack.c.h.b16 %v5788
    %v7060 = vunpack.c.l.b16 %v5789
    %v7061 = vunpack.c.h.b16 %v5789
    %v7062 = vunpack.c.l.b16 %v5790
    %v7063 = vunpack.c.h.b16 %v5790
    %v7064 = vunpack.c.l.b16 %v5791
    %v7065 = vunpack.c.h.b16 %v5791
    %v7066 = vunpack.c.l.b16 %v5792
    %v7067 = vunpack.c.h.b16 %v5792
    %v7068 = vunpack.c.l.b16 %v5793
    %v7069 = vunpack.c.h.b16 %v5793
    %v7070 = vunpack.c.l.b16 %v5794
    %v7071 = vunpack.c.h.b16 %v5794
    %v7072 = vunpack.c.l.b16 %v5795
    %v7073 = vunpack.c.h.b16 %v5795
    %v7074 = vunpack.c.l.b16 %v5796
    %v7075 = vunpack.c.h.b16 %v5796
    %v7076 = vunpack.c.l.b16 %v5797
    %v7077 = vunpack.c.h.b16 %v5797
    %v7078 = vunpack.c.l.b16 %v5798
    %v7079 = vunpack.c.h.b16 %v5798
    %v7080 = vunpack.c.l.b16 %v5799
    %v7081 = vunpack.c.h.b16 %v5799
    %v7082 = vunpack.c.l.b16 %v5800
    %v7083 = vunpack.c.h.b16 %v5800
    %v7084 = vunpack.c.l.b16 %v5801
    %v7085 = vunpack.c.h.b16 %v5801
    %v7086 = vunpack.c.l.b16 %v5802
    %v7087 = vunpack.c.h.b16 %v5802
    %v7088 = vunpack.c.l.b16 %v5803
    %v7089 = vunpack.c.h.b16 %v5803
    %v7090 = vunpack.c.l.b16 %v5804
    %v7091 = vunpack.c.h.b16 %v5804
    %v7092 = vunpack.c.l.b16 %v5805
    %v7093 = vunpack.c.h.b16 %v5805
    %v7094 = vunpack.c.l.b16 %v5806
    %v7095 = vunpack.c.h.b16 %v5806
    %v7096 = vunpack.c.l.b16 %v5807
    %v7097 = vunpack.c.h.b16 %v5807
    %v7098 = vunpack.c.l.b16 %v5808
    %v7099 = vunpack.c.h.b16 %v5808
    %v7100 = vunpack.c.l.b16 %v5809
    %v7101 = vunpack.c.h.b16 %v5809
    %v7102 = vunpack.c.l.b16 %v5810
    %v7103 = vunpack.c.h.b16 %v5810
    %v7104 = vunpack.c.l.b16 %v5811
    %v7105 = vunpack.c.h.b16 %v5811
    %v7106 = vunpack.c.l.b16 %v5812
    %v7107 = vunpack.c.h.b16 %v5812
    %v7108 = vunpack.c.l.b16 %v5813
    %v7109 = vunpack.c.h.b16 %v5813
    %v7110 = vunpack.c.l.b16 %v5814
    %v7111 = vunpack.c.h.b16 %v5814
    %v7112 = vunpack.c.l.b16 %v5815
    %v7113 = vunpack.c.h.b16 %v5815
    %v7114 = vunpack.c.l.b16 %v5816
    %v7115 = vunpack.c.h.b16 %v5816
    %v7116 = vunpack.c.l.b16 %v5817
    %v7117 = vunpack.c.h.b16 %v5817
    %v7118 = vunpack.c.l.b16 %v5818
    %v7119 = vunpack.c.h.b16 %v5818
    %v7120 = vunpack.c.l.b16 %v5819
    %v7121 = vunpack.c.h.b16 %v5819
    %v7122 = vunpack.c.l.b16 %v5820
    %v7123 = vunpack.c.h.b16 %v5820
    %v7124 = vunpack.c.l.b16 %v5821
    %v7125 = vunpack.c.h.b16 %v5821
    %v7126 = vunpack.c.l.b16 %v5822
    %v7127 = vunpack.c.h.b16 %v5822
    %v7128 = vunpack.c.l.b16 %v5823
    %v7129 = vunpack.c.h.b16 %v5823
    %v7130 = vunpack.c.l.b16 %v5824
    %v7131 = vunpack.c.h.b16 %v5824
    %v7132 = vunpack.c.l.b16 %v5825
    %v7133 = vunpack.c.h.b16 %v5825
    %v7134 = vunpack.c.l.b16 %v5826
    %v7135 = vunpack.c.h.b16 %v5826
    %v7136 = vunpack.c.l.b16 %v5827
    %v7137 = vunpack.c.h.b16 %v5827
    %v7138 = vunpack.c.l.b16 %v5828
    %v7139 = vunpack.c.h.b16 %v5828
    %v7140 = vunpack.c.l.b16 %v5829
    %v7141 = vunpack.c.h.b16 %v5829
    %v7142 = vunpack.c.l.b16 %v5830
    %v7143 = vunpack.c.h.b16 %v5830
    %v7144 = vunpack.c.l.b16 %v5831
    %v7145 = vunpack.c.h.b16 %v5831
    %v7146 = vunpack.c.l.b16 %v5832
    %v7147 = vunpack.c.h.b16 %v5832
    %v7148 = vunpack.c.l.b16 %v5833
    %v7149 = vunpack.c.h.b16 %v5833
    %v7150 = vunpack.c.l.b16 %v5834
    %v7151 = vunpack.c.h.b16 %v5834
    %v7152 = vunpack.c.l.b16 %v5835
    %v7153 = vunpack.c.h.b16 %v5835
    %v7154 = vunpack.c.l.b16 %v5836
    %v7155 = vunpack.c.h.b16 %v5836
    %v7156 = vunpack.c.l.b16 %v5837
    %v7157 = vunpack.c.h.b16 %v5837
    %v7158 = vunpack.c.l.b16 %v5838
    %v7159 = vunpack.c.h.b16 %v5838
    %v7160 = vunpack.c.l.b16 %v5839
    %v7161 = vunpack.c.h.b16 %v5839
    %v7162 = vunpack.c.l.b16 %v5840
    %v7163 = vunpack.c.h.b16 %v5840
    %v7164 = vunpack.c.l.b16 %v5841
    %v7165 = vunpack.c.h.b16 %v5841
    %v7166 = vunpack.c.l.b16 %v5842
    %v7167 = vunpack.c.h.b16 %v5842
    %v7168 = vunpack.c.l.b16 %v5843
    %v7169 = vunpack.c.h.b16 %v5843
    %v7170 = vunpack.c.l.b16 %v5844
    %v7171 = vunpack.c.h.b16 %v5844
    %v7172 = vunpack.c.l.b16 %v5845
    %v7173 = vunpack.c.h.b16 %v5845
    %v7174 = vunpack.c.l.b16 %v5846
    %v7175 = vunpack.c.h.b16 %v5846
    %v7176 = vunpack.c.l.b16 %v5847
    %v7177 = vunpack.c.h.b16 %v5847
    %v7178 = vunpack.c.l.b16 %v5848
    %v7179 = vunpack.c.h.b16 %v5848
    %v7180 = vunpack.c.l.b16 %v5849
    %v7181 = vunpack.c.h.b16 %v5849
    %v7182 = vunpack.c.l.b16 %v5850
    %v7183 = vunpack.c.h.b16 %v5850
    %v7184 = vunpack.c.l.b16 %v5851
    %v7185 = vunpack.c.h.b16 %v5851
    %v7186 = vunpack.c.l.b16 %v5852
    %v7187 = vunpack.c.h.b16 %v5852
    %v7188 = vunpack.c.l.b16 %v5853
    %v7189 = vunpack.c.h.b16 %v5853
    %v7190 = vunpack.c.l.b16 %v5854
    %v7191 = vunpack.c.h.b16 %v5854
    %v7192 = vunpack.c.l.b16 %v5855
    %v7193 = vunpack.c.h.b16 %v5855
    %v7194 = vunpack.c.l.b16 %v5856
    %v7195 = vunpack.c.h.b16 %v5856
    %v7196 = vunpack.c.l.b16 %v5857
    %v7197 = vunpack.c.h.b16 %v5857
    %v7198 = vunpack.c.l.b16 %v5858
    %v7199 = vunpack.c.h.b16 %v5858
    %v7200 = vunpack.c.l.b16 %v5859
    %v7201 = vunpack.c.h.b16 %v5859
    %v7202 = vunpack.c.l.b16 %v5860
    %v7203 = vunpack.c.h.b16 %v5860
    %v7204 = vunpack.c.l.b16 %v5861
    %v7205 = vunpack.c.h.b16 %v5861
    %v7206 = vunpack.c.l.b16 %v5862
    %v7207 = vunpack.c.h.b16 %v5862
    %v7208 = vunpack.c.l.b16 %v5863
    %v7209 = vunpack.c.h.b16 %v5863
    %v7210 = vunpack.c.l.b16 %v5864
    %v7211 = vunpack.c.h.b16 %v5864
    %v7212 = vunpack.c.l.b16 %v5865
    %v7213 = vunpack.c.h.b16 %v5865
    %v7214 = vunpack.c.l.b16 %v5866
    %v7215 = vunpack.c.h.b16 %v5866
    %v7216 = vunpack.c.l.b16 %v5867
    %v7217 = vunpack.c.h.b16 %v5867
    %v7218 = vunpack.c.l.b16 %v5868
    %v7219 = vunpack.c.h.b16 %v5868
    %v7220 = vunpack.c.l.b16 %v5869
    %v7221 = vunpack.c.h.b16 %v5869
    %v7222 = vunpack.c.l.b16 %v5870
    %v7223 = vunpack.c.h.b16 %v5870
    %v7224 = vunpack.c.l.b16 %v5871
    %v7225 = vunpack.c.h.b16 %v5871
    %v7226 = vunpack.c.l.b16 %v5872
    %v7227 = vunpack.c.h.b16 %v5872
    %v7228 = vunpack.c.l.b16 %v5873
    %v7229 = vunpack.c.h.b16 %v5873
    %v7230 = vunpack.c.l.b16 %v5874
    %v7231 = vunpack.c.h.b16 %v5874
    %v7232 = vunpack.c.l.b16 %v5875
    %v7233 = vunpack.c.h.b16 %v5875
    %v7234 = vunpack.c.l.b16 %v5876
    %v7235 = vunpack.c.h.b16 %v5876
    %v7236 = vunpack.c.l.b16 %v5877
    %v7237 = vunpack.c.h.b16 %v5877
    %v7238 = vunpack.c.l.b16 %v5878
    %v7239 = vunpack.c.h.b16 %v5878
    %v7240 = vunpack.c.l.b16 %v5879
    %v7241 = vunpack.c.h.b16 %v5879
    %v7242 = vunpack.c.l.b16 %v5880
    %v7243 = vunpack.c.h.b16 %v5880
    %v7244 = vunpack.c.l.b16 %v5881
    %v7245 = vunpack.c.h.b16 %v5881
    %v7246 = vunpack.c.l.b16 %v5882
    %v7247 = vunpack.c.h.b16 %v5882
    %v7248 = vunpack.c.l.b16 %v5883
    %v7249 = vunpack.c.h.b16 %v5883
    %v7250 = vunpack.c.l.b16 %v5884
    %v7251 = vunpack.c.h.b16 %v5884
    %v7252 = vunpack.c.l.b16 %v5885
    %v7253 = vunpack.c.h.b16 %v5885
    %v7254 = vunpack.c.l.b16 %v5886
    %v7255 = vunpack.c.h.b16 %v5886
    %v7256 = vunpack.c.l.b16 %v5887
    %v7257 = vunpack.c.h.b16 %v5887
    %v7258 = vunpack.c.l.b16 %v5888
    %v7259 = vunpack.c.h.b16 %v5888
    %v7260 = vunpack.c.l.b16 %v5889
    %v7261 = vunpack.c.h.b16 %v5889
    %v7262 = vunpack.c.l.b16 %v5890
    %v7263 = vunpack.c.h.b16 %v5890
    %v7264 = vunpack.c.l.b16 %v5891
    %v7265 = vunpack.c.h.b16 %v5891
    %v7266 = vunpack.c.l.b16 %v5892
    %v7267 = vunpack.c.h.b16 %v5892
    %v7268 = vunpack.c.l.b16 %v5893
    %v7269 = vunpack.c.h.b16 %v5893
    %v7270 = vunpack.c.l.b16 %v5894
    %v7271 = vunpack.c.h.b16 %v5894
    %v7272 = vunpack.c.l.b16 %v5895
    %v7273 = vunpack.c.h.b16 %v5895
    %v7274 = vunpack.c.l.b16 %v5896
    %v7275 = vunpack.c.h.b16 %v5896
    %v7276 = vunpack.c.l.b16 %v5897
    %v7277 = vunpack.c.h.b16 %v5897
    %v7278 = vunpack.c.l.b16 %v5898
    %v7279 = vunpack.c.h.b16 %v5898
    %v7280 = vunpack.c.l.b16 %v5899
    %v7281 = vunpack.c.h.b16 %v5899
    %v7282 = vunpack.c.l.b16 %v5900
    %v7283 = vunpack.c.h.b16 %v5900
    %v7284 = vunpack.c.l.b16 %v5901
    %v7285 = vunpack.c.h.b16 %v5901
    %v7286 = vunpack.c.l.b16 %v5902
    %v7287 = vunpack.c.h.b16 %v5902
    %v7288 = vunpack.c.l.b16 %v5903
    %v7289 = vunpack.c.h.b16 %v5903
    %v7290 = vunpack.c.l.b16 %v5904
    %v7291 = vunpack.c.h.b16 %v5904
    %v7292 = vunpack.c.l.b16 %v5905
    %v7293 = vunpack.c.h.b16 %v5905
    %v7294 = vunpack.c.l.b16 %v5906
    %v7295 = vunpack.c.h.b16 %v5906
    %v7296 = vunpack.c.l.b16 %v5907
    %v7297 = vunpack.c.h.b16 %v5907
    %v7298 = vunpack.c.l.b16 %v5908
    %v7299 = vunpack.c.h.b16 %v5908
    %v7300 = vunpack.c.l.b16 %v5909
    %v7301 = vunpack.c.h.b16 %v5909
    %v7302 = vunpack.c.l.b16 %v5910
    %v7303 = vunpack.c.h.b16 %v5910
    %v7304 = vunpack.c.l.b16 %v5911
    %v7305 = vunpack.c.h.b16 %v5911
    %v7306 = vunpack.c.l.b16 %v5912
    %v7307 = vunpack.c.h.b16 %v5912
    %v7308 = vunpack.c.l.b16 %v5913
    %v7309 = vunpack.c.h.b16 %v5913
    %v7310 = vunpack.c.l.b16 %v5914
    %v7311 = vunpack.c.h.b16 %v5914
    %v7312 = vunpack.c.l.b16 %v5915
    %v7313 = vunpack.c.h.b16 %v5915
    %v7314 = vunpack.c.l.b16 %v5916
    %v7315 = vunpack.c.h.b16 %v5916
    %v7316 = vunpack.c.l.b16 %v5917
    %v7317 = vunpack.c.h.b16 %v5917
    %v7318 = vunpack.c.l.b16 %v5918
    %v7319 = vunpack.c.h.b16 %v5918
    %v7320 = vunpack.c.l.b16 %v5919
    %v7321 = vunpack.c.h.b16 %v5919
    %v7322 = vunpack.c.l.b16 %v5920
    %v7323 = vunpack.c.h.b16 %v5920
    %v7324 = vunpack.c.l.b16 %v5921
    %v7325 = vunpack.c.h.b16 %v5921
    %v7326 = vunpack.c.l.b16 %v5922
    %v7327 = vunpack.c.h.b16 %v5922
    %v7328 = vunpack.c.l.b16 %v5923
    %v7329 = vunpack.c.h.b16 %v5923
    %v7330 = vunpack.c.l.b16 %v5924
    %v7331 = vunpack.c.h.b16 %v5924
    %v7332 = vunpack.c.l.b16 %v5925
    %v7333 = vunpack.c.h.b16 %v5925
    %v7334 = vunpack.c.l.b16 %v5926
    %v7335 = vunpack.c.h.b16 %v5926
    %v7336 = vunpack.c.l.b16 %v5927
    %v7337 = vunpack.c.h.b16 %v5927
    %v7338 = vunpack.c.l.b16 %v5928
    %v7339 = vunpack.c.h.b16 %v5928
    %v7340 = vunpack.c.l.b16 %v5929
    %v7341 = vunpack.c.h.b16 %v5929
    %v7342 = vunpack.c.l.b16 %v5930
    %v7343 = vunpack.c.h.b16 %v5930
    %v7344 = vunpack.c.l.b16 %v5931
    %v7345 = vunpack.c.h.b16 %v5931
    %v7346 = vunpack.c.l.b16 %v5932
    %v7347 = vunpack.c.h.b16 %v5932
    %v7348 = vunpack.c.l.b16 %v5933
    %v7349 = vunpack.c.h.b16 %v5933
    %v7350 = vunpack.c.l.b16 %v5934
    %v7351 = vunpack.c.h.b16 %v5934
    %v7352 = vunpack.c.l.b16 %v5935
    %v7353 = vunpack.c.h.b16 %v5935
    %v7354 = vunpack.c.l.b16 %v5936
    %v7355 = vunpack.c.h.b16 %v5936
    %v7356 = vunpack.c.l.b16 %v5937
    %v7357 = vunpack.c.h.b16 %v5937
    %v7358 = vunpack.c.l.b16 %v5938
    %v7359 = vunpack.c.h.b16 %v5938
    %v7360 = vunpack.c.l.b16 %v5939
    %v7361 = vunpack.c.h.b16 %v5939
    %v7362 = vunpack.c.l.b16 %v5940
    %v7363 = vunpack.c.h.b16 %v5940
    %v7364 = vunpack.c.l.b16 %v5941
    %v7365 = vunpack.c.h.b16 %v5941
    %v7366 = vunpack.c.l.b16 %v5942
    %v7367 = vunpack.c.h.b16 %v5942
    %v7368 = vunpack.c.l.b16 %v5943
    %v7369 = vunpack.c.h.b16 %v5943
    %v7370 = vunpack.c.l.b16 %v5944
    %v7371 = vunpack.c.h.b16 %v5944
    %v7372 = vunpack.c.l.b16 %v5945
    %v7373 = vunpack.c.h.b16 %v5945
    %v7374 = vunpack.c.l.b16 %v5946
    %v7375 = vunpack.c.h.b16 %v5946
    %v7376 = vunpack.c.l.b16 %v5947
    %v7377 = vunpack.c.h.b16 %v5947
    %v7378 = vunpack.c.l.b16 %v5948
    %v7379 = vunpack.c.h.b16 %v5948
    %v7380 = vunpack.c.l.b16 %v5949
    %v7381 = vunpack.c.h.b16 %v5949
    %v7382 = vunpack.c.l.b16 %v5950
    %v7383 = vunpack.c.h.b16 %v5950
    %v7384 = vunpack.c.l.b16 %v5951
    %v7385 = vunpack.c.h.b16 %v5951
    %v7386 = vunpack.c.l.b16 %v5952
    %v7387 = vunpack.c.h.b16 %v5952
    %v7388 = vunpack.c.l.b16 %v5953
    %v7389 = vunpack.c.h.b16 %v5953
    %v7390 = vunpack.c.l.b16 %v5954
    %v7391 = vunpack.c.h.b16 %v5954
    %v7392 = vunpack.c.l.b16 %v5955
    %v7393 = vunpack.c.h.b16 %v5955
    %v7394 = vunpack.c.l.b16 %v5956
    %v7395 = vunpack.c.h.b16 %v5956
    %v7396 = vunpack.c.l.b16 %v5957
    %v7397 = vunpack.c.h.b16 %v5957
    %v7398 = vunpack.c.l.b16 %v5958
    %v7399 = vunpack.c.h.b16 %v5958
    %v7400 = vunpack.c.l.b16 %v5959
    %v7401 = vunpack.c.h.b16 %v5959
    %v7402 = vunpack.c.l.b16 %v5960
    %v7403 = vunpack.c.h.b16 %v5960
    %v7404 = vunpack.c.l.b16 %v5961
    %v7405 = vunpack.c.h.b16 %v5961
    %v7406 = vunpack.c.l.b16 %v5962
    %v7407 = vunpack.c.h.b16 %v5962
    %v7408 = vunpack.c.l.b16 %v5963
    %v7409 = vunpack.c.h.b16 %v5963
    %v7410 = vunpack.c.l.b16 %v5964
    %v7411 = vunpack.c.h.b16 %v5964
    %v7412 = vunpack.c.l.b16 %v5965
    %v7413 = vunpack.c.h.b16 %v5965
    %v7414 = vunpack.c.l.b16 %v5966
    %v7415 = vunpack.c.h.b16 %v5966
    %v7416 = vunpack.c.l.b16 %v5967
    %v7417 = vunpack.c.h.b16 %v5967
    %v7418 = vunpack.c.l.b16 %v5968
    %v7419 = vunpack.c.h.b16 %v5968
    %v7420 = vunpack.c.l.b16 %v5969
    %v7421 = vunpack.c.h.b16 %v5969
    %v7422 = vunpack.c.l.b16 %v5970
    %v7423 = vunpack.c.h.b16 %v5970
    %v7424 = vunpack.c.l.b16 %v5971
    %v7425 = vunpack.c.h.b16 %v5971
    %v7426 = vunpack.c.l.b16 %v5972
    %v7427 = vunpack.c.h.b16 %v5972
    %v7428 = vunpack.c.l.b16 %v5973
    %v7429 = vunpack.c.h.b16 %v5973
    %v7430 = vunpack.c.l.b16 %v5974
    %v7431 = vunpack.c.h.b16 %v5974
    %v7432 = vunpack.c.l.b16 %v5975
    %v7433 = vunpack.c.h.b16 %v5975
    %v7434 = vunpack.c.l.b16 %v5976
    %v7435 = vunpack.c.h.b16 %v5976
    %v7436 = vunpack.c.l.b16 %v5977
    %v7437 = vunpack.c.h.b16 %v5977
    %v7438 = vunpack.c.l.b16 %v5978
    %v7439 = vunpack.c.h.b16 %v5978
    %v7440 = vunpack.c.l.b16 %v5979
    %v7441 = vunpack.c.h.b16 %v5979
    %v7442 = vunpack.c.l.b16 %v5980
    %v7443 = vunpack.c.h.b16 %v5980
    %v7444 = vunpack.c.l.b16 %v5981
    %v7445 = vunpack.c.h.b16 %v5981
    %v7446 = vunpack.c.l.b16 %v5982
    %v7447 = vunpack.c.h.b16 %v5982
    %v7448 = vunpack.c.l.b16 %v5983
    %v7449 = vunpack.c.h.b16 %v5983
    %v7450 = vunpack.c.l.b16 %v5984
    %v7451 = vunpack.c.h.b16 %v5984
    %v7452 = vunpack.c.l.b16 %v5985
    %v7453 = vunpack.c.h.b16 %v5985
    %v7454 = vunpack.c.l.b16 %v5986
    %v7455 = vunpack.c.h.b16 %v5986
    %v7456 = vunpack.c.l.b16 %v5987
    %v7457 = vunpack.c.h.b16 %v5987
    %v7458 = vunpack.c.l.b16 %v5988
    %v7459 = vunpack.c.h.b16 %v5988
    %v7460 = vunpack.c.l.b16 %v5989
    %v7461 = vunpack.c.h.b16 %v5989
    %v7462 = vunpack.c.l.b16 %v5990
    %v7463 = vunpack.c.h.b16 %v5990
    %v7464 = vunpack.c.l.b16 %v5991
    %v7465 = vunpack.c.h.b16 %v5991
    %v7466 = vunpack.c.l.b16 %v5992
    %v7467 = vunpack.c.h.b16 %v5992
    %v7468 = vunpack.c.l.b16 %v5993
    %v7469 = vunpack.c.h.b16 %v5993
    %v7470 = vunpack.c.l.b16 %v5994
    %v7471 = vunpack.c.h.b16 %v5994
    %v7472 = vunpack.c.l.b16 %v5995
    %v7473 = vunpack.c.h.b16 %v5995
    %v7474 = vunpack.c.l.b16 %v5996
    %v7475 = vunpack.c.h.b16 %v5996
    %v7476 = vunpack.c.l.b16 %v5997
    %v7477 = vunpack.c.h.b16 %v5997
    %v7478 = vunpack.c.l.b16 %v5998
    %v7479 = vunpack.c.h.b16 %v5998
    %v7480 = vunpack.c.l.b16 %v5999
    %v7481 = vunpack.c.h.b16 %v5999
    %v7482 = vunpack.c.l.b16 %v6000
    %v7483 = vunpack.c.h.b16 %v6000
    %v7484 = vunpack.c.l.b16 %v6001
    %v7485 = vunpack.c.h.b16 %v6001
    %v7486 = vunpack.c.l.b16 %v6002
    %v7487 = vunpack.c.h.b16 %v6002
    %v7488 = vunpack.c.l.b16 %v6003
    %v7489 = vunpack.c.h.b16 %v6003
    %v7490 = vunpack.c.l.b16 %v6004
    %v7491 = vunpack.c.h.b16 %v6004
    %v7492 = vunpack.c.l.b16 %v6005
    %v7493 = vunpack.c.h.b16 %v6005
    %v7494 = vunpack.c.l.b16 %v6006
    %v7495 = vunpack.c.h.b16 %v6006
    %v7496 = vunpack.c.l.b16 %v6007
    %v7497 = vunpack.c.h.b16 %v6007
    %v7498 = vunpack.c.l.b16 %v6008
    %v7499 = vunpack.c.h.b16 %v6008
    %v7500 = vunpack.c.l.b16 %v6009
    %v7501 = vunpack.c.h.b16 %v6009
    %v7502 = vunpack.c.l.b16 %v6010
    %v7503 = vunpack.c.h.b16 %v6010
    %v7504 = vunpack.c.l.b16 %v6011
    %v7505 = vunpack.c.h.b16 %v6011
    %v7506 = vunpack.c.l.b16 %v6012
    %v7507 = vunpack.c.h.b16 %v6012
    %v7508 = vunpack.c.l.b16 %v6013
    %v7509 = vunpack.c.h.b16 %v6013
    %v7510 = vunpack.c.l.b16 %v6014
    %v7511 = vunpack.c.h.b16 %v6014
    %v7512 = vunpack.c.l.b16 %v6015
    %v7513 = vunpack.c.h.b16 %v6015
    %v7514 = vunpack.c.l.b16 %v6016
    %v7515 = vunpack.c.h.b16 %v6016
    %v7516 = vunpack.c.l.b16 %v6017
    %v7517 = vunpack.c.h.b16 %v6017
    %v7518 = vunpack.c.l.b16 %v6018
    %v7519 = vunpack.c.h.b16 %v6018
    %v7520 = vunpack.c.l.b16 %v6019
    %v7521 = vunpack.c.h.b16 %v6019
    %v7522 = vunpack.c.l.b16 %v6020
    %v7523 = vunpack.c.h.b16 %v6020
    %v7524 = vunpack.c.l.b16 %v6021
    %v7525 = vunpack.c.h.b16 %v6021
    %v7526 = vunpack.c.l.b16 %v6022
    %v7527 = vunpack.c.h.b16 %v6022
    %v7528 = vunpack.c.l.b16 %v6023
    %v7529 = vunpack.c.h.b16 %v6023
    %v7530 = vunpack.c.l.b16 %v6024
    %v7531 = vunpack.c.h.b16 %v6024
    %v7532 = vunpack.c.l.b16 %v6025
    %v7533 = vunpack.c.h.b16 %v6025
    %v7534 = vunpack.c.l.b16 %v6026
    %v7535 = vunpack.c.h.b16 %v6026
    %v7536 = vunpack.c.l.b16 %v6027
    %v7537 = vunpack.c.h.b16 %v6027
    %v7538 = vunpack.c.l.b16 %v6028
    %v7539 = vunpack.c.h.b16 %v6028
    %v7540 = vunpack.c.l.b16 %v6029
    %v7541 = vunpack.c.h.b16 %v6029
    %v7542 = vunpack.c.l.b16 %v6030
    %v7543 = vunpack.c.h.b16 %v6030
    %v7544 = vunpack.c.l.b16 %v6031
    %v7545 = vunpack.c.h.b16 %v6031
    %v7546 = vunpack.c.l.b16 %v6032
    %v7547 = vunpack.c.h.b16 %v6032
    %v7548 = vunpack.c.l.b16 %v6033
    %v7549 = vunpack.c.h.b16 %v6033
    %v7550 = vunpack.c.l.b16 %v6034
    %v7551 = vunpack.c.h.b16 %v6034
    %v7552 = vunpack.c.l.b16 %v6035
    %v7553 = vunpack.c.h.b16 %v6035
    %v7554 = vunpack.c.l.b16 %v6036
    %v7555 = vunpack.c.h.b16 %v6036
    %v7556 = vunpack.c.l.b16 %v6037
    %v7557 = vunpack.c.h.b16 %v6037
    %v7558 = vunpack.c.l.b16 %v6038
    %v7559 = vunpack.c.h.b16 %v6038
    %v7560 = vunpack.c.l.b16 %v6039
    %v7561 = vunpack.c.h.b16 %v6039
    %v7562 = vunpack.c.l.b16 %v6040
    %v7563 = vunpack.c.h.b16 %v6040
    %v7564 = vunpack.c.l.b16 %v6041
    %v7565 = vunpack.c.h.b16 %v6041
    %v7566 = vunpack.c.l.b16 %v6042
    %v7567 = vunpack.c.h.b16 %v6042
    %v7568 = vunpack.c.l.b16 %v6043
    %v7569 = vunpack.c.h.b16 %v6043
    %v7570 = vunpack.c.l.b16 %v6044
    %v7571 = vunpack.c.h.b16 %v6044
    %v7572 = vunpack.c.l.b16 %v6045
    %v7573 = vunpack.c.h.b16 %v6045
    %v7574 = vunpack.c.l.b16 %v6046
    %v7575 = vunpack.c.h.b16 %v6046
    %v7576 = vunpack.c.l.b16 %v6047
    %v7577 = vunpack.c.h.b16 %v6047
    %v7578 = vunpack.c.l.b16 %v6048
    %v7579 = vunpack.c.h.b16 %v6048
    %v7580 = vunpack.c.l.b16 %v6049
    %v7581 = vunpack.c.h.b16 %v6049
    %v7582 = vunpack.c.l.b16 %v6050
    %v7583 = vunpack.c.h.b16 %v6050
    %v7584 = vunpack.c.l.b16 %v6051
    %v7585 = vunpack.c.h.b16 %v6051
    %v7586 = vunpack.c.l.b16 %v6052
    %v7587 = vunpack.c.h.b16 %v6052
    %v7588 = vunpack.c.l.b16 %v6053
    %v7589 = vunpack.c.h.b16 %v6053
    %v7590 = vunpack.c.l.b16 %v6054
    %v7591 = vunpack.c.h.b16 %v6054
    %v7592 = vunpack.c.l.b16 %v6055
    %v7593 = vunpack.c.h.b16 %v6055
    %v7594 = vunpack.c.l.b16 %v6056
    %v7595 = vunpack.c.h.b16 %v6056
    %v7596 = vunpack.c.l.b16 %v6057
    %v7597 = vunpack.c.h.b16 %v6057
    %v7598 = vunpack.c.l.b16 %v6058
    %v7599 = vunpack.c.h.b16 %v6058
    %v7600 = vunpack.c.l.b16 %v6059
    %v7601 = vunpack.c.h.b16 %v6059
    %v7602 = vunpack.c.l.b16 %v6060
    %v7603 = vunpack.c.h.b16 %v6060
    %v7604 = vunpack.c.l.b16 %v6061
    %v7605 = vunpack.c.h.b16 %v6061
    %v7606 = vunpack.c.l.b16 %v6062
    %v7607 = vunpack.c.h.b16 %v6062
    %v7608 = vunpack.c.l.b16 %v6063
    %v7609 = vunpack.c.h.b16 %v6063
    %v7610 = vunpack.c.l.b16 %v6064
    %v7611 = vunpack.c.h.b16 %v6064
    %v7612 = vunpack.c.l.b16 %v6065
    %v7613 = vunpack.c.h.b16 %v6065
    %v7614 = vunpack.c.l.b16 %v6066
    %v7615 = vunpack.c.h.b16 %v6066
    %v7616 = vunpack.c.l.b16 %v6067
    %v7617 = vunpack.c.h.b16 %v6067
    %v7618 = vunpack.c.l.b16 %v6068
    %v7619 = vunpack.c.h.b16 %v6068
    %v7620 = vunpack.c.l.b16 %v6069
    %v7621 = vunpack.c.h.b16 %v6069
    %v7622 = vunpack.c.l.b16 %v6070
    %v7623 = vunpack.c.h.b16 %v6070
    %v7624 = vunpack.c.l.b16 %v6071
    %v7625 = vunpack.c.h.b16 %v6071
    %v7626 = vunpack.c.l.b16 %v6072
    %v7627 = vunpack.c.h.b16 %v6072
    %v7628 = vunpack.c.l.b16 %v6073
    %v7629 = vunpack.c.h.b16 %v6073
    %v7630 = vunpack.c.l.b16 %v6074
    %v7631 = vunpack.c.h.b16 %v6074
    %v7632 = vunpack.c.l.b16 %v6075
    %v7633 = vunpack.c.h.b16 %v6075
    %v7634 = vunpack.c.l.b16 %v6076
    %v7635 = vunpack.c.h.b16 %v6076
    %v7636 = vunpack.c.l.b16 %v6077
    %v7637 = vunpack.c.h.b16 %v6077
    %v7638 = vunpack.c.l.b16 %v6078
    %v7639 = vunpack.c.h.b16 %v6078
    %v7640 = vunpack.c.l.b16 %v6079
    %v7641 = vunpack.c.h.b16 %v6079
    %v7642 = vunpack.c.l.b16 %v6080
    %v7643 = vunpack.c.h.b16 %v6080
    %v7644 = vunpack.c.l.b16 %v6081
    %v7645 = vunpack.c.h.b16 %v6081
    %v7646 = vunpack.c.l.b16 %v6082
    %v7647 = vunpack.c.h.b16 %v6082
    %v7648 = vunpack.c.l.b16 %v6083
    %v7649 = vunpack.c.h.b16 %v6083
    %v7650 = vunpack.c.l.b16 %v6084
    %v7651 = vunpack.c.h.b16 %v6084
    %v7652 = vunpack.c.l.b16 %v6085
    %v7653 = vunpack.c.h.b16 %v6085
    %v7654 = vunpack.c.l.b16 %v6086
    %v7655 = vunpack.c.h.b16 %v6086
    %v7656 = vunpack.c.l.b16 %v6087
    %v7657 = vunpack.c.h.b16 %v6087
    %v7658 = vunpack.c.l.b16 %v6088
    %v7659 = vunpack.c.h.b16 %v6088
    %v7660 = vunpack.c.l.b16 %v6089
    %v7661 = vunpack.c.h.b16 %v6089
    %v7662 = vunpack.c.l.b16 %v6090
    %v7663 = vunpack.c.h.b16 %v6090
    %v7664 = vunpack.c.l.b16 %v6091
    %v7665 = vunpack.c.h.b16 %v6091
    %v7666 = vunpack.c.l.b16 %v6092
    %v7667 = vunpack.c.h.b16 %v6092
    %v7668 = vunpack.c.l.b16 %v6093
    %v7669 = vunpack.c.h.b16 %v6093
    %v7670 = vunpack.c.l.b16 %v6094
    %v7671 = vunpack.c.h.b16 %v6094
    %v7672 = vunpack.c.l.b16 %v6095
    %v7673 = vunpack.c.h.b16 %v6095
    %v7674 = vpack.c.b16 %v6658, %v6650
    %v7675 = vpack.c.b16 %v6659, %v6651
    %v7676 = vpack.c.b16 %v6660, %v6652
    %v7677 = vpack.c.b16 %v6661, %v6653
    %v7678 = vpack.c.b16 %v6662, %v6654
    %v7679 = vpack.c.b16 %v6663, %v6655
    %v7680 = vpack.c.b16 %v6664, %v6656
    %v7681 = vpack.c.b16 %v6665, %v6657
    %v7682 = vpack.c.b16 %v6674, %v6666
    %v7683 = vpack.c.b16 %v6675, %v6667
    %v7684 = vpack.c.b16 %v6676, %v6668
    %v7685 = vpack.c.b16 %v6677, %v6669
    %v7686 = vpack.c.b16 %v6678, %v6670
    %v7687 = vpack.c.b16 %v6679, %v6671
    %v7688 = vpack.c.b16 %v6680, %v6672
    %v7689 = vpack.c.b16 %v6681, %v6673
    %v7690 = vpack.c.b16 %v6690, %v6682
    %v7691 = vpack.c.b16 %v6691, %v6683
    %v7692 = vpack.c.b16 %v6692, %v6684
    %v7693 = vpack.c.b16 %v6693, %v6685
    %v7694 = vpack.c.b16 %v6694, %v6686
    %v7695 = vpack.c.b16 %v6695, %v6687
    %v7696 = vpack.c.b16 %v6696, %v6688
    %v7697 = vpack.c.b16 %v6697, %v6689
    %v7698 = vpack.c.b16 %v6706, %v6698
    %v7699 = vpack.c.b16 %v6707, %v6699
    %v7700 = vpack.c.b16 %v6708, %v6700
    %v7701 = vpack.c.b16 %v6709, %v6701
    %v7702 = vpack.c.b16 %v6710, %v6702
    %v7703 = vpack.c.b16 %v6711, %v6703
    %v7704 = vpack.c.b16 %v6712, %v6704
    %v7705 = vpack.c.b16 %v6713, %v6705
    %v7706 = vpack.c.b16 %v6722, %v6714
    %v7707 = vpack.c.b16 %v6723, %v6715
    %v7708 = vpack.c.b16 %v6724, %v6716
    %v7709 = vpack.c.b16 %v6725, %v6717
    %v7710 = vpack.c.b16 %v6726, %v6718
    %v7711 = vpack.c.b16 %v6727, %v6719
    %v7712 = vpack.c.b16 %v6728, %v6720
    %v7713 = vpack.c.b16 %v6729, %v6721
    %v7714 = vpack.c.b16 %v6738, %v6730
    %v7715 = vpack.c.b16 %v6739, %v6731
    %v7716 = vpack.c.b16 %v6740, %v6732
    %v7717 = vpack.c.b16 %v6741, %v6733
    %v7718 = vpack.c.b16 %v6742, %v6734
    %v7719 = vpack.c.b16 %v6743, %v6735
    %v7720 = vpack.c.b16 %v6744, %v6736
    %v7721 = vpack.c.b16 %v6745, %v6737
    %v7722 = vpack.c.b16 %v6754, %v6746
    %v7723 = vpack.c.b16 %v6755, %v6747
    %v7724 = vpack.c.b16 %v6756, %v6748
    %v7725 = vpack.c.b16 %v6757, %v6749
    %v7726 = vpack.c.b16 %v6758, %v6750
    %v7727 = vpack.c.b16 %v6759, %v6751
    %v7728 = vpack.c.b16 %v6760, %v6752
    %v7729 = vpack.c.b16 %v6761, %v6753
    %v7730 = vpack.c.b16 %v6770, %v6762
    %v7731 = vpack.c.b16 %v6771, %v6763
    %v7732 = vpack.c.b16 %v6772, %v6764
    %v7733 = vpack.c.b16 %v6773, %v6765
    %v7734 = vpack.c.b16 %v6774, %v6766
    %v7735 = vpack.c.b16 %v6775, %v6767
    %v7736 = vpack.c.b16 %v6776, %v6768
    %v7737 = vpack.c.b16 %v6777, %v6769
    %v7738 = vpack.c.b16 %v6786, %v6778
    %v7739 = vpack.c.b16 %v6787, %v6779
    %v7740 = vpack.c.b16 %v6788, %v6780
    %v7741 = vpack.c.b16 %v6789, %v6781
    %v7742 = vpack.c.b16 %v6790, %v6782
    %v7743 = vpack.c.b16 %v6791, %v6783
    %v7744 = vpack.c.b16 %v6792, %v6784
    %v7745 = vpack.c.b16 %v6793, %v6785
    %v7746 = vpack.c.b16 %v6802, %v6794
    %v7747 = vpack.c.b16 %v6803, %v6795
    %v7748 = vpack.c.b16 %v6804, %v6796
    %v7749 = vpack.c.b16 %v6805, %v6797
    %v7750 = vpack.c.b16 %v6806, %v6798
    %v7751 = vpack.c.b16 %v6807, %v6799
    %v7752 = vpack.c.b16 %v6808, %v6800
    %v7753 = vpack.c.b16 %v6809, %v6801
    %v7754 = vpack.c.b16 %v6818, %v6810
    %v7755 = vpack.c.b16 %v6819, %v6811
    %v7756 = vpack.c.b16 %v6820, %v6812
    %v7757 = vpack.c.b16 %v6821, %v6813
    %v7758 = vpack.c.b16 %v6822, %v6814
    %v7759 = vpack.c.b16 %v6823, %v6815
    %v7760 = vpack.c.b16 %v6824, %v6816
    %v7761 = vpack.c.b16 %v6825, %v6817
    %v7762 = vpack.c.b16 %v6834, %v6826
    %v7763 = vpack.c.b16 %v6835, %v6827
    %v7764 = vpack.c.b16 %v6836, %v6828
    %v7765 = vpack.c.b16 %v6837, %v6829
    %v7766 = vpack.c.b16 %v6838, %v6830
    %v7767 = vpack.c.b16 %v6839, %v6831
    %v7768 = vpack.c.b16 %v6840, %v6832
    %v7769 = vpack.c.b16 %v6841, %v6833
    %v7770 = vpack.c.b16 %v6850, %v6842
    %v7771 = vpack.c.b16 %v6851, %v6843
    %v7772 = vpack.c.b16 %v6852, %v6844
    %v7773 = vpack.c.b16 %v6853, %v6845
    %v7774 = vpack.c.b16 %v6854, %v6846
    %v7775 = vpack.c.b16 %v6855, %v6847
    %v7776 = vpack.c.b16 %v6856, %v6848
    %v7777 = vpack.c.b16 %v6857, %v6849
    %v7778 = vpack.c.b16 %v6866, %v6858
    %v7779 = vpack.c.b16 %v6867, %v6859
    %v7780 = vpack.c.b16 %v6868, %v6860
    %v7781 = vpack.c.b16 %v6869, %v6861
    %v7782 = vpack.c.b16 %v6870, %v6862
    %v7783 = vpack.c.b16 %v6871, %v6863
    %v7784 = vpack.c.b16 %v6872, %v6864
    %v7785 = vpack.c.b16 %v6873, %v6865
    %v7786 = vpack.c.b16 %v6882, %v6874
    %v7787 = vpack.c.b16 %v6883, %v6875
    %v7788 = vpack.c.b16 %v6884, %v6876
    %v7789 = vpack.c.b16 %v6885, %v6877
    %v7790 = vpack.c.b16 %v6886, %v6878
    %v7791 = vpack.c.b16 %v6887, %v6879
    %v7792 = vpack.c.b16 %v6888, %v6880
    %v7793 = vpack.c.b16 %v6889, %v6881
    %v7794 = vpack.c.b16 %v6898, %v6890
    %v7795 = vpack.c.b16 %v6899, %v6891
    %v7796 = vpack.c.b16 %v6900, %v6892
    %v7797 = vpack.c.b16 %v6901, %v6893
    %v7798 = vpack.c.b16 %v6902, %v6894
    %v7799 = vpack.c.b16 %v6903, %v6895
    %v7800 = vpack.c.b16 %v6904, %v6896
    %v7801 = vpack.c.b16 %v6905, %v6897
    %v7802 = vpack.c.b16 %v6914, %v6906
    %v7803 = vpack.c.b16 %v6915, %v6907
    %v7804 = vpack.c.b16 %v6916, %v6908
    %v7805 = vpack.c.b16 %v6917, %v6909
    %v7806 = vpack.c.b16 %v6918, %v6910
    %v7807 = vpack.c.b16 %v6919, %v6911
    %v7808 = vpack.c.b16 %v6920, %v6912
    %v7809 = vpack.c.b16 %v6921, %v6913
    %v7810 = vpack.c.b16 %v6930, %v6922
    %v7811 = vpack.c.b16 %v6931, %v6923
    %v7812 = vpack.c.b16 %v6932, %v6924
    %v7813 = vpack.c.b16 %v6933, %v6925
    %v7814 = vpack.c.b16 %v6934, %v6926
    %v7815 = vpack.c.b16 %v6935, %v6927
    %v7816 = vpack.c.b16 %v6936, %v6928
    %v7817 = vpack.c.b16 %v6937, %v6929
    %v7818 = vpack.c.b16 %v6946, %v6938
    %v7819 = vpack.c.b16 %v6947, %v6939
    %v7820 = vpack.c.b16 %v6948, %v6940
    %v7821 = vpack.c.b16 %v6949, %v6941
    %v7822 = vpack.c.b16 %v6950, %v6942
    %v7823 = vpack.c.b16 %v6951, %v6943
    %v7824 = vpack.c.b16 %v6952, %v6944
    %v7825 = vpack.c.b16 %v6953, %v6945
    %v7826 = vpack.c.b16 %v6962, %v6954
    %v7827 = vpack.c.b16 %v6963, %v6955
    %v7828 = vpack.c.b16 %v6964, %v6956
    %v7829 = vpack.c.b16 %v6965, %v6957
    %v7830 = vpack.c.b16 %v6966, %v6958
    %v7831 = vpack.c.b16 %v6967, %v6959
    %v7832 = vpack.c.b16 %v6968, %v6960
    %v7833 = vpack.c.b16 %v6969, %v6961
    %v7834 = vpack.c.b16 %v6978, %v6970
    %v7835 = vpack.c.b16 %v6979, %v6971
    %v7836 = vpack.c.b16 %v6980, %v6972
    %v7837 = vpack.c.b16 %v6981, %v6973
    %v7838 = vpack.c.b16 %v6982, %v6974
    %v7839 = vpack.c.b16 %v6983, %v6975
    %v7840 = vpack.c.b16 %v6984, %v6976
    %v7841 = vpack.c.b16 %v6985, %v6977
    %v7842 = vpack.c.b16 %v6994, %v6986
    %v7843 = vpack.c.b16 %v6995, %v6987
    %v7844 = vpack.c.b16 %v6996, %v6988
    %v7845 = vpack.c.b16 %v6997, %v6989
    %v7846 = vpack.c.b16 %v6998, %v6990
    %v7847 = vpack.c.b16 %v6999, %v6991
    %v7848 = vpack.c.b16 %v7000, %v6992
    %v7849 = vpack.c.b16 %v7001, %v6993
    %v7850 = vpack.c.b16 %v7010, %v7002
    %v7851 = vpack.c.b16 %v7011, %v7003
    %v7852 = vpack.c.b16 %v7012, %v7004
    %v7853 = vpack.c.b16 %v7013, %v7005
    %v7854 = vpack.c.b16 %v7014, %v7006
    %v7855 = vpack.c.b16 %v7015, %v7007
    %v7856 = vpack.c.b16 %v7016, %v7008
    %v7857 = vpack.c.b16 %v7017, %v7009
    %v7858 = vpack.c.b16 %v7026, %v7018
    %v7859 = vpack.c.b16 %v7027, %v7019
    %v7860 = vpack.c.b16 %v7028, %v7020
    %v7861 = vpack.c.b16 %v7029, %v7021
    %v7862 = vpack.c.b16 %v7030, %v7022
    %v7863 = vpack.c.b16 %v7031, %v7023
    %v7864 = vpack.c.b16 %v7032, %v7024
    %v7865 = vpack.c.b16 %v7033, %v7025
    %v7866 = vpack.c.b16 %v7042, %v7034
    %v7867 = vpack.c.b16 %v7043, %v7035
    %v7868 = vpack.c.b16 %v7044, %v7036
    %v7869 = vpack.c.b16 %v7045, %v7037
    %v7870 = vpack.c.b16 %v7046, %v7038
    %v7871 = vpack.c.b16 %v7047, %v7039
    %v7872 = vpack.c.b16 %v7048, %v7040
    %v7873 = vpack.c.b16 %v7049, %v7041
    %v7874 = vpack.c.b16 %v7058, %v7050
    %v7875 = vpack.c.b16 %v7059, %v7051
    %v7876 = vpack.c.b16 %v7060, %v7052
    %v7877 = vpack.c.b16 %v7061, %v7053
    %v7878 = vpack.c.b16 %v7062, %v7054
    %v7879 = vpack.c.b16 %v7063, %v7055
    %v7880 = vpack.c.b16 %v7064, %v7056
    %v7881 = vpack.c.b16 %v7065, %v7057
    %v7882 = vpack.c.b16 %v7074, %v7066
    %v7883 = vpack.c.b16 %v7075, %v7067
    %v7884 = vpack.c.b16 %v7076, %v7068
    %v7885 = vpack.c.b16 %v7077, %v7069
    %v7886 = vpack.c.b16 %v7078, %v7070
    %v7887 = vpack.c.b16 %v7079, %v7071
    %v7888 = vpack.c.b16 %v7080, %v7072
    %v7889 = vpack.c.b16 %v7081, %v7073
    %v7890 = vpack.c.b16 %v7090, %v7082
    %v7891 = vpack.c.b16 %v7091, %v7083
    %v7892 = vpack.c.b16 %v7092, %v7084
    %v7893 = vpack.c.b16 %v7093, %v7085
    %v7894 = vpack.c.b16 %v7094, %v7086
    %v7895 = vpack.c.b16 %v7095, %v7087
    %v7896 = vpack.c.b16 %v7096, %v7088
    %v7897 = vpack.c.b16 %v7097, %v7089
    %v7898 = vpack.c.b16 %v7106, %v7098
    %v7899 = vpack.c.b16 %v7107, %v7099
    %v7900 = vpack.c.b16 %v7108, %v7100
    %v7901 = vpack.c.b16 %v7109, %v7101
    %v7902 = vpack.c.b16 %v7110, %v7102
    %v7903 = vpack.c.b16 %v7111, %v7103
    %v7904 = vpack.c.b16 %v7112, %v7104
    %v7905 = vpack.c.b16 %v7113, %v7105
    %v7906 = vpack.c.b16 %v7122, %v7114
    %v7907 = vpack.c.b16 %v7123, %v7115
    %v7908 = vpack.c.b16 %v7124, %v7116
    %v7909 = vpack.c.b16 %v7125, %v7117
    %v7910 = vpack.c.b16 %v7126, %v7118
    %v7911 = vpack.c.b16 %v7127, %v7119
    %v7912 = vpack.c.b16 %v7128, %v7120
    %v7913 = vpack.c.b16 %v7129, %v7121
    %v7914 = vpack.c.b16 %v7138, %v7130
    %v7915 = vpack.c.b16 %v7139, %v7131
    %v7916 = vpack.c.b16 %v7140, %v7132
    %v7917 = vpack.c.b16 %v7141, %v7133
    %v7918 = vpack.c.b16 %v7142, %v7134
    %v7919 = vpack.c.b16 %v7143, %v7135
    %v7920 = vpack.c.b16 %v7144, %v7136
    %v7921 = vpack.c.b16 %v7145, %v7137
    %v7922 = vpack.c.b16 %v7154, %v7146
    %v7923 = vpack.c.b16 %v7155, %v7147
    %v7924 = vpack.c.b16 %v7156, %v7148
    %v7925 = vpack.c.b16 %v7157, %v7149
    %v7926 = vpack.c.b16 %v7158, %v7150
    %v7927 = vpack.c.b16 %v7159, %v7151
    %v7928 = vpack.c.b16 %v7160, %v7152
    %v7929 = vpack.c.b16 %v7161, %v7153
    %v7930 = vpack.c.b16 %v7170, %v7162
    %v7931 = vpack.c.b16 %v7171, %v7163
    %v7932 = vpack.c.b16 %v7172, %v7164
    %v7933 = vpack.c.b16 %v7173, %v7165
    %v7934 = vpack.c.b16 %v7174, %v7166
    %v7935 = vpack.c.b16 %v7175, %v7167
    %v7936 = vpack.c.b16 %v7176, %v7168
    %v7937 = vpack.c.b16 %v7177, %v7169
    %v7938 = vpack.c.b16 %v7186, %v7178
    %v7939 = vpack.c.b16 %v7187, %v7179
    %v7940 = vpack.c.b16 %v7188, %v7180
    %v7941 = vpack.c.b16 %v7189, %v7181
    %v7942 = vpack.c.b16 %v7190, %v7182
    %v7943 = vpack.c.b16 %v7191, %v7183
    %v7944 = vpack.c.b16 %v7192, %v7184
    %v7945 = vpack.c.b16 %v7193, %v7185
    %v7946 = vpack.c.b16 %v7202, %v7194
    %v7947 = vpack.c.b16 %v7203, %v7195
    %v7948 = vpack.c.b16 %v7204, %v7196
    %v7949 = vpack.c.b16 %v7205, %v7197
    %v7950 = vpack.c.b16 %v7206, %v7198
    %v7951 = vpack.c.b16 %v7207, %v7199
    %v7952 = vpack.c.b16 %v7208, %v7200
    %v7953 = vpack.c.b16 %v7209, %v7201
    %v7954 = vpack.c.b16 %v7218, %v7210
    %v7955 = vpack.c.b16 %v7219, %v7211
    %v7956 = vpack.c.b16 %v7220, %v7212
    %v7957 = vpack.c.b16 %v7221, %v7213
    %v7958 = vpack.c.b16 %v7222, %v7214
    %v7959 = vpack.c.b16 %v7223, %v7215
    %v7960 = vpack.c.b16 %v7224, %v7216
    %v7961 = vpack.c.b16 %v7225, %v7217
    %v7962 = vpack.c.b16 %v7234, %v7226
    %v7963 = vpack.c.b16 %v7235, %v7227
    %v7964 = vpack.c.b16 %v7236, %v7228
    %v7965 = vpack.c.b16 %v7237, %v7229
    %v7966 = vpack.c.b16 %v7238, %v7230
    %v7967 = vpack.c.b16 %v7239, %v7231
    %v7968 = vpack.c.b16 %v7240, %v7232
    %v7969 = vpack.c.b16 %v7241, %v7233
    %v7970 = vpack.c.b16 %v7250, %v7242
    %v7971 = vpack.c.b16 %v7251, %v7243
    %v7972 = vpack.c.b16 %v7252, %v7244
    %v7973 = vpack.c.b16 %v7253, %v7245
    %v7974 = vpack.c.b16 %v7254, %v7246
    %v7975 = vpack.c.b16 %v7255, %v7247
    %v7976 = vpack.c.b16 %v7256, %v7248
    %v7977 = vpack.c.b16 %v7257, %v7249
    %v7978 = vpack.c.b16 %v7266, %v7258
    %v7979 = vpack.c.b16 %v7267, %v7259
    %v7980 = vpack.c.b16 %v7268, %v7260
    %v7981 = vpack.c.b16 %v7269, %v7261
    %v7982 = vpack.c.b16 %v7270, %v7262
    %v7983 = vpack.c.b16 %v7271, %v7263
    %v7984 = vpack.c.b16 %v7272, %v7264
    %v7985 = vpack.c.b16 %v7273, %v7265
    %v7986 = vpack.c.b16 %v7282, %v7274
    %v7987 = vpack.c.b16 %v7283, %v7275
    %v7988 = vpack.c.b16 %v7284, %v7276
    %v7989 = vpack.c.b16 %v7285, %v7277
    %v7990 = vpack.c.b16 %v7286, %v7278
    %v7991 = vpack.c.b16 %v7287, %v7279
    %v7992 = vpack.c.b16 %v7288, %v7280
    %v7993 = vpack.c.b16 %v7289, %v7281
    %v7994 = vpack.c.b16 %v7298, %v7290
    %v7995 = vpack.c.b16 %v7299, %v7291
    %v7996 = vpack.c.b16 %v7300, %v7292
    %v7997 = vpack.c.b16 %v7301, %v7293
    %v7998 = vpack.c.b16 %v7302, %v7294
    %v7999 = vpack.c.b16 %v7303, %v7295
    %v8000 = vpack.c.b16 %v7304, %v7296
    %v8001 = vpack.c.b16 %v7305, %v7297
    %v8002 = vpack.c.b16 %v7314, %v7306
    %v8003 = vpack.c.b16 %v7315, %v7307
    %v8004 = vpack.c.b16 %v7316, %v7308
    %v8005 = vpack.c.b16 %v7317, %v7309
    %v8006 = vpack.c.b16 %v7318, %v7310
    %v8007 = vpack.c.b16 %v7319, %v7311
    %v8008 = vpack.c.b16 %v7320, %v7312
    %v8009 = vpack.c.b16 %v7321, %v7313
    %v8010 = vpack.c.b16 %v7330, %v7322
    %v8011 = vpack.c.b16 %v7331, %v7323
    %v8012 = vpack.c.b16 %v7332, %v7324
    %v8013 = vpack.c.b16 %v7333, %v7325
    %v8014 = vpack.c.b16 %v7334, %v7326
    %v8015 = vpack.c.b16 %v7335, %v7327
    %v8016 = vpack.c.b16 %v7336, %v7328
    %v8017 = vpack.c.b16 %v7337, %v7329
    %v8018 = vpack.c.b16 %v7346, %v7338
    %v8019 = vpack.c.b16 %v7347, %v7339
    %v8020 = vpack.c.b16 %v7348, %v7340
    %v8021 = vpack.c.b16 %v7349, %v7341
    %v8022 = vpack.c.b16 %v7350, %v7342
    %v8023 = vpack.c.b16 %v7351, %v7343
    %v8024 = vpack.c.b16 %v7352, %v7344
    %v8025 = vpack.c.b16 %v7353, %v7345
    %v8026 = vpack.c.b16 %v7362, %v7354
    %v8027 = vpack.c.b16 %v7363, %v7355
    %v8028 = vpack.c.b16 %v7364, %v7356
    %v8029 = vpack.c.b16 %v7365, %v7357
    %v8030 = vpack.c.b16 %v7366, %v7358
    %v8031 = vpack.c.b16 %v7367, %v7359
    %v8032 = vpack.c.b16 %v7368, %v7360
    %v8033 = vpack.c.b16 %v7369, %v7361
    %v8034 = vpack.c.b16 %v7378, %v7370
    %v8035 = vpack.c.b16 %v7379, %v7371
    %v8036 = vpack.c.b16 %v7380, %v7372
    %v8037 = vpack.c.b16 %v7381, %v7373
    %v8038 = vpack.c.b16 %v7382, %v7374
    %v8039 = vpack.c.b16 %v7383, %v7375
    %v8040 = vpack.c.b16 %v7384, %v7376
    %v8041 = vpack.c.b16 %v7385, %v7377
    %v8042 = vpack.c.b16 %v7394, %v7386
    %v8043 = vpack.c.b16 %v7395, %v7387
    %v8044 = vpack.c.b16 %v7396, %v7388
    %v8045 = vpack.c.b16 %v7397, %v7389
    %v8046 = vpack.c.b16 %v7398, %v7390
    %v8047 = vpack.c.b16 %v7399, %v7391
    %v8048 = vpack.c.b16 %v7400, %v7392
    %v8049 = vpack.c.b16 %v7401, %v7393
    %v8050 = vpack.c.b16 %v7410, %v7402
    %v8051 = vpack.c.b16 %v7411, %v7403
    %v8052 = vpack.c.b16 %v7412, %v7404
    %v8053 = vpack.c.b16 %v7413, %v7405
    %v8054 = vpack.c.b16 %v7414, %v7406
    %v8055 = vpack.c.b16 %v7415, %v7407
    %v8056 = vpack.c.b16 %v7416, %v7408
    %v8057 = vpack.c.b16 %v7417, %v7409
    %v8058 = vpack.c.b16 %v7426, %v7418
    %v8059 = vpack.c.b16 %v7427, %v7419
    %v8060 = vpack.c.b16 %v7428, %v7420
    %v8061 = vpack.c.b16 %v7429, %v7421
    %v8062 = vpack.c.b16 %v7430, %v7422
    %v8063 = vpack.c.b16 %v7431, %v7423
    %v8064 = vpack.c.b16 %v7432, %v7424
    %v8065 = vpack.c.b16 %v7433, %v7425
    %v8066 = vpack.c.b16 %v7442, %v7434
    %v8067 = vpack.c.b16 %v7443, %v7435
    %v8068 = vpack.c.b16 %v7444, %v7436
    %v8069 = vpack.c.b16 %v7445, %v7437
    %v8070 = vpack.c.b16 %v7446, %v7438
    %v8071 = vpack.c.b16 %v7447, %v7439
    %v8072 = vpack.c.b16 %v7448, %v7440
    %v8073 = vpack.c.b16 %v7449, %v7441
    %v8074 = vpack.c.b16 %v7458, %v7450
    %v8075 = vpack.c.b16 %v7459, %v7451
    %v8076 = vpack.c.b16 %v7460, %v7452
    %v8077 = vpack.c.b16 %v7461, %v7453
    %v8078 = vpack.c.b16 %v7462, %v7454
    %v8079 = vpack.c.b16 %v7463, %v7455
    %v8080 = vpack.c.b16 %v7464, %v7456
    %v8081 = vpack.c.b16 %v7465, %v7457
    %v8082 = vpack.c.b16 %v7474, %v7466
    %v8083 = vpack.c.b16 %v7475, %v7467
    %v8084 = vpack.c.b16 %v7476, %v7468
    %v8085 = vpack.c.b16 %v7477, %v7469
    %v8086 = vpack.c.b16 %v7478, %v7470
    %v8087 = vpack.c.b16 %v7479, %v7471
    %v8088 = vpack.c.b16 %v7480, %v7472
    %v8089 = vpack.c.b16 %v7481, %v7473
    %v8090 = vpack.c.b16 %v7490, %v7482
    %v8091 = vpack.c.b16 %v7491, %v7483
    %v8092 = vpack.c.b16 %v7492, %v7484
    %v8093 = vpack.c.b16 %v7493, %v7485
    %v8094 = vpack.c.b16 %v7494, %v7486
    %v8095 = vpack.c.b16 %v7495, %v7487
    %v8096 = vpack.c.b16 %v7496, %v7488
    %v8097 = vpack.c.b16 %v7497, %v7489
    %v8098 = vpack.c.b16 %v7506, %v7498
    %v8099 = vpack.c.b16 %v7507, %v7499
    %v8100 = vpack.c.b16 %v7508, %v7500
    %v8101 = vpack.c.b16 %v7509, %v7501
    %v8102 = vpack.c.b16 %v7510, %v7502
    %v8103 = vpack.c.b16 %v7511, %v7503
    %v8104 = vpack.c.b16 %v7512, %v7504
    %v8105 = vpack.c.b16 %v7513, %v7505
    %v8106 = vpack.c.b16 %v7522, %v7514
    %v8107 = vpack.c.b16 %v7523, %v7515
    %v8108 = vpack.c.b16 %v7524, %v7516
    %v8109 = vpack.c.b16 %v7525, %v7517
    %v8110 = vpack.c.b16 %v7526, %v7518
    %v8111 = vpack.c.b16 %v7527, %v7519
    %v8112 = vpack.c.b16 %v7528, %v7520
    %v8113 = vpack.c.b16 %v7529, %v7521
    %v8114 = vpack.c.b16 %v7538, %v7530
    %v8115 = vpack.c.b16 %v7539, %v7531
    %v8116 = vpack.c.b16 %v7540, %v7532
    %v8117 = vpack.c.b16 %v7541, %v7533
    %v8118 = vpack.c.b16 %v7542, %v7534
    %v8119 = vpack.c.b16 %v7543, %v7535
    %v8120 = vpack.c.b16 %v7544, %v7536
    %v8121 = vpack.c.b16 %v7545, %v7537
    %v8122 = vpack.c.b16 %v7554, %v7546
    %v8123 = vpack.c.b16 %v7555, %v7547
    %v8124 = vpack.c.b16 %v7556, %v7548
    %v8125 = vpack.c.b16 %v7557, %v7549
    %v8126 = vpack.c.b16 %v7558, %v7550
    %v8127 = vpack.c.b16 %v7559, %v7551
    %v8128 = vpack.c.b16 %v7560, %v7552
    %v8129 = vpack.c.b16 %v7561, %v7553
    %v8130 = vpack.c.b16 %v7570, %v7562
    %v8131 = vpack.c.b16 %v7571, %v7563
    %v8132 = vpack.c.b16 %v7572, %v7564
    %v8133 = vpack.c.b16 %v7573, %v7565
    %v8134 = vpack.c.b16 %v7574, %v7566
    %v8135 = vpack.c.b16 %v7575, %v7567
    %v8136 = vpack.c.b16 %v7576, %v7568
    %v8137 = vpack.c.b16 %v7577, %v7569
    %v8138 = vpack.c.b16 %v7586, %v7578
    %v8139 = vpack.c.b16 %v7587, %v7579
    %v8140 = vpack.c.b16 %v7588, %v7580
    %v8141 = vpack.c.b16 %v7589, %v7581
    %v8142 = vpack.c.b16 %v7590, %v7582
    %v8143 = vpack.c.b16 %v7591, %v7583
    %v8144 = vpack.c.b16 %v7592, %v7584
    %v8145 = vpack.c.b16 %v7593, %v7585
    %v8146 = vpack.c.b16 %v7602, %v7594
    %v8147 = vpack.c.b16 %v7603, %v7595
    %v8148 = vpack.c.b16 %v7604, %v7596
    %v8149 = vpack.c.b16 %v7605, %v7597
    %v8150 = vpack.c.b16 %v7606, %v7598
    %v8151 = vpack.c.b16 %v7607, %v7599
    %v8152 = vpack.c.b16 %v7608, %v7600
    %v8153 = vpack.c.b16 %v7609, %v7601
    %v8154 = vpack.c.b16 %v7618, %v7610
    %v8155 = vpack.c.b16 %v7619, %v7611
    %v8156 = vpack.c.b16 %v7620, %v7612
    %v8157 = vpack.c.b16 %v7621, %v7613
    %v8158 = vpack.c.b16 %v7622, %v7614
    %v8159 = vpack.c.b16 %v7623, %v7615
    %v8160 = vpack.c.b16 %v7624, %v7616
    %v8161 = vpack.c.b16 %v7625, %v7617
    %v8162 = vpack.c.b16 %v7634, %v7626
    %v8163 = vpack.c.b16 %v7635, %v7627
    %v8164 = vpack.c.b16 %v7636, %v7628
    %v8165 = vpack.c.b16 %v7637, %v7629
    %v8166 = vpack.c.b16 %v7638, %v7630
    %v8167 = vpack.c.b16 %v7639, %v7631
    %v8168 = vpack.c.b16 %v7640, %v7632
    %v8169 = vpack.c.b16 %v7641, %v7633
    %v8170 = vpack.c.b16 %v7650, %v7642
    %v8171 = vpack.c.b16 %v7651, %v7643
    %v8172 = vpack.c.b16 %v7652, %v7644
    %v8173 = vpack.c.b16 %v7653, %v7645
    %v8174 = vpack.c.b16 %v7654, %v7646
    %v8175 = vpack.c.b16 %v7655, %v7647
    %v8176 = vpack.c.b16 %v7656, %v7648
    %v8177 = vpack.c.b16 %v7657, %v7649
    %v8178 = vpack.c.b16 %v7666, %v7658
    %v8179 = vpack.c.b16 %v7667, %v7659
    %v8180 = vpack.c.b16 %v7668, %v7660
    %v8181 = vpack.c.b16 %v7669, %v7661
    %v8182 = vpack.c.b16 %v7670, %v7662
    %v8183 = vpack.c.b16 %v7671, %v7663
    %v8184 = vpack.c.b16 %v7672, %v7664
    %v8185 = vpack.c.b16 %v7673, %v7665
    %8698 = vmatprep.subr.bf16.mxu0 %v7675
    %8699 = vmatpush1.bf16.msra.mxu0 %v7674
    %8700 = vmatprep.subr.bf16.mxu0 %v7683
    %8701 = vmatpush1.bf16.msra.mxu0 %v7682
    %8702 = vmatprep.subr.bf16.mxu0 %v7691
    %8703 = vmatpush1.bf16.msra.mxu0 %v7690
    %8704 = vmatprep.subr.bf16.mxu0 %v7699
    %8705 = vmatpush1.bf16.msra.mxu0 %v7698
    %8706 = vmatprep.subr.bf16.mxu0 %v7707
    %8707 = vmatpush1.bf16.msra.mxu0 %v7706
    %8708 = vmatprep.subr.bf16.mxu0 %v7715
    %8709 = vmatpush1.bf16.msra.mxu0 %v7714
    %8710 = vmatprep.subr.bf16.mxu0 %v7723
    %8711 = vmatpush1.bf16.msra.mxu0 %v7722
    %8712 = vmatprep.subr.bf16.mxu0 %v7731
    %8713 = vmatpush1.bf16.msra.mxu0 %v7730
    %8714 = vmatprep.subr.bf16.mxu0 %v7739
    %8715 = vmatpush1.bf16.msra.mxu0 %v7738
    %8716 = vmatprep.subr.bf16.mxu0 %v7747
    %8717 = vmatpush1.bf16.msra.mxu0 %v7746
    %8718 = vmatprep.subr.bf16.mxu0 %v7755
    %8719 = vmatpush1.bf16.msra.mxu0 %v7754
    %8720 = vmatprep.subr.bf16.mxu0 %v7763
    %8721 = vmatpush1.bf16.msra.mxu0 %v7762
    %8722 = vmatprep.subr.bf16.mxu0 %v7771
    %8723 = vmatpush1.bf16.msra.mxu0 %v7770
    %8724 = vmatprep.subr.bf16.mxu0 %v7779
    %8725 = vmatpush1.bf16.msra.mxu0 %v7778
    %8726 = vmatprep.subr.bf16.mxu0 %v7787
    %8727 = vmatpush1.bf16.msra.mxu0 %v7786
    %8728 = vmatprep.subr.bf16.mxu0 %v7795
    %8729 = vmatpush1.bf16.msra.mxu0 %v7794
    %8730 = vmatprep.mubr.bf16.mxu0 %v5577
    %8731 = vmatmul.mubr.bf16.gmra.mrb[0].mxu0 %v5576
    %v8732 = vpop.f32.mrb[0].mxu0
    %v8733 = vadd.f32 %v6101, %v8732
    %v8734 = vpop.f32.mrb[0].mxu0
    %v8735 = vadd.f32 %v6105, %v8734
    %v8736 = vpop.f32.mrb[0].mxu0
    %v8737 = vpop.f32.mrb[0].mxu0
    %8738 = vdwg.mxu0
    %8739 = vmatprep.subr.bf16.mxu0 %v7803
    %8740 = vmatpush1.bf16.msra.mxu0 %v7802
    %8741 = vmatprep.subr.bf16.mxu0 %v7811
    %8742 = vmatpush1.bf16.msra.mxu0 %v7810
    %8743 = vmatprep.subr.bf16.mxu0 %v7819
    %8744 = vmatpush1.bf16.msra.mxu0 %v7818
    %8745 = vmatprep.subr.bf16.mxu0 %v7827
    %8746 = vmatpush1.bf16.msra.mxu0 %v7826
    %8747 = vmatprep.subr.bf16.mxu0 %v7835
    %8748 = vmatpush1.bf16.msra.mxu0 %v7834
    %8749 = vmatprep.subr.bf16.mxu0 %v7843
    %8750 = vmatpush1.bf16.msra.mxu0 %v7842
    %8751 = vmatprep.subr.bf16.mxu0 %v7851
    %8752 = vmatpush1.bf16.msra.mxu0 %v7850
    %8753 = vmatprep.subr.bf16.mxu0 %v7859
    %8754 = vmatpush1.bf16.msra.mxu0 %v7858
    %8755 = vmatprep.subr.bf16.mxu0 %v7867
    %8756 = vmatpush1.bf16.msra.mxu0 %v7866
    %8757 = vmatprep.subr.bf16.mxu0 %v7875
    %8758 = vmatpush1.bf16.msra.mxu0 %v7874
    %8759 = vmatprep.subr.bf16.mxu0 %v7883
    %8760 = vmatpush1.bf16.msra.mxu0 %v7882
    %8761 = vmatprep.subr.bf16.mxu0 %v7891
    %8762 = vmatpush1.bf16.msra.mxu0 %v7890
    %8763 = vmatprep.subr.bf16.mxu0 %v7899
    %8764 = vmatpush1.bf16.msra.mxu0 %v7898
    %8765 = vmatprep.subr.bf16.mxu0 %v7907
    %8766 = vmatpush1.bf16.msra.mxu0 %v7906
    %8767 = vmatprep.subr.bf16.mxu0 %v7915
    %8768 = vmatpush1.bf16.msra.mxu0 %v7914
    %8769 = vmatprep.subr.bf16.mxu0 %v7923
    %8770 = vmatpush1.bf16.msra.mxu0 %v7922
    %8771 = vmatprep.mubr.bf16.mxu0 %v5579
    %8772 = vmatmul.mubr.bf16.gmra.mrb[0].mxu0 %v5578
    %v8773 = vpop.f32.mrb[0].mxu0
    %v8774 = vadd.f32 %v8733, %v8773
    %v8775 = vpop.f32.mrb[0].mxu0
    %v8776 = vadd.f32 %v8735, %v8775
    %v8777 = vpop.f32.mrb[0].mxu0
    %v8778 = vpop.f32.mrb[0].mxu0
    %8779 = vdwg.mxu0
    %8780 = vmatprep.subr.bf16.mxu0 %v7931
    %8781 = vmatpush1.bf16.msra.mxu0 %v7930
    %8782 = vmatprep.subr.bf16.mxu0 %v7939
    %8783 = vmatpush1.bf16.msra.mxu0 %v7938
    %8784 = vmatprep.subr.bf16.mxu0 %v7947
    %8785 = vmatpush1.bf16.msra.mxu0 %v7946
    %8786 = vmatprep.subr.bf16.mxu0 %v7955
    %8787 = vmatpush1.bf16.msra.mxu0 %v7954
    %8788 = vmatprep.subr.bf16.mxu0 %v7963
    %8789 = vmatpush1.bf16.msra.mxu0 %v7962
    %8790 = vmatprep.subr.bf16.mxu0 %v7971
    %8791 = vmatpush1.bf16.msra.mxu0 %v7970
    %8792 = vmatprep.subr.bf16.mxu0 %v7979
    %8793 = vmatpush1.bf16.msra.mxu0 %v7978
    %8794 = vmatprep.subr.bf16.mxu0 %v7987
    %8795 = vmatpush1.bf16.msra.mxu0 %v7986
    %8796 = vmatprep.subr.bf16.mxu0 %v7995
    %8797 = vmatpush1.bf16.msra.mxu0 %v7994
    %8798 = vmatprep.subr.bf16.mxu0 %v8003
    %8799 = vmatpush1.bf16.msra.mxu0 %v8002
    %8800 = vmatprep.subr.bf16.mxu0 %v8011
    %8801 = vmatpush1.bf16.msra.mxu0 %v8010
    %8802 = vmatprep.subr.bf16.mxu0 %v8019
    %8803 = vmatpush1.bf16.msra.mxu0 %v8018
    %8804 = vmatprep.subr.bf16.mxu0 %v8027
    %8805 = vmatpush1.bf16.msra.mxu0 %v8026
    %8806 = vmatprep.subr.bf16.mxu0 %v8035
    %8807 = vmatpush1.bf16.msra.mxu0 %v8034
    %8808 = vmatprep.subr.bf16.mxu0 %v8043
    %8809 = vmatpush1.bf16.msra.mxu0 %v8042
    %8810 = vmatprep.subr.bf16.mxu0 %v8051
    %8811 = vmatpush1.bf16.msra.mxu0 %v8050
    %8812 = vmatprep.mubr.bf16.mxu0 %v5581
    %8813 = vmatmul.mubr.bf16.gmra.mrb[0].mxu0 %v5580
    %v8814 = vpop.f32.mrb[0].mxu0
    %v8815 = vadd.f32 %v8774, %v8814
    %v8816 = vpop.f32.mrb[0].mxu0
    %v8817 = vadd.f32 %v8776, %v8816
    %v8818 = vpop.f32.mrb[0].mxu0
    %v8819 = vpop.f32.mrb[0].mxu0
    %8820 = vdwg.mxu0
    %8821 = vmatprep.subr.bf16.mxu0 %v8059
    %8822 = vmatpush1.bf16.msra.mxu0 %v8058
    %8823 = vmatprep.subr.bf16.mxu0 %v8067
    %8824 = vmatpush1.bf16.msra.mxu0 %v8066
    %8825 = vmatprep.subr.bf16.mxu0 %v8075
    %8826 = vmatpush1.bf16.msra.mxu0 %v8074
    %8827 = vmatprep.subr.bf16.mxu0 %v8083
    %8828 = vmatpush1.bf16.msra.mxu0 %v8082
    %8829 = vmatprep.subr.bf16.mxu0 %v8091
    %8830 = vmatpush1.bf16.msra.mxu0 %v8090
    %8831 = vmatprep.subr.bf16.mxu0 %v8099
    %8832 = vmatpush1.bf16.msra.mxu0 %v8098
    %8833 = vmatprep.subr.bf16.mxu0 %v8107
    %8834 = vmatpush1.bf16.msra.mxu0 %v8106
    %8835 = vmatprep.subr.bf16.mxu0 %v8115
    %8836 = vmatpush1.bf16.msra.mxu0 %v8114
    %8837 = vmatprep.subr.bf16.mxu0 %v8123
    %8838 = vmatpush1.bf16.msra.mxu0 %v8122
    %8839 = vmatprep.subr.bf16.mxu0 %v8131
    %8840 = vmatpush1.bf16.msra.mxu0 %v8130
    %8841 = vmatprep.subr.bf16.mxu0 %v8139
    %8842 = vmatpush1.bf16.msra.mxu0 %v8138
    %8843 = vmatprep.subr.bf16.mxu0 %v8147
    %8844 = vmatpush1.bf16.msra.mxu0 %v8146
    %8845 = vmatprep.subr.bf16.mxu0 %v8155
    %8846 = vmatpush1.bf16.msra.mxu0 %v8154
    %8847 = vmatprep.subr.bf16.mxu0 %v8163
    %8848 = vmatpush1.bf16.msra.mxu0 %v8162
    %8849 = vmatprep.subr.bf16.mxu0 %v8171
    %8850 = vmatpush1.bf16.msra.mxu0 %v8170
    %8851 = vmatprep.subr.bf16.mxu0 %v8179
    %8852 = vmatpush1.bf16.msra.mxu0 %v8178
    %8853 = vmatprep.mubr.bf16.mxu0 %v5583
    %8854 = vmatmul.mubr.bf16.gmra.mrb[0].mxu0 %v5582
    %v8855 = vpop.f32.mrb[0].mxu0
    %v8856 = vadd.f32 %v8815, %v8855
    %v8857 = vpop.f32.mrb[0].mxu0
    %v8858 = vadd.f32 %v8817, %v8857
    %v8859 = vpop.f32.mrb[0].mxu0
    %v8860 = vpop.f32.mrb[0].mxu0
    %8861 = vdwg.mxu0
    %8862 = vmatprep.subr.bf16.mxu0 %v7677
    %8863 = vmatpush1.bf16.msra.mxu0 %v7676
    %8864 = vmatprep.subr.bf16.mxu0 %v7685
    %8865 = vmatpush1.bf16.msra.mxu0 %v7684
    %8866 = vmatprep.subr.bf16.mxu0 %v7693
    %8867 = vmatpush1.bf16.msra.mxu0 %v7692
    %8868 = vmatprep.subr.bf16.mxu0 %v7701
    %8869 = vmatpush1.bf16.msra.mxu0 %v7700
    %8870 = vmatprep.subr.bf16.mxu0 %v7709
    %8871 = vmatpush1.bf16.msra.mxu0 %v7708
    %8872 = vmatprep.subr.bf16.mxu0 %v7717
    %8873 = vmatpush1.bf16.msra.mxu0 %v7716
    %8874 = vmatprep.subr.bf16.mxu0 %v7725
    %8875 = vmatpush1.bf16.msra.mxu0 %v7724
    %8876 = vmatprep.subr.bf16.mxu0 %v7733
    %8877 = vmatpush1.bf16.msra.mxu0 %v7732
    %8878 = vmatprep.subr.bf16.mxu0 %v7741
    %8879 = vmatpush1.bf16.msra.mxu0 %v7740
    %8880 = vmatprep.subr.bf16.mxu0 %v7749
    %8881 = vmatpush1.bf16.msra.mxu0 %v7748
    %8882 = vmatprep.subr.bf16.mxu0 %v7757
    %8883 = vmatpush1.bf16.msra.mxu0 %v7756
    %8884 = vmatprep.subr.bf16.mxu0 %v7765
    %8885 = vmatpush1.bf16.msra.mxu0 %v7764
    %8886 = vmatprep.subr.bf16.mxu0 %v7773
    %8887 = vmatpush1.bf16.msra.mxu0 %v7772
    %8888 = vmatprep.subr.bf16.mxu0 %v7781
    %8889 = vmatpush1.bf16.msra.mxu0 %v7780
    %8890 = vmatprep.subr.bf16.mxu0 %v7789
    %8891 = vmatpush1.bf16.msra.mxu0 %v7788
    %8892 = vmatprep.subr.bf16.mxu0 %v7797
    %8893 = vmatpush1.bf16.msra.mxu0 %v7796
    %8894 = vmatprep.mubr.bf16.mxu0 %v5577
    %8895 = vmatmul.mubr.bf16.gmra.mrb[0].mxu0 %v5576
    %v8896 = vpop.f32.mrb[0].mxu0
    %v8897 = vadd.f32 %v6109, %v8896
    %v8898 = vpop.f32.mrb[0].mxu0
    %v8899 = vadd.f32 %v6113, %v8898
    %v8900 = vpop.f32.mrb[0].mxu0
    %v8901 = vpop.f32.mrb[0].mxu0
    %8902 = vdwg.mxu0
    %8903 = vmatprep.subr.bf16.mxu0 %v7805
    %8904 = vmatpush1.bf16.msra.mxu0 %v7804
    %8905 = vmatprep.subr.bf16.mxu0 %v7813
    %8906 = vmatpush1.bf16.msra.mxu0 %v7812
    %8907 = vmatprep.subr.bf16.mxu0 %v7821
    %8908 = vmatpush1.bf16.msra.mxu0 %v7820
    %8909 = vmatprep.subr.bf16.mxu0 %v7829
    %8910 = vmatpush1.bf16.msra.mxu0 %v7828
    %8911 = vmatprep.subr.bf16.mxu0 %v7837
    %8912 = vmatpush1.bf16.msra.mxu0 %v7836
    %8913 = vmatprep.subr.bf16.mxu0 %v7845
    %8914 = vmatpush1.bf16.msra.mxu0 %v7844
    %8915 = vmatprep.subr.bf16.mxu0 %v7853
    %8916 = vmatpush1.bf16.msra.mxu0 %v7852
    %8917 = vmatprep.subr.bf16.mxu0 %v7861
    %8918 = vmatpush1.bf16.msra.mxu0 %v7860
    %8919 = vmatprep.subr.bf16.mxu0 %v7869
    %8920 = vmatpush1.bf16.msra.mxu0 %v7868
    %8921 = vmatprep.subr.bf16.mxu0 %v7877
    %8922 = vmatpush1.bf16.msra.mxu0 %v7876
    %8923 = vmatprep.subr.bf16.mxu0 %v7885
    %8924 = vmatpush1.bf16.msra.mxu0 %v7884
    %8925 = vmatprep.subr.bf16.mxu0 %v7893
    %8926 = vmatpush1.bf16.msra.mxu0 %v7892
    %8927 = vmatprep.subr.bf16.mxu0 %v7901
    %8928 = vmatpush1.bf16.msra.mxu0 %v7900
    %8929 = vmatprep.subr.bf16.mxu0 %v7909
    %8930 = vmatpush1.bf16.msra.mxu0 %v7908
    %8931 = vmatprep.subr.bf16.mxu0 %v7917
    %8932 = vmatpush1.bf16.msra.mxu0 %v7916
    %8933 = vmatprep.subr.bf16.mxu0 %v7925
    %8934 = vmatpush1.bf16.msra.mxu0 %v7924
    %8935 = vmatprep.mubr.bf16.mxu0 %v5579
    %8936 = vmatmul.mubr.bf16.gmra.mrb[0].mxu0 %v5578
    %v8937 = vpop.f32.mrb[0].mxu0
    %v8938 = vadd.f32 %v8897, %v8937
    %v8939 = vpop.f32.mrb[0].mxu0
    %v8940 = vadd.f32 %v8899, %v8939
    %v8941 = vpop.f32.mrb[0].mxu0
    %v8942 = vpop.f32.mrb[0].mxu0
    %8943 = vdwg.mxu0
    %8944 = vmatprep.subr.bf16.mxu0 %v7933
    %8945 = vmatpush1.bf16.msra.mxu0 %v7932
    %8946 = vmatprep.subr.bf16.mxu0 %v7941
    %8947 = vmatpush1.bf16.msra.mxu0 %v7940
    %8948 = vmatprep.subr.bf16.mxu0 %v7949
    %8949 = vmatpush1.bf16.msra.mxu0 %v7948
    %8950 = vmatprep.subr.bf16.mxu0 %v7957
    %8951 = vmatpush1.bf16.msra.mxu0 %v7956
    %8952 = vmatprep.subr.bf16.mxu0 %v7965
    %8953 = vmatpush1.bf16.msra.mxu0 %v7964
    %8954 = vmatprep.subr.bf16.mxu0 %v7973
    %8955 = vmatpush1.bf16.msra.mxu0 %v7972
    %8956 = vmatprep.subr.bf16.mxu0 %v7981
    %8957 = vmatpush1.bf16.msra.mxu0 %v7980
    %8958 = vmatprep.subr.bf16.mxu0 %v7989
    %8959 = vmatpush1.bf16.msra.mxu0 %v7988
    %8960 = vmatprep.subr.bf16.mxu0 %v7997
    %8961 = vmatpush1.bf16.msra.mxu0 %v7996
    %8962 = vmatprep.subr.bf16.mxu0 %v8005
    %8963 = vmatpush1.bf16.msra.mxu0 %v8004
    %8964 = vmatprep.subr.bf16.mxu0 %v8013
    %8965 = vmatpush1.bf16.msra.mxu0 %v8012
    %8966 = vmatprep.subr.bf16.mxu0 %v8021
    %8967 = vmatpush1.bf16.msra.mxu0 %v8020
    %8968 = vmatprep.subr.bf16.mxu0 %v8029
    %8969 = vmatpush1.bf16.msra.mxu0 %v8028
    %8970 = vmatprep.subr.bf16.mxu0 %v8037
    %8971 = vmatpush1.bf16.msra.mxu0 %v8036
    %8972 = vmatprep.subr.bf16.mxu0 %v8045
    %8973 = vmatpush1.bf16.msra.mxu0 %v8044
    %8974 = vmatprep.subr.bf16.mxu0 %v8053
    %8975 = vmatpush1.bf16.msra.mxu0 %v8052
    %8976 = vmatprep.mubr.bf16.mxu0 %v5581
    %8977 = vmatmul.mubr.bf16.gmra.mrb[0].mxu0 %v5580
    %v8978 = vpop.f32.mrb[0].mxu0
    %v8979 = vadd.f32 %v8938, %v8978
    %v8980 = vpop.f32.mrb[0].mxu0
    %v8981 = vadd.f32 %v8940, %v8980
    %v8982 = vpop.f32.mrb[0].mxu0
    %v8983 = vpop.f32.mrb[0].mxu0
    %8984 = vdwg.mxu0
    %8985 = vmatprep.subr.bf16.mxu0 %v8061
    %8986 = vmatpush1.bf16.msra.mxu0 %v8060
    %8987 = vmatprep.subr.bf16.mxu0 %v8069
    %8988 = vmatpush1.bf16.msra.mxu0 %v8068
    %8989 = vmatprep.subr.bf16.mxu0 %v8077
    %8990 = vmatpush1.bf16.msra.mxu0 %v8076
    %8991 = vmatprep.subr.bf16.mxu0 %v8085
    %8992 = vmatpush1.bf16.msra.mxu0 %v8084
    %8993 = vmatprep.subr.bf16.mxu0 %v8093
    %8994 = vmatpush1.bf16.msra.mxu0 %v8092
    %8995 = vmatprep.subr.bf16.mxu0 %v8101
    %8996 = vmatpush1.bf16.msra.mxu0 %v8100
    %8997 = vmatprep.subr.bf16.mxu0 %v8109
    %8998 = vmatpush1.bf16.msra.mxu0 %v8108
    %8999 = vmatprep.subr.bf16.mxu0 %v8117
    %9000 = vmatpush1.bf16.msra.mxu0 %v8116
    %9001 = vmatprep.subr.bf16.mxu0 %v8125
    %9002 = vmatpush1.bf16.msra.mxu0 %v8124
    %9003 = vmatprep.subr.bf16.mxu0 %v8133
    %9004 = vmatpush1.bf16.msra.mxu0 %v8132
    %9005 = vmatprep.subr.bf16.mxu0 %v8141
    %9006 = vmatpush1.bf16.msra.mxu0 %v8140
    %9007 = vmatprep.subr.bf16.mxu0 %v8149
    %9008 = vmatpush1.bf16.msra.mxu0 %v8148
    %9009 = vmatprep.subr.bf16.mxu0 %v8157
    %9010 = vmatpush1.bf16.msra.mxu0 %v8156
    %9011 = vmatprep.subr.bf16.mxu0 %v8165
    %9012 = vmatpush1.bf16.msra.mxu0 %v8164
    %9013 = vmatprep.subr.bf16.mxu0 %v8173
    %9014 = vmatpush1.bf16.msra.mxu0 %v8172
    %9015 = vmatprep.subr.bf16.mxu0 %v8181
    %9016 = vmatpush1.bf16.msra.mxu0 %v8180
    %9017 = vmatprep.mubr.bf16.mxu0 %v5583
    %9018 = vmatmul.mubr.bf16.gmra.mrb[0].mxu0 %v5582
    %v9019 = vpop.f32.mrb[0].mxu0
    %v9020 = vadd.f32 %v8979, %v9019
    %v9021 = vpop.f32.mrb[0].mxu0
    %v9022 = vadd.f32 %v8981, %v9021
    %v9023 = vpop.f32.mrb[0].mxu0
    %v9024 = vpop.f32.mrb[0].mxu0
    %9025 = vdwg.mxu0
    %9026 = vmatprep.subr.bf16.mxu0 %v7679
    %9027 = vmatpush1.bf16.msra.mxu0 %v7678
    %9028 = vmatprep.subr.bf16.mxu0 %v7687
    %9029 = vmatpush1.bf16.msra.mxu0 %v7686
    %9030 = vmatprep.subr.bf16.mxu0 %v7695
    %9031 = vmatpush1.bf16.msra.mxu0 %v7694
    %9032 = vmatprep.subr.bf16.mxu0 %v7703
    %9033 = vmatpush1.bf16.msra.mxu0 %v7702
    %9034 = vmatprep.subr.bf16.mxu0 %v7711
    %9035 = vmatpush1.bf16.msra.mxu0 %v7710
    %9036 = vmatprep.subr.bf16.mxu0 %v7719
    %9037 = vmatpush1.bf16.msra.mxu0 %v7718
    %9038 = vmatprep.subr.bf16.mxu0 %v7727
    %9039 = vmatpush1.bf16.msra.mxu0 %v7726
    %9040 = vmatprep.subr.bf16.mxu0 %v7735
    %9041 = vmatpush1.bf16.msra.mxu0 %v7734
    %9042 = vmatprep.subr.bf16.mxu0 %v7743
    %9043 = vmatpush1.bf16.msra.mxu0 %v7742
    %9044 = vmatprep.subr.bf16.mxu0 %v7751
    %9045 = vmatpush1.bf16.msra.mxu0 %v7750
    %9046 = vmatprep.subr.bf16.mxu0 %v7759
    %9047 = vmatpush1.bf16.msra.mxu0 %v7758
    %9048 = vmatprep.subr.bf16.mxu0 %v7767
    %9049 = vmatpush1.bf16.msra.mxu0 %v7766
    %9050 = vmatprep.subr.bf16.mxu0 %v7775
    %9051 = vmatpush1.bf16.msra.mxu0 %v7774
    %9052 = vmatprep.subr.bf16.mxu0 %v7783
    %9053 = vmatpush1.bf16.msra.mxu0 %v7782
    %9054 = vmatprep.subr.bf16.mxu0 %v7791
    %9055 = vmatpush1.bf16.msra.mxu0 %v7790
    %9056 = vmatprep.subr.bf16.mxu0 %v7799
    %9057 = vmatpush1.bf16.msra.mxu0 %v7798
    %9058 = vmatprep.mubr.bf16.mxu0 %v5577
    %9059 = vmatmul.mubr.bf16.gmra.mrb[0].mxu0 %v5576
    %v9060 = vpop.f32.mrb[0].mxu0
    %v9061 = vadd.f32 %v6117, %v9060
    %v9062 = vpop.f32.mrb[0].mxu0
    %v9063 = vadd.f32 %v6121, %v9062
    %v9064 = vpop.f32.mrb[0].mxu0
    %v9065 = vpop.f32.mrb[0].mxu0
    %9066 = vdwg.mxu0
    %9067 = vmatprep.subr.bf16.mxu0 %v7807
    %9068 = vmatpush1.bf16.msra.mxu0 %v7806
    %9069 = vmatprep.subr.bf16.mxu0 %v7815
    %9070 = vmatpush1.bf16.msra.mxu0 %v7814
    %9071 = vmatprep.subr.bf16.mxu0 %v7823
    %9072 = vmatpush1.bf16.msra.mxu0 %v7822
    %9073 = vmatprep.subr.bf16.mxu0 %v7831
    %9074 = vmatpush1.bf16.msra.mxu0 %v7830
    %9075 = vmatprep.subr.bf16.mxu0 %v7839
    %9076 = vmatpush1.bf16.msra.mxu0 %v7838
    %9077 = vmatprep.subr.bf16.mxu0 %v7847
    %9078 = vmatpush1.bf16.msra.mxu0 %v7846
    %9079 = vmatprep.subr.bf16.mxu0 %v7855
    %9080 = vmatpush1.bf16.msra.mxu0 %v7854
    %9081 = vmatprep.subr.bf16.mxu0 %v7863
    %9082 = vmatpush1.bf16.msra.mxu0 %v7862
    %9083 = vmatprep.subr.bf16.mxu0 %v7871
    %9084 = vmatpush1.bf16.msra.mxu0 %v7870
    %9085 = vmatprep.subr.bf16.mxu0 %v7879
    %9086 = vmatpush1.bf16.msra.mxu0 %v7878
    %9087 = vmatprep.subr.bf16.mxu0 %v7887
    %9088 = vmatpush1.bf16.msra.mxu0 %v7886
    %9089 = vmatprep.subr.bf16.mxu0 %v7895
    %9090 = vmatpush1.bf16.msra.mxu0 %v7894
    %9091 = vmatprep.subr.bf16.mxu0 %v7903
    %9092 = vmatpush1.bf16.msra.mxu0 %v7902
    %9093 = vmatprep.subr.bf16.mxu0 %v7911
    %9094 = vmatpush1.bf16.msra.mxu0 %v7910
    %9095 = vmatprep.subr.bf16.mxu0 %v7919
    %9096 = vmatpush1.bf16.msra.mxu0 %v7918
    %9097 = vmatprep.subr.bf16.mxu0 %v7927
    %9098 = vmatpush1.bf16.msra.mxu0 %v7926
    %9099 = vmatprep.mubr.bf16.mxu0 %v5579
    %9100 = vmatmul.mubr.bf16.gmra.mrb[0].mxu0 %v5578
    %v9101 = vpop.f32.mrb[0].mxu0
    %v9102 = vadd.f32 %v9061, %v9101
    %v9103 = vpop.f32.mrb[0].mxu0
    %v9104 = vadd.f32 %v9063, %v9103
    %v9105 = vpop.f32.mrb[0].mxu0
    %v9106 = vpop.f32.mrb[0].mxu0
    %9107 = vdwg.mxu0
    %9108 = vmatprep.subr.bf16.mxu0 %v7935
    %9109 = vmatpush1.bf16.msra.mxu0 %v7934
    %9110 = vmatprep.subr.bf16.mxu0 %v7943
    %9111 = vmatpush1.bf16.msra.mxu0 %v7942
    %9112 = vmatprep.subr.bf16.mxu0 %v7951
    %9113 = vmatpush1.bf16.msra.mxu0 %v7950
    %9114 = vmatprep.subr.bf16.mxu0 %v7959
    %9115 = vmatpush1.bf16.msra.mxu0 %v7958
    %9116 = vmatprep.subr.bf16.mxu0 %v7967
    %9117 = vmatpush1.bf16.msra.mxu0 %v7966
    %9118 = vmatprep.subr.bf16.mxu0 %v7975
    %9119 = vmatpush1.bf16.msra.mxu0 %v7974
    %9120 = vmatprep.subr.bf16.mxu0 %v7983
    %9121 = vmatpush1.bf16.msra.mxu0 %v7982
    %9122 = vmatprep.subr.bf16.mxu0 %v7991
    %9123 = vmatpush1.bf16.msra.mxu0 %v7990
    %9124 = vmatprep.subr.bf16.mxu0 %v7999
    %9125 = vmatpush1.bf16.msra.mxu0 %v7998
    %9126 = vmatprep.subr.bf16.mxu0 %v8007
    %9127 = vmatpush1.bf16.msra.mxu0 %v8006
    %9128 = vmatprep.subr.bf16.mxu0 %v8015
    %9129 = vmatpush1.bf16.msra.mxu0 %v8014
    %9130 = vmatprep.subr.bf16.mxu0 %v8023
    %9131 = vmatpush1.bf16.msra.mxu0 %v8022
    %9132 = vmatprep.subr.bf16.mxu0 %v8031
    %9133 = vmatpush1.bf16.msra.mxu0 %v8030
    %9134 = vmatprep.subr.bf16.mxu0 %v8039
    %9135 = vmatpush1.bf16.msra.mxu0 %v8038
    %9136 = vmatprep.subr.bf16.mxu0 %v8047
    %9137 = vmatpush1.bf16.msra.mxu0 %v8046
    %9138 = vmatprep.subr.bf16.mxu0 %v8055
    %9139 = vmatpush1.bf16.msra.mxu0 %v8054
    %9140 = vmatprep.mubr.bf16.mxu0 %v5581
    %9141 = vmatmul.mubr.bf16.gmra.mrb[0].mxu0 %v5580
    %v9142 = vpop.f32.mrb[0].mxu0
    %v9143 = vadd.f32 %v9102, %v9142
    %v9144 = vpop.f32.mrb[0].mxu0
    %v9145 = vadd.f32 %v9104, %v9144
    %v9146 = vpop.f32.mrb[0].mxu0
    %v9147 = vpop.f32.mrb[0].mxu0
    %9148 = vdwg.mxu0
    %9149 = vmatprep.subr.bf16.mxu0 %v8063
    %9150 = vmatpush1.bf16.msra.mxu0 %v8062
    %9151 = vmatprep.subr.bf16.mxu0 %v8071
    %9152 = vmatpush1.bf16.msra.mxu0 %v8070
    %9153 = vmatprep.subr.bf16.mxu0 %v8079
    %9154 = vmatpush1.bf16.msra.mxu0 %v8078
    %9155 = vmatprep.subr.bf16.mxu0 %v8087
    %9156 = vmatpush1.bf16.msra.mxu0 %v8086
    %9157 = vmatprep.subr.bf16.mxu0 %v8095
    %9158 = vmatpush1.bf16.msra.mxu0 %v8094
    %9159 = vmatprep.subr.bf16.mxu0 %v8103
    %9160 = vmatpush1.bf16.msra.mxu0 %v8102
    %9161 = vmatprep.subr.bf16.mxu0 %v8111
    %9162 = vmatpush1.bf16.msra.mxu0 %v8110
    %9163 = vmatprep.subr.bf16.mxu0 %v8119
    %9164 = vmatpush1.bf16.msra.mxu0 %v8118
    %9165 = vmatprep.subr.bf16.mxu0 %v8127
    %9166 = vmatpush1.bf16.msra.mxu0 %v8126
    %9167 = vmatprep.subr.bf16.mxu0 %v8135
    %9168 = vmatpush1.bf16.msra.mxu0 %v8134
    %9169 = vmatprep.subr.bf16.mxu0 %v8143
    %9170 = vmatpush1.bf16.msra.mxu0 %v8142
    %9171 = vmatprep.subr.bf16.mxu0 %v8151
    %9172 = vmatpush1.bf16.msra.mxu0 %v8150
    %9173 = vmatprep.subr.bf16.mxu0 %v8159
    %9174 = vmatpush1.bf16.msra.mxu0 %v8158
    %9175 = vmatprep.subr.bf16.mxu0 %v8167
    %9176 = vmatpush1.bf16.msra.mxu0 %v8166
    %9177 = vmatprep.subr.bf16.mxu0 %v8175
    %9178 = vmatpush1.bf16.msra.mxu0 %v8174
    %9179 = vmatprep.subr.bf16.mxu0 %v8183
    %9180 = vmatpush1.bf16.msra.mxu0 %v8182
    %9181 = vmatprep.mubr.bf16.mxu0 %v5583
    %9182 = vmatmul.mubr.bf16.gmra.mrb[0].mxu0 %v5582
    %v9183 = vpop.f32.mrb[0].mxu0
    %v9184 = vadd.f32 %v9143, %v9183
    %v9185 = vpop.f32.mrb[0].mxu0
    %v9186 = vadd.f32 %v9145, %v9185
    %v9187 = vpop.f32.mrb[0].mxu0
    %v9188 = vpop.f32.mrb[0].mxu0
    %9189 = vdwg.mxu0
    %9190 = vmatprep.subr.bf16.mxu0 %v7681
    %9191 = vmatpush1.bf16.msra.mxu0 %v7680
    %9192 = vmatprep.subr.bf16.mxu0 %v7689
    %9193 = vmatpush1.bf16.msra.mxu0 %v7688
    %9194 = vmatprep.subr.bf16.mxu0 %v7697
    %9195 = vmatpush1.bf16.msra.mxu0 %v7696
    %9196 = vmatprep.subr.bf16.mxu0 %v7705
    %9197 = vmatpush1.bf16.msra.mxu0 %v7704
    %9198 = vmatprep.subr.bf16.mxu0 %v7713
    %9199 = vmatpush1.bf16.msra.mxu0 %v7712
    %9200 = vmatprep.subr.bf16.mxu0 %v7721
    %9201 = vmatpush1.bf16.msra.mxu0 %v7720
    %9202 = vmatprep.subr.bf16.mxu0 %v7729
    %9203 = vmatpush1.bf16.msra.mxu0 %v7728
    %9204 = vmatprep.subr.bf16.mxu0 %v7737
    %9205 = vmatpush1.bf16.msra.mxu0 %v7736
    %9206 = vmatprep.subr.bf16.mxu0 %v7745
    %9207 = vmatpush1.bf16.msra.mxu0 %v7744
    %9208 = vmatprep.subr.bf16.mxu0 %v7753
    %9209 = vmatpush1.bf16.msra.mxu0 %v7752
    %9210 = vmatprep.subr.bf16.mxu0 %v7761
    %9211 = vmatpush1.bf16.msra.mxu0 %v7760
    %9212 = vmatprep.subr.bf16.mxu0 %v7769
    %9213 = vmatpush1.bf16.msra.mxu0 %v7768
    %9214 = vmatprep.subr.bf16.mxu0 %v7777
    %9215 = vmatpush1.bf16.msra.mxu0 %v7776
    %9216 = vmatprep.subr.bf16.mxu0 %v7785
    %9217 = vmatpush1.bf16.msra.mxu0 %v7784
    %9218 = vmatprep.subr.bf16.mxu0 %v7793
    %9219 = vmatpush1.bf16.msra.mxu0 %v7792
    %9220 = vmatprep.subr.bf16.mxu0 %v7801
    %9221 = vmatpush1.bf16.msra.mxu0 %v7800
    %9222 = vmatprep.mubr.bf16.mxu0 %v5577
    %9223 = vmatmul.mubr.bf16.gmra.mrb[0].mxu0 %v5576
    %v9224 = vpop.f32.mrb[0].mxu0
    %v9225 = vadd.f32 %v6125, %v9224
    %v9226 = vpop.f32.mrb[0].mxu0
    %v9227 = vadd.f32 %v6129, %v9226
    %v9228 = vpop.f32.mrb[0].mxu0
    %v9229 = vpop.f32.mrb[0].mxu0
    %9230 = vdwg.mxu0
    %9231 = vmatprep.subr.bf16.mxu0 %v7809
    %9232 = vmatpush1.bf16.msra.mxu0 %v7808
    %9233 = vmatprep.subr.bf16.mxu0 %v7817
    %9234 = vmatpush1.bf16.msra.mxu0 %v7816
    %9235 = vmatprep.subr.bf16.mxu0 %v7825
    %9236 = vmatpush1.bf16.msra.mxu0 %v7824
    %9237 = vmatprep.subr.bf16.mxu0 %v7833
    %9238 = vmatpush1.bf16.msra.mxu0 %v7832
    %9239 = vmatprep.subr.bf16.mxu0 %v7841
    %9240 = vmatpush1.bf16.msra.mxu0 %v7840
    %9241 = vmatprep.subr.bf16.mxu0 %v7849
    %9242 = vmatpush1.bf16.msra.mxu0 %v7848
    %9243 = vmatprep.subr.bf16.mxu0 %v7857
    %9244 = vmatpush1.bf16.msra.mxu0 %v7856
    %9245 = vmatprep.subr.bf16.mxu0 %v7865
    %9246 = vmatpush1.bf16.msra.mxu0 %v7864
    %9247 = vmatprep.subr.bf16.mxu0 %v7873
    %9248 = vmatpush1.bf16.msra.mxu0 %v7872
    %9249 = vmatprep.subr.bf16.mxu0 %v7881
    %9250 = vmatpush1.bf16.msra.mxu0 %v7880
    %9251 = vmatprep.subr.bf16.mxu0 %v7889
    %9252 = vmatpush1.bf16.msra.mxu0 %v7888
    %9253 = vmatprep.subr.bf16.mxu0 %v7897
    %9254 = vmatpush1.bf16.msra.mxu0 %v7896
    %9255 = vmatprep.subr.bf16.mxu0 %v7905
    %9256 = vmatpush1.bf16.msra.mxu0 %v7904
    %9257 = vmatprep.subr.bf16.mxu0 %v7913
    %9258 = vmatpush1.bf16.msra.mxu0 %v7912
    %9259 = vmatprep.subr.bf16.mxu0 %v7921
    %9260 = vmatpush1.bf16.msra.mxu0 %v7920
    %9261 = vmatprep.subr.bf16.mxu0 %v7929
    %9262 = vmatpush1.bf16.msra.mxu0 %v7928
    %9263 = vmatprep.mubr.bf16.mxu0 %v5579
    %9264 = vmatmul.mubr.bf16.gmra.mrb[0].mxu0 %v5578
    %v9265 = vpop.f32.mrb[0].mxu0
    %v9266 = vadd.f32 %v9225, %v9265
    %v9267 = vpop.f32.mrb[0].mxu0
    %v9268 = vadd.f32 %v9227, %v9267
    %v9269 = vpop.f32.mrb[0].mxu0
    %v9270 = vpop.f32.mrb[0].mxu0
    %9271 = vdwg.mxu0
    %9272 = vmatprep.subr.bf16.mxu0 %v7937
    %9273 = vmatpush1.bf16.msra.mxu0 %v7936
    %9274 = vmatprep.subr.bf16.mxu0 %v7945
    %9275 = vmatpush1.bf16.msra.mxu0 %v7944
    %9276 = vmatprep.subr.bf16.mxu0 %v7953
    %9277 = vmatpush1.bf16.msra.mxu0 %v7952
    %9278 = vmatprep.subr.bf16.mxu0 %v7961
    %9279 = vmatpush1.bf16.msra.mxu0 %v7960
    %9280 = vmatprep.subr.bf16.mxu0 %v7969
    %9281 = vmatpush1.bf16.msra.mxu0 %v7968
    %9282 = vmatprep.subr.bf16.mxu0 %v7977
    %9283 = vmatpush1.bf16.msra.mxu0 %v7976
    %9284 = vmatprep.subr.bf16.mxu0 %v7985
    %9285 = vmatpush1.bf16.msra.mxu0 %v7984
    %9286 = vmatprep.subr.bf16.mxu0 %v7993
    %9287 = vmatpush1.bf16.msra.mxu0 %v7992
    %9288 = vmatprep.subr.bf16.mxu0 %v8001
    %9289 = vmatpush1.bf16.msra.mxu0 %v8000
    %9290 = vmatprep.subr.bf16.mxu0 %v8009
    %9291 = vmatpush1.bf16.msra.mxu0 %v8008
    %9292 = vmatprep.subr.bf16.mxu0 %v8017
    %9293 = vmatpush1.bf16.msra.mxu0 %v8016
    %9294 = vmatprep.subr.bf16.mxu0 %v8025
    %9295 = vmatpush1.bf16.msra.mxu0 %v8024
    %9296 = vmatprep.subr.bf16.mxu0 %v8033
    %9297 = vmatpush1.bf16.msra.mxu0 %v8032
    %9298 = vmatprep.subr.bf16.mxu0 %v8041
    %9299 = vmatpush1.bf16.msra.mxu0 %v8040
    %9300 = vmatprep.subr.bf16.mxu0 %v8049
    %9301 = vmatpush1.bf16.msra.mxu0 %v8048
    %9302 = vmatprep.subr.bf16.mxu0 %v8057
    %9303 = vmatpush1.bf16.msra.mxu0 %v8056
    %9304 = vmatprep.mubr.bf16.mxu0 %v5581
    %9305 = vmatmul.mubr.bf16.gmra.mrb[0].mxu0 %v5580
    %v9306 = vpop.f32.mrb[0].mxu0
    %v9307 = vadd.f32 %v9266, %v9306
    %v9308 = vpop.f32.mrb[0].mxu0
    %v9309 = vadd.f32 %v9268, %v9308
    %v9310 = vpop.f32.mrb[0].mxu0
    %v9311 = vpop.f32.mrb[0].mxu0
    %9312 = vdwg.mxu0
    %9313 = vmatprep.subr.bf16.mxu0 %v8065
    %9314 = vmatpush1.bf16.msra.mxu0 %v8064
    %9315 = vmatprep.subr.bf16.mxu0 %v8073
    %9316 = vmatpush1.bf16.msra.mxu0 %v8072
    %9317 = vmatprep.subr.bf16.mxu0 %v8081
    %9318 = vmatpush1.bf16.msra.mxu0 %v8080
    %9319 = vmatprep.subr.bf16.mxu0 %v8089
    %9320 = vmatpush1.bf16.msra.mxu0 %v8088
    %9321 = vmatprep.subr.bf16.mxu0 %v8097
    %9322 = vmatpush1.bf16.msra.mxu0 %v8096
    %9323 = vmatprep.subr.bf16.mxu0 %v8105
    %9324 = vmatpush1.bf16.msra.mxu0 %v8104
    %9325 = vmatprep.subr.bf16.mxu0 %v8113
    %9326 = vmatpush1.bf16.msra.mxu0 %v8112
    %9327 = vmatprep.subr.bf16.mxu0 %v8121
    %9328 = vmatpush1.bf16.msra.mxu0 %v8120
    %9329 = vmatprep.subr.bf16.mxu0 %v8129
    %9330 = vmatpush1.bf16.msra.mxu0 %v8128
    %9331 = vmatprep.subr.bf16.mxu0 %v8137
    %9332 = vmatpush1.bf16.msra.mxu0 %v8136
    %9333 = vmatprep.subr.bf16.mxu0 %v8145
    %9334 = vmatpush1.bf16.msra.mxu0 %v8144
    %9335 = vmatprep.subr.bf16.mxu0 %v8153
    %9336 = vmatpush1.bf16.msra.mxu0 %v8152
    %9337 = vmatprep.subr.bf16.mxu0 %v8161
    %9338 = vmatpush1.bf16.msra.mxu0 %v8160
    %9339 = vmatprep.subr.bf16.mxu0 %v8169
    %9340 = vmatpush1.bf16.msra.mxu0 %v8168
    %9341 = vmatprep.subr.bf16.mxu0 %v8177
    %9342 = vmatpush1.bf16.msra.mxu0 %v8176
    %9343 = vmatprep.subr.bf16.mxu0 %v8185
    %9344 = vmatpush1.bf16.msra.mxu0 %v8184
    %9345 = vmatprep.mubr.bf16.mxu0 %v5583
    %9346 = vmatmul.mubr.bf16.gmra.mrb[0].mxu0 %v5582
    %v9347 = vpop.f32.mrb[0].mxu0
    %v9348 = vadd.f32 %v9307, %v9347
    %v9349 = vpop.f32.mrb[0].mxu0
    %v9350 = vadd.f32 %v9309, %v9349
    %v9351 = vpop.f32.mrb[0].mxu0
    %v9352 = vpop.f32.mrb[0].mxu0
    %9353 = vdwg.mxu0
    %v9354 = vpack.c.bf16 %v8856, %v8856
    %v9355 = vpack.c.bf16 %v8858, %v8858
    %v9356 = vpack.c.bf16 %v9020, %v9020
    %v9357 = vpack.c.bf16 %v9022, %v9022
    %v9358 = vpack.c.bf16 %v9184, %v9184
    %v9359 = vpack.c.bf16 %v9186, %v9186
    %v9360 = vpack.c.bf16 %v9348, %v9348
    %v9361 = vpack.c.bf16 %v9350, %v9350
    %v9362 = vld [vmem:[#allocation20] sm:$0xf]
    %v9363 = vld [vmem:[#allocation20 + $0x4] sm:$0xf]
    %v9364 = vld [vmem:[#allocation20 + $0x8] sm:$0xf]
    %v9365 = vld [vmem:[#allocation20 + $0xc] sm:$0xf]
    %v9366 = vld [vmem:[#allocation20 + $0x10] sm:$0xf]
    %v9367 = vld [vmem:[#allocation20 + $0x14] sm:$0xf]
    %v9368 = vld [vmem:[#allocation20 + $0x18] sm:$0xf]
    %v9369 = vld [vmem:[#allocation20 + $0x1c] sm:$0xf]
    %v9370 = vld [vmem:[#allocation20 + $0x20] sm:$0xf]
    %v9371 = vld [vmem:[#allocation20 + $0x24] sm:$0xf]
    %v9372 = vld [vmem:[#allocation20 + $0x28] sm:$0xf]
    %v9373 = vld [vmem:[#allocation20 + $0x2c] sm:$0xf]
    %v9374 = vld [vmem:[#allocation20 + $0x30] sm:$0xf]
    %v9375 = vld [vmem:[#allocation20 + $0x34] sm:$0xf]
    %v9376 = vld [vmem:[#allocation20 + $0x38] sm:$0xf]
    %v9377 = vld [vmem:[#allocation20 + $0x3c] sm:$0xf]
    %v9378 = vld [vmem:[#allocation20 + $0x40] sm:$0xf]
    %v9379 = vld [vmem:[#allocation20 + $0x44] sm:$0xf]
    %v9380 = vld [vmem:[#allocation20 + $0x48] sm:$0xf]
    %v9381 = vld [vmem:[#allocation20 + $0x4c] sm:$0xf]
    %v9382 = vld [vmem:[#allocation20 + $0x50] sm:$0xf]
    %v9383 = vld [vmem:[#allocation20 + $0x54] sm:$0xf]
    %v9384 = vld [vmem:[#allocation20 + $0x58] sm:$0xf]
    %v9385 = vld [vmem:[#allocation20 + $0x5c] sm:$0xf]
    %v9386 = vld [vmem:[#allocation20 + $0x60] sm:$0xf]
    %v9387 = vld [vmem:[#allocation20 + $0x64] sm:$0xf]
    %v9388 = vld [vmem:[#allocation20 + $0x68] sm:$0xf]
    %v9389 = vld [vmem:[#allocation20 + $0x6c] sm:$0xf]
    %v9390 = vld [vmem:[#allocation20 + $0x70] sm:$0xf]
    %v9391 = vld [vmem:[#allocation20 + $0x74] sm:$0xf]
    %v9392 = vld [vmem:[#allocation20 + $0x78] sm:$0xf]
    %v9393 = vld [vmem:[#allocation20 + $0x7c] sm:$0xf]
    %v9394 = vld [vmem:[#allocation20 + $0x80] sm:$0xf]
    %v9395 = vld [vmem:[#allocation20 + $0x84] sm:$0xf]
    %v9396 = vld [vmem:[#allocation20 + $0x88] sm:$0xf]
    %v9397 = vld [vmem:[#allocation20 + $0x8c] sm:$0xf]
    %v9398 = vld [vmem:[#allocation20 + $0x90] sm:$0xf]
    %v9399 = vld [vmem:[#allocation20 + $0x94] sm:$0xf]
    %v9400 = vld [vmem:[#allocation20 + $0x98] sm:$0xf]
    %v9401 = vld [vmem:[#allocation20 + $0x9c] sm:$0xf]
    %v9402 = vld [vmem:[#allocation20 + $0xa0] sm:$0xf]
    %v9403 = vld [vmem:[#allocation20 + $0xa4] sm:$0xf]
    %v9404 = vld [vmem:[#allocation20 + $0xa8] sm:$0xf]
    %v9405 = vld [vmem:[#allocation20 + $0xac] sm:$0xf]
    %v9406 = vld [vmem:[#allocation20 + $0xb0] sm:$0xf]
    %v9407 = vld [vmem:[#allocation20 + $0xb4] sm:$0xf]
    %v9408 = vld [vmem:[#allocation20 + $0xb8] sm:$0xf]
    %v9409 = vld [vmem:[#allocation20 + $0xbc] sm:$0xf]
    %v9410 = vld [vmem:[#allocation20 + $0xc0] sm:$0xf]
    %v9411 = vld [vmem:[#allocation20 + $0xc4] sm:$0xf]
    %v9412 = vld [vmem:[#allocation20 + $0xc8] sm:$0xf]
    %v9413 = vld [vmem:[#allocation20 + $0xcc] sm:$0xf]
    %v9414 = vld [vmem:[#allocation20 + $0xd0] sm:$0xf]
    %v9415 = vld [vmem:[#allocation20 + $0xd4] sm:$0xf]
    %v9416 = vld [vmem:[#allocation20 + $0xd8] sm:$0xf]
    %v9417 = vld [vmem:[#allocation20 + $0xdc] sm:$0xf]
    %v9418 = vld [vmem:[#allocation20 + $0xe0] sm:$0xf]
    %v9419 = vld [vmem:[#allocation20 + $0xe4] sm:$0xf]
    %v9420 = vld [vmem:[#allocation20 + $0xe8] sm:$0xf]
    %v9421 = vld [vmem:[#allocation20 + $0xec] sm:$0xf]
    %v9422 = vld [vmem:[#allocation20 + $0xf0] sm:$0xf]
    %v9423 = vld [vmem:[#allocation20 + $0xf4] sm:$0xf]
    %v9424 = vld [vmem:[#allocation20 + $0xf8] sm:$0xf]
    %v9425 = vld [vmem:[#allocation20 + $0xfc] sm:$0xf]
    %v9426 = vld [vmem:[#allocation20 + $0x100] sm:$0xf]
    %v9427 = vld [vmem:[#allocation20 + $0x104] sm:$0xf]
    %v9428 = vld [vmem:[#allocation20 + $0x108] sm:$0xf]
    %v9429 = vld [vmem:[#allocation20 + $0x10c] sm:$0xf]
    %v9430 = vld [vmem:[#allocation20 + $0x110] sm:$0xf]
    %v9431 = vld [vmem:[#allocation20 + $0x114] sm:$0xf]
    %v9432 = vld [vmem:[#allocation20 + $0x118] sm:$0xf]
    %v9433 = vld [vmem:[#allocation20 + $0x11c] sm:$0xf]
    %v9434 = vld [vmem:[#allocation20 + $0x120] sm:$0xf]
    %v9435 = vld [vmem:[#allocation20 + $0x124] sm:$0xf]
    %v9436 = vld [vmem:[#allocation20 + $0x128] sm:$0xf]
    %v9437 = vld [vmem:[#allocation20 + $0x12c] sm:$0xf]
    %v9438 = vld [vmem:[#allocation20 + $0x130] sm:$0xf]
    %v9439 = vld [vmem:[#allocation20 + $0x134] sm:$0xf]
    %v9440 = vld [vmem:[#allocation20 + $0x138] sm:$0xf]
    %v9441 = vld [vmem:[#allocation20 + $0x13c] sm:$0xf]
    %v9442 = vld [vmem:[#allocation20 + $0x140] sm:$0xf]
    %v9443 = vld [vmem:[#allocation20 + $0x144] sm:$0xf]
    %v9444 = vld [vmem:[#allocation20 + $0x148] sm:$0xf]
    %v9445 = vld [vmem:[#allocation20 + $0x14c] sm:$0xf]
    %v9446 = vld [vmem:[#allocation20 + $0x150] sm:$0xf]
    %v9447 = vld [vmem:[#allocation20 + $0x154] sm:$0xf]
    %v9448 = vld [vmem:[#allocation20 + $0x158] sm:$0xf]
    %v9449 = vld [vmem:[#allocation20 + $0x15c] sm:$0xf]
    %v9450 = vld [vmem:[#allocation20 + $0x160] sm:$0xf]
    %v9451 = vld [vmem:[#allocation20 + $0x164] sm:$0xf]
    %v9452 = vld [vmem:[#allocation20 + $0x168] sm:$0xf]
    %v9453 = vld [vmem:[#allocation20 + $0x16c] sm:$0xf]
    %v9454 = vld [vmem:[#allocation20 + $0x170] sm:$0xf]
    %v9455 = vld [vmem:[#allocation20 + $0x174] sm:$0xf]
    %v9456 = vld [vmem:[#allocation20 + $0x178] sm:$0xf]
    %v9457 = vld [vmem:[#allocation20 + $0x17c] sm:$0xf]
    %v9458 = vld [vmem:[#allocation20 + $0x180] sm:$0xf]
    %v9459 = vld [vmem:[#allocation20 + $0x184] sm:$0xf]
    %v9460 = vld [vmem:[#allocation20 + $0x188] sm:$0xf]
    %v9461 = vld [vmem:[#allocation20 + $0x18c] sm:$0xf]
    %v9462 = vld [vmem:[#allocation20 + $0x190] sm:$0xf]
    %v9463 = vld [vmem:[#allocation20 + $0x194] sm:$0xf]
    %v9464 = vld [vmem:[#allocation20 + $0x198] sm:$0xf]
    %v9465 = vld [vmem:[#allocation20 + $0x19c] sm:$0xf]
    %v9466 = vld [vmem:[#allocation20 + $0x1a0] sm:$0xf]
    %v9467 = vld [vmem:[#allocation20 + $0x1a4] sm:$0xf]
    %v9468 = vld [vmem:[#allocation20 + $0x1a8] sm:$0xf]
    %v9469 = vld [vmem:[#allocation20 + $0x1ac] sm:$0xf]
    %v9470 = vld [vmem:[#allocation20 + $0x1b0] sm:$0xf]
    %v9471 = vld [vmem:[#allocation20 + $0x1b4] sm:$0xf]
    %v9472 = vld [vmem:[#allocation20 + $0x1b8] sm:$0xf]
    %v9473 = vld [vmem:[#allocation20 + $0x1bc] sm:$0xf]
    %v9474 = vld [vmem:[#allocation20 + $0x1c0] sm:$0xf]
    %v9475 = vld [vmem:[#allocation20 + $0x1c4] sm:$0xf]
    %v9476 = vld [vmem:[#allocation20 + $0x1c8] sm:$0xf]
    %v9477 = vld [vmem:[#allocation20 + $0x1cc] sm:$0xf]
    %v9478 = vld [vmem:[#allocation20 + $0x1d0] sm:$0xf]
    %v9479 = vld [vmem:[#allocation20 + $0x1d4] sm:$0xf]
    %v9480 = vld [vmem:[#allocation20 + $0x1d8] sm:$0xf]
    %v9481 = vld [vmem:[#allocation20 + $0x1dc] sm:$0xf]
    %v9482 = vld [vmem:[#allocation20 + $0x1e0] sm:$0xf]
    %v9483 = vld [vmem:[#allocation20 + $0x1e4] sm:$0xf]
    %v9484 = vld [vmem:[#allocation20 + $0x1e8] sm:$0xf]
    %v9485 = vld [vmem:[#allocation20 + $0x1ec] sm:$0xf]
    %v9486 = vld [vmem:[#allocation20 + $0x1f0] sm:$0xf]
    %v9487 = vld [vmem:[#allocation20 + $0x1f4] sm:$0xf]
    %v9488 = vld [vmem:[#allocation20 + $0x1f8] sm:$0xf]
    %v9489 = vld [vmem:[#allocation20 + $0x1fc] sm:$0xf]
    %v9490 = vld [vmem:[#allocation22] sm:$0x1]
    %v9492 = vlaneseq
    %v9493 = vshrl.u32 %v9492, 7
    %v9494 = vsub.s32 0, %v9493
    %v9495 = vrot.slane %v9490, %v9494
    %v9625 = vunpack.c.l.b16 %v9362
    %v9626 = vunpack.c.l.b16 %v9363
    %v9627 = vunpack.c.l.b16 %v9364
    %v9628 = vunpack.c.l.b16 %v9365
    %v9629 = vunpack.c.l.b16 %v9366
    %v9630 = vunpack.c.l.b16 %v9367
    %v9631 = vunpack.c.l.b16 %v9368
    %v9632 = vunpack.c.l.b16 %v9369
    %v9633 = vunpack.c.l.b16 %v9370
    %v9634 = vunpack.c.l.b16 %v9371
    %v9635 = vunpack.c.l.b16 %v9372
    %v9636 = vunpack.c.l.b16 %v9373
    %v9637 = vunpack.c.l.b16 %v9374
    %v9638 = vunpack.c.l.b16 %v9375
    %v9639 = vunpack.c.l.b16 %v9376
    %v9640 = vunpack.c.l.b16 %v9377
    %v9641 = vunpack.c.l.b16 %v9378
    %v9642 = vunpack.c.l.b16 %v9379
    %v9643 = vunpack.c.l.b16 %v9380
    %v9644 = vunpack.c.l.b16 %v9381
    %v9645 = vunpack.c.l.b16 %v9382
    %v9646 = vunpack.c.l.b16 %v9383
    %v9647 = vunpack.c.l.b16 %v9384
    %v9648 = vunpack.c.l.b16 %v9385
    %v9649 = vunpack.c.l.b16 %v9386
    %v9650 = vunpack.c.l.b16 %v9387
    %v9651 = vunpack.c.l.b16 %v9388
    %v9652 = vunpack.c.l.b16 %v9389
    %v9653 = vunpack.c.l.b16 %v9390
    %v9654 = vunpack.c.l.b16 %v9391
    %v9655 = vunpack.c.l.b16 %v9392
    %v9656 = vunpack.c.l.b16 %v9393
    %v9657 = vunpack.c.l.b16 %v9394
    %v9658 = vunpack.c.l.b16 %v9395
    %v9659 = vunpack.c.l.b16 %v9396
    %v9660 = vunpack.c.l.b16 %v9397
    %v9661 = vunpack.c.l.b16 %v9398
    %v9662 = vunpack.c.l.b16 %v9399
    %v9663 = vunpack.c.l.b16 %v9400
    %v9664 = vunpack.c.l.b16 %v9401
    %v9665 = vunpack.c.l.b16 %v9402
    %v9666 = vunpack.c.l.b16 %v9403
    %v9667 = vunpack.c.l.b16 %v9404
    %v9668 = vunpack.c.l.b16 %v9405
    %v9669 = vunpack.c.l.b16 %v9406
    %v9670 = vunpack.c.l.b16 %v9407
    %v9671 = vunpack.c.l.b16 %v9408
    %v9672 = vunpack.c.l.b16 %v9409
    %v9673 = vunpack.c.l.b16 %v9410
    %v9674 = vunpack.c.l.b16 %v9411
    %v9675 = vunpack.c.l.b16 %v9412
    %v9676 = vunpack.c.l.b16 %v9413
    %v9677 = vunpack.c.l.b16 %v9414
    %v9678 = vunpack.c.l.b16 %v9415
    %v9679 = vunpack.c.l.b16 %v9416
    %v9680 = vunpack.c.l.b16 %v9417
    %v9681 = vunpack.c.l.b16 %v9418
    %v9682 = vunpack.c.l.b16 %v9419
    %v9683 = vunpack.c.l.b16 %v9420
    %v9684 = vunpack.c.l.b16 %v9421
    %v9685 = vunpack.c.l.b16 %v9422
    %v9686 = vunpack.c.l.b16 %v9423
    %v9687 = vunpack.c.l.b16 %v9424
    %v9688 = vunpack.c.l.b16 %v9425
    %v9689 = vunpack.c.l.b16 %v9426
    %v9690 = vunpack.c.l.b16 %v9427
    %v9691 = vunpack.c.l.b16 %v9428
    %v9692 = vunpack.c.l.b16 %v9429
    %v9693 = vunpack.c.l.b16 %v9430
    %v9694 = vunpack.c.l.b16 %v9431
    %v9695 = vunpack.c.l.b16 %v9432
    %v9696 = vunpack.c.l.b16 %v9433
    %v9697 = vunpack.c.l.b16 %v9434
    %v9698 = vunpack.c.l.b16 %v9435
    %v9699 = vunpack.c.l.b16 %v9436
    %v9700 = vunpack.c.l.b16 %v9437
    %v9701 = vunpack.c.l.b16 %v9438
    %v9702 = vunpack.c.l.b16 %v9439
    %v9703 = vunpack.c.l.b16 %v9440
    %v9704 = vunpack.c.l.b16 %v9441
    %v9705 = vunpack.c.l.b16 %v9442
    %v9706 = vunpack.c.l.b16 %v9443
    %v9707 = vunpack.c.l.b16 %v9444
    %v9708 = vunpack.c.l.b16 %v9445
    %v9709 = vunpack.c.l.b16 %v9446
    %v9710 = vunpack.c.l.b16 %v9447
    %v9711 = vunpack.c.l.b16 %v9448
    %v9712 = vunpack.c.l.b16 %v9449
    %v9713 = vunpack.c.l.b16 %v9450
    %v9714 = vunpack.c.l.b16 %v9451
    %v9715 = vunpack.c.l.b16 %v9452
    %v9716 = vunpack.c.l.b16 %v9453
    %v9717 = vunpack.c.l.b16 %v9454
    %v9718 = vunpack.c.l.b16 %v9455
    %v9719 = vunpack.c.l.b16 %v9456
    %v9720 = vunpack.c.l.b16 %v9457
    %v9721 = vunpack.c.l.b16 %v9458
    %v9722 = vunpack.c.l.b16 %v9459
    %v9723 = vunpack.c.l.b16 %v9460
    %v9724 = vunpack.c.l.b16 %v9461
    %v9725 = vunpack.c.l.b16 %v9462
    %v9726 = vunpack.c.l.b16 %v9463
    %v9727 = vunpack.c.l.b16 %v9464
    %v9728 = vunpack.c.l.b16 %v9465
    %v9729 = vunpack.c.l.b16 %v9466
    %v9730 = vunpack.c.l.b16 %v9467
    %v9731 = vunpack.c.l.b16 %v9468
    %v9732 = vunpack.c.l.b16 %v9469
    %v9733 = vunpack.c.l.b16 %v9470
    %v9734 = vunpack.c.l.b16 %v9471
    %v9735 = vunpack.c.l.b16 %v9472
    %v9736 = vunpack.c.l.b16 %v9473
    %v9737 = vunpack.c.l.b16 %v9474
    %v9738 = vunpack.c.l.b16 %v9475
    %v9739 = vunpack.c.l.b16 %v9476
    %v9740 = vunpack.c.l.b16 %v9477
    %v9741 = vunpack.c.l.b16 %v9478
    %v9742 = vunpack.c.l.b16 %v9479
    %v9743 = vunpack.c.l.b16 %v9480
    %v9744 = vunpack.c.l.b16 %v9481
    %v9745 = vunpack.c.l.b16 %v9482
    %v9746 = vunpack.c.l.b16 %v9483
    %v9747 = vunpack.c.l.b16 %v9484
    %v9748 = vunpack.c.l.b16 %v9485
    %v9749 = vunpack.c.l.b16 %v9486
    %v9750 = vunpack.c.l.b16 %v9487
    %v9751 = vunpack.c.l.b16 %v9488
    %v9752 = vunpack.c.l.b16 %v9489
    %v9753 = vpack.c.b16 %v9626, %v9625
    %v9754 = vpack.c.b16 %v9628, %v9627
    %v9755 = vpack.c.b16 %v9630, %v9629
    %v9756 = vpack.c.b16 %v9632, %v9631
    %v9757 = vpack.c.b16 %v9634, %v9633
    %v9758 = vpack.c.b16 %v9636, %v9635
    %v9759 = vpack.c.b16 %v9638, %v9637
    %v9760 = vpack.c.b16 %v9640, %v9639
    %v9761 = vpack.c.b16 %v9642, %v9641
    %v9762 = vpack.c.b16 %v9644, %v9643
    %v9763 = vpack.c.b16 %v9646, %v9645
    %v9764 = vpack.c.b16 %v9648, %v9647
    %v9765 = vpack.c.b16 %v9650, %v9649
    %v9766 = vpack.c.b16 %v9652, %v9651
    %v9767 = vpack.c.b16 %v9654, %v9653
    %v9768 = vpack.c.b16 %v9656, %v9655
    %v9769 = vpack.c.b16 %v9658, %v9657
    %v9770 = vpack.c.b16 %v9660, %v9659
    %v9771 = vpack.c.b16 %v9662, %v9661
    %v9772 = vpack.c.b16 %v9664, %v9663
    %v9773 = vpack.c.b16 %v9666, %v9665
    %v9774 = vpack.c.b16 %v9668, %v9667
    %v9775 = vpack.c.b16 %v9670, %v9669
    %v9776 = vpack.c.b16 %v9672, %v9671
    %v9777 = vpack.c.b16 %v9674, %v9673
    %v9778 = vpack.c.b16 %v9676, %v9675
    %v9779 = vpack.c.b16 %v9678, %v9677
    %v9780 = vpack.c.b16 %v9680, %v9679
    %v9781 = vpack.c.b16 %v9682, %v9681
    %v9782 = vpack.c.b16 %v9684, %v9683
    %v9783 = vpack.c.b16 %v9686, %v9685
    %v9784 = vpack.c.b16 %v9688, %v9687
    %v9785 = vpack.c.b16 %v9690, %v9689
    %v9786 = vpack.c.b16 %v9692, %v9691
    %v9787 = vpack.c.b16 %v9694, %v9693
    %v9788 = vpack.c.b16 %v9696, %v9695
    %v9789 = vpack.c.b16 %v9698, %v9697
    %v9790 = vpack.c.b16 %v9700, %v9699
    %v9791 = vpack.c.b16 %v9702, %v9701
    %v9792 = vpack.c.b16 %v9704, %v9703
    %v9793 = vpack.c.b16 %v9706, %v9705
    %v9794 = vpack.c.b16 %v9708, %v9707
    %v9795 = vpack.c.b16 %v9710, %v9709
    %v9796 = vpack.c.b16 %v9712, %v9711
    %v9797 = vpack.c.b16 %v9714, %v9713
    %v9798 = vpack.c.b16 %v9716, %v9715
    %v9799 = vpack.c.b16 %v9718, %v9717
    %v9800 = vpack.c.b16 %v9720, %v9719
    %v9801 = vpack.c.b16 %v9722, %v9721
    %v9802 = vpack.c.b16 %v9724, %v9723
    %v9803 = vpack.c.b16 %v9726, %v9725
    %v9804 = vpack.c.b16 %v9728, %v9727
    %v9805 = vpack.c.b16 %v9730, %v9729
    %v9806 = vpack.c.b16 %v9732, %v9731
    %v9807 = vpack.c.b16 %v9734, %v9733
    %v9808 = vpack.c.b16 %v9736, %v9735
    %v9809 = vpack.c.b16 %v9738, %v9737
    %v9810 = vpack.c.b16 %v9740, %v9739
    %v9811 = vpack.c.b16 %v9742, %v9741
    %v9812 = vpack.c.b16 %v9744, %v9743
    %v9813 = vpack.c.b16 %v9746, %v9745
    %v9814 = vpack.c.b16 %v9748, %v9747
    %v9815 = vpack.c.b16 %v9750, %v9749
    %v9816 = vpack.c.b16 %v9752, %v9751
    %9881 = vmatprep.subr.bf16.mxu0 0
    %9882 = vmatpush1.bf16.msra.mxu0 %v9753
    %9883 = vmatprep.subr.bf16.mxu0 0
    %9884 = vmatpush1.bf16.msra.mxu0 %v9754
    %9885 = vmatprep.subr.bf16.mxu0 0
    %9886 = vmatpush1.bf16.msra.mxu0 %v9755
    %9887 = vmatprep.subr.bf16.mxu0 0
    %9888 = vmatpush1.bf16.msra.mxu0 %v9756
    %9889 = vmatprep.subr.bf16.mxu0 0
    %9890 = vmatpush1.bf16.msra.mxu0 %v9757
    %9891 = vmatprep.subr.bf16.mxu0 0
    %9892 = vmatpush1.bf16.msra.mxu0 %v9758
    %9893 = vmatprep.subr.bf16.mxu0 0
    %9894 = vmatpush1.bf16.msra.mxu0 %v9759
    %9895 = vmatprep.subr.bf16.mxu0 0
    %9896 = vmatpush1.bf16.msra.mxu0 %v9760
    %9897 = vmatprep.subr.bf16.mxu0 0
    %9898 = vmatpush1.bf16.msra.mxu0 %v9761
    %9899 = vmatprep.subr.bf16.mxu0 0
    %9900 = vmatpush1.bf16.msra.mxu0 %v9762
    %9901 = vmatprep.subr.bf16.mxu0 0
    %9902 = vmatpush1.bf16.msra.mxu0 %v9763
    %9903 = vmatprep.subr.bf16.mxu0 0
    %9904 = vmatpush1.bf16.msra.mxu0 %v9764
    %9905 = vmatprep.subr.bf16.mxu0 0
    %9906 = vmatpush1.bf16.msra.mxu0 %v9765
    %9907 = vmatprep.subr.bf16.mxu0 0
    %9908 = vmatpush1.bf16.msra.mxu0 %v9766
    %9909 = vmatprep.subr.bf16.mxu0 0
    %9910 = vmatpush1.bf16.msra.mxu0 %v9767
    %9911 = vmatprep.subr.bf16.mxu0 0
    %9912 = vmatpush1.bf16.msra.mxu0 %v9768
    %9913 = vmatprep.mubr.bf16.mxu0 %v9355
    %9914 = vmatmul.mubr.bf16.gmra.mrb[0].mxu0 %v9354
    %v9915 = vpop.f32.mrb[0].mxu0
    %v9916 = vadd.f32 %v9495, %v9915
    %v9917 = vpop.f32.mrb[0].mxu0
    %v9918 = vpop.f32.mrb[0].mxu0
    %v9919 = vpop.f32.mrb[0].mxu0
    %9920 = vdwg.mxu0
    %9921 = vmatprep.subr.bf16.mxu0 0
    %9922 = vmatpush1.bf16.msra.mxu0 %v9769
    %9923 = vmatprep.subr.bf16.mxu0 0
    %9924 = vmatpush1.bf16.msra.mxu0 %v9770
    %9925 = vmatprep.subr.bf16.mxu0 0
    %9926 = vmatpush1.bf16.msra.mxu0 %v9771
    %9927 = vmatprep.subr.bf16.mxu0 0
    %9928 = vmatpush1.bf16.msra.mxu0 %v9772
    %9929 = vmatprep.subr.bf16.mxu0 0
    %9930 = vmatpush1.bf16.msra.mxu0 %v9773
    %9931 = vmatprep.subr.bf16.mxu0 0
    %9932 = vmatpush1.bf16.msra.mxu0 %v9774
    %9933 = vmatprep.subr.bf16.mxu0 0
    %9934 = vmatpush1.bf16.msra.mxu0 %v9775
    %9935 = vmatprep.subr.bf16.mxu0 0
    %9936 = vmatpush1.bf16.msra.mxu0 %v9776
    %9937 = vmatprep.subr.bf16.mxu0 0
    %9938 = vmatpush1.bf16.msra.mxu0 %v9777
    %9939 = vmatprep.subr.bf16.mxu0 0
    %9940 = vmatpush1.bf16.msra.mxu0 %v9778
    %9941 = vmatprep.subr.bf16.mxu0 0
    %9942 = vmatpush1.bf16.msra.mxu0 %v9779
    %9943 = vmatprep.subr.bf16.mxu0 0
    %9944 = vmatpush1.bf16.msra.mxu0 %v9780
    %9945 = vmatprep.subr.bf16.mxu0 0
    %9946 = vmatpush1.bf16.msra.mxu0 %v9781
    %9947 = vmatprep.subr.bf16.mxu0 0
    %9948 = vmatpush1.bf16.msra.mxu0 %v9782
    %9949 = vmatprep.subr.bf16.mxu0 0
    %9950 = vmatpush1.bf16.msra.mxu0 %v9783
    %9951 = vmatprep.subr.bf16.mxu0 0
    %9952 = vmatpush1.bf16.msra.mxu0 %v9784
    %9953 = vmatprep.mubr.bf16.mxu0 %v9357
    %9954 = vmatmul.mubr.bf16.gmra.mrb[0].mxu0 %v9356
    %v9955 = vpop.f32.mrb[0].mxu0
    %v9956 = vadd.f32 %v9916, %v9955
    %v9957 = vpop.f32.mrb[0].mxu0
    %v9958 = vpop.f32.mrb[0].mxu0
    %v9959 = vpop.f32.mrb[0].mxu0
    %9960 = vdwg.mxu0
    %9961 = vmatprep.subr.bf16.mxu0 0
    %9962 = vmatpush1.bf16.msra.mxu0 %v9785
    %9963 = vmatprep.subr.bf16.mxu0 0
    %9964 = vmatpush1.bf16.msra.mxu0 %v9786
    %9965 = vmatprep.subr.bf16.mxu0 0
    %9966 = vmatpush1.bf16.msra.mxu0 %v9787
    %9967 = vmatprep.subr.bf16.mxu0 0
    %9968 = vmatpush1.bf16.msra.mxu0 %v9788
    %9969 = vmatprep.subr.bf16.mxu0 0
    %9970 = vmatpush1.bf16.msra.mxu0 %v9789
    %9971 = vmatprep.subr.bf16.mxu0 0
    %9972 = vmatpush1.bf16.msra.mxu0 %v9790
    %9973 = vmatprep.subr.bf16.mxu0 0
    %9974 = vmatpush1.bf16.msra.mxu0 %v9791
    %9975 = vmatprep.subr.bf16.mxu0 0
    %9976 = vmatpush1.bf16.msra.mxu0 %v9792
    %9977 = vmatprep.subr.bf16.mxu0 0
    %9978 = vmatpush1.bf16.msra.mxu0 %v9793
    %9979 = vmatprep.subr.bf16.mxu0 0
    %9980 = vmatpush1.bf16.msra.mxu0 %v9794
    %9981 = vmatprep.subr.bf16.mxu0 0
    %9982 = vmatpush1.bf16.msra.mxu0 %v9795
    %9983 = vmatprep.subr.bf16.mxu0 0
    %9984 = vmatpush1.bf16.msra.mxu0 %v9796
    %9985 = vmatprep.subr.bf16.mxu0 0
    %9986 = vmatpush1.bf16.msra.mxu0 %v9797
    %9987 = vmatprep.subr.bf16.mxu0 0
    %9988 = vmatpush1.bf16.msra.mxu0 %v9798
    %9989 = vmatprep.subr.bf16.mxu0 0
    %9990 = vmatpush1.bf16.msra.mxu0 %v9799
    %9991 = vmatprep.subr.bf16.mxu0 0
    %9992 = vmatpush1.bf16.msra.mxu0 %v9800
    %9993 = vmatprep.mubr.bf16.mxu0 %v9359
    %9994 = vmatmul.mubr.bf16.gmra.mrb[0].mxu0 %v9358
    %v9995 = vpop.f32.mrb[0].mxu0
    %v9996 = vadd.f32 %v9956, %v9995
    %v9997 = vpop.f32.mrb[0].mxu0
    %v9998 = vpop.f32.mrb[0].mxu0
    %v9999 = vpop.f32.mrb[0].mxu0
    %10000 = vdwg.mxu0
    %10001 = vmatprep.subr.bf16.mxu0 0
    %10002 = vmatpush1.bf16.msra.mxu0 %v9801
    %10003 = vmatprep.subr.bf16.mxu0 0
    %10004 = vmatpush1.bf16.msra.mxu0 %v9802
    %10005 = vmatprep.subr.bf16.mxu0 0
    %10006 = vmatpush1.bf16.msra.mxu0 %v9803
    %10007 = vmatprep.subr.bf16.mxu0 0
    %10008 = vmatpush1.bf16.msra.mxu0 %v9804
    %10009 = vmatprep.subr.bf16.mxu0 0
    %10010 = vmatpush1.bf16.msra.mxu0 %v9805
    %10011 = vmatprep.subr.bf16.mxu0 0
    %10012 = vmatpush1.bf16.msra.mxu0 %v9806
    %10013 = vmatprep.subr.bf16.mxu0 0
    %10014 = vmatpush1.bf16.msra.mxu0 %v9807
    %10015 = vmatprep.subr.bf16.mxu0 0
    %10016 = vmatpush1.bf16.msra.mxu0 %v9808
    %10017 = vmatprep.subr.bf16.mxu0 0
    %10018 = vmatpush1.bf16.msra.mxu0 %v9809
    %10019 = vmatprep.subr.bf16.mxu0 0
    %10020 = vmatpush1.bf16.msra.mxu0 %v9810
    %10021 = vmatprep.subr.bf16.mxu0 0
    %10022 = vmatpush1.bf16.msra.mxu0 %v9811
    %10023 = vmatprep.subr.bf16.mxu0 0
    %10024 = vmatpush1.bf16.msra.mxu0 %v9812
    %10025 = vmatprep.subr.bf16.mxu0 0
    %10026 = vmatpush1.bf16.msra.mxu0 %v9813
    %10027 = vmatprep.subr.bf16.mxu0 0
    %10028 = vmatpush1.bf16.msra.mxu0 %v9814
    %10029 = vmatprep.subr.bf16.mxu0 0
    %10030 = vmatpush1.bf16.msra.mxu0 %v9815
    %10031 = vmatprep.subr.bf16.mxu0 0
    %10032 = vmatpush1.bf16.msra.mxu0 %v9816
    %10033 = vmatprep.mubr.bf16.mxu0 %v9361
    %10034 = vmatmul.mubr.bf16.gmra.mrb[0].mxu0 %v9360
    %v10035 = vpop.f32.mrb[0].mxu0
    %v10036 = vadd.f32 %v9996, %v10035
    %v10037 = vpop.f32.mrb[0].mxu0
    %v10038 = vpop.f32.mrb[0].mxu0
    %v10039 = vpop.f32.mrb[0].mxu0
    %10040 = vdwg.mxu0
    %v10041 = vxor.u32 %v10036, 2147483648
    %v10042 = vmul.f32 %v10041, 1.442695
    %v10043 = vpow.pop %v10042
    %v10044 = vadd.f32 %v10043, 1.0
    %v10045 = vrcp.pop %v10044
    %v10046 = vmul.f32 1.0, %v10045
    %10047 = vst [vmem:[#allocation24] sm:$0xff] %v10046
    // Predicated region
    $region106: #{tpu_custom_call.1} parent=1 // pred_check
      _
    $region107: #{tpu_custom_call.1} parent=1 // pred_check_branch
      %10049 = sbr.rel (0) target = $region109
    $region108: #{tpu_custom_call.1} parent=1 // pred_region
      %s10051 = ssub.s32 64, 64
      %10052 = vsyncadd [#allocation4], %s10051
      %s10054 = sshll.u32 [#allocation23], 4
      %s10055 = int_to_ptr.vmem [resolvable:$true] %s10054
      %10057 = dma.vmem_to_hbm [thread:$0]  %s10055, 64, %s13, [#allocation4]
    $region109: #{tpu_custom_call.1} parent=1 // pred_fallthru
      _
    // Predicated region
    $region110: #{tpu_custom_call.1} parent=1 // pred_check
      _
    $region111: #{tpu_custom_call.1} parent=1 // pred_check_branch
      %10059 = sbr.rel (0) target = $region113
    $region112: #{tpu_custom_call.1} parent=1 // pred_region
      %s10061 = ssub.s32 128, 128
      %10062 = vsyncadd [#allocation25], %s10061
      %s10064 = sshll.u32 [#allocation24], 4
      %s10065 = int_to_ptr.vmem [resolvable:$true] %s10064
      %10067 = dma.vmem_to_hbm [thread:$0]  %s10065, 128, %s14, [#allocation25]
    $region113: #{tpu_custom_call.1} parent=1 // pred_fallthru
      _
    // Predicated region
    $region114: #{tpu_custom_call.1} parent=1 // pred_check
      _
    $region115: #{tpu_custom_call.1} parent=1 // pred_check_branch
      %10069 = sbr.rel (0) target = $region117
    $region116: #{tpu_custom_call.1} parent=1 // pred_region
      %10070 = dma.done [#allocation4], 64
    $region117: #{tpu_custom_call.1} parent=1 // pred_fallthru
      _
    // Predicated region
    $region118: #{tpu_custom_call.1} parent=1 // pred_check
      _
    $region119: #{tpu_custom_call.1} parent=1 // pred_check_branch
      %10072 = sbr.rel (0) target = $region121
    $region120: #{tpu_custom_call.1} parent=1 // pred_region
      %10073 = dma.done [#allocation25], 128
    $region121: #{tpu_custom_call.1} parent=1 // pred_fallthru
      _
    %10074 = vsyncpa [#allocation3], 1
    %10075 = vsyncpa [#allocation6], 1
    %10076 = vsyncpa [#allocation9], 1
    %10077 = vsyncpa [#allocation12], 1
    %10078 = vsyncpa [#allocation15], 1
    %10079 = vsyncpa [#allocation18], 1
    %10080 = vsyncpa [#allocation21], 1
    %10081 = vsyncpa [#allocation4], 1
    %10082 = vsyncpa [#allocation25], 1

</llo_original>
